<compile_context>
chip_gen: v7x
topology: tpu7x:2x2x1
jax: 0.10.0
libtpu: 0.0.40
codegen_flags: <defaults>
</compile_context>

<pallas_src>
import math

import jax
import jax.numpy as jnp
from jax.experimental import pallas as pl
from jax.experimental.pallas import tpu as pltpu


def _round_up(x, m):
    return ((x + m - 1) // m) * m


def _vmem_capacity_bytes():
    """Physical VMEM per core; conservative 64 MiB (v7x) fallback if unknown."""
    try:
        cap = int(pltpu.get_tpu_info().vmem_capacity_bytes)
        if cap >= 32 * 1024 * 1024:
            return cap
    except Exception:
        pass
    return 64 * 1024 * 1024


def _choose_block_rows(num_rows, budget_rows, row_step):
    """Rows per block: fits budget, multiple of row_step (or full), >=2 blocks
    when splittable so v7x megacore sharding has work on both TensorCores."""
    tn = num_rows if budget_rows >= num_rows else budget_rows
    if num_rows >= 2 * row_step:
        target_blocks = 4 if num_rows >= 4 * row_step else 2
        tn = min(tn, _round_up(pl.cdiv(num_rows, target_blocks), row_step))
    return max(1, tn)


def averaging_sentence_encoder(inputs, word_count, *, max_block_rows=None):
    """inputs: (..., W, E) float; word_count: (...) int -> (..., E) float32."""
    *lead, W, E = inputs.shape
    lead = tuple(lead)
    N = math.prod(lead) if lead else 1

    in_item = jnp.dtype(inputs.dtype).itemsize
    sub_in = 8 if in_item >= 4 else (16 if in_item == 2 else 32)

    cap = _vmem_capacity_bytes()
    vmem_limit = min(int(cap * 0.85), cap - (12 << 20))   # headroom for Mosaic scratch
    budget = int(vmem_limit * 0.75)

    # Precomputed reciprocal of the (zero-filled) word counts.
    wc = word_count.reshape(N)
    inv = 1.0 / jnp.maximum(wc, 1).astype(jnp.float32)    # (N,)

    # --- choose layout -----------------------------------------------------
    G = 1
    if E < 128 and 128 % E == 0 and N % (128 // E) == 0:
        G = 128 // E
    C = G * W * E            # packed input row width
    Co = G * E               # packed output row width
    pool_bytes = 2 * _round_up(C, sub_in) * _round_up(Co, 128) * in_item
    use_packed = (E < 128) and (pool_bytes <= max(budget // 4, 4 << 20))

    if use_packed:
        # ---- packed MXU-pooling path ---------------------------------------
        R = N // G
        row_step = sub_in
        per_row = (2 * _round_up(C, 128) * in_item     # input block, double-buffered
                   + 2 * _round_up(Co, 128) * 4        # f32 output block
                   + 2 * _round_up(Co, 128) * 4)       # f32 reciprocal block
        avail = max(budget - pool_bytes, per_row * row_step)
        budget_rows = max(row_step, (avail // per_row) // row_step * row_step)
        if max_block_rows is not None:
            budget_rows = min(budget_rows,
                              max(row_step, _round_up(max_block_rows, row_step)))
        tn = _choose_block_rows(R, budget_rows, row_step)
        num_blocks = pl.cdiv(R, tn)

        # Free, contiguous reshape: row r packs sentences r*G .. r*G+G-1.
        x2 = inputs.reshape(R, C)
        inv2 = jnp.broadcast_to(inv[:, None], (N, E)).reshape(R, Co)

        # Block-diagonal 0/1 pooling matrix: out[r, g*E+e] = sum_w x[r*G+g, w, e].
        pool_blk = jnp.tile(jnp.eye(E, dtype=inputs.dtype), (W, 1))     # (W*E, E)
        if G > 1:
            pool = jnp.kron(jnp.eye(G, dtype=inputs.dtype), pool_blk)   # (C, Co)
        else:
            pool = pool_blk

        # f32 operands need full-precision MXU passes; bf16/int are exact anyway.
        prec = jax.lax.Precision.HIGHEST if inputs.dtype == jnp.float32 else None

        def kernel(x_ref, p_ref, inv_ref, o_ref):
            s = jnp.dot(x_ref[...], p_ref[...],
                        preferred_element_type=jnp.float32,
                        precision=prec)
            o_ref[...] = s * inv_ref[...]
            # TODO(synk): dropout (p=dropout_) only applies in training mode; this
            # is the inference forward (F.dropout(training=False) == identity).

        out = pl.pallas_call(
            kernel,
            out_shape=jax.ShapeDtypeStruct((R, Co), jnp.float32),
            grid=(num_blocks,),
            in_specs=[
                pl.BlockSpec((tn, C), lambda i: (i, 0)),
                pl.BlockSpec((C, Co), lambda i: (0, 0)),   # resident pooling matrix
                pl.BlockSpec((tn, Co), lambda i: (i, 0)),
            ],
            out_specs=pl.BlockSpec((tn, Co), lambda i: (i, 0)),
            compiler_params=pltpu.CompilerParams(
                dimension_semantics=("parallel",),
                vmem_limit_bytes=vmem_limit,
            ),
        )(x2, pool, inv2)
        return out.reshape(*lead, E)

    # ---- fallback reduce path (E >= 128: already lane-dense) ---------------
    row_step = 8
    Wpad = _round_up(W, sub_in)
    Epad = _round_up(E, 128)
    per_row = 2 * Wpad * Epad * in_item + 2 * Epad * 4 + 2 * Epad * 4
    budget_rows = max(row_step, (budget // per_row) // row_step * row_step)
    if max_block_rows is not None:
        budget_rows = min(budget_rows,
                          max(row_step, _round_up(max_block_rows, row_step)))
    tn = _choose_block_rows(N, budget_rows, row_step)
    num_blocks = pl.cdiv(N, tn)

    x3 = inputs.reshape(N, W, E)
    inv2 = jnp.broadcast_to(inv[:, None], (N, E))

    def kernel(x_ref, inv_ref, o_ref):
        # Short static accumulation over W: no full-block f32 temporary.
        acc = x_ref[:, 0, :].astype(jnp.float32)
        for w in range(1, W):
            acc = acc + x_ref[:, w, :].astype(jnp.float32)
        o_ref[...] = acc * inv_ref[...]
        # TODO(synk): dropout only applies in training mode (identity at eval).

    out = pl.pallas_call(
        kernel,
        out_shape=jax.ShapeDtypeStruct((N, E), jnp.float32),
        grid=(num_blocks,),
        in_specs=[
            pl.BlockSpec((tn, W, E), lambda i: (i, 0, 0)),
            pl.BlockSpec((tn, E), lambda i: (i, 0)),
        ],
        out_specs=pl.BlockSpec((tn, E), lambda i: (i, 0)),
        compiler_params=pltpu.CompilerParams(
            dimension_semantics=("parallel",),
            vmem_limit_bytes=vmem_limit,
        ),
    )(x3, inv2)
    return out.reshape(*lead, E)


def _reference(inputs, word_count):
    wc_f = jnp.where(word_count == 0, 1, word_count).astype(jnp.float32)[..., None]
    return inputs.astype(jnp.float32).sum(axis=-2) / wc_f


def _check(name, inputs, word_count, **kwargs):
    out = jax.block_until_ready(averaging_sentence_encoder(inputs, word_count, **kwargs))
    ref = _reference(inputs, word_count)
    assert out.shape == ref.shape, (name, out.shape, ref.shape)
    assert jnp.allclose(out, ref, atol=1e-4, rtol=1e-4), (
        name, float(jnp.max(jnp.abs(out - ref))))


if __name__ == "__main__":
    key = jax.random.PRNGKey(0)
    k1, k2, k3, k4, k5, k6 = jax.random.split(key, 6)

    # 1) Main spec shapes (packed MXU path, E < 128).
    B, S, W, E = 2, 8, 16, 32
    x = jax.random.normal(k1, (B, S, W, E), dtype=jnp.float32)
    wc = jax.random.randint(k2, (B, S), 0, W + 1, dtype=jnp.int32)   # include zeros
    _check("f32_packed", x, wc)

    # 2) bf16 inputs: native-dtype DMA + MXU accumulate in f32.
    _check("bf16_packed", x.astype(jnp.bfloat16), wc)

    # 3) Non-divisible row count + forced multi-block (partial last block masked).
    B3, S3 = 5, 8                                    # N=40 -> 10 packed rows
    x3 = jax.random.normal(k3, (B3, S3, W, E), dtype=jnp.float32)
    wc3 = jax.random.randint(k4, (B3, S3), 0, W + 1, dtype=jnp.int32)
    _check("f32_partial_block", x3, wc3, max_block_rows=8)

    # 4) Large embedding (E >= 128): lane-dense fallback reduce path.
    B4, S4, W4, E4 = 2, 8, 8, 256
    x4 = jax.random.normal(k5, (B4, S4, W4, E4), dtype=jnp.float32)
    wc4 = jax.random.randint(k6, (B4, S4), 0, W4 + 1, dtype=jnp.int32)
    _check("f32_reduce_path", x4, wc4)

    print("KERNEL_OK")
</pallas_src>

<mosaic_0001>
module attributes {stable_mosaic.version = 11 : i64} {
  func.func @kernel(%arg0: i32, %arg1: memref<4x2048xf32, #tpu.memory_space<vmem>>, %arg2: memref<2048x128xf32, #tpu.memory_space<vmem>>, %arg3: memref<4x128xf32, #tpu.memory_space<vmem>>, %arg4: memref<4x128xf32, #tpu.memory_space<vmem>>) attributes {dimension_semantics = [#tpu.dimension_semantics<parallel>], iteration_bounds = array<i64: 1>, scalar_prefetch = 0 : i64, scratch_operands = 0 : i64, tpu.core_type = #tpu.core_type<tc>, window_params = [{transform_indices = @transform_0, window_bounds = array<i64: 4, 2048>}, {pipeline_mode = #tpu.pipeline_mode<synchronous>, transform_indices = @transform_1, window_bounds = array<i64: 2048, 128>}, {transform_indices = @transform_2, window_bounds = array<i64: 4, 128>}, {transform_indices = @transform_3, window_bounds = array<i64: 4, 128>}]} {
    %c0 = arith.constant 0 : index
    %c0_0 = arith.constant 0 : index
    %0 = vector.load %arg1[%c0, %c0_0] : memref<4x2048xf32, #tpu.memory_space<vmem>>, vector<4x2048xf32>
    %c0_1 = arith.constant 0 : index
    %c0_2 = arith.constant 0 : index
    %1 = vector.load %arg2[%c0_1, %c0_2] : memref<2048x128xf32, #tpu.memory_space<vmem>>, vector<2048x128xf32>
    %cst = arith.constant dense<0.000000e+00> : vector<4x128xf32>
    %2 = tpu.matmul %0, %1, %cst {dimension_numbers = #tpu.dot_dimension_numbers<[1], [0], [0], [1], [0, 0, 1, 1], [], []>, precision = #tpu.contract_precision<fp32>} : vector<4x2048xf32>, vector<2048x128xf32>, vector<4x128xf32> -> vector<4x128xf32>
    %c0_3 = arith.constant 0 : index
    %c0_4 = arith.constant 0 : index
    %3 = vector.load %arg3[%c0_3, %c0_4] : memref<4x128xf32, #tpu.memory_space<vmem>>, vector<4x128xf32>
    %4 = arith.mulf %2, %3 : vector<4x128xf32>
    %c0_5 = arith.constant 0 : index
    %c0_6 = arith.constant 0 : index
    %5 = vector.load %arg4[%c0_5, %c0_6] : memref<4x128xf32, #tpu.memory_space<vmem>>, vector<4x128xf32>
    tpu.vector_store %arg4[%c0_5, %c0_6], %4 {strides = array<i32>} : memref<4x128xf32, #tpu.memory_space<vmem>>, vector<4x128xf32>,
    return
  }
  func.func @transform_0(%arg0: i32) -> (i32, i32) {
    %c0_i32 = arith.constant 0 : i32
    %c0_i32_0 = arith.constant 0 : i32
    return %arg0, %c0_i32 : i32, i32
  }
  func.func @transform_1(%arg0: i32) -> (i32, i32) {
    %c0_i32 = arith.constant 0 : i32
    %c0_i32_0 = arith.constant 0 : i32
    %c0_i32_1 = arith.constant 0 : i32
    return %c0_i32, %c0_i32_0 : i32, i32
  }
  func.func @transform_2(%arg0: i32) -> (i32, i32) {
    %c0_i32 = arith.constant 0 : i32
    %c0_i32_0 = arith.constant 0 : i32
    return %arg0, %c0_i32 : i32, i32
  }
  func.func @transform_3(%arg0: i32) -> (i32, i32) {
    %c0_i32 = arith.constant 0 : i32
    %c0_i32_0 = arith.constant 0 : i32
    return %arg0, %c0_i32 : i32, i32
  }
}

</mosaic_0001>

<llo_original>
// kernel: tpu_custom_call.1
$region0: #{tpu_custom_call.1}
  #allocation0 [shape = 'u32[]', space=smem, size = 0x4, offset = 0x4, fixed_abs, tag = 'smem constant byte address 0x4 - core index']
  #allocation1 [shape = 'u32[144,128]{1,0:T(1,128)}', space=vmem, size = 0x12000, scoped, tag = 'internal scratch']
  %s0 = inlined_call_operand.hbm [shape: f32[4,2048], index: 0, kind: input, shape index: {}]
  %s1 = inlined_call_operand.hbm [shape: f32[2048,128], index: 1, kind: input, shape index: {}]
  %s2 = inlined_call_operand.vmem [shape: f32[4,128], index: 2, kind: input, shape index: {}]
  %s3 = inlined_call_operand.hbm [shape: f32[4,128], index: 3, kind: output, shape index: {}]
  %s4 = sld [smem:[#allocation0]]
  $region30: #{tpu_custom_call.1} parent=0
    _
  %s6 = ssub.s32 1, %s4
  %s7 = scalar_select 0, %s6, %s4
  $region1: #{tpu_custom_call.1} parent=0
    #allocation2 [shape = 'u8[32768]{0}', space=vmem, size = 0x8000, scoped, tag = 'input window, operand 0, single buffered']
    #allocation3 [shape = 's32[1]{0}', space=sflag, size = 0x4, scoped, tag = 'scoped memory for tpu_custom_call.1']
    #allocation4 [shape = 's32[1]{0}', space=sflag, size = 0x4, scoped, tag = 'scoped memory for tpu_custom_call.1']
    #allocation5 [shape = 'u8[1048576]{0}', space=vmem, size = 0x100000, scoped, tag = 'input window, operand 1, single buffered']
    #allocation6 [shape = 's32[1]{0}', space=sflag, size = 0x4, scoped, tag = 'scoped memory for tpu_custom_call.1']
    #allocation7 [shape = 'u8[2048]{0}', space=vmem, size = 0x800, scoped, tag = 'output window, operand 0, single buffered']
    %8 = vsyncpa [#allocation3], 0
    %9 = vsyncpa [#allocation6], 0
    %10 = vsyncpa [#allocation4], 0
    // Predicated region
    $region2: #{tpu_custom_call.1} parent=1 // pred_check
      _
    $region3: #{tpu_custom_call.1} parent=1 // pred_check_branch
      %12 = sbr.rel (0) target = $region5
    $region4: #{tpu_custom_call.1} parent=1 // pred_region
      %s14 = ssub.s32 1024, 1024
      %15 = vsyncadd [#allocation3], %s14
      %s17 = sshll.u32 [#allocation2], 4
      %s18 = int_to_ptr.vmem [resolvable:$true] %s17
      %20 = dma.hbm_to_vmem [thread:$0]  %s0, 1024, %s18, [#allocation3]
    $region5: #{tpu_custom_call.1} parent=1 // pred_fallthru
      _
    // Predicated region
    $region6: #{tpu_custom_call.1} parent=1 // pred_check
      _
    $region7: #{tpu_custom_call.1} parent=1 // pred_check_branch
      %22 = sbr.rel (0) target = $region9
    $region8: #{tpu_custom_call.1} parent=1 // pred_region
      %s24 = ssub.s32 32768, 32768
      %25 = vsyncadd [#allocation6], %s24
      %s26 = sshll.u32 [#allocation5], 4
      %s27 = int_to_ptr.vmem [resolvable:$true] %s26
      %32 = dma.hbm_to_vmem [thread:$0]  %s1, 32768, %s27, [#allocation6], 128, 128, 8
    $region9: #{tpu_custom_call.1} parent=1 // pred_fallthru
      _
    // Predicated region
    $region10: #{tpu_custom_call.1} parent=1 // pred_check
      _
    $region11: #{tpu_custom_call.1} parent=1 // pred_check_branch
      %34 = sbr.rel (0) target = $region13
    $region12: #{tpu_custom_call.1} parent=1 // pred_region
      _
    $region13: #{tpu_custom_call.1} parent=1 // pred_fallthru
      _
    // Predicated region
    $region14: #{tpu_custom_call.1} parent=1 // pred_check
      _
    $region15: #{tpu_custom_call.1} parent=1 // pred_check_branch
      %36 = sbr.rel (0) target = $region17
    $region16: #{tpu_custom_call.1} parent=1 // pred_region
      %37 = dma.done [#allocation3], 1024
    $region17: #{tpu_custom_call.1} parent=1 // pred_fallthru
      _
    // Predicated region
    $region18: #{tpu_custom_call.1} parent=1 // pred_check
      _
    $region19: #{tpu_custom_call.1} parent=1 // pred_check_branch
      %39 = sbr.rel (0) target = $region21
    $region20: #{tpu_custom_call.1} parent=1 // pred_region
      %40 = dma.done [#allocation6], 32768
    $region21: #{tpu_custom_call.1} parent=1 // pred_fallthru
      _
    %v41 = vld [vmem:[#allocation2] sm:$0xff]
    %v42 = vld [vmem:[#allocation2 + $0x8] sm:$0xff]
    %v43 = vld [vmem:[#allocation2 + $0x10] sm:$0xff]
    %v44 = vld [vmem:[#allocation2 + $0x18] sm:$0xff]
    %v45 = vld [vmem:[#allocation2 + $0x20] sm:$0xff]
    %v46 = vld [vmem:[#allocation2 + $0x28] sm:$0xff]
    %v47 = vld [vmem:[#allocation2 + $0x30] sm:$0xff]
    %v48 = vld [vmem:[#allocation2 + $0x38] sm:$0xff]
    %v49 = vld [vmem:[#allocation5] sm:$0xff]
    %v50 = vld [vmem:[#allocation5 + $0x8] sm:$0xff]
    %v51 = vld [vmem:[#allocation5 + $0x10] sm:$0xff]
    %v52 = vld [vmem:[#allocation5 + $0x18] sm:$0xff]
    %v53 = vld [vmem:[#allocation5 + $0x20] sm:$0xff]
    %v54 = vld [vmem:[#allocation5 + $0x28] sm:$0xff]
    %v55 = vld [vmem:[#allocation5 + $0x30] sm:$0xff]
    %v56 = vld [vmem:[#allocation5 + $0x38] sm:$0xff]
    %v57 = vld [vmem:[#allocation5 + $0x40] sm:$0xff]
    %v58 = vld [vmem:[#allocation5 + $0x48] sm:$0xff]
    %v59 = vld [vmem:[#allocation5 + $0x50] sm:$0xff]
    %v60 = vld [vmem:[#allocation5 + $0x58] sm:$0xff]
    %v61 = vld [vmem:[#allocation5 + $0x60] sm:$0xff]
    %v62 = vld [vmem:[#allocation5 + $0x68] sm:$0xff]
    %v63 = vld [vmem:[#allocation5 + $0x70] sm:$0xff]
    %v64 = vld [vmem:[#allocation5 + $0x78] sm:$0xff]
    %v65 = vld [vmem:[#allocation5 + $0x80] sm:$0xff]
    %v66 = vld [vmem:[#allocation5 + $0x88] sm:$0xff]
    %v67 = vld [vmem:[#allocation5 + $0x90] sm:$0xff]
    %v68 = vld [vmem:[#allocation5 + $0x98] sm:$0xff]
    %v69 = vld [vmem:[#allocation5 + $0xa0] sm:$0xff]
    %v70 = vld [vmem:[#allocation5 + $0xa8] sm:$0xff]
    %v71 = vld [vmem:[#allocation5 + $0xb0] sm:$0xff]
    %v72 = vld [vmem:[#allocation5 + $0xb8] sm:$0xff]
    %v73 = vld [vmem:[#allocation5 + $0xc0] sm:$0xff]
    %v74 = vld [vmem:[#allocation5 + $0xc8] sm:$0xff]
    %v75 = vld [vmem:[#allocation5 + $0xd0] sm:$0xff]
    %v76 = vld [vmem:[#allocation5 + $0xd8] sm:$0xff]
    %v77 = vld [vmem:[#allocation5 + $0xe0] sm:$0xff]
    %v78 = vld [vmem:[#allocation5 + $0xe8] sm:$0xff]
    %v79 = vld [vmem:[#allocation5 + $0xf0] sm:$0xff]
    %v80 = vld [vmem:[#allocation5 + $0xf8] sm:$0xff]
    %v81 = vld [vmem:[#allocation5 + $0x100] sm:$0xff]
    %v82 = vld [vmem:[#allocation5 + $0x108] sm:$0xff]
    %v83 = vld [vmem:[#allocation5 + $0x110] sm:$0xff]
    %v84 = vld [vmem:[#allocation5 + $0x118] sm:$0xff]
    %v85 = vld [vmem:[#allocation5 + $0x120] sm:$0xff]
    %v86 = vld [vmem:[#allocation5 + $0x128] sm:$0xff]
    %v87 = vld [vmem:[#allocation5 + $0x130] sm:$0xff]
    %v88 = vld [vmem:[#allocation5 + $0x138] sm:$0xff]
    %v89 = vld [vmem:[#allocation5 + $0x140] sm:$0xff]
    %v90 = vld [vmem:[#allocation5 + $0x148] sm:$0xff]
    %v91 = vld [vmem:[#allocation5 + $0x150] sm:$0xff]
    %v92 = vld [vmem:[#allocation5 + $0x158] sm:$0xff]
    %v93 = vld [vmem:[#allocation5 + $0x160] sm:$0xff]
    %v94 = vld [vmem:[#allocation5 + $0x168] sm:$0xff]
    %v95 = vld [vmem:[#allocation5 + $0x170] sm:$0xff]
    %v96 = vld [vmem:[#allocation5 + $0x178] sm:$0xff]
    %v97 = vld [vmem:[#allocation5 + $0x180] sm:$0xff]
    %v98 = vld [vmem:[#allocation5 + $0x188] sm:$0xff]
    %v99 = vld [vmem:[#allocation5 + $0x190] sm:$0xff]
    %v100 = vld [vmem:[#allocation5 + $0x198] sm:$0xff]
    %v101 = vld [vmem:[#allocation5 + $0x1a0] sm:$0xff]
    %v102 = vld [vmem:[#allocation5 + $0x1a8] sm:$0xff]
    %v103 = vld [vmem:[#allocation5 + $0x1b0] sm:$0xff]
    %v104 = vld [vmem:[#allocation5 + $0x1b8] sm:$0xff]
    %v105 = vld [vmem:[#allocation5 + $0x1c0] sm:$0xff]
    %v106 = vld [vmem:[#allocation5 + $0x1c8] sm:$0xff]
    %v107 = vld [vmem:[#allocation5 + $0x1d0] sm:$0xff]
    %v108 = vld [vmem:[#allocation5 + $0x1d8] sm:$0xff]
    %v109 = vld [vmem:[#allocation5 + $0x1e0] sm:$0xff]
    %v110 = vld [vmem:[#allocation5 + $0x1e8] sm:$0xff]
    %v111 = vld [vmem:[#allocation5 + $0x1f0] sm:$0xff]
    %v112 = vld [vmem:[#allocation5 + $0x1f8] sm:$0xff]
    %v113 = vld [vmem:[#allocation5 + $0x200] sm:$0xff]
    %v114 = vld [vmem:[#allocation5 + $0x208] sm:$0xff]
    %v115 = vld [vmem:[#allocation5 + $0x210] sm:$0xff]
    %v116 = vld [vmem:[#allocation5 + $0x218] sm:$0xff]
    %v117 = vld [vmem:[#allocation5 + $0x220] sm:$0xff]
    %v118 = vld [vmem:[#allocation5 + $0x228] sm:$0xff]
    %v119 = vld [vmem:[#allocation5 + $0x230] sm:$0xff]
    %v120 = vld [vmem:[#allocation5 + $0x238] sm:$0xff]
    %v121 = vld [vmem:[#allocation5 + $0x240] sm:$0xff]
    %v122 = vld [vmem:[#allocation5 + $0x248] sm:$0xff]
    %v123 = vld [vmem:[#allocation5 + $0x250] sm:$0xff]
    %v124 = vld [vmem:[#allocation5 + $0x258] sm:$0xff]
    %v125 = vld [vmem:[#allocation5 + $0x260] sm:$0xff]
    %v126 = vld [vmem:[#allocation5 + $0x268] sm:$0xff]
    %v127 = vld [vmem:[#allocation5 + $0x270] sm:$0xff]
    %v128 = vld [vmem:[#allocation5 + $0x278] sm:$0xff]
    %v129 = vld [vmem:[#allocation5 + $0x280] sm:$0xff]
    %v130 = vld [vmem:[#allocation5 + $0x288] sm:$0xff]
    %v131 = vld [vmem:[#allocation5 + $0x290] sm:$0xff]
    %v132 = vld [vmem:[#allocation5 + $0x298] sm:$0xff]
    %v133 = vld [vmem:[#allocation5 + $0x2a0] sm:$0xff]
    %v134 = vld [vmem:[#allocation5 + $0x2a8] sm:$0xff]
    %v135 = vld [vmem:[#allocation5 + $0x2b0] sm:$0xff]
    %v136 = vld [vmem:[#allocation5 + $0x2b8] sm:$0xff]
    %v137 = vld [vmem:[#allocation5 + $0x2c0] sm:$0xff]
    %v138 = vld [vmem:[#allocation5 + $0x2c8] sm:$0xff]
    %v139 = vld [vmem:[#allocation5 + $0x2d0] sm:$0xff]
    %v140 = vld [vmem:[#allocation5 + $0x2d8] sm:$0xff]
    %v141 = vld [vmem:[#allocation5 + $0x2e0] sm:$0xff]
    %v142 = vld [vmem:[#allocation5 + $0x2e8] sm:$0xff]
    %v143 = vld [vmem:[#allocation5 + $0x2f0] sm:$0xff]
    %v144 = vld [vmem:[#allocation5 + $0x2f8] sm:$0xff]
    %v145 = vld [vmem:[#allocation5 + $0x300] sm:$0xff]
    %v146 = vld [vmem:[#allocation5 + $0x308] sm:$0xff]
    %v147 = vld [vmem:[#allocation5 + $0x310] sm:$0xff]
    %v148 = vld [vmem:[#allocation5 + $0x318] sm:$0xff]
    %v149 = vld [vmem:[#allocation5 + $0x320] sm:$0xff]
    %v150 = vld [vmem:[#allocation5 + $0x328] sm:$0xff]
    %v151 = vld [vmem:[#allocation5 + $0x330] sm:$0xff]
    %v152 = vld [vmem:[#allocation5 + $0x338] sm:$0xff]
    %v153 = vld [vmem:[#allocation5 + $0x340] sm:$0xff]
    %v154 = vld [vmem:[#allocation5 + $0x348] sm:$0xff]
    %v155 = vld [vmem:[#allocation5 + $0x350] sm:$0xff]
    %v156 = vld [vmem:[#allocation5 + $0x358] sm:$0xff]
    %v157 = vld [vmem:[#allocation5 + $0x360] sm:$0xff]
    %v158 = vld [vmem:[#allocation5 + $0x368] sm:$0xff]
    %v159 = vld [vmem:[#allocation5 + $0x370] sm:$0xff]
    %v160 = vld [vmem:[#allocation5 + $0x378] sm:$0xff]
    %v161 = vld [vmem:[#allocation5 + $0x380] sm:$0xff]
    %v162 = vld [vmem:[#allocation5 + $0x388] sm:$0xff]
    %v163 = vld [vmem:[#allocation5 + $0x390] sm:$0xff]
    %v164 = vld [vmem:[#allocation5 + $0x398] sm:$0xff]
    %v165 = vld [vmem:[#allocation5 + $0x3a0] sm:$0xff]
    %v166 = vld [vmem:[#allocation5 + $0x3a8] sm:$0xff]
    %v167 = vld [vmem:[#allocation5 + $0x3b0] sm:$0xff]
    %v168 = vld [vmem:[#allocation5 + $0x3b8] sm:$0xff]
    %v169 = vld [vmem:[#allocation5 + $0x3c0] sm:$0xff]
    %v170 = vld [vmem:[#allocation5 + $0x3c8] sm:$0xff]
    %v171 = vld [vmem:[#allocation5 + $0x3d0] sm:$0xff]
    %v172 = vld [vmem:[#allocation5 + $0x3d8] sm:$0xff]
    %v173 = vld [vmem:[#allocation5 + $0x3e0] sm:$0xff]
    %v174 = vld [vmem:[#allocation5 + $0x3e8] sm:$0xff]
    %v175 = vld [vmem:[#allocation5 + $0x3f0] sm:$0xff]
    %v176 = vld [vmem:[#allocation5 + $0x3f8] sm:$0xff]
    %v177 = vld [vmem:[#allocation5 + $0x400] sm:$0xff]
    %v178 = vld [vmem:[#allocation5 + $0x408] sm:$0xff]
    %v179 = vld [vmem:[#allocation5 + $0x410] sm:$0xff]
    %v180 = vld [vmem:[#allocation5 + $0x418] sm:$0xff]
    %v181 = vld [vmem:[#allocation5 + $0x420] sm:$0xff]
    %v182 = vld [vmem:[#allocation5 + $0x428] sm:$0xff]
    %v183 = vld [vmem:[#allocation5 + $0x430] sm:$0xff]
    %v184 = vld [vmem:[#allocation5 + $0x438] sm:$0xff]
    %v185 = vld [vmem:[#allocation5 + $0x440] sm:$0xff]
    %v186 = vld [vmem:[#allocation5 + $0x448] sm:$0xff]
    %v187 = vld [vmem:[#allocation5 + $0x450] sm:$0xff]
    %v188 = vld [vmem:[#allocation5 + $0x458] sm:$0xff]
    %v189 = vld [vmem:[#allocation5 + $0x460] sm:$0xff]
    %v190 = vld [vmem:[#allocation5 + $0x468] sm:$0xff]
    %v191 = vld [vmem:[#allocation5 + $0x470] sm:$0xff]
    %v192 = vld [vmem:[#allocation5 + $0x478] sm:$0xff]
    %v193 = vld [vmem:[#allocation5 + $0x480] sm:$0xff]
    %v194 = vld [vmem:[#allocation5 + $0x488] sm:$0xff]
    %v195 = vld [vmem:[#allocation5 + $0x490] sm:$0xff]
    %v196 = vld [vmem:[#allocation5 + $0x498] sm:$0xff]
    %v197 = vld [vmem:[#allocation5 + $0x4a0] sm:$0xff]
    %v198 = vld [vmem:[#allocation5 + $0x4a8] sm:$0xff]
    %v199 = vld [vmem:[#allocation5 + $0x4b0] sm:$0xff]
    %v200 = vld [vmem:[#allocation5 + $0x4b8] sm:$0xff]
    %v201 = vld [vmem:[#allocation5 + $0x4c0] sm:$0xff]
    %v202 = vld [vmem:[#allocation5 + $0x4c8] sm:$0xff]
    %v203 = vld [vmem:[#allocation5 + $0x4d0] sm:$0xff]
    %v204 = vld [vmem:[#allocation5 + $0x4d8] sm:$0xff]
    %v205 = vld [vmem:[#allocation5 + $0x4e0] sm:$0xff]
    %v206 = vld [vmem:[#allocation5 + $0x4e8] sm:$0xff]
    %v207 = vld [vmem:[#allocation5 + $0x4f0] sm:$0xff]
    %v208 = vld [vmem:[#allocation5 + $0x4f8] sm:$0xff]
    %v209 = vld [vmem:[#allocation5 + $0x500] sm:$0xff]
    %v210 = vld [vmem:[#allocation5 + $0x508] sm:$0xff]
    %v211 = vld [vmem:[#allocation5 + $0x510] sm:$0xff]
    %v212 = vld [vmem:[#allocation5 + $0x518] sm:$0xff]
    %v213 = vld [vmem:[#allocation5 + $0x520] sm:$0xff]
    %v214 = vld [vmem:[#allocation5 + $0x528] sm:$0xff]
    %v215 = vld [vmem:[#allocation5 + $0x530] sm:$0xff]
    %v216 = vld [vmem:[#allocation5 + $0x538] sm:$0xff]
    %v217 = vld [vmem:[#allocation5 + $0x540] sm:$0xff]
    %v218 = vld [vmem:[#allocation5 + $0x548] sm:$0xff]
    %v219 = vld [vmem:[#allocation5 + $0x550] sm:$0xff]
    %v220 = vld [vmem:[#allocation5 + $0x558] sm:$0xff]
    %v221 = vld [vmem:[#allocation5 + $0x560] sm:$0xff]
    %v222 = vld [vmem:[#allocation5 + $0x568] sm:$0xff]
    %v223 = vld [vmem:[#allocation5 + $0x570] sm:$0xff]
    %v224 = vld [vmem:[#allocation5 + $0x578] sm:$0xff]
    %v225 = vld [vmem:[#allocation5 + $0x580] sm:$0xff]
    %v226 = vld [vmem:[#allocation5 + $0x588] sm:$0xff]
    %v227 = vld [vmem:[#allocation5 + $0x590] sm:$0xff]
    %v228 = vld [vmem:[#allocation5 + $0x598] sm:$0xff]
    %v229 = vld [vmem:[#allocation5 + $0x5a0] sm:$0xff]
    %v230 = vld [vmem:[#allocation5 + $0x5a8] sm:$0xff]
    %v231 = vld [vmem:[#allocation5 + $0x5b0] sm:$0xff]
    %v232 = vld [vmem:[#allocation5 + $0x5b8] sm:$0xff]
    %v233 = vld [vmem:[#allocation5 + $0x5c0] sm:$0xff]
    %v234 = vld [vmem:[#allocation5 + $0x5c8] sm:$0xff]
    %v235 = vld [vmem:[#allocation5 + $0x5d0] sm:$0xff]
    %v236 = vld [vmem:[#allocation5 + $0x5d8] sm:$0xff]
    %v237 = vld [vmem:[#allocation5 + $0x5e0] sm:$0xff]
    %v238 = vld [vmem:[#allocation5 + $0x5e8] sm:$0xff]
    %v239 = vld [vmem:[#allocation5 + $0x5f0] sm:$0xff]
    %v240 = vld [vmem:[#allocation5 + $0x5f8] sm:$0xff]
    %v241 = vld [vmem:[#allocation5 + $0x600] sm:$0xff]
    %v242 = vld [vmem:[#allocation5 + $0x608] sm:$0xff]
    %v243 = vld [vmem:[#allocation5 + $0x610] sm:$0xff]
    %v244 = vld [vmem:[#allocation5 + $0x618] sm:$0xff]
    %v245 = vld [vmem:[#allocation5 + $0x620] sm:$0xff]
    %v246 = vld [vmem:[#allocation5 + $0x628] sm:$0xff]
    %v247 = vld [vmem:[#allocation5 + $0x630] sm:$0xff]
    %v248 = vld [vmem:[#allocation5 + $0x638] sm:$0xff]
    %v249 = vld [vmem:[#allocation5 + $0x640] sm:$0xff]
    %v250 = vld [vmem:[#allocation5 + $0x648] sm:$0xff]
    %v251 = vld [vmem:[#allocation5 + $0x650] sm:$0xff]
    %v252 = vld [vmem:[#allocation5 + $0x658] sm:$0xff]
    %v253 = vld [vmem:[#allocation5 + $0x660] sm:$0xff]
    %v254 = vld [vmem:[#allocation5 + $0x668] sm:$0xff]
    %v255 = vld [vmem:[#allocation5 + $0x670] sm:$0xff]
    %v256 = vld [vmem:[#allocation5 + $0x678] sm:$0xff]
    %v257 = vld [vmem:[#allocation5 + $0x680] sm:$0xff]
    %v258 = vld [vmem:[#allocation5 + $0x688] sm:$0xff]
    %v259 = vld [vmem:[#allocation5 + $0x690] sm:$0xff]
    %v260 = vld [vmem:[#allocation5 + $0x698] sm:$0xff]
    %v261 = vld [vmem:[#allocation5 + $0x6a0] sm:$0xff]
    %v262 = vld [vmem:[#allocation5 + $0x6a8] sm:$0xff]
    %v263 = vld [vmem:[#allocation5 + $0x6b0] sm:$0xff]
    %v264 = vld [vmem:[#allocation5 + $0x6b8] sm:$0xff]
    %v265 = vld [vmem:[#allocation5 + $0x6c0] sm:$0xff]
    %v266 = vld [vmem:[#allocation5 + $0x6c8] sm:$0xff]
    %v267 = vld [vmem:[#allocation5 + $0x6d0] sm:$0xff]
    %v268 = vld [vmem:[#allocation5 + $0x6d8] sm:$0xff]
    %v269 = vld [vmem:[#allocation5 + $0x6e0] sm:$0xff]
    %v270 = vld [vmem:[#allocation5 + $0x6e8] sm:$0xff]
    %v271 = vld [vmem:[#allocation5 + $0x6f0] sm:$0xff]
    %v272 = vld [vmem:[#allocation5 + $0x6f8] sm:$0xff]
    %v273 = vld [vmem:[#allocation5 + $0x700] sm:$0xff]
    %v274 = vld [vmem:[#allocation5 + $0x708] sm:$0xff]
    %v275 = vld [vmem:[#allocation5 + $0x710] sm:$0xff]
    %v276 = vld [vmem:[#allocation5 + $0x718] sm:$0xff]
    %v277 = vld [vmem:[#allocation5 + $0x720] sm:$0xff]
    %v278 = vld [vmem:[#allocation5 + $0x728] sm:$0xff]
    %v279 = vld [vmem:[#allocation5 + $0x730] sm:$0xff]
    %v280 = vld [vmem:[#allocation5 + $0x738] sm:$0xff]
    %v281 = vld [vmem:[#allocation5 + $0x740] sm:$0xff]
    %v282 = vld [vmem:[#allocation5 + $0x748] sm:$0xff]
    %v283 = vld [vmem:[#allocation5 + $0x750] sm:$0xff]
    %v284 = vld [vmem:[#allocation5 + $0x758] sm:$0xff]
    %v285 = vld [vmem:[#allocation5 + $0x760] sm:$0xff]
    %v286 = vld [vmem:[#allocation5 + $0x768] sm:$0xff]
    %v287 = vld [vmem:[#allocation5 + $0x770] sm:$0xff]
    %v288 = vld [vmem:[#allocation5 + $0x778] sm:$0xff]
    %v289 = vld [vmem:[#allocation5 + $0x780] sm:$0xff]
    %v290 = vld [vmem:[#allocation5 + $0x788] sm:$0xff]
    %v291 = vld [vmem:[#allocation5 + $0x790] sm:$0xff]
    %v292 = vld [vmem:[#allocation5 + $0x798] sm:$0xff]
    %v293 = vld [vmem:[#allocation5 + $0x7a0] sm:$0xff]
    %v294 = vld [vmem:[#allocation5 + $0x7a8] sm:$0xff]
    %v295 = vld [vmem:[#allocation5 + $0x7b0] sm:$0xff]
    %v296 = vld [vmem:[#allocation5 + $0x7b8] sm:$0xff]
    %v297 = vld [vmem:[#allocation5 + $0x7c0] sm:$0xff]
    %v298 = vld [vmem:[#allocation5 + $0x7c8] sm:$0xff]
    %v299 = vld [vmem:[#allocation5 + $0x7d0] sm:$0xff]
    %v300 = vld [vmem:[#allocation5 + $0x7d8] sm:$0xff]
    %v301 = vld [vmem:[#allocation5 + $0x7e0] sm:$0xff]
    %v302 = vld [vmem:[#allocation5 + $0x7e8] sm:$0xff]
    %v303 = vld [vmem:[#allocation5 + $0x7f0] sm:$0xff]
    %v304 = vld [vmem:[#allocation5 + $0x7f8] sm:$0xff]
    %v313 = vcombine.high %v41, %v41
    %v314 = vcombine.high %v42, %v42
    %v315 = vcombine.high %v43, %v43
    %v316 = vcombine.high %v44, %v44
    %v317 = vcombine.high %v45, %v45
    %v318 = vcombine.high %v46, %v46
    %v319 = vcombine.high %v47, %v47
    %v320 = vcombine.high %v48, %v48
    %329 = vmatprep.subr.mxu0 0.0
    %v330 = vand.u32 %v49, 4294901760
    %331 = vmatpush1.msra.mxu0 %v330
    %332 = vmatprep.subr.mxu0 0.0
    %v333 = vand.u32 %v50, 4294901760
    %334 = vmatpush1.msra.mxu0 %v333
    %335 = vmatprep.subr.mxu0 0.0
    %v336 = vand.u32 %v51, 4294901760
    %337 = vmatpush1.msra.mxu0 %v336
    %338 = vmatprep.subr.mxu0 0.0
    %v339 = vand.u32 %v52, 4294901760
    %340 = vmatpush1.msra.mxu0 %v339
    %341 = vmatprep.subr.mxu0 0.0
    %v342 = vand.u32 %v53, 4294901760
    %343 = vmatpush1.msra.mxu0 %v342
    %344 = vmatprep.subr.mxu0 0.0
    %v345 = vand.u32 %v54, 4294901760
    %346 = vmatpush1.msra.mxu0 %v345
    %347 = vmatprep.subr.mxu0 0.0
    %v348 = vand.u32 %v55, 4294901760
    %349 = vmatpush1.msra.mxu0 %v348
    %350 = vmatprep.subr.mxu0 0.0
    %v351 = vand.u32 %v56, 4294901760
    %352 = vmatpush1.msra.mxu0 %v351
    %353 = vmatprep.subr.mxu0 0.0
    %v354 = vand.u32 %v57, 4294901760
    %355 = vmatpush1.msra.mxu0 %v354
    %356 = vmatprep.subr.mxu0 0.0
    %v357 = vand.u32 %v58, 4294901760
    %358 = vmatpush1.msra.mxu0 %v357
    %359 = vmatprep.subr.mxu0 0.0
    %v360 = vand.u32 %v59, 4294901760
    %361 = vmatpush1.msra.mxu0 %v360
    %362 = vmatprep.subr.mxu0 0.0
    %v363 = vand.u32 %v60, 4294901760
    %364 = vmatpush1.msra.mxu0 %v363
    %365 = vmatprep.subr.mxu0 0.0
    %v366 = vand.u32 %v61, 4294901760
    %367 = vmatpush1.msra.mxu0 %v366
    %368 = vmatprep.subr.mxu0 0.0
    %v369 = vand.u32 %v62, 4294901760
    %370 = vmatpush1.msra.mxu0 %v369
    %371 = vmatprep.subr.mxu0 0.0
    %v372 = vand.u32 %v63, 4294901760
    %373 = vmatpush1.msra.mxu0 %v372
    %374 = vmatprep.subr.mxu0 0.0
    %v375 = vand.u32 %v64, 4294901760
    %376 = vmatpush1.msra.mxu0 %v375
    %377 = vmatprep.subr.mxu0 0.0
    %v378 = vand.u32 %v65, 4294901760
    %379 = vmatpush1.msra.mxu0 %v378
    %380 = vmatprep.subr.mxu0 0.0
    %v381 = vand.u32 %v66, 4294901760
    %382 = vmatpush1.msra.mxu0 %v381
    %383 = vmatprep.subr.mxu0 0.0
    %v384 = vand.u32 %v67, 4294901760
    %385 = vmatpush1.msra.mxu0 %v384
    %386 = vmatprep.subr.mxu0 0.0
    %v387 = vand.u32 %v68, 4294901760
    %388 = vmatpush1.msra.mxu0 %v387
    %389 = vmatprep.subr.mxu0 0.0
    %v390 = vand.u32 %v69, 4294901760
    %391 = vmatpush1.msra.mxu0 %v390
    %392 = vmatprep.subr.mxu0 0.0
    %v393 = vand.u32 %v70, 4294901760
    %394 = vmatpush1.msra.mxu0 %v393
    %395 = vmatprep.subr.mxu0 0.0
    %v396 = vand.u32 %v71, 4294901760
    %397 = vmatpush1.msra.mxu0 %v396
    %398 = vmatprep.subr.mxu0 0.0
    %v399 = vand.u32 %v72, 4294901760
    %400 = vmatpush1.msra.mxu0 %v399
    %401 = vmatprep.subr.mxu0 0.0
    %v402 = vand.u32 %v73, 4294901760
    %403 = vmatpush1.msra.mxu0 %v402
    %404 = vmatprep.subr.mxu0 0.0
    %v405 = vand.u32 %v74, 4294901760
    %406 = vmatpush1.msra.mxu0 %v405
    %407 = vmatprep.subr.mxu0 0.0
    %v408 = vand.u32 %v75, 4294901760
    %409 = vmatpush1.msra.mxu0 %v408
    %410 = vmatprep.subr.mxu0 0.0
    %v411 = vand.u32 %v76, 4294901760
    %412 = vmatpush1.msra.mxu0 %v411
    %413 = vmatprep.subr.mxu0 0.0
    %v414 = vand.u32 %v77, 4294901760
    %415 = vmatpush1.msra.mxu0 %v414
    %416 = vmatprep.subr.mxu0 0.0
    %v417 = vand.u32 %v78, 4294901760
    %418 = vmatpush1.msra.mxu0 %v417
    %419 = vmatprep.subr.mxu0 0.0
    %v420 = vand.u32 %v79, 4294901760
    %421 = vmatpush1.msra.mxu0 %v420
    %422 = vmatprep.subr.mxu0 0.0
    %v423 = vand.u32 %v80, 4294901760
    %424 = vmatpush1.msra.mxu0 %v423
    %v425 = vand.u32 %v313, 4294901760
    %v426 = vsub.f32 %v313, %v425
    %v427 = vand.u32 %v426, 4294901760
    %v428 = vsub.f32 %v426, %v427
    %v429 = vand.u32 %v428, 4294901760
    %430 = vmatprep.mubr.f32.mxu0 %v429
    %v431 = vand.u32 %v41, 4294901760
    %v432 = vsub.f32 %v41, %v431
    %v433 = vand.u32 %v432, 4294901760
    %v434 = vsub.f32 %v432, %v433
    %v435 = vand.u32 %v434, 4294901760
    %436 = vmatmul.mubr.f32.gmra.mrb[0].mxu0 %v435
    %v437 = vpop.f32.mrb[0].mxu0
    %v438 = vadd.f32 0.0, %v437
    %v439 = vpop.f32.mrb[0].mxu0
    %440 = vdwg.mxu0
    %441 = vmatprep.subr.mxu0 0.0
    %v442 = vand.u32 %v49, 4294901760
    %v443 = vsub.f32 %v49, %v442
    %v444 = vand.u32 %v443, 4294901760
    %v445 = vsub.f32 %v443, %v444
    %v446 = vand.u32 %v445, 4294901760
    %447 = vmatpush1.msra.mxu0 %v446
    %448 = vmatprep.subr.mxu0 0.0
    %v449 = vand.u32 %v50, 4294901760
    %v450 = vsub.f32 %v50, %v449
    %v451 = vand.u32 %v450, 4294901760
    %v452 = vsub.f32 %v450, %v451
    %v453 = vand.u32 %v452, 4294901760
    %454 = vmatpush1.msra.mxu0 %v453
    %455 = vmatprep.subr.mxu0 0.0
    %v456 = vand.u32 %v51, 4294901760
    %v457 = vsub.f32 %v51, %v456
    %v458 = vand.u32 %v457, 4294901760
    %v459 = vsub.f32 %v457, %v458
    %v460 = vand.u32 %v459, 4294901760
    %461 = vmatpush1.msra.mxu0 %v460
    %462 = vmatprep.subr.mxu0 0.0
    %v463 = vand.u32 %v52, 4294901760
    %v464 = vsub.f32 %v52, %v463
    %v465 = vand.u32 %v464, 4294901760
    %v466 = vsub.f32 %v464, %v465
    %v467 = vand.u32 %v466, 4294901760
    %468 = vmatpush1.msra.mxu0 %v467
    %469 = vmatprep.subr.mxu0 0.0
    %v470 = vand.u32 %v53, 4294901760
    %v471 = vsub.f32 %v53, %v470
    %v472 = vand.u32 %v471, 4294901760
    %v473 = vsub.f32 %v471, %v472
    %v474 = vand.u32 %v473, 4294901760
    %475 = vmatpush1.msra.mxu0 %v474
    %476 = vmatprep.subr.mxu0 0.0
    %v477 = vand.u32 %v54, 4294901760
    %v478 = vsub.f32 %v54, %v477
    %v479 = vand.u32 %v478, 4294901760
    %v480 = vsub.f32 %v478, %v479
    %v481 = vand.u32 %v480, 4294901760
    %482 = vmatpush1.msra.mxu0 %v481
    %483 = vmatprep.subr.mxu0 0.0
    %v484 = vand.u32 %v55, 4294901760
    %v485 = vsub.f32 %v55, %v484
    %v486 = vand.u32 %v485, 4294901760
    %v487 = vsub.f32 %v485, %v486
    %v488 = vand.u32 %v487, 4294901760
    %489 = vmatpush1.msra.mxu0 %v488
    %490 = vmatprep.subr.mxu0 0.0
    %v491 = vand.u32 %v56, 4294901760
    %v492 = vsub.f32 %v56, %v491
    %v493 = vand.u32 %v492, 4294901760
    %v494 = vsub.f32 %v492, %v493
    %v495 = vand.u32 %v494, 4294901760
    %496 = vmatpush1.msra.mxu0 %v495
    %497 = vmatprep.subr.mxu0 0.0
    %v498 = vand.u32 %v57, 4294901760
    %v499 = vsub.f32 %v57, %v498
    %v500 = vand.u32 %v499, 4294901760
    %v501 = vsub.f32 %v499, %v500
    %v502 = vand.u32 %v501, 4294901760
    %503 = vmatpush1.msra.mxu0 %v502
    %504 = vmatprep.subr.mxu0 0.0
    %v505 = vand.u32 %v58, 4294901760
    %v506 = vsub.f32 %v58, %v505
    %v507 = vand.u32 %v506, 4294901760
    %v508 = vsub.f32 %v506, %v507
    %v509 = vand.u32 %v508, 4294901760
    %510 = vmatpush1.msra.mxu0 %v509
    %511 = vmatprep.subr.mxu0 0.0
    %v512 = vand.u32 %v59, 4294901760
    %v513 = vsub.f32 %v59, %v512
    %v514 = vand.u32 %v513, 4294901760
    %v515 = vsub.f32 %v513, %v514
    %v516 = vand.u32 %v515, 4294901760
    %517 = vmatpush1.msra.mxu0 %v516
    %518 = vmatprep.subr.mxu0 0.0
    %v519 = vand.u32 %v60, 4294901760
    %v520 = vsub.f32 %v60, %v519
    %v521 = vand.u32 %v520, 4294901760
    %v522 = vsub.f32 %v520, %v521
    %v523 = vand.u32 %v522, 4294901760
    %524 = vmatpush1.msra.mxu0 %v523
    %525 = vmatprep.subr.mxu0 0.0
    %v526 = vand.u32 %v61, 4294901760
    %v527 = vsub.f32 %v61, %v526
    %v528 = vand.u32 %v527, 4294901760
    %v529 = vsub.f32 %v527, %v528
    %v530 = vand.u32 %v529, 4294901760
    %531 = vmatpush1.msra.mxu0 %v530
    %532 = vmatprep.subr.mxu0 0.0
    %v533 = vand.u32 %v62, 4294901760
    %v534 = vsub.f32 %v62, %v533
    %v535 = vand.u32 %v534, 4294901760
    %v536 = vsub.f32 %v534, %v535
    %v537 = vand.u32 %v536, 4294901760
    %538 = vmatpush1.msra.mxu0 %v537
    %539 = vmatprep.subr.mxu0 0.0
    %v540 = vand.u32 %v63, 4294901760
    %v541 = vsub.f32 %v63, %v540
    %v542 = vand.u32 %v541, 4294901760
    %v543 = vsub.f32 %v541, %v542
    %v544 = vand.u32 %v543, 4294901760
    %545 = vmatpush1.msra.mxu0 %v544
    %546 = vmatprep.subr.mxu0 0.0
    %v547 = vand.u32 %v64, 4294901760
    %v548 = vsub.f32 %v64, %v547
    %v549 = vand.u32 %v548, 4294901760
    %v550 = vsub.f32 %v548, %v549
    %v551 = vand.u32 %v550, 4294901760
    %552 = vmatpush1.msra.mxu0 %v551
    %553 = vmatprep.subr.mxu0 0.0
    %v554 = vand.u32 %v65, 4294901760
    %v555 = vsub.f32 %v65, %v554
    %v556 = vand.u32 %v555, 4294901760
    %v557 = vsub.f32 %v555, %v556
    %v558 = vand.u32 %v557, 4294901760
    %559 = vmatpush1.msra.mxu0 %v558
    %560 = vmatprep.subr.mxu0 0.0
    %v561 = vand.u32 %v66, 4294901760
    %v562 = vsub.f32 %v66, %v561
    %v563 = vand.u32 %v562, 4294901760
    %v564 = vsub.f32 %v562, %v563
    %v565 = vand.u32 %v564, 4294901760
    %566 = vmatpush1.msra.mxu0 %v565
    %567 = vmatprep.subr.mxu0 0.0
    %v568 = vand.u32 %v67, 4294901760
    %v569 = vsub.f32 %v67, %v568
    %v570 = vand.u32 %v569, 4294901760
    %v571 = vsub.f32 %v569, %v570
    %v572 = vand.u32 %v571, 4294901760
    %573 = vmatpush1.msra.mxu0 %v572
    %574 = vmatprep.subr.mxu0 0.0
    %v575 = vand.u32 %v68, 4294901760
    %v576 = vsub.f32 %v68, %v575
    %v577 = vand.u32 %v576, 4294901760
    %v578 = vsub.f32 %v576, %v577
    %v579 = vand.u32 %v578, 4294901760
    %580 = vmatpush1.msra.mxu0 %v579
    %581 = vmatprep.subr.mxu0 0.0
    %v582 = vand.u32 %v69, 4294901760
    %v583 = vsub.f32 %v69, %v582
    %v584 = vand.u32 %v583, 4294901760
    %v585 = vsub.f32 %v583, %v584
    %v586 = vand.u32 %v585, 4294901760
    %587 = vmatpush1.msra.mxu0 %v586
    %588 = vmatprep.subr.mxu0 0.0
    %v589 = vand.u32 %v70, 4294901760
    %v590 = vsub.f32 %v70, %v589
    %v591 = vand.u32 %v590, 4294901760
    %v592 = vsub.f32 %v590, %v591
    %v593 = vand.u32 %v592, 4294901760
    %594 = vmatpush1.msra.mxu0 %v593
    %595 = vmatprep.subr.mxu0 0.0
    %v596 = vand.u32 %v71, 4294901760
    %v597 = vsub.f32 %v71, %v596
    %v598 = vand.u32 %v597, 4294901760
    %v599 = vsub.f32 %v597, %v598
    %v600 = vand.u32 %v599, 4294901760
    %601 = vmatpush1.msra.mxu0 %v600
    %602 = vmatprep.subr.mxu0 0.0
    %v603 = vand.u32 %v72, 4294901760
    %v604 = vsub.f32 %v72, %v603
    %v605 = vand.u32 %v604, 4294901760
    %v606 = vsub.f32 %v604, %v605
    %v607 = vand.u32 %v606, 4294901760
    %608 = vmatpush1.msra.mxu0 %v607
    %609 = vmatprep.subr.mxu0 0.0
    %v610 = vand.u32 %v73, 4294901760
    %v611 = vsub.f32 %v73, %v610
    %v612 = vand.u32 %v611, 4294901760
    %v613 = vsub.f32 %v611, %v612
    %v614 = vand.u32 %v613, 4294901760
    %615 = vmatpush1.msra.mxu0 %v614
    %616 = vmatprep.subr.mxu0 0.0
    %v617 = vand.u32 %v74, 4294901760
    %v618 = vsub.f32 %v74, %v617
    %v619 = vand.u32 %v618, 4294901760
    %v620 = vsub.f32 %v618, %v619
    %v621 = vand.u32 %v620, 4294901760
    %622 = vmatpush1.msra.mxu0 %v621
    %623 = vmatprep.subr.mxu0 0.0
    %v624 = vand.u32 %v75, 4294901760
    %v625 = vsub.f32 %v75, %v624
    %v626 = vand.u32 %v625, 4294901760
    %v627 = vsub.f32 %v625, %v626
    %v628 = vand.u32 %v627, 4294901760
    %629 = vmatpush1.msra.mxu0 %v628
    %630 = vmatprep.subr.mxu0 0.0
    %v631 = vand.u32 %v76, 4294901760
    %v632 = vsub.f32 %v76, %v631
    %v633 = vand.u32 %v632, 4294901760
    %v634 = vsub.f32 %v632, %v633
    %v635 = vand.u32 %v634, 4294901760
    %636 = vmatpush1.msra.mxu0 %v635
    %637 = vmatprep.subr.mxu0 0.0
    %v638 = vand.u32 %v77, 4294901760
    %v639 = vsub.f32 %v77, %v638
    %v640 = vand.u32 %v639, 4294901760
    %v641 = vsub.f32 %v639, %v640
    %v642 = vand.u32 %v641, 4294901760
    %643 = vmatpush1.msra.mxu0 %v642
    %644 = vmatprep.subr.mxu0 0.0
    %v645 = vand.u32 %v78, 4294901760
    %v646 = vsub.f32 %v78, %v645
    %v647 = vand.u32 %v646, 4294901760
    %v648 = vsub.f32 %v646, %v647
    %v649 = vand.u32 %v648, 4294901760
    %650 = vmatpush1.msra.mxu0 %v649
    %651 = vmatprep.subr.mxu0 0.0
    %v652 = vand.u32 %v79, 4294901760
    %v653 = vsub.f32 %v79, %v652
    %v654 = vand.u32 %v653, 4294901760
    %v655 = vsub.f32 %v653, %v654
    %v656 = vand.u32 %v655, 4294901760
    %657 = vmatpush1.msra.mxu0 %v656
    %658 = vmatprep.subr.mxu0 0.0
    %v659 = vand.u32 %v80, 4294901760
    %v660 = vsub.f32 %v80, %v659
    %v661 = vand.u32 %v660, 4294901760
    %v662 = vsub.f32 %v660, %v661
    %v663 = vand.u32 %v662, 4294901760
    %664 = vmatpush1.msra.mxu0 %v663
    %v665 = vand.u32 %v313, 4294901760
    %666 = vmatprep.mubr.f32.mxu0 %v665
    %v667 = vand.u32 %v41, 4294901760
    %668 = vmatmul.mubr.f32.gmra.mrb[0].mxu0 %v667
    %v669 = vpop.f32.mrb[0].mxu0
    %v670 = vadd.f32 %v438, %v669
    %v671 = vpop.f32.mrb[0].mxu0
    %672 = vdwg.mxu0
    %673 = vmatprep.subr.mxu0 0.0
    %v674 = vand.u32 %v49, 4294901760
    %v675 = vsub.f32 %v49, %v674
    %676 = vmatpush1.msra.mxu0 %v675
    %677 = vmatprep.subr.mxu0 0.0
    %v678 = vand.u32 %v50, 4294901760
    %v679 = vsub.f32 %v50, %v678
    %680 = vmatpush1.msra.mxu0 %v679
    %681 = vmatprep.subr.mxu0 0.0
    %v682 = vand.u32 %v51, 4294901760
    %v683 = vsub.f32 %v51, %v682
    %684 = vmatpush1.msra.mxu0 %v683
    %685 = vmatprep.subr.mxu0 0.0
    %v686 = vand.u32 %v52, 4294901760
    %v687 = vsub.f32 %v52, %v686
    %688 = vmatpush1.msra.mxu0 %v687
    %689 = vmatprep.subr.mxu0 0.0
    %v690 = vand.u32 %v53, 4294901760
    %v691 = vsub.f32 %v53, %v690
    %692 = vmatpush1.msra.mxu0 %v691
    %693 = vmatprep.subr.mxu0 0.0
    %v694 = vand.u32 %v54, 4294901760
    %v695 = vsub.f32 %v54, %v694
    %696 = vmatpush1.msra.mxu0 %v695
    %697 = vmatprep.subr.mxu0 0.0
    %v698 = vand.u32 %v55, 4294901760
    %v699 = vsub.f32 %v55, %v698
    %700 = vmatpush1.msra.mxu0 %v699
    %701 = vmatprep.subr.mxu0 0.0
    %v702 = vand.u32 %v56, 4294901760
    %v703 = vsub.f32 %v56, %v702
    %704 = vmatpush1.msra.mxu0 %v703
    %705 = vmatprep.subr.mxu0 0.0
    %v706 = vand.u32 %v57, 4294901760
    %v707 = vsub.f32 %v57, %v706
    %708 = vmatpush1.msra.mxu0 %v707
    %709 = vmatprep.subr.mxu0 0.0
    %v710 = vand.u32 %v58, 4294901760
    %v711 = vsub.f32 %v58, %v710
    %712 = vmatpush1.msra.mxu0 %v711
    %713 = vmatprep.subr.mxu0 0.0
    %v714 = vand.u32 %v59, 4294901760
    %v715 = vsub.f32 %v59, %v714
    %716 = vmatpush1.msra.mxu0 %v715
    %717 = vmatprep.subr.mxu0 0.0
    %v718 = vand.u32 %v60, 4294901760
    %v719 = vsub.f32 %v60, %v718
    %720 = vmatpush1.msra.mxu0 %v719
    %721 = vmatprep.subr.mxu0 0.0
    %v722 = vand.u32 %v61, 4294901760
    %v723 = vsub.f32 %v61, %v722
    %724 = vmatpush1.msra.mxu0 %v723
    %725 = vmatprep.subr.mxu0 0.0
    %v726 = vand.u32 %v62, 4294901760
    %v727 = vsub.f32 %v62, %v726
    %728 = vmatpush1.msra.mxu0 %v727
    %729 = vmatprep.subr.mxu0 0.0
    %v730 = vand.u32 %v63, 4294901760
    %v731 = vsub.f32 %v63, %v730
    %732 = vmatpush1.msra.mxu0 %v731
    %733 = vmatprep.subr.mxu0 0.0
    %v734 = vand.u32 %v64, 4294901760
    %v735 = vsub.f32 %v64, %v734
    %736 = vmatpush1.msra.mxu0 %v735
    %737 = vmatprep.subr.mxu0 0.0
    %v738 = vand.u32 %v65, 4294901760
    %v739 = vsub.f32 %v65, %v738
    %740 = vmatpush1.msra.mxu0 %v739
    %741 = vmatprep.subr.mxu0 0.0
    %v742 = vand.u32 %v66, 4294901760
    %v743 = vsub.f32 %v66, %v742
    %744 = vmatpush1.msra.mxu0 %v743
    %745 = vmatprep.subr.mxu0 0.0
    %v746 = vand.u32 %v67, 4294901760
    %v747 = vsub.f32 %v67, %v746
    %748 = vmatpush1.msra.mxu0 %v747
    %749 = vmatprep.subr.mxu0 0.0
    %v750 = vand.u32 %v68, 4294901760
    %v751 = vsub.f32 %v68, %v750
    %752 = vmatpush1.msra.mxu0 %v751
    %753 = vmatprep.subr.mxu0 0.0
    %v754 = vand.u32 %v69, 4294901760
    %v755 = vsub.f32 %v69, %v754
    %756 = vmatpush1.msra.mxu0 %v755
    %757 = vmatprep.subr.mxu0 0.0
    %v758 = vand.u32 %v70, 4294901760
    %v759 = vsub.f32 %v70, %v758
    %760 = vmatpush1.msra.mxu0 %v759
    %761 = vmatprep.subr.mxu0 0.0
    %v762 = vand.u32 %v71, 4294901760
    %v763 = vsub.f32 %v71, %v762
    %764 = vmatpush1.msra.mxu0 %v763
    %765 = vmatprep.subr.mxu0 0.0
    %v766 = vand.u32 %v72, 4294901760
    %v767 = vsub.f32 %v72, %v766
    %768 = vmatpush1.msra.mxu0 %v767
    %769 = vmatprep.subr.mxu0 0.0
    %v770 = vand.u32 %v73, 4294901760
    %v771 = vsub.f32 %v73, %v770
    %772 = vmatpush1.msra.mxu0 %v771
    %773 = vmatprep.subr.mxu0 0.0
    %v774 = vand.u32 %v74, 4294901760
    %v775 = vsub.f32 %v74, %v774
    %776 = vmatpush1.msra.mxu0 %v775
    %777 = vmatprep.subr.mxu0 0.0
    %v778 = vand.u32 %v75, 4294901760
    %v779 = vsub.f32 %v75, %v778
    %780 = vmatpush1.msra.mxu0 %v779
    %781 = vmatprep.subr.mxu0 0.0
    %v782 = vand.u32 %v76, 4294901760
    %v783 = vsub.f32 %v76, %v782
    %784 = vmatpush1.msra.mxu0 %v783
    %785 = vmatprep.subr.mxu0 0.0
    %v786 = vand.u32 %v77, 4294901760
    %v787 = vsub.f32 %v77, %v786
    %788 = vmatpush1.msra.mxu0 %v787
    %789 = vmatprep.subr.mxu0 0.0
    %v790 = vand.u32 %v78, 4294901760
    %v791 = vsub.f32 %v78, %v790
    %792 = vmatpush1.msra.mxu0 %v791
    %793 = vmatprep.subr.mxu0 0.0
    %v794 = vand.u32 %v79, 4294901760
    %v795 = vsub.f32 %v79, %v794
    %796 = vmatpush1.msra.mxu0 %v795
    %797 = vmatprep.subr.mxu0 0.0
    %v798 = vand.u32 %v80, 4294901760
    %v799 = vsub.f32 %v80, %v798
    %800 = vmatpush1.msra.mxu0 %v799
    %v801 = vand.u32 %v313, 4294901760
    %v802 = vsub.f32 %v313, %v801
    %803 = vmatprep.mubr.f32.mxu0 %v802
    %v804 = vand.u32 %v41, 4294901760
    %v805 = vsub.f32 %v41, %v804
    %806 = vmatmul.mubr.f32.gmra.mrb[0].mxu0 %v805
    %v807 = vpop.f32.mrb[0].mxu0
    %v808 = vadd.f32 %v670, %v807
    %v809 = vpop.f32.mrb[0].mxu0
    %810 = vdwg.mxu0
    %811 = vmatprep.subr.mxu0 0.0
    %v812 = vand.u32 %v49, 4294901760
    %813 = vmatpush1.msra.mxu0 %v812
    %814 = vmatprep.subr.mxu0 0.0
    %v815 = vand.u32 %v50, 4294901760
    %816 = vmatpush1.msra.mxu0 %v815
    %817 = vmatprep.subr.mxu0 0.0
    %v818 = vand.u32 %v51, 4294901760
    %819 = vmatpush1.msra.mxu0 %v818
    %820 = vmatprep.subr.mxu0 0.0
    %v821 = vand.u32 %v52, 4294901760
    %822 = vmatpush1.msra.mxu0 %v821
    %823 = vmatprep.subr.mxu0 0.0
    %v824 = vand.u32 %v53, 4294901760
    %825 = vmatpush1.msra.mxu0 %v824
    %826 = vmatprep.subr.mxu0 0.0
    %v827 = vand.u32 %v54, 4294901760
    %828 = vmatpush1.msra.mxu0 %v827
    %829 = vmatprep.subr.mxu0 0.0
    %v830 = vand.u32 %v55, 4294901760
    %831 = vmatpush1.msra.mxu0 %v830
    %832 = vmatprep.subr.mxu0 0.0
    %v833 = vand.u32 %v56, 4294901760
    %834 = vmatpush1.msra.mxu0 %v833
    %835 = vmatprep.subr.mxu0 0.0
    %v836 = vand.u32 %v57, 4294901760
    %837 = vmatpush1.msra.mxu0 %v836
    %838 = vmatprep.subr.mxu0 0.0
    %v839 = vand.u32 %v58, 4294901760
    %840 = vmatpush1.msra.mxu0 %v839
    %841 = vmatprep.subr.mxu0 0.0
    %v842 = vand.u32 %v59, 4294901760
    %843 = vmatpush1.msra.mxu0 %v842
    %844 = vmatprep.subr.mxu0 0.0
    %v845 = vand.u32 %v60, 4294901760
    %846 = vmatpush1.msra.mxu0 %v845
    %847 = vmatprep.subr.mxu0 0.0
    %v848 = vand.u32 %v61, 4294901760
    %849 = vmatpush1.msra.mxu0 %v848
    %850 = vmatprep.subr.mxu0 0.0
    %v851 = vand.u32 %v62, 4294901760
    %852 = vmatpush1.msra.mxu0 %v851
    %853 = vmatprep.subr.mxu0 0.0
    %v854 = vand.u32 %v63, 4294901760
    %855 = vmatpush1.msra.mxu0 %v854
    %856 = vmatprep.subr.mxu0 0.0
    %v857 = vand.u32 %v64, 4294901760
    %858 = vmatpush1.msra.mxu0 %v857
    %859 = vmatprep.subr.mxu0 0.0
    %v860 = vand.u32 %v65, 4294901760
    %861 = vmatpush1.msra.mxu0 %v860
    %862 = vmatprep.subr.mxu0 0.0
    %v863 = vand.u32 %v66, 4294901760
    %864 = vmatpush1.msra.mxu0 %v863
    %865 = vmatprep.subr.mxu0 0.0
    %v866 = vand.u32 %v67, 4294901760
    %867 = vmatpush1.msra.mxu0 %v866
    %868 = vmatprep.subr.mxu0 0.0
    %v869 = vand.u32 %v68, 4294901760
    %870 = vmatpush1.msra.mxu0 %v869
    %871 = vmatprep.subr.mxu0 0.0
    %v872 = vand.u32 %v69, 4294901760
    %873 = vmatpush1.msra.mxu0 %v872
    %874 = vmatprep.subr.mxu0 0.0
    %v875 = vand.u32 %v70, 4294901760
    %876 = vmatpush1.msra.mxu0 %v875
    %877 = vmatprep.subr.mxu0 0.0
    %v878 = vand.u32 %v71, 4294901760
    %879 = vmatpush1.msra.mxu0 %v878
    %880 = vmatprep.subr.mxu0 0.0
    %v881 = vand.u32 %v72, 4294901760
    %882 = vmatpush1.msra.mxu0 %v881
    %883 = vmatprep.subr.mxu0 0.0
    %v884 = vand.u32 %v73, 4294901760
    %885 = vmatpush1.msra.mxu0 %v884
    %886 = vmatprep.subr.mxu0 0.0
    %v887 = vand.u32 %v74, 4294901760
    %888 = vmatpush1.msra.mxu0 %v887
    %889 = vmatprep.subr.mxu0 0.0
    %v890 = vand.u32 %v75, 4294901760
    %891 = vmatpush1.msra.mxu0 %v890
    %892 = vmatprep.subr.mxu0 0.0
    %v893 = vand.u32 %v76, 4294901760
    %894 = vmatpush1.msra.mxu0 %v893
    %895 = vmatprep.subr.mxu0 0.0
    %v896 = vand.u32 %v77, 4294901760
    %897 = vmatpush1.msra.mxu0 %v896
    %898 = vmatprep.subr.mxu0 0.0
    %v899 = vand.u32 %v78, 4294901760
    %900 = vmatpush1.msra.mxu0 %v899
    %901 = vmatprep.subr.mxu0 0.0
    %v902 = vand.u32 %v79, 4294901760
    %903 = vmatpush1.msra.mxu0 %v902
    %904 = vmatprep.subr.mxu0 0.0
    %v905 = vand.u32 %v80, 4294901760
    %906 = vmatpush1.msra.mxu0 %v905
    %v907 = vand.u32 %v313, 4294901760
    %v908 = vsub.f32 %v313, %v907
    %v909 = vand.u32 %v908, 4294901760
    %910 = vmatprep.mubr.f32.mxu0 %v909
    %v911 = vand.u32 %v41, 4294901760
    %v912 = vsub.f32 %v41, %v911
    %v913 = vand.u32 %v912, 4294901760
    %914 = vmatmul.mubr.f32.gmra.mrb[0].mxu0 %v913
    %v915 = vpop.f32.mrb[0].mxu0
    %v916 = vadd.f32 %v808, %v915
    %v917 = vpop.f32.mrb[0].mxu0
    %918 = vdwg.mxu0
    %919 = vmatprep.subr.mxu0 0.0
    %v920 = vand.u32 %v49, 4294901760
    %v921 = vsub.f32 %v49, %v920
    %v922 = vand.u32 %v921, 4294901760
    %923 = vmatpush1.msra.mxu0 %v922
    %924 = vmatprep.subr.mxu0 0.0
    %v925 = vand.u32 %v50, 4294901760
    %v926 = vsub.f32 %v50, %v925
    %v927 = vand.u32 %v926, 4294901760
    %928 = vmatpush1.msra.mxu0 %v927
    %929 = vmatprep.subr.mxu0 0.0
    %v930 = vand.u32 %v51, 4294901760
    %v931 = vsub.f32 %v51, %v930
    %v932 = vand.u32 %v931, 4294901760
    %933 = vmatpush1.msra.mxu0 %v932
    %934 = vmatprep.subr.mxu0 0.0
    %v935 = vand.u32 %v52, 4294901760
    %v936 = vsub.f32 %v52, %v935
    %v937 = vand.u32 %v936, 4294901760
    %938 = vmatpush1.msra.mxu0 %v937
    %939 = vmatprep.subr.mxu0 0.0
    %v940 = vand.u32 %v53, 4294901760
    %v941 = vsub.f32 %v53, %v940
    %v942 = vand.u32 %v941, 4294901760
    %943 = vmatpush1.msra.mxu0 %v942
    %944 = vmatprep.subr.mxu0 0.0
    %v945 = vand.u32 %v54, 4294901760
    %v946 = vsub.f32 %v54, %v945
    %v947 = vand.u32 %v946, 4294901760
    %948 = vmatpush1.msra.mxu0 %v947
    %949 = vmatprep.subr.mxu0 0.0
    %v950 = vand.u32 %v55, 4294901760
    %v951 = vsub.f32 %v55, %v950
    %v952 = vand.u32 %v951, 4294901760
    %953 = vmatpush1.msra.mxu0 %v952
    %954 = vmatprep.subr.mxu0 0.0
    %v955 = vand.u32 %v56, 4294901760
    %v956 = vsub.f32 %v56, %v955
    %v957 = vand.u32 %v956, 4294901760
    %958 = vmatpush1.msra.mxu0 %v957
    %959 = vmatprep.subr.mxu0 0.0
    %v960 = vand.u32 %v57, 4294901760
    %v961 = vsub.f32 %v57, %v960
    %v962 = vand.u32 %v961, 4294901760
    %963 = vmatpush1.msra.mxu0 %v962
    %964 = vmatprep.subr.mxu0 0.0
    %v965 = vand.u32 %v58, 4294901760
    %v966 = vsub.f32 %v58, %v965
    %v967 = vand.u32 %v966, 4294901760
    %968 = vmatpush1.msra.mxu0 %v967
    %969 = vmatprep.subr.mxu0 0.0
    %v970 = vand.u32 %v59, 4294901760
    %v971 = vsub.f32 %v59, %v970
    %v972 = vand.u32 %v971, 4294901760
    %973 = vmatpush1.msra.mxu0 %v972
    %974 = vmatprep.subr.mxu0 0.0
    %v975 = vand.u32 %v60, 4294901760
    %v976 = vsub.f32 %v60, %v975
    %v977 = vand.u32 %v976, 4294901760
    %978 = vmatpush1.msra.mxu0 %v977
    %979 = vmatprep.subr.mxu0 0.0
    %v980 = vand.u32 %v61, 4294901760
    %v981 = vsub.f32 %v61, %v980
    %v982 = vand.u32 %v981, 4294901760
    %983 = vmatpush1.msra.mxu0 %v982
    %984 = vmatprep.subr.mxu0 0.0
    %v985 = vand.u32 %v62, 4294901760
    %v986 = vsub.f32 %v62, %v985
    %v987 = vand.u32 %v986, 4294901760
    %988 = vmatpush1.msra.mxu0 %v987
    %989 = vmatprep.subr.mxu0 0.0
    %v990 = vand.u32 %v63, 4294901760
    %v991 = vsub.f32 %v63, %v990
    %v992 = vand.u32 %v991, 4294901760
    %993 = vmatpush1.msra.mxu0 %v992
    %994 = vmatprep.subr.mxu0 0.0
    %v995 = vand.u32 %v64, 4294901760
    %v996 = vsub.f32 %v64, %v995
    %v997 = vand.u32 %v996, 4294901760
    %998 = vmatpush1.msra.mxu0 %v997
    %999 = vmatprep.subr.mxu0 0.0
    %v1000 = vand.u32 %v65, 4294901760
    %v1001 = vsub.f32 %v65, %v1000
    %v1002 = vand.u32 %v1001, 4294901760
    %1003 = vmatpush1.msra.mxu0 %v1002
    %1004 = vmatprep.subr.mxu0 0.0
    %v1005 = vand.u32 %v66, 4294901760
    %v1006 = vsub.f32 %v66, %v1005
    %v1007 = vand.u32 %v1006, 4294901760
    %1008 = vmatpush1.msra.mxu0 %v1007
    %1009 = vmatprep.subr.mxu0 0.0
    %v1010 = vand.u32 %v67, 4294901760
    %v1011 = vsub.f32 %v67, %v1010
    %v1012 = vand.u32 %v1011, 4294901760
    %1013 = vmatpush1.msra.mxu0 %v1012
    %1014 = vmatprep.subr.mxu0 0.0
    %v1015 = vand.u32 %v68, 4294901760
    %v1016 = vsub.f32 %v68, %v1015
    %v1017 = vand.u32 %v1016, 4294901760
    %1018 = vmatpush1.msra.mxu0 %v1017
    %1019 = vmatprep.subr.mxu0 0.0
    %v1020 = vand.u32 %v69, 4294901760
    %v1021 = vsub.f32 %v69, %v1020
    %v1022 = vand.u32 %v1021, 4294901760
    %1023 = vmatpush1.msra.mxu0 %v1022
    %1024 = vmatprep.subr.mxu0 0.0
    %v1025 = vand.u32 %v70, 4294901760
    %v1026 = vsub.f32 %v70, %v1025
    %v1027 = vand.u32 %v1026, 4294901760
    %1028 = vmatpush1.msra.mxu0 %v1027
    %1029 = vmatprep.subr.mxu0 0.0
    %v1030 = vand.u32 %v71, 4294901760
    %v1031 = vsub.f32 %v71, %v1030
    %v1032 = vand.u32 %v1031, 4294901760
    %1033 = vmatpush1.msra.mxu0 %v1032
    %1034 = vmatprep.subr.mxu0 0.0
    %v1035 = vand.u32 %v72, 4294901760
    %v1036 = vsub.f32 %v72, %v1035
    %v1037 = vand.u32 %v1036, 4294901760
    %1038 = vmatpush1.msra.mxu0 %v1037
    %1039 = vmatprep.subr.mxu0 0.0
    %v1040 = vand.u32 %v73, 4294901760
    %v1041 = vsub.f32 %v73, %v1040
    %v1042 = vand.u32 %v1041, 4294901760
    %1043 = vmatpush1.msra.mxu0 %v1042
    %1044 = vmatprep.subr.mxu0 0.0
    %v1045 = vand.u32 %v74, 4294901760
    %v1046 = vsub.f32 %v74, %v1045
    %v1047 = vand.u32 %v1046, 4294901760
    %1048 = vmatpush1.msra.mxu0 %v1047
    %1049 = vmatprep.subr.mxu0 0.0
    %v1050 = vand.u32 %v75, 4294901760
    %v1051 = vsub.f32 %v75, %v1050
    %v1052 = vand.u32 %v1051, 4294901760
    %1053 = vmatpush1.msra.mxu0 %v1052
    %1054 = vmatprep.subr.mxu0 0.0
    %v1055 = vand.u32 %v76, 4294901760
    %v1056 = vsub.f32 %v76, %v1055
    %v1057 = vand.u32 %v1056, 4294901760
    %1058 = vmatpush1.msra.mxu0 %v1057
    %1059 = vmatprep.subr.mxu0 0.0
    %v1060 = vand.u32 %v77, 4294901760
    %v1061 = vsub.f32 %v77, %v1060
    %v1062 = vand.u32 %v1061, 4294901760
    %1063 = vmatpush1.msra.mxu0 %v1062
    %1064 = vmatprep.subr.mxu0 0.0
    %v1065 = vand.u32 %v78, 4294901760
    %v1066 = vsub.f32 %v78, %v1065
    %v1067 = vand.u32 %v1066, 4294901760
    %1068 = vmatpush1.msra.mxu0 %v1067
    %1069 = vmatprep.subr.mxu0 0.0
    %v1070 = vand.u32 %v79, 4294901760
    %v1071 = vsub.f32 %v79, %v1070
    %v1072 = vand.u32 %v1071, 4294901760
    %1073 = vmatpush1.msra.mxu0 %v1072
    %1074 = vmatprep.subr.mxu0 0.0
    %v1075 = vand.u32 %v80, 4294901760
    %v1076 = vsub.f32 %v80, %v1075
    %v1077 = vand.u32 %v1076, 4294901760
    %1078 = vmatpush1.msra.mxu0 %v1077
    %v1079 = vand.u32 %v313, 4294901760
    %1080 = vmatprep.mubr.f32.mxu0 %v1079
    %v1081 = vand.u32 %v41, 4294901760
    %1082 = vmatmul.mubr.f32.gmra.mrb[0].mxu0 %v1081
    %v1083 = vpop.f32.mrb[0].mxu0
    %v1084 = vadd.f32 %v916, %v1083
    %v1085 = vpop.f32.mrb[0].mxu0
    %1086 = vdwg.mxu0
    %1087 = vmatprep.subr.mxu0 0.0
    %v1088 = vand.u32 %v49, 4294901760
    %1089 = vmatpush1.msra.mxu0 %v1088
    %1090 = vmatprep.subr.mxu0 0.0
    %v1091 = vand.u32 %v50, 4294901760
    %1092 = vmatpush1.msra.mxu0 %v1091
    %1093 = vmatprep.subr.mxu0 0.0
    %v1094 = vand.u32 %v51, 4294901760
    %1095 = vmatpush1.msra.mxu0 %v1094
    %1096 = vmatprep.subr.mxu0 0.0
    %v1097 = vand.u32 %v52, 4294901760
    %1098 = vmatpush1.msra.mxu0 %v1097
    %1099 = vmatprep.subr.mxu0 0.0
    %v1100 = vand.u32 %v53, 4294901760
    %1101 = vmatpush1.msra.mxu0 %v1100
    %1102 = vmatprep.subr.mxu0 0.0
    %v1103 = vand.u32 %v54, 4294901760
    %1104 = vmatpush1.msra.mxu0 %v1103
    %1105 = vmatprep.subr.mxu0 0.0
    %v1106 = vand.u32 %v55, 4294901760
    %1107 = vmatpush1.msra.mxu0 %v1106
    %1108 = vmatprep.subr.mxu0 0.0
    %v1109 = vand.u32 %v56, 4294901760
    %1110 = vmatpush1.msra.mxu0 %v1109
    %1111 = vmatprep.subr.mxu0 0.0
    %v1112 = vand.u32 %v57, 4294901760
    %1113 = vmatpush1.msra.mxu0 %v1112
    %1114 = vmatprep.subr.mxu0 0.0
    %v1115 = vand.u32 %v58, 4294901760
    %1116 = vmatpush1.msra.mxu0 %v1115
    %1117 = vmatprep.subr.mxu0 0.0
    %v1118 = vand.u32 %v59, 4294901760
    %1119 = vmatpush1.msra.mxu0 %v1118
    %1120 = vmatprep.subr.mxu0 0.0
    %v1121 = vand.u32 %v60, 4294901760
    %1122 = vmatpush1.msra.mxu0 %v1121
    %1123 = vmatprep.subr.mxu0 0.0
    %v1124 = vand.u32 %v61, 4294901760
    %1125 = vmatpush1.msra.mxu0 %v1124
    %1126 = vmatprep.subr.mxu0 0.0
    %v1127 = vand.u32 %v62, 4294901760
    %1128 = vmatpush1.msra.mxu0 %v1127
    %1129 = vmatprep.subr.mxu0 0.0
    %v1130 = vand.u32 %v63, 4294901760
    %1131 = vmatpush1.msra.mxu0 %v1130
    %1132 = vmatprep.subr.mxu0 0.0
    %v1133 = vand.u32 %v64, 4294901760
    %1134 = vmatpush1.msra.mxu0 %v1133
    %1135 = vmatprep.subr.mxu0 0.0
    %v1136 = vand.u32 %v65, 4294901760
    %1137 = vmatpush1.msra.mxu0 %v1136
    %1138 = vmatprep.subr.mxu0 0.0
    %v1139 = vand.u32 %v66, 4294901760
    %1140 = vmatpush1.msra.mxu0 %v1139
    %1141 = vmatprep.subr.mxu0 0.0
    %v1142 = vand.u32 %v67, 4294901760
    %1143 = vmatpush1.msra.mxu0 %v1142
    %1144 = vmatprep.subr.mxu0 0.0
    %v1145 = vand.u32 %v68, 4294901760
    %1146 = vmatpush1.msra.mxu0 %v1145
    %1147 = vmatprep.subr.mxu0 0.0
    %v1148 = vand.u32 %v69, 4294901760
    %1149 = vmatpush1.msra.mxu0 %v1148
    %1150 = vmatprep.subr.mxu0 0.0
    %v1151 = vand.u32 %v70, 4294901760
    %1152 = vmatpush1.msra.mxu0 %v1151
    %1153 = vmatprep.subr.mxu0 0.0
    %v1154 = vand.u32 %v71, 4294901760
    %1155 = vmatpush1.msra.mxu0 %v1154
    %1156 = vmatprep.subr.mxu0 0.0
    %v1157 = vand.u32 %v72, 4294901760
    %1158 = vmatpush1.msra.mxu0 %v1157
    %1159 = vmatprep.subr.mxu0 0.0
    %v1160 = vand.u32 %v73, 4294901760
    %1161 = vmatpush1.msra.mxu0 %v1160
    %1162 = vmatprep.subr.mxu0 0.0
    %v1163 = vand.u32 %v74, 4294901760
    %1164 = vmatpush1.msra.mxu0 %v1163
    %1165 = vmatprep.subr.mxu0 0.0
    %v1166 = vand.u32 %v75, 4294901760
    %1167 = vmatpush1.msra.mxu0 %v1166
    %1168 = vmatprep.subr.mxu0 0.0
    %v1169 = vand.u32 %v76, 4294901760
    %1170 = vmatpush1.msra.mxu0 %v1169
    %1171 = vmatprep.subr.mxu0 0.0
    %v1172 = vand.u32 %v77, 4294901760
    %1173 = vmatpush1.msra.mxu0 %v1172
    %1174 = vmatprep.subr.mxu0 0.0
    %v1175 = vand.u32 %v78, 4294901760
    %1176 = vmatpush1.msra.mxu0 %v1175
    %1177 = vmatprep.subr.mxu0 0.0
    %v1178 = vand.u32 %v79, 4294901760
    %1179 = vmatpush1.msra.mxu0 %v1178
    %1180 = vmatprep.subr.mxu0 0.0
    %v1181 = vand.u32 %v80, 4294901760
    %1182 = vmatpush1.msra.mxu0 %v1181
    %v1183 = vand.u32 %v313, 4294901760
    %1184 = vmatprep.mubr.f32.mxu0 %v1183
    %v1185 = vand.u32 %v41, 4294901760
    %1186 = vmatmul.mubr.f32.gmra.mrb[0].mxu0 %v1185
    %v1187 = vpop.f32.mrb[0].mxu0
    %v1188 = vadd.f32 %v1084, %v1187
    %v1189 = vpop.f32.mrb[0].mxu0
    %1190 = vdwg.mxu0
    %1191 = vmatprep.subr.mxu0 0.0
    %v1192 = vand.u32 %v81, 4294901760
    %1193 = vmatpush1.msra.mxu0 %v1192
    %1194 = vmatprep.subr.mxu0 0.0
    %v1195 = vand.u32 %v82, 4294901760
    %1196 = vmatpush1.msra.mxu0 %v1195
    %1197 = vmatprep.subr.mxu0 0.0
    %v1198 = vand.u32 %v83, 4294901760
    %1199 = vmatpush1.msra.mxu0 %v1198
    %1200 = vmatprep.subr.mxu0 0.0
    %v1201 = vand.u32 %v84, 4294901760
    %1202 = vmatpush1.msra.mxu0 %v1201
    %1203 = vmatprep.subr.mxu0 0.0
    %v1204 = vand.u32 %v85, 4294901760
    %1205 = vmatpush1.msra.mxu0 %v1204
    %1206 = vmatprep.subr.mxu0 0.0
    %v1207 = vand.u32 %v86, 4294901760
    %1208 = vmatpush1.msra.mxu0 %v1207
    %1209 = vmatprep.subr.mxu0 0.0
    %v1210 = vand.u32 %v87, 4294901760
    %1211 = vmatpush1.msra.mxu0 %v1210
    %1212 = vmatprep.subr.mxu0 0.0
    %v1213 = vand.u32 %v88, 4294901760
    %1214 = vmatpush1.msra.mxu0 %v1213
    %1215 = vmatprep.subr.mxu0 0.0
    %v1216 = vand.u32 %v89, 4294901760
    %1217 = vmatpush1.msra.mxu0 %v1216
    %1218 = vmatprep.subr.mxu0 0.0
    %v1219 = vand.u32 %v90, 4294901760
    %1220 = vmatpush1.msra.mxu0 %v1219
    %1221 = vmatprep.subr.mxu0 0.0
    %v1222 = vand.u32 %v91, 4294901760
    %1223 = vmatpush1.msra.mxu0 %v1222
    %1224 = vmatprep.subr.mxu0 0.0
    %v1225 = vand.u32 %v92, 4294901760
    %1226 = vmatpush1.msra.mxu0 %v1225
    %1227 = vmatprep.subr.mxu0 0.0
    %v1228 = vand.u32 %v93, 4294901760
    %1229 = vmatpush1.msra.mxu0 %v1228
    %1230 = vmatprep.subr.mxu0 0.0
    %v1231 = vand.u32 %v94, 4294901760
    %1232 = vmatpush1.msra.mxu0 %v1231
    %1233 = vmatprep.subr.mxu0 0.0
    %v1234 = vand.u32 %v95, 4294901760
    %1235 = vmatpush1.msra.mxu0 %v1234
    %1236 = vmatprep.subr.mxu0 0.0
    %v1237 = vand.u32 %v96, 4294901760
    %1238 = vmatpush1.msra.mxu0 %v1237
    %1239 = vmatprep.subr.mxu0 0.0
    %v1240 = vand.u32 %v97, 4294901760
    %1241 = vmatpush1.msra.mxu0 %v1240
    %1242 = vmatprep.subr.mxu0 0.0
    %v1243 = vand.u32 %v98, 4294901760
    %1244 = vmatpush1.msra.mxu0 %v1243
    %1245 = vmatprep.subr.mxu0 0.0
    %v1246 = vand.u32 %v99, 4294901760
    %1247 = vmatpush1.msra.mxu0 %v1246
    %1248 = vmatprep.subr.mxu0 0.0
    %v1249 = vand.u32 %v100, 4294901760
    %1250 = vmatpush1.msra.mxu0 %v1249
    %1251 = vmatprep.subr.mxu0 0.0
    %v1252 = vand.u32 %v101, 4294901760
    %1253 = vmatpush1.msra.mxu0 %v1252
    %1254 = vmatprep.subr.mxu0 0.0
    %v1255 = vand.u32 %v102, 4294901760
    %1256 = vmatpush1.msra.mxu0 %v1255
    %1257 = vmatprep.subr.mxu0 0.0
    %v1258 = vand.u32 %v103, 4294901760
    %1259 = vmatpush1.msra.mxu0 %v1258
    %1260 = vmatprep.subr.mxu0 0.0
    %v1261 = vand.u32 %v104, 4294901760
    %1262 = vmatpush1.msra.mxu0 %v1261
    %1263 = vmatprep.subr.mxu0 0.0
    %v1264 = vand.u32 %v105, 4294901760
    %1265 = vmatpush1.msra.mxu0 %v1264
    %1266 = vmatprep.subr.mxu0 0.0
    %v1267 = vand.u32 %v106, 4294901760
    %1268 = vmatpush1.msra.mxu0 %v1267
    %1269 = vmatprep.subr.mxu0 0.0
    %v1270 = vand.u32 %v107, 4294901760
    %1271 = vmatpush1.msra.mxu0 %v1270
    %1272 = vmatprep.subr.mxu0 0.0
    %v1273 = vand.u32 %v108, 4294901760
    %1274 = vmatpush1.msra.mxu0 %v1273
    %1275 = vmatprep.subr.mxu0 0.0
    %v1276 = vand.u32 %v109, 4294901760
    %1277 = vmatpush1.msra.mxu0 %v1276
    %1278 = vmatprep.subr.mxu0 0.0
    %v1279 = vand.u32 %v110, 4294901760
    %1280 = vmatpush1.msra.mxu0 %v1279
    %1281 = vmatprep.subr.mxu0 0.0
    %v1282 = vand.u32 %v111, 4294901760
    %1283 = vmatpush1.msra.mxu0 %v1282
    %1284 = vmatprep.subr.mxu0 0.0
    %v1285 = vand.u32 %v112, 4294901760
    %1286 = vmatpush1.msra.mxu0 %v1285
    %v1287 = vand.u32 %v314, 4294901760
    %v1288 = vsub.f32 %v314, %v1287
    %v1289 = vand.u32 %v1288, 4294901760
    %v1290 = vsub.f32 %v1288, %v1289
    %v1291 = vand.u32 %v1290, 4294901760
    %1292 = vmatprep.mubr.f32.mxu0 %v1291
    %v1293 = vand.u32 %v42, 4294901760
    %v1294 = vsub.f32 %v42, %v1293
    %v1295 = vand.u32 %v1294, 4294901760
    %v1296 = vsub.f32 %v1294, %v1295
    %v1297 = vand.u32 %v1296, 4294901760
    %1298 = vmatmul.mubr.f32.gmra.mrb[0].mxu0 %v1297
    %v1299 = vpop.f32.mrb[0].mxu0
    %v1300 = vadd.f32 %v1188, %v1299
    %v1301 = vpop.f32.mrb[0].mxu0
    %1302 = vdwg.mxu0
    %1303 = vmatprep.subr.mxu0 0.0
    %v1304 = vand.u32 %v81, 4294901760
    %v1305 = vsub.f32 %v81, %v1304
    %v1306 = vand.u32 %v1305, 4294901760
    %v1307 = vsub.f32 %v1305, %v1306
    %v1308 = vand.u32 %v1307, 4294901760
    %1309 = vmatpush1.msra.mxu0 %v1308
    %1310 = vmatprep.subr.mxu0 0.0
    %v1311 = vand.u32 %v82, 4294901760
    %v1312 = vsub.f32 %v82, %v1311
    %v1313 = vand.u32 %v1312, 4294901760
    %v1314 = vsub.f32 %v1312, %v1313
    %v1315 = vand.u32 %v1314, 4294901760
    %1316 = vmatpush1.msra.mxu0 %v1315
    %1317 = vmatprep.subr.mxu0 0.0
    %v1318 = vand.u32 %v83, 4294901760
    %v1319 = vsub.f32 %v83, %v1318
    %v1320 = vand.u32 %v1319, 4294901760
    %v1321 = vsub.f32 %v1319, %v1320
    %v1322 = vand.u32 %v1321, 4294901760
    %1323 = vmatpush1.msra.mxu0 %v1322
    %1324 = vmatprep.subr.mxu0 0.0
    %v1325 = vand.u32 %v84, 4294901760
    %v1326 = vsub.f32 %v84, %v1325
    %v1327 = vand.u32 %v1326, 4294901760
    %v1328 = vsub.f32 %v1326, %v1327
    %v1329 = vand.u32 %v1328, 4294901760
    %1330 = vmatpush1.msra.mxu0 %v1329
    %1331 = vmatprep.subr.mxu0 0.0
    %v1332 = vand.u32 %v85, 4294901760
    %v1333 = vsub.f32 %v85, %v1332
    %v1334 = vand.u32 %v1333, 4294901760
    %v1335 = vsub.f32 %v1333, %v1334
    %v1336 = vand.u32 %v1335, 4294901760
    %1337 = vmatpush1.msra.mxu0 %v1336
    %1338 = vmatprep.subr.mxu0 0.0
    %v1339 = vand.u32 %v86, 4294901760
    %v1340 = vsub.f32 %v86, %v1339
    %v1341 = vand.u32 %v1340, 4294901760
    %v1342 = vsub.f32 %v1340, %v1341
    %v1343 = vand.u32 %v1342, 4294901760
    %1344 = vmatpush1.msra.mxu0 %v1343
    %1345 = vmatprep.subr.mxu0 0.0
    %v1346 = vand.u32 %v87, 4294901760
    %v1347 = vsub.f32 %v87, %v1346
    %v1348 = vand.u32 %v1347, 4294901760
    %v1349 = vsub.f32 %v1347, %v1348
    %v1350 = vand.u32 %v1349, 4294901760
    %1351 = vmatpush1.msra.mxu0 %v1350
    %1352 = vmatprep.subr.mxu0 0.0
    %v1353 = vand.u32 %v88, 4294901760
    %v1354 = vsub.f32 %v88, %v1353
    %v1355 = vand.u32 %v1354, 4294901760
    %v1356 = vsub.f32 %v1354, %v1355
    %v1357 = vand.u32 %v1356, 4294901760
    %1358 = vmatpush1.msra.mxu0 %v1357
    %1359 = vmatprep.subr.mxu0 0.0
    %v1360 = vand.u32 %v89, 4294901760
    %v1361 = vsub.f32 %v89, %v1360
    %v1362 = vand.u32 %v1361, 4294901760
    %v1363 = vsub.f32 %v1361, %v1362
    %v1364 = vand.u32 %v1363, 4294901760
    %1365 = vmatpush1.msra.mxu0 %v1364
    %1366 = vmatprep.subr.mxu0 0.0
    %v1367 = vand.u32 %v90, 4294901760
    %v1368 = vsub.f32 %v90, %v1367
    %v1369 = vand.u32 %v1368, 4294901760
    %v1370 = vsub.f32 %v1368, %v1369
    %v1371 = vand.u32 %v1370, 4294901760
    %1372 = vmatpush1.msra.mxu0 %v1371
    %1373 = vmatprep.subr.mxu0 0.0
    %v1374 = vand.u32 %v91, 4294901760
    %v1375 = vsub.f32 %v91, %v1374
    %v1376 = vand.u32 %v1375, 4294901760
    %v1377 = vsub.f32 %v1375, %v1376
    %v1378 = vand.u32 %v1377, 4294901760
    %1379 = vmatpush1.msra.mxu0 %v1378
    %1380 = vmatprep.subr.mxu0 0.0
    %v1381 = vand.u32 %v92, 4294901760
    %v1382 = vsub.f32 %v92, %v1381
    %v1383 = vand.u32 %v1382, 4294901760
    %v1384 = vsub.f32 %v1382, %v1383
    %v1385 = vand.u32 %v1384, 4294901760
    %1386 = vmatpush1.msra.mxu0 %v1385
    %1387 = vmatprep.subr.mxu0 0.0
    %v1388 = vand.u32 %v93, 4294901760
    %v1389 = vsub.f32 %v93, %v1388
    %v1390 = vand.u32 %v1389, 4294901760
    %v1391 = vsub.f32 %v1389, %v1390
    %v1392 = vand.u32 %v1391, 4294901760
    %1393 = vmatpush1.msra.mxu0 %v1392
    %1394 = vmatprep.subr.mxu0 0.0
    %v1395 = vand.u32 %v94, 4294901760
    %v1396 = vsub.f32 %v94, %v1395
    %v1397 = vand.u32 %v1396, 4294901760
    %v1398 = vsub.f32 %v1396, %v1397
    %v1399 = vand.u32 %v1398, 4294901760
    %1400 = vmatpush1.msra.mxu0 %v1399
    %1401 = vmatprep.subr.mxu0 0.0
    %v1402 = vand.u32 %v95, 4294901760
    %v1403 = vsub.f32 %v95, %v1402
    %v1404 = vand.u32 %v1403, 4294901760
    %v1405 = vsub.f32 %v1403, %v1404
    %v1406 = vand.u32 %v1405, 4294901760
    %1407 = vmatpush1.msra.mxu0 %v1406
    %1408 = vmatprep.subr.mxu0 0.0
    %v1409 = vand.u32 %v96, 4294901760
    %v1410 = vsub.f32 %v96, %v1409
    %v1411 = vand.u32 %v1410, 4294901760
    %v1412 = vsub.f32 %v1410, %v1411
    %v1413 = vand.u32 %v1412, 4294901760
    %1414 = vmatpush1.msra.mxu0 %v1413
    %1415 = vmatprep.subr.mxu0 0.0
    %v1416 = vand.u32 %v97, 4294901760
    %v1417 = vsub.f32 %v97, %v1416
    %v1418 = vand.u32 %v1417, 4294901760
    %v1419 = vsub.f32 %v1417, %v1418
    %v1420 = vand.u32 %v1419, 4294901760
    %1421 = vmatpush1.msra.mxu0 %v1420
    %1422 = vmatprep.subr.mxu0 0.0
    %v1423 = vand.u32 %v98, 4294901760
    %v1424 = vsub.f32 %v98, %v1423
    %v1425 = vand.u32 %v1424, 4294901760
    %v1426 = vsub.f32 %v1424, %v1425
    %v1427 = vand.u32 %v1426, 4294901760
    %1428 = vmatpush1.msra.mxu0 %v1427
    %1429 = vmatprep.subr.mxu0 0.0
    %v1430 = vand.u32 %v99, 4294901760
    %v1431 = vsub.f32 %v99, %v1430
    %v1432 = vand.u32 %v1431, 4294901760
    %v1433 = vsub.f32 %v1431, %v1432
    %v1434 = vand.u32 %v1433, 4294901760
    %1435 = vmatpush1.msra.mxu0 %v1434
    %1436 = vmatprep.subr.mxu0 0.0
    %v1437 = vand.u32 %v100, 4294901760
    %v1438 = vsub.f32 %v100, %v1437
    %v1439 = vand.u32 %v1438, 4294901760
    %v1440 = vsub.f32 %v1438, %v1439
    %v1441 = vand.u32 %v1440, 4294901760
    %1442 = vmatpush1.msra.mxu0 %v1441
    %1443 = vmatprep.subr.mxu0 0.0
    %v1444 = vand.u32 %v101, 4294901760
    %v1445 = vsub.f32 %v101, %v1444
    %v1446 = vand.u32 %v1445, 4294901760
    %v1447 = vsub.f32 %v1445, %v1446
    %v1448 = vand.u32 %v1447, 4294901760
    %1449 = vmatpush1.msra.mxu0 %v1448
    %1450 = vmatprep.subr.mxu0 0.0
    %v1451 = vand.u32 %v102, 4294901760
    %v1452 = vsub.f32 %v102, %v1451
    %v1453 = vand.u32 %v1452, 4294901760
    %v1454 = vsub.f32 %v1452, %v1453
    %v1455 = vand.u32 %v1454, 4294901760
    %1456 = vmatpush1.msra.mxu0 %v1455
    %1457 = vmatprep.subr.mxu0 0.0
    %v1458 = vand.u32 %v103, 4294901760
    %v1459 = vsub.f32 %v103, %v1458
    %v1460 = vand.u32 %v1459, 4294901760
    %v1461 = vsub.f32 %v1459, %v1460
    %v1462 = vand.u32 %v1461, 4294901760
    %1463 = vmatpush1.msra.mxu0 %v1462
    %1464 = vmatprep.subr.mxu0 0.0
    %v1465 = vand.u32 %v104, 4294901760
    %v1466 = vsub.f32 %v104, %v1465
    %v1467 = vand.u32 %v1466, 4294901760
    %v1468 = vsub.f32 %v1466, %v1467
    %v1469 = vand.u32 %v1468, 4294901760
    %1470 = vmatpush1.msra.mxu0 %v1469
    %1471 = vmatprep.subr.mxu0 0.0
    %v1472 = vand.u32 %v105, 4294901760
    %v1473 = vsub.f32 %v105, %v1472
    %v1474 = vand.u32 %v1473, 4294901760
    %v1475 = vsub.f32 %v1473, %v1474
    %v1476 = vand.u32 %v1475, 4294901760
    %1477 = vmatpush1.msra.mxu0 %v1476
    %1478 = vmatprep.subr.mxu0 0.0
    %v1479 = vand.u32 %v106, 4294901760
    %v1480 = vsub.f32 %v106, %v1479
    %v1481 = vand.u32 %v1480, 4294901760
    %v1482 = vsub.f32 %v1480, %v1481
    %v1483 = vand.u32 %v1482, 4294901760
    %1484 = vmatpush1.msra.mxu0 %v1483
    %1485 = vmatprep.subr.mxu0 0.0
    %v1486 = vand.u32 %v107, 4294901760
    %v1487 = vsub.f32 %v107, %v1486
    %v1488 = vand.u32 %v1487, 4294901760
    %v1489 = vsub.f32 %v1487, %v1488
    %v1490 = vand.u32 %v1489, 4294901760
    %1491 = vmatpush1.msra.mxu0 %v1490
    %1492 = vmatprep.subr.mxu0 0.0
    %v1493 = vand.u32 %v108, 4294901760
    %v1494 = vsub.f32 %v108, %v1493
    %v1495 = vand.u32 %v1494, 4294901760
    %v1496 = vsub.f32 %v1494, %v1495
    %v1497 = vand.u32 %v1496, 4294901760
    %1498 = vmatpush1.msra.mxu0 %v1497
    %1499 = vmatprep.subr.mxu0 0.0
    %v1500 = vand.u32 %v109, 4294901760
    %v1501 = vsub.f32 %v109, %v1500
    %v1502 = vand.u32 %v1501, 4294901760
    %v1503 = vsub.f32 %v1501, %v1502
    %v1504 = vand.u32 %v1503, 4294901760
    %1505 = vmatpush1.msra.mxu0 %v1504
    %1506 = vmatprep.subr.mxu0 0.0
    %v1507 = vand.u32 %v110, 4294901760
    %v1508 = vsub.f32 %v110, %v1507
    %v1509 = vand.u32 %v1508, 4294901760
    %v1510 = vsub.f32 %v1508, %v1509
    %v1511 = vand.u32 %v1510, 4294901760
    %1512 = vmatpush1.msra.mxu0 %v1511
    %1513 = vmatprep.subr.mxu0 0.0
    %v1514 = vand.u32 %v111, 4294901760
    %v1515 = vsub.f32 %v111, %v1514
    %v1516 = vand.u32 %v1515, 4294901760
    %v1517 = vsub.f32 %v1515, %v1516
    %v1518 = vand.u32 %v1517, 4294901760
    %1519 = vmatpush1.msra.mxu0 %v1518
    %1520 = vmatprep.subr.mxu0 0.0
    %v1521 = vand.u32 %v112, 4294901760
    %v1522 = vsub.f32 %v112, %v1521
    %v1523 = vand.u32 %v1522, 4294901760
    %v1524 = vsub.f32 %v1522, %v1523
    %v1525 = vand.u32 %v1524, 4294901760
    %1526 = vmatpush1.msra.mxu0 %v1525
    %v1527 = vand.u32 %v314, 4294901760
    %1528 = vmatprep.mubr.f32.mxu0 %v1527
    %v1529 = vand.u32 %v42, 4294901760
    %1530 = vmatmul.mubr.f32.gmra.mrb[0].mxu0 %v1529
    %v1531 = vpop.f32.mrb[0].mxu0
    %v1532 = vadd.f32 %v1300, %v1531
    %v1533 = vpop.f32.mrb[0].mxu0
    %1534 = vdwg.mxu0
    %1535 = vmatprep.subr.mxu0 0.0
    %v1536 = vand.u32 %v81, 4294901760
    %v1537 = vsub.f32 %v81, %v1536
    %1538 = vmatpush1.msra.mxu0 %v1537
    %1539 = vmatprep.subr.mxu0 0.0
    %v1540 = vand.u32 %v82, 4294901760
    %v1541 = vsub.f32 %v82, %v1540
    %1542 = vmatpush1.msra.mxu0 %v1541
    %1543 = vmatprep.subr.mxu0 0.0
    %v1544 = vand.u32 %v83, 4294901760
    %v1545 = vsub.f32 %v83, %v1544
    %1546 = vmatpush1.msra.mxu0 %v1545
    %1547 = vmatprep.subr.mxu0 0.0
    %v1548 = vand.u32 %v84, 4294901760
    %v1549 = vsub.f32 %v84, %v1548
    %1550 = vmatpush1.msra.mxu0 %v1549
    %1551 = vmatprep.subr.mxu0 0.0
    %v1552 = vand.u32 %v85, 4294901760
    %v1553 = vsub.f32 %v85, %v1552
    %1554 = vmatpush1.msra.mxu0 %v1553
    %1555 = vmatprep.subr.mxu0 0.0
    %v1556 = vand.u32 %v86, 4294901760
    %v1557 = vsub.f32 %v86, %v1556
    %1558 = vmatpush1.msra.mxu0 %v1557
    %1559 = vmatprep.subr.mxu0 0.0
    %v1560 = vand.u32 %v87, 4294901760
    %v1561 = vsub.f32 %v87, %v1560
    %1562 = vmatpush1.msra.mxu0 %v1561
    %1563 = vmatprep.subr.mxu0 0.0
    %v1564 = vand.u32 %v88, 4294901760
    %v1565 = vsub.f32 %v88, %v1564
    %1566 = vmatpush1.msra.mxu0 %v1565
    %1567 = vmatprep.subr.mxu0 0.0
    %v1568 = vand.u32 %v89, 4294901760
    %v1569 = vsub.f32 %v89, %v1568
    %1570 = vmatpush1.msra.mxu0 %v1569
    %1571 = vmatprep.subr.mxu0 0.0
    %v1572 = vand.u32 %v90, 4294901760
    %v1573 = vsub.f32 %v90, %v1572
    %1574 = vmatpush1.msra.mxu0 %v1573
    %1575 = vmatprep.subr.mxu0 0.0
    %v1576 = vand.u32 %v91, 4294901760
    %v1577 = vsub.f32 %v91, %v1576
    %1578 = vmatpush1.msra.mxu0 %v1577
    %1579 = vmatprep.subr.mxu0 0.0
    %v1580 = vand.u32 %v92, 4294901760
    %v1581 = vsub.f32 %v92, %v1580
    %1582 = vmatpush1.msra.mxu0 %v1581
    %1583 = vmatprep.subr.mxu0 0.0
    %v1584 = vand.u32 %v93, 4294901760
    %v1585 = vsub.f32 %v93, %v1584
    %1586 = vmatpush1.msra.mxu0 %v1585
    %1587 = vmatprep.subr.mxu0 0.0
    %v1588 = vand.u32 %v94, 4294901760
    %v1589 = vsub.f32 %v94, %v1588
    %1590 = vmatpush1.msra.mxu0 %v1589
    %1591 = vmatprep.subr.mxu0 0.0
    %v1592 = vand.u32 %v95, 4294901760
    %v1593 = vsub.f32 %v95, %v1592
    %1594 = vmatpush1.msra.mxu0 %v1593
    %1595 = vmatprep.subr.mxu0 0.0
    %v1596 = vand.u32 %v96, 4294901760
    %v1597 = vsub.f32 %v96, %v1596
    %1598 = vmatpush1.msra.mxu0 %v1597
    %1599 = vmatprep.subr.mxu0 0.0
    %v1600 = vand.u32 %v97, 4294901760
    %v1601 = vsub.f32 %v97, %v1600
    %1602 = vmatpush1.msra.mxu0 %v1601
    %1603 = vmatprep.subr.mxu0 0.0
    %v1604 = vand.u32 %v98, 4294901760
    %v1605 = vsub.f32 %v98, %v1604
    %1606 = vmatpush1.msra.mxu0 %v1605
    %1607 = vmatprep.subr.mxu0 0.0
    %v1608 = vand.u32 %v99, 4294901760
    %v1609 = vsub.f32 %v99, %v1608
    %1610 = vmatpush1.msra.mxu0 %v1609
    %1611 = vmatprep.subr.mxu0 0.0
    %v1612 = vand.u32 %v100, 4294901760
    %v1613 = vsub.f32 %v100, %v1612
    %1614 = vmatpush1.msra.mxu0 %v1613
    %1615 = vmatprep.subr.mxu0 0.0
    %v1616 = vand.u32 %v101, 4294901760
    %v1617 = vsub.f32 %v101, %v1616
    %1618 = vmatpush1.msra.mxu0 %v1617
    %1619 = vmatprep.subr.mxu0 0.0
    %v1620 = vand.u32 %v102, 4294901760
    %v1621 = vsub.f32 %v102, %v1620
    %1622 = vmatpush1.msra.mxu0 %v1621
    %1623 = vmatprep.subr.mxu0 0.0
    %v1624 = vand.u32 %v103, 4294901760
    %v1625 = vsub.f32 %v103, %v1624
    %1626 = vmatpush1.msra.mxu0 %v1625
    %1627 = vmatprep.subr.mxu0 0.0
    %v1628 = vand.u32 %v104, 4294901760
    %v1629 = vsub.f32 %v104, %v1628
    %1630 = vmatpush1.msra.mxu0 %v1629
    %1631 = vmatprep.subr.mxu0 0.0
    %v1632 = vand.u32 %v105, 4294901760
    %v1633 = vsub.f32 %v105, %v1632
    %1634 = vmatpush1.msra.mxu0 %v1633
    %1635 = vmatprep.subr.mxu0 0.0
    %v1636 = vand.u32 %v106, 4294901760
    %v1637 = vsub.f32 %v106, %v1636
    %1638 = vmatpush1.msra.mxu0 %v1637
    %1639 = vmatprep.subr.mxu0 0.0
    %v1640 = vand.u32 %v107, 4294901760
    %v1641 = vsub.f32 %v107, %v1640
    %1642 = vmatpush1.msra.mxu0 %v1641
    %1643 = vmatprep.subr.mxu0 0.0
    %v1644 = vand.u32 %v108, 4294901760
    %v1645 = vsub.f32 %v108, %v1644
    %1646 = vmatpush1.msra.mxu0 %v1645
    %1647 = vmatprep.subr.mxu0 0.0
    %v1648 = vand.u32 %v109, 4294901760
    %v1649 = vsub.f32 %v109, %v1648
    %1650 = vmatpush1.msra.mxu0 %v1649
    %1651 = vmatprep.subr.mxu0 0.0
    %v1652 = vand.u32 %v110, 4294901760
    %v1653 = vsub.f32 %v110, %v1652
    %1654 = vmatpush1.msra.mxu0 %v1653
    %1655 = vmatprep.subr.mxu0 0.0
    %v1656 = vand.u32 %v111, 4294901760
    %v1657 = vsub.f32 %v111, %v1656
    %1658 = vmatpush1.msra.mxu0 %v1657
    %1659 = vmatprep.subr.mxu0 0.0
    %v1660 = vand.u32 %v112, 4294901760
    %v1661 = vsub.f32 %v112, %v1660
    %1662 = vmatpush1.msra.mxu0 %v1661
    %v1663 = vand.u32 %v314, 4294901760
    %v1664 = vsub.f32 %v314, %v1663
    %1665 = vmatprep.mubr.f32.mxu0 %v1664
    %v1666 = vand.u32 %v42, 4294901760
    %v1667 = vsub.f32 %v42, %v1666
    %1668 = vmatmul.mubr.f32.gmra.mrb[0].mxu0 %v1667
    %v1669 = vpop.f32.mrb[0].mxu0
    %v1670 = vadd.f32 %v1532, %v1669
    %v1671 = vpop.f32.mrb[0].mxu0
    %1672 = vdwg.mxu0
    %1673 = vmatprep.subr.mxu0 0.0
    %v1674 = vand.u32 %v81, 4294901760
    %1675 = vmatpush1.msra.mxu0 %v1674
    %1676 = vmatprep.subr.mxu0 0.0
    %v1677 = vand.u32 %v82, 4294901760
    %1678 = vmatpush1.msra.mxu0 %v1677
    %1679 = vmatprep.subr.mxu0 0.0
    %v1680 = vand.u32 %v83, 4294901760
    %1681 = vmatpush1.msra.mxu0 %v1680
    %1682 = vmatprep.subr.mxu0 0.0
    %v1683 = vand.u32 %v84, 4294901760
    %1684 = vmatpush1.msra.mxu0 %v1683
    %1685 = vmatprep.subr.mxu0 0.0
    %v1686 = vand.u32 %v85, 4294901760
    %1687 = vmatpush1.msra.mxu0 %v1686
    %1688 = vmatprep.subr.mxu0 0.0
    %v1689 = vand.u32 %v86, 4294901760
    %1690 = vmatpush1.msra.mxu0 %v1689
    %1691 = vmatprep.subr.mxu0 0.0
    %v1692 = vand.u32 %v87, 4294901760
    %1693 = vmatpush1.msra.mxu0 %v1692
    %1694 = vmatprep.subr.mxu0 0.0
    %v1695 = vand.u32 %v88, 4294901760
    %1696 = vmatpush1.msra.mxu0 %v1695
    %1697 = vmatprep.subr.mxu0 0.0
    %v1698 = vand.u32 %v89, 4294901760
    %1699 = vmatpush1.msra.mxu0 %v1698
    %1700 = vmatprep.subr.mxu0 0.0
    %v1701 = vand.u32 %v90, 4294901760
    %1702 = vmatpush1.msra.mxu0 %v1701
    %1703 = vmatprep.subr.mxu0 0.0
    %v1704 = vand.u32 %v91, 4294901760
    %1705 = vmatpush1.msra.mxu0 %v1704
    %1706 = vmatprep.subr.mxu0 0.0
    %v1707 = vand.u32 %v92, 4294901760
    %1708 = vmatpush1.msra.mxu0 %v1707
    %1709 = vmatprep.subr.mxu0 0.0
    %v1710 = vand.u32 %v93, 4294901760
    %1711 = vmatpush1.msra.mxu0 %v1710
    %1712 = vmatprep.subr.mxu0 0.0
    %v1713 = vand.u32 %v94, 4294901760
    %1714 = vmatpush1.msra.mxu0 %v1713
    %1715 = vmatprep.subr.mxu0 0.0
    %v1716 = vand.u32 %v95, 4294901760
    %1717 = vmatpush1.msra.mxu0 %v1716
    %1718 = vmatprep.subr.mxu0 0.0
    %v1719 = vand.u32 %v96, 4294901760
    %1720 = vmatpush1.msra.mxu0 %v1719
    %1721 = vmatprep.subr.mxu0 0.0
    %v1722 = vand.u32 %v97, 4294901760
    %1723 = vmatpush1.msra.mxu0 %v1722
    %1724 = vmatprep.subr.mxu0 0.0
    %v1725 = vand.u32 %v98, 4294901760
    %1726 = vmatpush1.msra.mxu0 %v1725
    %1727 = vmatprep.subr.mxu0 0.0
    %v1728 = vand.u32 %v99, 4294901760
    %1729 = vmatpush1.msra.mxu0 %v1728
    %1730 = vmatprep.subr.mxu0 0.0
    %v1731 = vand.u32 %v100, 4294901760
    %1732 = vmatpush1.msra.mxu0 %v1731
    %1733 = vmatprep.subr.mxu0 0.0
    %v1734 = vand.u32 %v101, 4294901760
    %1735 = vmatpush1.msra.mxu0 %v1734
    %1736 = vmatprep.subr.mxu0 0.0
    %v1737 = vand.u32 %v102, 4294901760
    %1738 = vmatpush1.msra.mxu0 %v1737
    %1739 = vmatprep.subr.mxu0 0.0
    %v1740 = vand.u32 %v103, 4294901760
    %1741 = vmatpush1.msra.mxu0 %v1740
    %1742 = vmatprep.subr.mxu0 0.0
    %v1743 = vand.u32 %v104, 4294901760
    %1744 = vmatpush1.msra.mxu0 %v1743
    %1745 = vmatprep.subr.mxu0 0.0
    %v1746 = vand.u32 %v105, 4294901760
    %1747 = vmatpush1.msra.mxu0 %v1746
    %1748 = vmatprep.subr.mxu0 0.0
    %v1749 = vand.u32 %v106, 4294901760
    %1750 = vmatpush1.msra.mxu0 %v1749
    %1751 = vmatprep.subr.mxu0 0.0
    %v1752 = vand.u32 %v107, 4294901760
    %1753 = vmatpush1.msra.mxu0 %v1752
    %1754 = vmatprep.subr.mxu0 0.0
    %v1755 = vand.u32 %v108, 4294901760
    %1756 = vmatpush1.msra.mxu0 %v1755
    %1757 = vmatprep.subr.mxu0 0.0
    %v1758 = vand.u32 %v109, 4294901760
    %1759 = vmatpush1.msra.mxu0 %v1758
    %1760 = vmatprep.subr.mxu0 0.0
    %v1761 = vand.u32 %v110, 4294901760
    %1762 = vmatpush1.msra.mxu0 %v1761
    %1763 = vmatprep.subr.mxu0 0.0
    %v1764 = vand.u32 %v111, 4294901760
    %1765 = vmatpush1.msra.mxu0 %v1764
    %1766 = vmatprep.subr.mxu0 0.0
    %v1767 = vand.u32 %v112, 4294901760
    %1768 = vmatpush1.msra.mxu0 %v1767
    %v1769 = vand.u32 %v314, 4294901760
    %v1770 = vsub.f32 %v314, %v1769
    %v1771 = vand.u32 %v1770, 4294901760
    %1772 = vmatprep.mubr.f32.mxu0 %v1771
    %v1773 = vand.u32 %v42, 4294901760
    %v1774 = vsub.f32 %v42, %v1773
    %v1775 = vand.u32 %v1774, 4294901760
    %1776 = vmatmul.mubr.f32.gmra.mrb[0].mxu0 %v1775
    %v1777 = vpop.f32.mrb[0].mxu0
    %v1778 = vadd.f32 %v1670, %v1777
    %v1779 = vpop.f32.mrb[0].mxu0
    %1780 = vdwg.mxu0
    %1781 = vmatprep.subr.mxu0 0.0
    %v1782 = vand.u32 %v81, 4294901760
    %v1783 = vsub.f32 %v81, %v1782
    %v1784 = vand.u32 %v1783, 4294901760
    %1785 = vmatpush1.msra.mxu0 %v1784
    %1786 = vmatprep.subr.mxu0 0.0
    %v1787 = vand.u32 %v82, 4294901760
    %v1788 = vsub.f32 %v82, %v1787
    %v1789 = vand.u32 %v1788, 4294901760
    %1790 = vmatpush1.msra.mxu0 %v1789
    %1791 = vmatprep.subr.mxu0 0.0
    %v1792 = vand.u32 %v83, 4294901760
    %v1793 = vsub.f32 %v83, %v1792
    %v1794 = vand.u32 %v1793, 4294901760
    %1795 = vmatpush1.msra.mxu0 %v1794
    %1796 = vmatprep.subr.mxu0 0.0
    %v1797 = vand.u32 %v84, 4294901760
    %v1798 = vsub.f32 %v84, %v1797
    %v1799 = vand.u32 %v1798, 4294901760
    %1800 = vmatpush1.msra.mxu0 %v1799
    %1801 = vmatprep.subr.mxu0 0.0
    %v1802 = vand.u32 %v85, 4294901760
    %v1803 = vsub.f32 %v85, %v1802
    %v1804 = vand.u32 %v1803, 4294901760
    %1805 = vmatpush1.msra.mxu0 %v1804
    %1806 = vmatprep.subr.mxu0 0.0
    %v1807 = vand.u32 %v86, 4294901760
    %v1808 = vsub.f32 %v86, %v1807
    %v1809 = vand.u32 %v1808, 4294901760
    %1810 = vmatpush1.msra.mxu0 %v1809
    %1811 = vmatprep.subr.mxu0 0.0
    %v1812 = vand.u32 %v87, 4294901760
    %v1813 = vsub.f32 %v87, %v1812
    %v1814 = vand.u32 %v1813, 4294901760
    %1815 = vmatpush1.msra.mxu0 %v1814
    %1816 = vmatprep.subr.mxu0 0.0
    %v1817 = vand.u32 %v88, 4294901760
    %v1818 = vsub.f32 %v88, %v1817
    %v1819 = vand.u32 %v1818, 4294901760
    %1820 = vmatpush1.msra.mxu0 %v1819
    %1821 = vmatprep.subr.mxu0 0.0
    %v1822 = vand.u32 %v89, 4294901760
    %v1823 = vsub.f32 %v89, %v1822
    %v1824 = vand.u32 %v1823, 4294901760
    %1825 = vmatpush1.msra.mxu0 %v1824
    %1826 = vmatprep.subr.mxu0 0.0
    %v1827 = vand.u32 %v90, 4294901760
    %v1828 = vsub.f32 %v90, %v1827
    %v1829 = vand.u32 %v1828, 4294901760
    %1830 = vmatpush1.msra.mxu0 %v1829
    %1831 = vmatprep.subr.mxu0 0.0
    %v1832 = vand.u32 %v91, 4294901760
    %v1833 = vsub.f32 %v91, %v1832
    %v1834 = vand.u32 %v1833, 4294901760
    %1835 = vmatpush1.msra.mxu0 %v1834
    %1836 = vmatprep.subr.mxu0 0.0
    %v1837 = vand.u32 %v92, 4294901760
    %v1838 = vsub.f32 %v92, %v1837
    %v1839 = vand.u32 %v1838, 4294901760
    %1840 = vmatpush1.msra.mxu0 %v1839
    %1841 = vmatprep.subr.mxu0 0.0
    %v1842 = vand.u32 %v93, 4294901760
    %v1843 = vsub.f32 %v93, %v1842
    %v1844 = vand.u32 %v1843, 4294901760
    %1845 = vmatpush1.msra.mxu0 %v1844
    %1846 = vmatprep.subr.mxu0 0.0
    %v1847 = vand.u32 %v94, 4294901760
    %v1848 = vsub.f32 %v94, %v1847
    %v1849 = vand.u32 %v1848, 4294901760
    %1850 = vmatpush1.msra.mxu0 %v1849
    %1851 = vmatprep.subr.mxu0 0.0
    %v1852 = vand.u32 %v95, 4294901760
    %v1853 = vsub.f32 %v95, %v1852
    %v1854 = vand.u32 %v1853, 4294901760
    %1855 = vmatpush1.msra.mxu0 %v1854
    %1856 = vmatprep.subr.mxu0 0.0
    %v1857 = vand.u32 %v96, 4294901760
    %v1858 = vsub.f32 %v96, %v1857
    %v1859 = vand.u32 %v1858, 4294901760
    %1860 = vmatpush1.msra.mxu0 %v1859
    %1861 = vmatprep.subr.mxu0 0.0
    %v1862 = vand.u32 %v97, 4294901760
    %v1863 = vsub.f32 %v97, %v1862
    %v1864 = vand.u32 %v1863, 4294901760
    %1865 = vmatpush1.msra.mxu0 %v1864
    %1866 = vmatprep.subr.mxu0 0.0
    %v1867 = vand.u32 %v98, 4294901760
    %v1868 = vsub.f32 %v98, %v1867
    %v1869 = vand.u32 %v1868, 4294901760
    %1870 = vmatpush1.msra.mxu0 %v1869
    %1871 = vmatprep.subr.mxu0 0.0
    %v1872 = vand.u32 %v99, 4294901760
    %v1873 = vsub.f32 %v99, %v1872
    %v1874 = vand.u32 %v1873, 4294901760
    %1875 = vmatpush1.msra.mxu0 %v1874
    %1876 = vmatprep.subr.mxu0 0.0
    %v1877 = vand.u32 %v100, 4294901760
    %v1878 = vsub.f32 %v100, %v1877
    %v1879 = vand.u32 %v1878, 4294901760
    %1880 = vmatpush1.msra.mxu0 %v1879
    %1881 = vmatprep.subr.mxu0 0.0
    %v1882 = vand.u32 %v101, 4294901760
    %v1883 = vsub.f32 %v101, %v1882
    %v1884 = vand.u32 %v1883, 4294901760
    %1885 = vmatpush1.msra.mxu0 %v1884
    %1886 = vmatprep.subr.mxu0 0.0
    %v1887 = vand.u32 %v102, 4294901760
    %v1888 = vsub.f32 %v102, %v1887
    %v1889 = vand.u32 %v1888, 4294901760
    %1890 = vmatpush1.msra.mxu0 %v1889
    %1891 = vmatprep.subr.mxu0 0.0
    %v1892 = vand.u32 %v103, 4294901760
    %v1893 = vsub.f32 %v103, %v1892
    %v1894 = vand.u32 %v1893, 4294901760
    %1895 = vmatpush1.msra.mxu0 %v1894
    %1896 = vmatprep.subr.mxu0 0.0
    %v1897 = vand.u32 %v104, 4294901760
    %v1898 = vsub.f32 %v104, %v1897
    %v1899 = vand.u32 %v1898, 4294901760
    %1900 = vmatpush1.msra.mxu0 %v1899
    %1901 = vmatprep.subr.mxu0 0.0
    %v1902 = vand.u32 %v105, 4294901760
    %v1903 = vsub.f32 %v105, %v1902
    %v1904 = vand.u32 %v1903, 4294901760
    %1905 = vmatpush1.msra.mxu0 %v1904
    %1906 = vmatprep.subr.mxu0 0.0
    %v1907 = vand.u32 %v106, 4294901760
    %v1908 = vsub.f32 %v106, %v1907
    %v1909 = vand.u32 %v1908, 4294901760
    %1910 = vmatpush1.msra.mxu0 %v1909
    %1911 = vmatprep.subr.mxu0 0.0
    %v1912 = vand.u32 %v107, 4294901760
    %v1913 = vsub.f32 %v107, %v1912
    %v1914 = vand.u32 %v1913, 4294901760
    %1915 = vmatpush1.msra.mxu0 %v1914
    %1916 = vmatprep.subr.mxu0 0.0
    %v1917 = vand.u32 %v108, 4294901760
    %v1918 = vsub.f32 %v108, %v1917
    %v1919 = vand.u32 %v1918, 4294901760
    %1920 = vmatpush1.msra.mxu0 %v1919
    %1921 = vmatprep.subr.mxu0 0.0
    %v1922 = vand.u32 %v109, 4294901760
    %v1923 = vsub.f32 %v109, %v1922
    %v1924 = vand.u32 %v1923, 4294901760
    %1925 = vmatpush1.msra.mxu0 %v1924
    %1926 = vmatprep.subr.mxu0 0.0
    %v1927 = vand.u32 %v110, 4294901760
    %v1928 = vsub.f32 %v110, %v1927
    %v1929 = vand.u32 %v1928, 4294901760
    %1930 = vmatpush1.msra.mxu0 %v1929
    %1931 = vmatprep.subr.mxu0 0.0
    %v1932 = vand.u32 %v111, 4294901760
    %v1933 = vsub.f32 %v111, %v1932
    %v1934 = vand.u32 %v1933, 4294901760
    %1935 = vmatpush1.msra.mxu0 %v1934
    %1936 = vmatprep.subr.mxu0 0.0
    %v1937 = vand.u32 %v112, 4294901760
    %v1938 = vsub.f32 %v112, %v1937
    %v1939 = vand.u32 %v1938, 4294901760
    %1940 = vmatpush1.msra.mxu0 %v1939
    %v1941 = vand.u32 %v314, 4294901760
    %1942 = vmatprep.mubr.f32.mxu0 %v1941
    %v1943 = vand.u32 %v42, 4294901760
    %1944 = vmatmul.mubr.f32.gmra.mrb[0].mxu0 %v1943
    %v1945 = vpop.f32.mrb[0].mxu0
    %v1946 = vadd.f32 %v1778, %v1945
    %v1947 = vpop.f32.mrb[0].mxu0
    %1948 = vdwg.mxu0
    %1949 = vmatprep.subr.mxu0 0.0
    %v1950 = vand.u32 %v81, 4294901760
    %1951 = vmatpush1.msra.mxu0 %v1950
    %1952 = vmatprep.subr.mxu0 0.0
    %v1953 = vand.u32 %v82, 4294901760
    %1954 = vmatpush1.msra.mxu0 %v1953
    %1955 = vmatprep.subr.mxu0 0.0
    %v1956 = vand.u32 %v83, 4294901760
    %1957 = vmatpush1.msra.mxu0 %v1956
    %1958 = vmatprep.subr.mxu0 0.0
    %v1959 = vand.u32 %v84, 4294901760
    %1960 = vmatpush1.msra.mxu0 %v1959
    %1961 = vmatprep.subr.mxu0 0.0
    %v1962 = vand.u32 %v85, 4294901760
    %1963 = vmatpush1.msra.mxu0 %v1962
    %1964 = vmatprep.subr.mxu0 0.0
    %v1965 = vand.u32 %v86, 4294901760
    %1966 = vmatpush1.msra.mxu0 %v1965
    %1967 = vmatprep.subr.mxu0 0.0
    %v1968 = vand.u32 %v87, 4294901760
    %1969 = vmatpush1.msra.mxu0 %v1968
    %1970 = vmatprep.subr.mxu0 0.0
    %v1971 = vand.u32 %v88, 4294901760
    %1972 = vmatpush1.msra.mxu0 %v1971
    %1973 = vmatprep.subr.mxu0 0.0
    %v1974 = vand.u32 %v89, 4294901760
    %1975 = vmatpush1.msra.mxu0 %v1974
    %1976 = vmatprep.subr.mxu0 0.0
    %v1977 = vand.u32 %v90, 4294901760
    %1978 = vmatpush1.msra.mxu0 %v1977
    %1979 = vmatprep.subr.mxu0 0.0
    %v1980 = vand.u32 %v91, 4294901760
    %1981 = vmatpush1.msra.mxu0 %v1980
    %1982 = vmatprep.subr.mxu0 0.0
    %v1983 = vand.u32 %v92, 4294901760
    %1984 = vmatpush1.msra.mxu0 %v1983
    %1985 = vmatprep.subr.mxu0 0.0
    %v1986 = vand.u32 %v93, 4294901760
    %1987 = vmatpush1.msra.mxu0 %v1986
    %1988 = vmatprep.subr.mxu0 0.0
    %v1989 = vand.u32 %v94, 4294901760
    %1990 = vmatpush1.msra.mxu0 %v1989
    %1991 = vmatprep.subr.mxu0 0.0
    %v1992 = vand.u32 %v95, 4294901760
    %1993 = vmatpush1.msra.mxu0 %v1992
    %1994 = vmatprep.subr.mxu0 0.0
    %v1995 = vand.u32 %v96, 4294901760
    %1996 = vmatpush1.msra.mxu0 %v1995
    %1997 = vmatprep.subr.mxu0 0.0
    %v1998 = vand.u32 %v97, 4294901760
    %1999 = vmatpush1.msra.mxu0 %v1998
    %2000 = vmatprep.subr.mxu0 0.0
    %v2001 = vand.u32 %v98, 4294901760
    %2002 = vmatpush1.msra.mxu0 %v2001
    %2003 = vmatprep.subr.mxu0 0.0
    %v2004 = vand.u32 %v99, 4294901760
    %2005 = vmatpush1.msra.mxu0 %v2004
    %2006 = vmatprep.subr.mxu0 0.0
    %v2007 = vand.u32 %v100, 4294901760
    %2008 = vmatpush1.msra.mxu0 %v2007
    %2009 = vmatprep.subr.mxu0 0.0
    %v2010 = vand.u32 %v101, 4294901760
    %2011 = vmatpush1.msra.mxu0 %v2010
    %2012 = vmatprep.subr.mxu0 0.0
    %v2013 = vand.u32 %v102, 4294901760
    %2014 = vmatpush1.msra.mxu0 %v2013
    %2015 = vmatprep.subr.mxu0 0.0
    %v2016 = vand.u32 %v103, 4294901760
    %2017 = vmatpush1.msra.mxu0 %v2016
    %2018 = vmatprep.subr.mxu0 0.0
    %v2019 = vand.u32 %v104, 4294901760
    %2020 = vmatpush1.msra.mxu0 %v2019
    %2021 = vmatprep.subr.mxu0 0.0
    %v2022 = vand.u32 %v105, 4294901760
    %2023 = vmatpush1.msra.mxu0 %v2022
    %2024 = vmatprep.subr.mxu0 0.0
    %v2025 = vand.u32 %v106, 4294901760
    %2026 = vmatpush1.msra.mxu0 %v2025
    %2027 = vmatprep.subr.mxu0 0.0
    %v2028 = vand.u32 %v107, 4294901760
    %2029 = vmatpush1.msra.mxu0 %v2028
    %2030 = vmatprep.subr.mxu0 0.0
    %v2031 = vand.u32 %v108, 4294901760
    %2032 = vmatpush1.msra.mxu0 %v2031
    %2033 = vmatprep.subr.mxu0 0.0
    %v2034 = vand.u32 %v109, 4294901760
    %2035 = vmatpush1.msra.mxu0 %v2034
    %2036 = vmatprep.subr.mxu0 0.0
    %v2037 = vand.u32 %v110, 4294901760
    %2038 = vmatpush1.msra.mxu0 %v2037
    %2039 = vmatprep.subr.mxu0 0.0
    %v2040 = vand.u32 %v111, 4294901760
    %2041 = vmatpush1.msra.mxu0 %v2040
    %2042 = vmatprep.subr.mxu0 0.0
    %v2043 = vand.u32 %v112, 4294901760
    %2044 = vmatpush1.msra.mxu0 %v2043
    %v2045 = vand.u32 %v314, 4294901760
    %2046 = vmatprep.mubr.f32.mxu0 %v2045
    %v2047 = vand.u32 %v42, 4294901760
    %2048 = vmatmul.mubr.f32.gmra.mrb[0].mxu0 %v2047
    %v2049 = vpop.f32.mrb[0].mxu0
    %v2050 = vadd.f32 %v1946, %v2049
    %v2051 = vpop.f32.mrb[0].mxu0
    %2052 = vdwg.mxu0
    %2053 = vmatprep.subr.mxu0 0.0
    %v2054 = vand.u32 %v113, 4294901760
    %2055 = vmatpush1.msra.mxu0 %v2054
    %2056 = vmatprep.subr.mxu0 0.0
    %v2057 = vand.u32 %v114, 4294901760
    %2058 = vmatpush1.msra.mxu0 %v2057
    %2059 = vmatprep.subr.mxu0 0.0
    %v2060 = vand.u32 %v115, 4294901760
    %2061 = vmatpush1.msra.mxu0 %v2060
    %2062 = vmatprep.subr.mxu0 0.0
    %v2063 = vand.u32 %v116, 4294901760
    %2064 = vmatpush1.msra.mxu0 %v2063
    %2065 = vmatprep.subr.mxu0 0.0
    %v2066 = vand.u32 %v117, 4294901760
    %2067 = vmatpush1.msra.mxu0 %v2066
    %2068 = vmatprep.subr.mxu0 0.0
    %v2069 = vand.u32 %v118, 4294901760
    %2070 = vmatpush1.msra.mxu0 %v2069
    %2071 = vmatprep.subr.mxu0 0.0
    %v2072 = vand.u32 %v119, 4294901760
    %2073 = vmatpush1.msra.mxu0 %v2072
    %2074 = vmatprep.subr.mxu0 0.0
    %v2075 = vand.u32 %v120, 4294901760
    %2076 = vmatpush1.msra.mxu0 %v2075
    %2077 = vmatprep.subr.mxu0 0.0
    %v2078 = vand.u32 %v121, 4294901760
    %2079 = vmatpush1.msra.mxu0 %v2078
    %2080 = vmatprep.subr.mxu0 0.0
    %v2081 = vand.u32 %v122, 4294901760
    %2082 = vmatpush1.msra.mxu0 %v2081
    %2083 = vmatprep.subr.mxu0 0.0
    %v2084 = vand.u32 %v123, 4294901760
    %2085 = vmatpush1.msra.mxu0 %v2084
    %2086 = vmatprep.subr.mxu0 0.0
    %v2087 = vand.u32 %v124, 4294901760
    %2088 = vmatpush1.msra.mxu0 %v2087
    %2089 = vmatprep.subr.mxu0 0.0
    %v2090 = vand.u32 %v125, 4294901760
    %2091 = vmatpush1.msra.mxu0 %v2090
    %2092 = vmatprep.subr.mxu0 0.0
    %v2093 = vand.u32 %v126, 4294901760
    %2094 = vmatpush1.msra.mxu0 %v2093
    %2095 = vmatprep.subr.mxu0 0.0
    %v2096 = vand.u32 %v127, 4294901760
    %2097 = vmatpush1.msra.mxu0 %v2096
    %2098 = vmatprep.subr.mxu0 0.0
    %v2099 = vand.u32 %v128, 4294901760
    %2100 = vmatpush1.msra.mxu0 %v2099
    %2101 = vmatprep.subr.mxu0 0.0
    %v2102 = vand.u32 %v129, 4294901760
    %2103 = vmatpush1.msra.mxu0 %v2102
    %2104 = vmatprep.subr.mxu0 0.0
    %v2105 = vand.u32 %v130, 4294901760
    %2106 = vmatpush1.msra.mxu0 %v2105
    %2107 = vmatprep.subr.mxu0 0.0
    %v2108 = vand.u32 %v131, 4294901760
    %2109 = vmatpush1.msra.mxu0 %v2108
    %2110 = vmatprep.subr.mxu0 0.0
    %v2111 = vand.u32 %v132, 4294901760
    %2112 = vmatpush1.msra.mxu0 %v2111
    %2113 = vmatprep.subr.mxu0 0.0
    %v2114 = vand.u32 %v133, 4294901760
    %2115 = vmatpush1.msra.mxu0 %v2114
    %2116 = vmatprep.subr.mxu0 0.0
    %v2117 = vand.u32 %v134, 4294901760
    %2118 = vmatpush1.msra.mxu0 %v2117
    %2119 = vmatprep.subr.mxu0 0.0
    %v2120 = vand.u32 %v135, 4294901760
    %2121 = vmatpush1.msra.mxu0 %v2120
    %2122 = vmatprep.subr.mxu0 0.0
    %v2123 = vand.u32 %v136, 4294901760
    %2124 = vmatpush1.msra.mxu0 %v2123
    %2125 = vmatprep.subr.mxu0 0.0
    %v2126 = vand.u32 %v137, 4294901760
    %2127 = vmatpush1.msra.mxu0 %v2126
    %2128 = vmatprep.subr.mxu0 0.0
    %v2129 = vand.u32 %v138, 4294901760
    %2130 = vmatpush1.msra.mxu0 %v2129
    %2131 = vmatprep.subr.mxu0 0.0
    %v2132 = vand.u32 %v139, 4294901760
    %2133 = vmatpush1.msra.mxu0 %v2132
    %2134 = vmatprep.subr.mxu0 0.0
    %v2135 = vand.u32 %v140, 4294901760
    %2136 = vmatpush1.msra.mxu0 %v2135
    %2137 = vmatprep.subr.mxu0 0.0
    %v2138 = vand.u32 %v141, 4294901760
    %2139 = vmatpush1.msra.mxu0 %v2138
    %2140 = vmatprep.subr.mxu0 0.0
    %v2141 = vand.u32 %v142, 4294901760
    %2142 = vmatpush1.msra.mxu0 %v2141
    %2143 = vmatprep.subr.mxu0 0.0
    %v2144 = vand.u32 %v143, 4294901760
    %2145 = vmatpush1.msra.mxu0 %v2144
    %2146 = vmatprep.subr.mxu0 0.0
    %v2147 = vand.u32 %v144, 4294901760
    %2148 = vmatpush1.msra.mxu0 %v2147
    %v2149 = vand.u32 %v315, 4294901760
    %v2150 = vsub.f32 %v315, %v2149
    %v2151 = vand.u32 %v2150, 4294901760
    %v2152 = vsub.f32 %v2150, %v2151
    %v2153 = vand.u32 %v2152, 4294901760
    %2154 = vmatprep.mubr.f32.mxu0 %v2153
    %v2155 = vand.u32 %v43, 4294901760
    %v2156 = vsub.f32 %v43, %v2155
    %v2157 = vand.u32 %v2156, 4294901760
    %v2158 = vsub.f32 %v2156, %v2157
    %v2159 = vand.u32 %v2158, 4294901760
    %2160 = vmatmul.mubr.f32.gmra.mrb[0].mxu0 %v2159
    %v2161 = vpop.f32.mrb[0].mxu0
    %v2162 = vadd.f32 %v2050, %v2161
    %v2163 = vpop.f32.mrb[0].mxu0
    %2164 = vdwg.mxu0
    %2165 = vmatprep.subr.mxu0 0.0
    %v2166 = vand.u32 %v113, 4294901760
    %v2167 = vsub.f32 %v113, %v2166
    %v2168 = vand.u32 %v2167, 4294901760
    %v2169 = vsub.f32 %v2167, %v2168
    %v2170 = vand.u32 %v2169, 4294901760
    %2171 = vmatpush1.msra.mxu0 %v2170
    %2172 = vmatprep.subr.mxu0 0.0
    %v2173 = vand.u32 %v114, 4294901760
    %v2174 = vsub.f32 %v114, %v2173
    %v2175 = vand.u32 %v2174, 4294901760
    %v2176 = vsub.f32 %v2174, %v2175
    %v2177 = vand.u32 %v2176, 4294901760
    %2178 = vmatpush1.msra.mxu0 %v2177
    %2179 = vmatprep.subr.mxu0 0.0
    %v2180 = vand.u32 %v115, 4294901760
    %v2181 = vsub.f32 %v115, %v2180
    %v2182 = vand.u32 %v2181, 4294901760
    %v2183 = vsub.f32 %v2181, %v2182
    %v2184 = vand.u32 %v2183, 4294901760
    %2185 = vmatpush1.msra.mxu0 %v2184
    %2186 = vmatprep.subr.mxu0 0.0
    %v2187 = vand.u32 %v116, 4294901760
    %v2188 = vsub.f32 %v116, %v2187
    %v2189 = vand.u32 %v2188, 4294901760
    %v2190 = vsub.f32 %v2188, %v2189
    %v2191 = vand.u32 %v2190, 4294901760
    %2192 = vmatpush1.msra.mxu0 %v2191
    %2193 = vmatprep.subr.mxu0 0.0
    %v2194 = vand.u32 %v117, 4294901760
    %v2195 = vsub.f32 %v117, %v2194
    %v2196 = vand.u32 %v2195, 4294901760
    %v2197 = vsub.f32 %v2195, %v2196
    %v2198 = vand.u32 %v2197, 4294901760
    %2199 = vmatpush1.msra.mxu0 %v2198
    %2200 = vmatprep.subr.mxu0 0.0
    %v2201 = vand.u32 %v118, 4294901760
    %v2202 = vsub.f32 %v118, %v2201
    %v2203 = vand.u32 %v2202, 4294901760
    %v2204 = vsub.f32 %v2202, %v2203
    %v2205 = vand.u32 %v2204, 4294901760
    %2206 = vmatpush1.msra.mxu0 %v2205
    %2207 = vmatprep.subr.mxu0 0.0
    %v2208 = vand.u32 %v119, 4294901760
    %v2209 = vsub.f32 %v119, %v2208
    %v2210 = vand.u32 %v2209, 4294901760
    %v2211 = vsub.f32 %v2209, %v2210
    %v2212 = vand.u32 %v2211, 4294901760
    %2213 = vmatpush1.msra.mxu0 %v2212
    %2214 = vmatprep.subr.mxu0 0.0
    %v2215 = vand.u32 %v120, 4294901760
    %v2216 = vsub.f32 %v120, %v2215
    %v2217 = vand.u32 %v2216, 4294901760
    %v2218 = vsub.f32 %v2216, %v2217
    %v2219 = vand.u32 %v2218, 4294901760
    %2220 = vmatpush1.msra.mxu0 %v2219
    %2221 = vmatprep.subr.mxu0 0.0
    %v2222 = vand.u32 %v121, 4294901760
    %v2223 = vsub.f32 %v121, %v2222
    %v2224 = vand.u32 %v2223, 4294901760
    %v2225 = vsub.f32 %v2223, %v2224
    %v2226 = vand.u32 %v2225, 4294901760
    %2227 = vmatpush1.msra.mxu0 %v2226
    %2228 = vmatprep.subr.mxu0 0.0
    %v2229 = vand.u32 %v122, 4294901760
    %v2230 = vsub.f32 %v122, %v2229
    %v2231 = vand.u32 %v2230, 4294901760
    %v2232 = vsub.f32 %v2230, %v2231
    %v2233 = vand.u32 %v2232, 4294901760
    %2234 = vmatpush1.msra.mxu0 %v2233
    %2235 = vmatprep.subr.mxu0 0.0
    %v2236 = vand.u32 %v123, 4294901760
    %v2237 = vsub.f32 %v123, %v2236
    %v2238 = vand.u32 %v2237, 4294901760
    %v2239 = vsub.f32 %v2237, %v2238
    %v2240 = vand.u32 %v2239, 4294901760
    %2241 = vmatpush1.msra.mxu0 %v2240
    %2242 = vmatprep.subr.mxu0 0.0
    %v2243 = vand.u32 %v124, 4294901760
    %v2244 = vsub.f32 %v124, %v2243
    %v2245 = vand.u32 %v2244, 4294901760
    %v2246 = vsub.f32 %v2244, %v2245
    %v2247 = vand.u32 %v2246, 4294901760
    %2248 = vmatpush1.msra.mxu0 %v2247
    %2249 = vmatprep.subr.mxu0 0.0
    %v2250 = vand.u32 %v125, 4294901760
    %v2251 = vsub.f32 %v125, %v2250
    %v2252 = vand.u32 %v2251, 4294901760
    %v2253 = vsub.f32 %v2251, %v2252
    %v2254 = vand.u32 %v2253, 4294901760
    %2255 = vmatpush1.msra.mxu0 %v2254
    %2256 = vmatprep.subr.mxu0 0.0
    %v2257 = vand.u32 %v126, 4294901760
    %v2258 = vsub.f32 %v126, %v2257
    %v2259 = vand.u32 %v2258, 4294901760
    %v2260 = vsub.f32 %v2258, %v2259
    %v2261 = vand.u32 %v2260, 4294901760
    %2262 = vmatpush1.msra.mxu0 %v2261
    %2263 = vmatprep.subr.mxu0 0.0
    %v2264 = vand.u32 %v127, 4294901760
    %v2265 = vsub.f32 %v127, %v2264
    %v2266 = vand.u32 %v2265, 4294901760
    %v2267 = vsub.f32 %v2265, %v2266
    %v2268 = vand.u32 %v2267, 4294901760
    %2269 = vmatpush1.msra.mxu0 %v2268
    %2270 = vmatprep.subr.mxu0 0.0
    %v2271 = vand.u32 %v128, 4294901760
    %v2272 = vsub.f32 %v128, %v2271
    %v2273 = vand.u32 %v2272, 4294901760
    %v2274 = vsub.f32 %v2272, %v2273
    %v2275 = vand.u32 %v2274, 4294901760
    %2276 = vmatpush1.msra.mxu0 %v2275
    %2277 = vmatprep.subr.mxu0 0.0
    %v2278 = vand.u32 %v129, 4294901760
    %v2279 = vsub.f32 %v129, %v2278
    %v2280 = vand.u32 %v2279, 4294901760
    %v2281 = vsub.f32 %v2279, %v2280
    %v2282 = vand.u32 %v2281, 4294901760
    %2283 = vmatpush1.msra.mxu0 %v2282
    %2284 = vmatprep.subr.mxu0 0.0
    %v2285 = vand.u32 %v130, 4294901760
    %v2286 = vsub.f32 %v130, %v2285
    %v2287 = vand.u32 %v2286, 4294901760
    %v2288 = vsub.f32 %v2286, %v2287
    %v2289 = vand.u32 %v2288, 4294901760
    %2290 = vmatpush1.msra.mxu0 %v2289
    %2291 = vmatprep.subr.mxu0 0.0
    %v2292 = vand.u32 %v131, 4294901760
    %v2293 = vsub.f32 %v131, %v2292
    %v2294 = vand.u32 %v2293, 4294901760
    %v2295 = vsub.f32 %v2293, %v2294
    %v2296 = vand.u32 %v2295, 4294901760
    %2297 = vmatpush1.msra.mxu0 %v2296
    %2298 = vmatprep.subr.mxu0 0.0
    %v2299 = vand.u32 %v132, 4294901760
    %v2300 = vsub.f32 %v132, %v2299
    %v2301 = vand.u32 %v2300, 4294901760
    %v2302 = vsub.f32 %v2300, %v2301
    %v2303 = vand.u32 %v2302, 4294901760
    %2304 = vmatpush1.msra.mxu0 %v2303
    %2305 = vmatprep.subr.mxu0 0.0
    %v2306 = vand.u32 %v133, 4294901760
    %v2307 = vsub.f32 %v133, %v2306
    %v2308 = vand.u32 %v2307, 4294901760
    %v2309 = vsub.f32 %v2307, %v2308
    %v2310 = vand.u32 %v2309, 4294901760
    %2311 = vmatpush1.msra.mxu0 %v2310
    %2312 = vmatprep.subr.mxu0 0.0
    %v2313 = vand.u32 %v134, 4294901760
    %v2314 = vsub.f32 %v134, %v2313
    %v2315 = vand.u32 %v2314, 4294901760
    %v2316 = vsub.f32 %v2314, %v2315
    %v2317 = vand.u32 %v2316, 4294901760
    %2318 = vmatpush1.msra.mxu0 %v2317
    %2319 = vmatprep.subr.mxu0 0.0
    %v2320 = vand.u32 %v135, 4294901760
    %v2321 = vsub.f32 %v135, %v2320
    %v2322 = vand.u32 %v2321, 4294901760
    %v2323 = vsub.f32 %v2321, %v2322
    %v2324 = vand.u32 %v2323, 4294901760
    %2325 = vmatpush1.msra.mxu0 %v2324
    %2326 = vmatprep.subr.mxu0 0.0
    %v2327 = vand.u32 %v136, 4294901760
    %v2328 = vsub.f32 %v136, %v2327
    %v2329 = vand.u32 %v2328, 4294901760
    %v2330 = vsub.f32 %v2328, %v2329
    %v2331 = vand.u32 %v2330, 4294901760
    %2332 = vmatpush1.msra.mxu0 %v2331
    %2333 = vmatprep.subr.mxu0 0.0
    %v2334 = vand.u32 %v137, 4294901760
    %v2335 = vsub.f32 %v137, %v2334
    %v2336 = vand.u32 %v2335, 4294901760
    %v2337 = vsub.f32 %v2335, %v2336
    %v2338 = vand.u32 %v2337, 4294901760
    %2339 = vmatpush1.msra.mxu0 %v2338
    %2340 = vmatprep.subr.mxu0 0.0
    %v2341 = vand.u32 %v138, 4294901760
    %v2342 = vsub.f32 %v138, %v2341
    %v2343 = vand.u32 %v2342, 4294901760
    %v2344 = vsub.f32 %v2342, %v2343
    %v2345 = vand.u32 %v2344, 4294901760
    %2346 = vmatpush1.msra.mxu0 %v2345
    %2347 = vmatprep.subr.mxu0 0.0
    %v2348 = vand.u32 %v139, 4294901760
    %v2349 = vsub.f32 %v139, %v2348
    %v2350 = vand.u32 %v2349, 4294901760
    %v2351 = vsub.f32 %v2349, %v2350
    %v2352 = vand.u32 %v2351, 4294901760
    %2353 = vmatpush1.msra.mxu0 %v2352
    %2354 = vmatprep.subr.mxu0 0.0
    %v2355 = vand.u32 %v140, 4294901760
    %v2356 = vsub.f32 %v140, %v2355
    %v2357 = vand.u32 %v2356, 4294901760
    %v2358 = vsub.f32 %v2356, %v2357
    %v2359 = vand.u32 %v2358, 4294901760
    %2360 = vmatpush1.msra.mxu0 %v2359
    %2361 = vmatprep.subr.mxu0 0.0
    %v2362 = vand.u32 %v141, 4294901760
    %v2363 = vsub.f32 %v141, %v2362
    %v2364 = vand.u32 %v2363, 4294901760
    %v2365 = vsub.f32 %v2363, %v2364
    %v2366 = vand.u32 %v2365, 4294901760
    %2367 = vmatpush1.msra.mxu0 %v2366
    %2368 = vmatprep.subr.mxu0 0.0
    %v2369 = vand.u32 %v142, 4294901760
    %v2370 = vsub.f32 %v142, %v2369
    %v2371 = vand.u32 %v2370, 4294901760
    %v2372 = vsub.f32 %v2370, %v2371
    %v2373 = vand.u32 %v2372, 4294901760
    %2374 = vmatpush1.msra.mxu0 %v2373
    %2375 = vmatprep.subr.mxu0 0.0
    %v2376 = vand.u32 %v143, 4294901760
    %v2377 = vsub.f32 %v143, %v2376
    %v2378 = vand.u32 %v2377, 4294901760
    %v2379 = vsub.f32 %v2377, %v2378
    %v2380 = vand.u32 %v2379, 4294901760
    %2381 = vmatpush1.msra.mxu0 %v2380
    %2382 = vmatprep.subr.mxu0 0.0
    %v2383 = vand.u32 %v144, 4294901760
    %v2384 = vsub.f32 %v144, %v2383
    %v2385 = vand.u32 %v2384, 4294901760
    %v2386 = vsub.f32 %v2384, %v2385
    %v2387 = vand.u32 %v2386, 4294901760
    %2388 = vmatpush1.msra.mxu0 %v2387
    %v2389 = vand.u32 %v315, 4294901760
    %2390 = vmatprep.mubr.f32.mxu0 %v2389
    %v2391 = vand.u32 %v43, 4294901760
    %2392 = vmatmul.mubr.f32.gmra.mrb[0].mxu0 %v2391
    %v2393 = vpop.f32.mrb[0].mxu0
    %v2394 = vadd.f32 %v2162, %v2393
    %v2395 = vpop.f32.mrb[0].mxu0
    %2396 = vdwg.mxu0
    %2397 = vmatprep.subr.mxu0 0.0
    %v2398 = vand.u32 %v113, 4294901760
    %v2399 = vsub.f32 %v113, %v2398
    %2400 = vmatpush1.msra.mxu0 %v2399
    %2401 = vmatprep.subr.mxu0 0.0
    %v2402 = vand.u32 %v114, 4294901760
    %v2403 = vsub.f32 %v114, %v2402
    %2404 = vmatpush1.msra.mxu0 %v2403
    %2405 = vmatprep.subr.mxu0 0.0
    %v2406 = vand.u32 %v115, 4294901760
    %v2407 = vsub.f32 %v115, %v2406
    %2408 = vmatpush1.msra.mxu0 %v2407
    %2409 = vmatprep.subr.mxu0 0.0
    %v2410 = vand.u32 %v116, 4294901760
    %v2411 = vsub.f32 %v116, %v2410
    %2412 = vmatpush1.msra.mxu0 %v2411
    %2413 = vmatprep.subr.mxu0 0.0
    %v2414 = vand.u32 %v117, 4294901760
    %v2415 = vsub.f32 %v117, %v2414
    %2416 = vmatpush1.msra.mxu0 %v2415
    %2417 = vmatprep.subr.mxu0 0.0
    %v2418 = vand.u32 %v118, 4294901760
    %v2419 = vsub.f32 %v118, %v2418
    %2420 = vmatpush1.msra.mxu0 %v2419
    %2421 = vmatprep.subr.mxu0 0.0
    %v2422 = vand.u32 %v119, 4294901760
    %v2423 = vsub.f32 %v119, %v2422
    %2424 = vmatpush1.msra.mxu0 %v2423
    %2425 = vmatprep.subr.mxu0 0.0
    %v2426 = vand.u32 %v120, 4294901760
    %v2427 = vsub.f32 %v120, %v2426
    %2428 = vmatpush1.msra.mxu0 %v2427
    %2429 = vmatprep.subr.mxu0 0.0
    %v2430 = vand.u32 %v121, 4294901760
    %v2431 = vsub.f32 %v121, %v2430
    %2432 = vmatpush1.msra.mxu0 %v2431
    %2433 = vmatprep.subr.mxu0 0.0
    %v2434 = vand.u32 %v122, 4294901760
    %v2435 = vsub.f32 %v122, %v2434
    %2436 = vmatpush1.msra.mxu0 %v2435
    %2437 = vmatprep.subr.mxu0 0.0
    %v2438 = vand.u32 %v123, 4294901760
    %v2439 = vsub.f32 %v123, %v2438
    %2440 = vmatpush1.msra.mxu0 %v2439
    %2441 = vmatprep.subr.mxu0 0.0
    %v2442 = vand.u32 %v124, 4294901760
    %v2443 = vsub.f32 %v124, %v2442
    %2444 = vmatpush1.msra.mxu0 %v2443
    %2445 = vmatprep.subr.mxu0 0.0
    %v2446 = vand.u32 %v125, 4294901760
    %v2447 = vsub.f32 %v125, %v2446
    %2448 = vmatpush1.msra.mxu0 %v2447
    %2449 = vmatprep.subr.mxu0 0.0
    %v2450 = vand.u32 %v126, 4294901760
    %v2451 = vsub.f32 %v126, %v2450
    %2452 = vmatpush1.msra.mxu0 %v2451
    %2453 = vmatprep.subr.mxu0 0.0
    %v2454 = vand.u32 %v127, 4294901760
    %v2455 = vsub.f32 %v127, %v2454
    %2456 = vmatpush1.msra.mxu0 %v2455
    %2457 = vmatprep.subr.mxu0 0.0
    %v2458 = vand.u32 %v128, 4294901760
    %v2459 = vsub.f32 %v128, %v2458
    %2460 = vmatpush1.msra.mxu0 %v2459
    %2461 = vmatprep.subr.mxu0 0.0
    %v2462 = vand.u32 %v129, 4294901760
    %v2463 = vsub.f32 %v129, %v2462
    %2464 = vmatpush1.msra.mxu0 %v2463
    %2465 = vmatprep.subr.mxu0 0.0
    %v2466 = vand.u32 %v130, 4294901760
    %v2467 = vsub.f32 %v130, %v2466
    %2468 = vmatpush1.msra.mxu0 %v2467
    %2469 = vmatprep.subr.mxu0 0.0
    %v2470 = vand.u32 %v131, 4294901760
    %v2471 = vsub.f32 %v131, %v2470
    %2472 = vmatpush1.msra.mxu0 %v2471
    %2473 = vmatprep.subr.mxu0 0.0
    %v2474 = vand.u32 %v132, 4294901760
    %v2475 = vsub.f32 %v132, %v2474
    %2476 = vmatpush1.msra.mxu0 %v2475
    %2477 = vmatprep.subr.mxu0 0.0
    %v2478 = vand.u32 %v133, 4294901760
    %v2479 = vsub.f32 %v133, %v2478
    %2480 = vmatpush1.msra.mxu0 %v2479
    %2481 = vmatprep.subr.mxu0 0.0
    %v2482 = vand.u32 %v134, 4294901760
    %v2483 = vsub.f32 %v134, %v2482
    %2484 = vmatpush1.msra.mxu0 %v2483
    %2485 = vmatprep.subr.mxu0 0.0
    %v2486 = vand.u32 %v135, 4294901760
    %v2487 = vsub.f32 %v135, %v2486
    %2488 = vmatpush1.msra.mxu0 %v2487
    %2489 = vmatprep.subr.mxu0 0.0
    %v2490 = vand.u32 %v136, 4294901760
    %v2491 = vsub.f32 %v136, %v2490
    %2492 = vmatpush1.msra.mxu0 %v2491
    %2493 = vmatprep.subr.mxu0 0.0
    %v2494 = vand.u32 %v137, 4294901760
    %v2495 = vsub.f32 %v137, %v2494
    %2496 = vmatpush1.msra.mxu0 %v2495
    %2497 = vmatprep.subr.mxu0 0.0
    %v2498 = vand.u32 %v138, 4294901760
    %v2499 = vsub.f32 %v138, %v2498
    %2500 = vmatpush1.msra.mxu0 %v2499
    %2501 = vmatprep.subr.mxu0 0.0
    %v2502 = vand.u32 %v139, 4294901760
    %v2503 = vsub.f32 %v139, %v2502
    %2504 = vmatpush1.msra.mxu0 %v2503
    %2505 = vmatprep.subr.mxu0 0.0
    %v2506 = vand.u32 %v140, 4294901760
    %v2507 = vsub.f32 %v140, %v2506
    %2508 = vmatpush1.msra.mxu0 %v2507
    %2509 = vmatprep.subr.mxu0 0.0
    %v2510 = vand.u32 %v141, 4294901760
    %v2511 = vsub.f32 %v141, %v2510
    %2512 = vmatpush1.msra.mxu0 %v2511
    %2513 = vmatprep.subr.mxu0 0.0
    %v2514 = vand.u32 %v142, 4294901760
    %v2515 = vsub.f32 %v142, %v2514
    %2516 = vmatpush1.msra.mxu0 %v2515
    %2517 = vmatprep.subr.mxu0 0.0
    %v2518 = vand.u32 %v143, 4294901760
    %v2519 = vsub.f32 %v143, %v2518
    %2520 = vmatpush1.msra.mxu0 %v2519
    %2521 = vmatprep.subr.mxu0 0.0
    %v2522 = vand.u32 %v144, 4294901760
    %v2523 = vsub.f32 %v144, %v2522
    %2524 = vmatpush1.msra.mxu0 %v2523
    %v2525 = vand.u32 %v315, 4294901760
    %v2526 = vsub.f32 %v315, %v2525
    %2527 = vmatprep.mubr.f32.mxu0 %v2526
    %v2528 = vand.u32 %v43, 4294901760
    %v2529 = vsub.f32 %v43, %v2528
    %2530 = vmatmul.mubr.f32.gmra.mrb[0].mxu0 %v2529
    %v2531 = vpop.f32.mrb[0].mxu0
    %v2532 = vadd.f32 %v2394, %v2531
    %v2533 = vpop.f32.mrb[0].mxu0
    %2534 = vdwg.mxu0
    %2535 = vmatprep.subr.mxu0 0.0
    %v2536 = vand.u32 %v113, 4294901760
    %2537 = vmatpush1.msra.mxu0 %v2536
    %2538 = vmatprep.subr.mxu0 0.0
    %v2539 = vand.u32 %v114, 4294901760
    %2540 = vmatpush1.msra.mxu0 %v2539
    %2541 = vmatprep.subr.mxu0 0.0
    %v2542 = vand.u32 %v115, 4294901760
    %2543 = vmatpush1.msra.mxu0 %v2542
    %2544 = vmatprep.subr.mxu0 0.0
    %v2545 = vand.u32 %v116, 4294901760
    %2546 = vmatpush1.msra.mxu0 %v2545
    %2547 = vmatprep.subr.mxu0 0.0
    %v2548 = vand.u32 %v117, 4294901760
    %2549 = vmatpush1.msra.mxu0 %v2548
    %2550 = vmatprep.subr.mxu0 0.0
    %v2551 = vand.u32 %v118, 4294901760
    %2552 = vmatpush1.msra.mxu0 %v2551
    %2553 = vmatprep.subr.mxu0 0.0
    %v2554 = vand.u32 %v119, 4294901760
    %2555 = vmatpush1.msra.mxu0 %v2554
    %2556 = vmatprep.subr.mxu0 0.0
    %v2557 = vand.u32 %v120, 4294901760
    %2558 = vmatpush1.msra.mxu0 %v2557
    %2559 = vmatprep.subr.mxu0 0.0
    %v2560 = vand.u32 %v121, 4294901760
    %2561 = vmatpush1.msra.mxu0 %v2560
    %2562 = vmatprep.subr.mxu0 0.0
    %v2563 = vand.u32 %v122, 4294901760
    %2564 = vmatpush1.msra.mxu0 %v2563
    %2565 = vmatprep.subr.mxu0 0.0
    %v2566 = vand.u32 %v123, 4294901760
    %2567 = vmatpush1.msra.mxu0 %v2566
    %2568 = vmatprep.subr.mxu0 0.0
    %v2569 = vand.u32 %v124, 4294901760
    %2570 = vmatpush1.msra.mxu0 %v2569
    %2571 = vmatprep.subr.mxu0 0.0
    %v2572 = vand.u32 %v125, 4294901760
    %2573 = vmatpush1.msra.mxu0 %v2572
    %2574 = vmatprep.subr.mxu0 0.0
    %v2575 = vand.u32 %v126, 4294901760
    %2576 = vmatpush1.msra.mxu0 %v2575
    %2577 = vmatprep.subr.mxu0 0.0
    %v2578 = vand.u32 %v127, 4294901760
    %2579 = vmatpush1.msra.mxu0 %v2578
    %2580 = vmatprep.subr.mxu0 0.0
    %v2581 = vand.u32 %v128, 4294901760
    %2582 = vmatpush1.msra.mxu0 %v2581
    %2583 = vmatprep.subr.mxu0 0.0
    %v2584 = vand.u32 %v129, 4294901760
    %2585 = vmatpush1.msra.mxu0 %v2584
    %2586 = vmatprep.subr.mxu0 0.0
    %v2587 = vand.u32 %v130, 4294901760
    %2588 = vmatpush1.msra.mxu0 %v2587
    %2589 = vmatprep.subr.mxu0 0.0
    %v2590 = vand.u32 %v131, 4294901760
    %2591 = vmatpush1.msra.mxu0 %v2590
    %2592 = vmatprep.subr.mxu0 0.0
    %v2593 = vand.u32 %v132, 4294901760
    %2594 = vmatpush1.msra.mxu0 %v2593
    %2595 = vmatprep.subr.mxu0 0.0
    %v2596 = vand.u32 %v133, 4294901760
    %2597 = vmatpush1.msra.mxu0 %v2596
    %2598 = vmatprep.subr.mxu0 0.0
    %v2599 = vand.u32 %v134, 4294901760
    %2600 = vmatpush1.msra.mxu0 %v2599
    %2601 = vmatprep.subr.mxu0 0.0
    %v2602 = vand.u32 %v135, 4294901760
    %2603 = vmatpush1.msra.mxu0 %v2602
    %2604 = vmatprep.subr.mxu0 0.0
    %v2605 = vand.u32 %v136, 4294901760
    %2606 = vmatpush1.msra.mxu0 %v2605
    %2607 = vmatprep.subr.mxu0 0.0
    %v2608 = vand.u32 %v137, 4294901760
    %2609 = vmatpush1.msra.mxu0 %v2608
    %2610 = vmatprep.subr.mxu0 0.0
    %v2611 = vand.u32 %v138, 4294901760
    %2612 = vmatpush1.msra.mxu0 %v2611
    %2613 = vmatprep.subr.mxu0 0.0
    %v2614 = vand.u32 %v139, 4294901760
    %2615 = vmatpush1.msra.mxu0 %v2614
    %2616 = vmatprep.subr.mxu0 0.0
    %v2617 = vand.u32 %v140, 4294901760
    %2618 = vmatpush1.msra.mxu0 %v2617
    %2619 = vmatprep.subr.mxu0 0.0
    %v2620 = vand.u32 %v141, 4294901760
    %2621 = vmatpush1.msra.mxu0 %v2620
    %2622 = vmatprep.subr.mxu0 0.0
    %v2623 = vand.u32 %v142, 4294901760
    %2624 = vmatpush1.msra.mxu0 %v2623
    %2625 = vmatprep.subr.mxu0 0.0
    %v2626 = vand.u32 %v143, 4294901760
    %2627 = vmatpush1.msra.mxu0 %v2626
    %2628 = vmatprep.subr.mxu0 0.0
    %v2629 = vand.u32 %v144, 4294901760
    %2630 = vmatpush1.msra.mxu0 %v2629
    %v2631 = vand.u32 %v315, 4294901760
    %v2632 = vsub.f32 %v315, %v2631
    %v2633 = vand.u32 %v2632, 4294901760
    %2634 = vmatprep.mubr.f32.mxu0 %v2633
    %v2635 = vand.u32 %v43, 4294901760
    %v2636 = vsub.f32 %v43, %v2635
    %v2637 = vand.u32 %v2636, 4294901760
    %2638 = vmatmul.mubr.f32.gmra.mrb[0].mxu0 %v2637
    %v2639 = vpop.f32.mrb[0].mxu0
    %v2640 = vadd.f32 %v2532, %v2639
    %v2641 = vpop.f32.mrb[0].mxu0
    %2642 = vdwg.mxu0
    %2643 = vmatprep.subr.mxu0 0.0
    %v2644 = vand.u32 %v113, 4294901760
    %v2645 = vsub.f32 %v113, %v2644
    %v2646 = vand.u32 %v2645, 4294901760
    %2647 = vmatpush1.msra.mxu0 %v2646
    %2648 = vmatprep.subr.mxu0 0.0
    %v2649 = vand.u32 %v114, 4294901760
    %v2650 = vsub.f32 %v114, %v2649
    %v2651 = vand.u32 %v2650, 4294901760
    %2652 = vmatpush1.msra.mxu0 %v2651
    %2653 = vmatprep.subr.mxu0 0.0
    %v2654 = vand.u32 %v115, 4294901760
    %v2655 = vsub.f32 %v115, %v2654
    %v2656 = vand.u32 %v2655, 4294901760
    %2657 = vmatpush1.msra.mxu0 %v2656
    %2658 = vmatprep.subr.mxu0 0.0
    %v2659 = vand.u32 %v116, 4294901760
    %v2660 = vsub.f32 %v116, %v2659
    %v2661 = vand.u32 %v2660, 4294901760
    %2662 = vmatpush1.msra.mxu0 %v2661
    %2663 = vmatprep.subr.mxu0 0.0
    %v2664 = vand.u32 %v117, 4294901760
    %v2665 = vsub.f32 %v117, %v2664
    %v2666 = vand.u32 %v2665, 4294901760
    %2667 = vmatpush1.msra.mxu0 %v2666
    %2668 = vmatprep.subr.mxu0 0.0
    %v2669 = vand.u32 %v118, 4294901760
    %v2670 = vsub.f32 %v118, %v2669
    %v2671 = vand.u32 %v2670, 4294901760
    %2672 = vmatpush1.msra.mxu0 %v2671
    %2673 = vmatprep.subr.mxu0 0.0
    %v2674 = vand.u32 %v119, 4294901760
    %v2675 = vsub.f32 %v119, %v2674
    %v2676 = vand.u32 %v2675, 4294901760
    %2677 = vmatpush1.msra.mxu0 %v2676
    %2678 = vmatprep.subr.mxu0 0.0
    %v2679 = vand.u32 %v120, 4294901760
    %v2680 = vsub.f32 %v120, %v2679
    %v2681 = vand.u32 %v2680, 4294901760
    %2682 = vmatpush1.msra.mxu0 %v2681
    %2683 = vmatprep.subr.mxu0 0.0
    %v2684 = vand.u32 %v121, 4294901760
    %v2685 = vsub.f32 %v121, %v2684
    %v2686 = vand.u32 %v2685, 4294901760
    %2687 = vmatpush1.msra.mxu0 %v2686
    %2688 = vmatprep.subr.mxu0 0.0
    %v2689 = vand.u32 %v122, 4294901760
    %v2690 = vsub.f32 %v122, %v2689
    %v2691 = vand.u32 %v2690, 4294901760
    %2692 = vmatpush1.msra.mxu0 %v2691
    %2693 = vmatprep.subr.mxu0 0.0
    %v2694 = vand.u32 %v123, 4294901760
    %v2695 = vsub.f32 %v123, %v2694
    %v2696 = vand.u32 %v2695, 4294901760
    %2697 = vmatpush1.msra.mxu0 %v2696
    %2698 = vmatprep.subr.mxu0 0.0
    %v2699 = vand.u32 %v124, 4294901760
    %v2700 = vsub.f32 %v124, %v2699
    %v2701 = vand.u32 %v2700, 4294901760
    %2702 = vmatpush1.msra.mxu0 %v2701
    %2703 = vmatprep.subr.mxu0 0.0
    %v2704 = vand.u32 %v125, 4294901760
    %v2705 = vsub.f32 %v125, %v2704
    %v2706 = vand.u32 %v2705, 4294901760
    %2707 = vmatpush1.msra.mxu0 %v2706
    %2708 = vmatprep.subr.mxu0 0.0
    %v2709 = vand.u32 %v126, 4294901760
    %v2710 = vsub.f32 %v126, %v2709
    %v2711 = vand.u32 %v2710, 4294901760
    %2712 = vmatpush1.msra.mxu0 %v2711
    %2713 = vmatprep.subr.mxu0 0.0
    %v2714 = vand.u32 %v127, 4294901760
    %v2715 = vsub.f32 %v127, %v2714
    %v2716 = vand.u32 %v2715, 4294901760
    %2717 = vmatpush1.msra.mxu0 %v2716
    %2718 = vmatprep.subr.mxu0 0.0
    %v2719 = vand.u32 %v128, 4294901760
    %v2720 = vsub.f32 %v128, %v2719
    %v2721 = vand.u32 %v2720, 4294901760
    %2722 = vmatpush1.msra.mxu0 %v2721
    %2723 = vmatprep.subr.mxu0 0.0
    %v2724 = vand.u32 %v129, 4294901760
    %v2725 = vsub.f32 %v129, %v2724
    %v2726 = vand.u32 %v2725, 4294901760
    %2727 = vmatpush1.msra.mxu0 %v2726
    %2728 = vmatprep.subr.mxu0 0.0
    %v2729 = vand.u32 %v130, 4294901760
    %v2730 = vsub.f32 %v130, %v2729
    %v2731 = vand.u32 %v2730, 4294901760
    %2732 = vmatpush1.msra.mxu0 %v2731
    %2733 = vmatprep.subr.mxu0 0.0
    %v2734 = vand.u32 %v131, 4294901760
    %v2735 = vsub.f32 %v131, %v2734
    %v2736 = vand.u32 %v2735, 4294901760
    %2737 = vmatpush1.msra.mxu0 %v2736
    %2738 = vmatprep.subr.mxu0 0.0
    %v2739 = vand.u32 %v132, 4294901760
    %v2740 = vsub.f32 %v132, %v2739
    %v2741 = vand.u32 %v2740, 4294901760
    %2742 = vmatpush1.msra.mxu0 %v2741
    %2743 = vmatprep.subr.mxu0 0.0
    %v2744 = vand.u32 %v133, 4294901760
    %v2745 = vsub.f32 %v133, %v2744
    %v2746 = vand.u32 %v2745, 4294901760
    %2747 = vmatpush1.msra.mxu0 %v2746
    %2748 = vmatprep.subr.mxu0 0.0
    %v2749 = vand.u32 %v134, 4294901760
    %v2750 = vsub.f32 %v134, %v2749
    %v2751 = vand.u32 %v2750, 4294901760
    %2752 = vmatpush1.msra.mxu0 %v2751
    %2753 = vmatprep.subr.mxu0 0.0
    %v2754 = vand.u32 %v135, 4294901760
    %v2755 = vsub.f32 %v135, %v2754
    %v2756 = vand.u32 %v2755, 4294901760
    %2757 = vmatpush1.msra.mxu0 %v2756
    %2758 = vmatprep.subr.mxu0 0.0
    %v2759 = vand.u32 %v136, 4294901760
    %v2760 = vsub.f32 %v136, %v2759
    %v2761 = vand.u32 %v2760, 4294901760
    %2762 = vmatpush1.msra.mxu0 %v2761
    %2763 = vmatprep.subr.mxu0 0.0
    %v2764 = vand.u32 %v137, 4294901760
    %v2765 = vsub.f32 %v137, %v2764
    %v2766 = vand.u32 %v2765, 4294901760
    %2767 = vmatpush1.msra.mxu0 %v2766
    %2768 = vmatprep.subr.mxu0 0.0
    %v2769 = vand.u32 %v138, 4294901760
    %v2770 = vsub.f32 %v138, %v2769
    %v2771 = vand.u32 %v2770, 4294901760
    %2772 = vmatpush1.msra.mxu0 %v2771
    %2773 = vmatprep.subr.mxu0 0.0
    %v2774 = vand.u32 %v139, 4294901760
    %v2775 = vsub.f32 %v139, %v2774
    %v2776 = vand.u32 %v2775, 4294901760
    %2777 = vmatpush1.msra.mxu0 %v2776
    %2778 = vmatprep.subr.mxu0 0.0
    %v2779 = vand.u32 %v140, 4294901760
    %v2780 = vsub.f32 %v140, %v2779
    %v2781 = vand.u32 %v2780, 4294901760
    %2782 = vmatpush1.msra.mxu0 %v2781
    %2783 = vmatprep.subr.mxu0 0.0
    %v2784 = vand.u32 %v141, 4294901760
    %v2785 = vsub.f32 %v141, %v2784
    %v2786 = vand.u32 %v2785, 4294901760
    %2787 = vmatpush1.msra.mxu0 %v2786
    %2788 = vmatprep.subr.mxu0 0.0
    %v2789 = vand.u32 %v142, 4294901760
    %v2790 = vsub.f32 %v142, %v2789
    %v2791 = vand.u32 %v2790, 4294901760
    %2792 = vmatpush1.msra.mxu0 %v2791
    %2793 = vmatprep.subr.mxu0 0.0
    %v2794 = vand.u32 %v143, 4294901760
    %v2795 = vsub.f32 %v143, %v2794
    %v2796 = vand.u32 %v2795, 4294901760
    %2797 = vmatpush1.msra.mxu0 %v2796
    %2798 = vmatprep.subr.mxu0 0.0
    %v2799 = vand.u32 %v144, 4294901760
    %v2800 = vsub.f32 %v144, %v2799
    %v2801 = vand.u32 %v2800, 4294901760
    %2802 = vmatpush1.msra.mxu0 %v2801
    %v2803 = vand.u32 %v315, 4294901760
    %2804 = vmatprep.mubr.f32.mxu0 %v2803
    %v2805 = vand.u32 %v43, 4294901760
    %2806 = vmatmul.mubr.f32.gmra.mrb[0].mxu0 %v2805
    %v2807 = vpop.f32.mrb[0].mxu0
    %v2808 = vadd.f32 %v2640, %v2807
    %v2809 = vpop.f32.mrb[0].mxu0
    %2810 = vdwg.mxu0
    %2811 = vmatprep.subr.mxu0 0.0
    %v2812 = vand.u32 %v113, 4294901760
    %2813 = vmatpush1.msra.mxu0 %v2812
    %2814 = vmatprep.subr.mxu0 0.0
    %v2815 = vand.u32 %v114, 4294901760
    %2816 = vmatpush1.msra.mxu0 %v2815
    %2817 = vmatprep.subr.mxu0 0.0
    %v2818 = vand.u32 %v115, 4294901760
    %2819 = vmatpush1.msra.mxu0 %v2818
    %2820 = vmatprep.subr.mxu0 0.0
    %v2821 = vand.u32 %v116, 4294901760
    %2822 = vmatpush1.msra.mxu0 %v2821
    %2823 = vmatprep.subr.mxu0 0.0
    %v2824 = vand.u32 %v117, 4294901760
    %2825 = vmatpush1.msra.mxu0 %v2824
    %2826 = vmatprep.subr.mxu0 0.0
    %v2827 = vand.u32 %v118, 4294901760
    %2828 = vmatpush1.msra.mxu0 %v2827
    %2829 = vmatprep.subr.mxu0 0.0
    %v2830 = vand.u32 %v119, 4294901760
    %2831 = vmatpush1.msra.mxu0 %v2830
    %2832 = vmatprep.subr.mxu0 0.0
    %v2833 = vand.u32 %v120, 4294901760
    %2834 = vmatpush1.msra.mxu0 %v2833
    %2835 = vmatprep.subr.mxu0 0.0
    %v2836 = vand.u32 %v121, 4294901760
    %2837 = vmatpush1.msra.mxu0 %v2836
    %2838 = vmatprep.subr.mxu0 0.0
    %v2839 = vand.u32 %v122, 4294901760
    %2840 = vmatpush1.msra.mxu0 %v2839
    %2841 = vmatprep.subr.mxu0 0.0
    %v2842 = vand.u32 %v123, 4294901760
    %2843 = vmatpush1.msra.mxu0 %v2842
    %2844 = vmatprep.subr.mxu0 0.0
    %v2845 = vand.u32 %v124, 4294901760
    %2846 = vmatpush1.msra.mxu0 %v2845
    %2847 = vmatprep.subr.mxu0 0.0
    %v2848 = vand.u32 %v125, 4294901760
    %2849 = vmatpush1.msra.mxu0 %v2848
    %2850 = vmatprep.subr.mxu0 0.0
    %v2851 = vand.u32 %v126, 4294901760
    %2852 = vmatpush1.msra.mxu0 %v2851
    %2853 = vmatprep.subr.mxu0 0.0
    %v2854 = vand.u32 %v127, 4294901760
    %2855 = vmatpush1.msra.mxu0 %v2854
    %2856 = vmatprep.subr.mxu0 0.0
    %v2857 = vand.u32 %v128, 4294901760
    %2858 = vmatpush1.msra.mxu0 %v2857
    %2859 = vmatprep.subr.mxu0 0.0
    %v2860 = vand.u32 %v129, 4294901760
    %2861 = vmatpush1.msra.mxu0 %v2860
    %2862 = vmatprep.subr.mxu0 0.0
    %v2863 = vand.u32 %v130, 4294901760
    %2864 = vmatpush1.msra.mxu0 %v2863
    %2865 = vmatprep.subr.mxu0 0.0
    %v2866 = vand.u32 %v131, 4294901760
    %2867 = vmatpush1.msra.mxu0 %v2866
    %2868 = vmatprep.subr.mxu0 0.0
    %v2869 = vand.u32 %v132, 4294901760
    %2870 = vmatpush1.msra.mxu0 %v2869
    %2871 = vmatprep.subr.mxu0 0.0
    %v2872 = vand.u32 %v133, 4294901760
    %2873 = vmatpush1.msra.mxu0 %v2872
    %2874 = vmatprep.subr.mxu0 0.0
    %v2875 = vand.u32 %v134, 4294901760
    %2876 = vmatpush1.msra.mxu0 %v2875
    %2877 = vmatprep.subr.mxu0 0.0
    %v2878 = vand.u32 %v135, 4294901760
    %2879 = vmatpush1.msra.mxu0 %v2878
    %2880 = vmatprep.subr.mxu0 0.0
    %v2881 = vand.u32 %v136, 4294901760
    %2882 = vmatpush1.msra.mxu0 %v2881
    %2883 = vmatprep.subr.mxu0 0.0
    %v2884 = vand.u32 %v137, 4294901760
    %2885 = vmatpush1.msra.mxu0 %v2884
    %2886 = vmatprep.subr.mxu0 0.0
    %v2887 = vand.u32 %v138, 4294901760
    %2888 = vmatpush1.msra.mxu0 %v2887
    %2889 = vmatprep.subr.mxu0 0.0
    %v2890 = vand.u32 %v139, 4294901760
    %2891 = vmatpush1.msra.mxu0 %v2890
    %2892 = vmatprep.subr.mxu0 0.0
    %v2893 = vand.u32 %v140, 4294901760
    %2894 = vmatpush1.msra.mxu0 %v2893
    %2895 = vmatprep.subr.mxu0 0.0
    %v2896 = vand.u32 %v141, 4294901760
    %2897 = vmatpush1.msra.mxu0 %v2896
    %2898 = vmatprep.subr.mxu0 0.0
    %v2899 = vand.u32 %v142, 4294901760
    %2900 = vmatpush1.msra.mxu0 %v2899
    %2901 = vmatprep.subr.mxu0 0.0
    %v2902 = vand.u32 %v143, 4294901760
    %2903 = vmatpush1.msra.mxu0 %v2902
    %2904 = vmatprep.subr.mxu0 0.0
    %v2905 = vand.u32 %v144, 4294901760
    %2906 = vmatpush1.msra.mxu0 %v2905
    %v2907 = vand.u32 %v315, 4294901760
    %2908 = vmatprep.mubr.f32.mxu0 %v2907
    %v2909 = vand.u32 %v43, 4294901760
    %2910 = vmatmul.mubr.f32.gmra.mrb[0].mxu0 %v2909
    %v2911 = vpop.f32.mrb[0].mxu0
    %v2912 = vadd.f32 %v2808, %v2911
    %v2913 = vpop.f32.mrb[0].mxu0
    %2914 = vdwg.mxu0
    %2915 = vmatprep.subr.mxu0 0.0
    %v2916 = vand.u32 %v145, 4294901760
    %2917 = vmatpush1.msra.mxu0 %v2916
    %2918 = vmatprep.subr.mxu0 0.0
    %v2919 = vand.u32 %v146, 4294901760
    %2920 = vmatpush1.msra.mxu0 %v2919
    %2921 = vmatprep.subr.mxu0 0.0
    %v2922 = vand.u32 %v147, 4294901760
    %2923 = vmatpush1.msra.mxu0 %v2922
    %2924 = vmatprep.subr.mxu0 0.0
    %v2925 = vand.u32 %v148, 4294901760
    %2926 = vmatpush1.msra.mxu0 %v2925
    %2927 = vmatprep.subr.mxu0 0.0
    %v2928 = vand.u32 %v149, 4294901760
    %2929 = vmatpush1.msra.mxu0 %v2928
    %2930 = vmatprep.subr.mxu0 0.0
    %v2931 = vand.u32 %v150, 4294901760
    %2932 = vmatpush1.msra.mxu0 %v2931
    %2933 = vmatprep.subr.mxu0 0.0
    %v2934 = vand.u32 %v151, 4294901760
    %2935 = vmatpush1.msra.mxu0 %v2934
    %2936 = vmatprep.subr.mxu0 0.0
    %v2937 = vand.u32 %v152, 4294901760
    %2938 = vmatpush1.msra.mxu0 %v2937
    %2939 = vmatprep.subr.mxu0 0.0
    %v2940 = vand.u32 %v153, 4294901760
    %2941 = vmatpush1.msra.mxu0 %v2940
    %2942 = vmatprep.subr.mxu0 0.0
    %v2943 = vand.u32 %v154, 4294901760
    %2944 = vmatpush1.msra.mxu0 %v2943
    %2945 = vmatprep.subr.mxu0 0.0
    %v2946 = vand.u32 %v155, 4294901760
    %2947 = vmatpush1.msra.mxu0 %v2946
    %2948 = vmatprep.subr.mxu0 0.0
    %v2949 = vand.u32 %v156, 4294901760
    %2950 = vmatpush1.msra.mxu0 %v2949
    %2951 = vmatprep.subr.mxu0 0.0
    %v2952 = vand.u32 %v157, 4294901760
    %2953 = vmatpush1.msra.mxu0 %v2952
    %2954 = vmatprep.subr.mxu0 0.0
    %v2955 = vand.u32 %v158, 4294901760
    %2956 = vmatpush1.msra.mxu0 %v2955
    %2957 = vmatprep.subr.mxu0 0.0
    %v2958 = vand.u32 %v159, 4294901760
    %2959 = vmatpush1.msra.mxu0 %v2958
    %2960 = vmatprep.subr.mxu0 0.0
    %v2961 = vand.u32 %v160, 4294901760
    %2962 = vmatpush1.msra.mxu0 %v2961
    %2963 = vmatprep.subr.mxu0 0.0
    %v2964 = vand.u32 %v161, 4294901760
    %2965 = vmatpush1.msra.mxu0 %v2964
    %2966 = vmatprep.subr.mxu0 0.0
    %v2967 = vand.u32 %v162, 4294901760
    %2968 = vmatpush1.msra.mxu0 %v2967
    %2969 = vmatprep.subr.mxu0 0.0
    %v2970 = vand.u32 %v163, 4294901760
    %2971 = vmatpush1.msra.mxu0 %v2970
    %2972 = vmatprep.subr.mxu0 0.0
    %v2973 = vand.u32 %v164, 4294901760
    %2974 = vmatpush1.msra.mxu0 %v2973
    %2975 = vmatprep.subr.mxu0 0.0
    %v2976 = vand.u32 %v165, 4294901760
    %2977 = vmatpush1.msra.mxu0 %v2976
    %2978 = vmatprep.subr.mxu0 0.0
    %v2979 = vand.u32 %v166, 4294901760
    %2980 = vmatpush1.msra.mxu0 %v2979
    %2981 = vmatprep.subr.mxu0 0.0
    %v2982 = vand.u32 %v167, 4294901760
    %2983 = vmatpush1.msra.mxu0 %v2982
    %2984 = vmatprep.subr.mxu0 0.0
    %v2985 = vand.u32 %v168, 4294901760
    %2986 = vmatpush1.msra.mxu0 %v2985
    %2987 = vmatprep.subr.mxu0 0.0
    %v2988 = vand.u32 %v169, 4294901760
    %2989 = vmatpush1.msra.mxu0 %v2988
    %2990 = vmatprep.subr.mxu0 0.0
    %v2991 = vand.u32 %v170, 4294901760
    %2992 = vmatpush1.msra.mxu0 %v2991
    %2993 = vmatprep.subr.mxu0 0.0
    %v2994 = vand.u32 %v171, 4294901760
    %2995 = vmatpush1.msra.mxu0 %v2994
    %2996 = vmatprep.subr.mxu0 0.0
    %v2997 = vand.u32 %v172, 4294901760
    %2998 = vmatpush1.msra.mxu0 %v2997
    %2999 = vmatprep.subr.mxu0 0.0
    %v3000 = vand.u32 %v173, 4294901760
    %3001 = vmatpush1.msra.mxu0 %v3000
    %3002 = vmatprep.subr.mxu0 0.0
    %v3003 = vand.u32 %v174, 4294901760
    %3004 = vmatpush1.msra.mxu0 %v3003
    %3005 = vmatprep.subr.mxu0 0.0
    %v3006 = vand.u32 %v175, 4294901760
    %3007 = vmatpush1.msra.mxu0 %v3006
    %3008 = vmatprep.subr.mxu0 0.0
    %v3009 = vand.u32 %v176, 4294901760
    %3010 = vmatpush1.msra.mxu0 %v3009
    %v3011 = vand.u32 %v316, 4294901760
    %v3012 = vsub.f32 %v316, %v3011
    %v3013 = vand.u32 %v3012, 4294901760
    %v3014 = vsub.f32 %v3012, %v3013
    %v3015 = vand.u32 %v3014, 4294901760
    %3016 = vmatprep.mubr.f32.mxu0 %v3015
    %v3017 = vand.u32 %v44, 4294901760
    %v3018 = vsub.f32 %v44, %v3017
    %v3019 = vand.u32 %v3018, 4294901760
    %v3020 = vsub.f32 %v3018, %v3019
    %v3021 = vand.u32 %v3020, 4294901760
    %3022 = vmatmul.mubr.f32.gmra.mrb[0].mxu0 %v3021
    %v3023 = vpop.f32.mrb[0].mxu0
    %v3024 = vadd.f32 %v2912, %v3023
    %v3025 = vpop.f32.mrb[0].mxu0
    %3026 = vdwg.mxu0
    %3027 = vmatprep.subr.mxu0 0.0
    %v3028 = vand.u32 %v145, 4294901760
    %v3029 = vsub.f32 %v145, %v3028
    %v3030 = vand.u32 %v3029, 4294901760
    %v3031 = vsub.f32 %v3029, %v3030
    %v3032 = vand.u32 %v3031, 4294901760
    %3033 = vmatpush1.msra.mxu0 %v3032
    %3034 = vmatprep.subr.mxu0 0.0
    %v3035 = vand.u32 %v146, 4294901760
    %v3036 = vsub.f32 %v146, %v3035
    %v3037 = vand.u32 %v3036, 4294901760
    %v3038 = vsub.f32 %v3036, %v3037
    %v3039 = vand.u32 %v3038, 4294901760
    %3040 = vmatpush1.msra.mxu0 %v3039
    %3041 = vmatprep.subr.mxu0 0.0
    %v3042 = vand.u32 %v147, 4294901760
    %v3043 = vsub.f32 %v147, %v3042
    %v3044 = vand.u32 %v3043, 4294901760
    %v3045 = vsub.f32 %v3043, %v3044
    %v3046 = vand.u32 %v3045, 4294901760
    %3047 = vmatpush1.msra.mxu0 %v3046
    %3048 = vmatprep.subr.mxu0 0.0
    %v3049 = vand.u32 %v148, 4294901760
    %v3050 = vsub.f32 %v148, %v3049
    %v3051 = vand.u32 %v3050, 4294901760
    %v3052 = vsub.f32 %v3050, %v3051
    %v3053 = vand.u32 %v3052, 4294901760
    %3054 = vmatpush1.msra.mxu0 %v3053
    %3055 = vmatprep.subr.mxu0 0.0
    %v3056 = vand.u32 %v149, 4294901760
    %v3057 = vsub.f32 %v149, %v3056
    %v3058 = vand.u32 %v3057, 4294901760
    %v3059 = vsub.f32 %v3057, %v3058
    %v3060 = vand.u32 %v3059, 4294901760
    %3061 = vmatpush1.msra.mxu0 %v3060
    %3062 = vmatprep.subr.mxu0 0.0
    %v3063 = vand.u32 %v150, 4294901760
    %v3064 = vsub.f32 %v150, %v3063
    %v3065 = vand.u32 %v3064, 4294901760
    %v3066 = vsub.f32 %v3064, %v3065
    %v3067 = vand.u32 %v3066, 4294901760
    %3068 = vmatpush1.msra.mxu0 %v3067
    %3069 = vmatprep.subr.mxu0 0.0
    %v3070 = vand.u32 %v151, 4294901760
    %v3071 = vsub.f32 %v151, %v3070
    %v3072 = vand.u32 %v3071, 4294901760
    %v3073 = vsub.f32 %v3071, %v3072
    %v3074 = vand.u32 %v3073, 4294901760
    %3075 = vmatpush1.msra.mxu0 %v3074
    %3076 = vmatprep.subr.mxu0 0.0
    %v3077 = vand.u32 %v152, 4294901760
    %v3078 = vsub.f32 %v152, %v3077
    %v3079 = vand.u32 %v3078, 4294901760
    %v3080 = vsub.f32 %v3078, %v3079
    %v3081 = vand.u32 %v3080, 4294901760
    %3082 = vmatpush1.msra.mxu0 %v3081
    %3083 = vmatprep.subr.mxu0 0.0
    %v3084 = vand.u32 %v153, 4294901760
    %v3085 = vsub.f32 %v153, %v3084
    %v3086 = vand.u32 %v3085, 4294901760
    %v3087 = vsub.f32 %v3085, %v3086
    %v3088 = vand.u32 %v3087, 4294901760
    %3089 = vmatpush1.msra.mxu0 %v3088
    %3090 = vmatprep.subr.mxu0 0.0
    %v3091 = vand.u32 %v154, 4294901760
    %v3092 = vsub.f32 %v154, %v3091
    %v3093 = vand.u32 %v3092, 4294901760
    %v3094 = vsub.f32 %v3092, %v3093
    %v3095 = vand.u32 %v3094, 4294901760
    %3096 = vmatpush1.msra.mxu0 %v3095
    %3097 = vmatprep.subr.mxu0 0.0
    %v3098 = vand.u32 %v155, 4294901760
    %v3099 = vsub.f32 %v155, %v3098
    %v3100 = vand.u32 %v3099, 4294901760
    %v3101 = vsub.f32 %v3099, %v3100
    %v3102 = vand.u32 %v3101, 4294901760
    %3103 = vmatpush1.msra.mxu0 %v3102
    %3104 = vmatprep.subr.mxu0 0.0
    %v3105 = vand.u32 %v156, 4294901760
    %v3106 = vsub.f32 %v156, %v3105
    %v3107 = vand.u32 %v3106, 4294901760
    %v3108 = vsub.f32 %v3106, %v3107
    %v3109 = vand.u32 %v3108, 4294901760
    %3110 = vmatpush1.msra.mxu0 %v3109
    %3111 = vmatprep.subr.mxu0 0.0
    %v3112 = vand.u32 %v157, 4294901760
    %v3113 = vsub.f32 %v157, %v3112
    %v3114 = vand.u32 %v3113, 4294901760
    %v3115 = vsub.f32 %v3113, %v3114
    %v3116 = vand.u32 %v3115, 4294901760
    %3117 = vmatpush1.msra.mxu0 %v3116
    %3118 = vmatprep.subr.mxu0 0.0
    %v3119 = vand.u32 %v158, 4294901760
    %v3120 = vsub.f32 %v158, %v3119
    %v3121 = vand.u32 %v3120, 4294901760
    %v3122 = vsub.f32 %v3120, %v3121
    %v3123 = vand.u32 %v3122, 4294901760
    %3124 = vmatpush1.msra.mxu0 %v3123
    %3125 = vmatprep.subr.mxu0 0.0
    %v3126 = vand.u32 %v159, 4294901760
    %v3127 = vsub.f32 %v159, %v3126
    %v3128 = vand.u32 %v3127, 4294901760
    %v3129 = vsub.f32 %v3127, %v3128
    %v3130 = vand.u32 %v3129, 4294901760
    %3131 = vmatpush1.msra.mxu0 %v3130
    %3132 = vmatprep.subr.mxu0 0.0
    %v3133 = vand.u32 %v160, 4294901760
    %v3134 = vsub.f32 %v160, %v3133
    %v3135 = vand.u32 %v3134, 4294901760
    %v3136 = vsub.f32 %v3134, %v3135
    %v3137 = vand.u32 %v3136, 4294901760
    %3138 = vmatpush1.msra.mxu0 %v3137
    %3139 = vmatprep.subr.mxu0 0.0
    %v3140 = vand.u32 %v161, 4294901760
    %v3141 = vsub.f32 %v161, %v3140
    %v3142 = vand.u32 %v3141, 4294901760
    %v3143 = vsub.f32 %v3141, %v3142
    %v3144 = vand.u32 %v3143, 4294901760
    %3145 = vmatpush1.msra.mxu0 %v3144
    %3146 = vmatprep.subr.mxu0 0.0
    %v3147 = vand.u32 %v162, 4294901760
    %v3148 = vsub.f32 %v162, %v3147
    %v3149 = vand.u32 %v3148, 4294901760
    %v3150 = vsub.f32 %v3148, %v3149
    %v3151 = vand.u32 %v3150, 4294901760
    %3152 = vmatpush1.msra.mxu0 %v3151
    %3153 = vmatprep.subr.mxu0 0.0
    %v3154 = vand.u32 %v163, 4294901760
    %v3155 = vsub.f32 %v163, %v3154
    %v3156 = vand.u32 %v3155, 4294901760
    %v3157 = vsub.f32 %v3155, %v3156
    %v3158 = vand.u32 %v3157, 4294901760
    %3159 = vmatpush1.msra.mxu0 %v3158
    %3160 = vmatprep.subr.mxu0 0.0
    %v3161 = vand.u32 %v164, 4294901760
    %v3162 = vsub.f32 %v164, %v3161
    %v3163 = vand.u32 %v3162, 4294901760
    %v3164 = vsub.f32 %v3162, %v3163
    %v3165 = vand.u32 %v3164, 4294901760
    %3166 = vmatpush1.msra.mxu0 %v3165
    %3167 = vmatprep.subr.mxu0 0.0
    %v3168 = vand.u32 %v165, 4294901760
    %v3169 = vsub.f32 %v165, %v3168
    %v3170 = vand.u32 %v3169, 4294901760
    %v3171 = vsub.f32 %v3169, %v3170
    %v3172 = vand.u32 %v3171, 4294901760
    %3173 = vmatpush1.msra.mxu0 %v3172
    %3174 = vmatprep.subr.mxu0 0.0
    %v3175 = vand.u32 %v166, 4294901760
    %v3176 = vsub.f32 %v166, %v3175
    %v3177 = vand.u32 %v3176, 4294901760
    %v3178 = vsub.f32 %v3176, %v3177
    %v3179 = vand.u32 %v3178, 4294901760
    %3180 = vmatpush1.msra.mxu0 %v3179
    %3181 = vmatprep.subr.mxu0 0.0
    %v3182 = vand.u32 %v167, 4294901760
    %v3183 = vsub.f32 %v167, %v3182
    %v3184 = vand.u32 %v3183, 4294901760
    %v3185 = vsub.f32 %v3183, %v3184
    %v3186 = vand.u32 %v3185, 4294901760
    %3187 = vmatpush1.msra.mxu0 %v3186
    %3188 = vmatprep.subr.mxu0 0.0
    %v3189 = vand.u32 %v168, 4294901760
    %v3190 = vsub.f32 %v168, %v3189
    %v3191 = vand.u32 %v3190, 4294901760
    %v3192 = vsub.f32 %v3190, %v3191
    %v3193 = vand.u32 %v3192, 4294901760
    %3194 = vmatpush1.msra.mxu0 %v3193
    %3195 = vmatprep.subr.mxu0 0.0
    %v3196 = vand.u32 %v169, 4294901760
    %v3197 = vsub.f32 %v169, %v3196
    %v3198 = vand.u32 %v3197, 4294901760
    %v3199 = vsub.f32 %v3197, %v3198
    %v3200 = vand.u32 %v3199, 4294901760
    %3201 = vmatpush1.msra.mxu0 %v3200
    %3202 = vmatprep.subr.mxu0 0.0
    %v3203 = vand.u32 %v170, 4294901760
    %v3204 = vsub.f32 %v170, %v3203
    %v3205 = vand.u32 %v3204, 4294901760
    %v3206 = vsub.f32 %v3204, %v3205
    %v3207 = vand.u32 %v3206, 4294901760
    %3208 = vmatpush1.msra.mxu0 %v3207
    %3209 = vmatprep.subr.mxu0 0.0
    %v3210 = vand.u32 %v171, 4294901760
    %v3211 = vsub.f32 %v171, %v3210
    %v3212 = vand.u32 %v3211, 4294901760
    %v3213 = vsub.f32 %v3211, %v3212
    %v3214 = vand.u32 %v3213, 4294901760
    %3215 = vmatpush1.msra.mxu0 %v3214
    %3216 = vmatprep.subr.mxu0 0.0
    %v3217 = vand.u32 %v172, 4294901760
    %v3218 = vsub.f32 %v172, %v3217
    %v3219 = vand.u32 %v3218, 4294901760
    %v3220 = vsub.f32 %v3218, %v3219
    %v3221 = vand.u32 %v3220, 4294901760
    %3222 = vmatpush1.msra.mxu0 %v3221
    %3223 = vmatprep.subr.mxu0 0.0
    %v3224 = vand.u32 %v173, 4294901760
    %v3225 = vsub.f32 %v173, %v3224
    %v3226 = vand.u32 %v3225, 4294901760
    %v3227 = vsub.f32 %v3225, %v3226
    %v3228 = vand.u32 %v3227, 4294901760
    %3229 = vmatpush1.msra.mxu0 %v3228
    %3230 = vmatprep.subr.mxu0 0.0
    %v3231 = vand.u32 %v174, 4294901760
    %v3232 = vsub.f32 %v174, %v3231
    %v3233 = vand.u32 %v3232, 4294901760
    %v3234 = vsub.f32 %v3232, %v3233
    %v3235 = vand.u32 %v3234, 4294901760
    %3236 = vmatpush1.msra.mxu0 %v3235
    %3237 = vmatprep.subr.mxu0 0.0
    %v3238 = vand.u32 %v175, 4294901760
    %v3239 = vsub.f32 %v175, %v3238
    %v3240 = vand.u32 %v3239, 4294901760
    %v3241 = vsub.f32 %v3239, %v3240
    %v3242 = vand.u32 %v3241, 4294901760
    %3243 = vmatpush1.msra.mxu0 %v3242
    %3244 = vmatprep.subr.mxu0 0.0
    %v3245 = vand.u32 %v176, 4294901760
    %v3246 = vsub.f32 %v176, %v3245
    %v3247 = vand.u32 %v3246, 4294901760
    %v3248 = vsub.f32 %v3246, %v3247
    %v3249 = vand.u32 %v3248, 4294901760
    %3250 = vmatpush1.msra.mxu0 %v3249
    %v3251 = vand.u32 %v316, 4294901760
    %3252 = vmatprep.mubr.f32.mxu0 %v3251
    %v3253 = vand.u32 %v44, 4294901760
    %3254 = vmatmul.mubr.f32.gmra.mrb[0].mxu0 %v3253
    %v3255 = vpop.f32.mrb[0].mxu0
    %v3256 = vadd.f32 %v3024, %v3255
    %v3257 = vpop.f32.mrb[0].mxu0
    %3258 = vdwg.mxu0
    %3259 = vmatprep.subr.mxu0 0.0
    %v3260 = vand.u32 %v145, 4294901760
    %v3261 = vsub.f32 %v145, %v3260
    %3262 = vmatpush1.msra.mxu0 %v3261
    %3263 = vmatprep.subr.mxu0 0.0
    %v3264 = vand.u32 %v146, 4294901760
    %v3265 = vsub.f32 %v146, %v3264
    %3266 = vmatpush1.msra.mxu0 %v3265
    %3267 = vmatprep.subr.mxu0 0.0
    %v3268 = vand.u32 %v147, 4294901760
    %v3269 = vsub.f32 %v147, %v3268
    %3270 = vmatpush1.msra.mxu0 %v3269
    %3271 = vmatprep.subr.mxu0 0.0
    %v3272 = vand.u32 %v148, 4294901760
    %v3273 = vsub.f32 %v148, %v3272
    %3274 = vmatpush1.msra.mxu0 %v3273
    %3275 = vmatprep.subr.mxu0 0.0
    %v3276 = vand.u32 %v149, 4294901760
    %v3277 = vsub.f32 %v149, %v3276
    %3278 = vmatpush1.msra.mxu0 %v3277
    %3279 = vmatprep.subr.mxu0 0.0
    %v3280 = vand.u32 %v150, 4294901760
    %v3281 = vsub.f32 %v150, %v3280
    %3282 = vmatpush1.msra.mxu0 %v3281
    %3283 = vmatprep.subr.mxu0 0.0
    %v3284 = vand.u32 %v151, 4294901760
    %v3285 = vsub.f32 %v151, %v3284
    %3286 = vmatpush1.msra.mxu0 %v3285
    %3287 = vmatprep.subr.mxu0 0.0
    %v3288 = vand.u32 %v152, 4294901760
    %v3289 = vsub.f32 %v152, %v3288
    %3290 = vmatpush1.msra.mxu0 %v3289
    %3291 = vmatprep.subr.mxu0 0.0
    %v3292 = vand.u32 %v153, 4294901760
    %v3293 = vsub.f32 %v153, %v3292
    %3294 = vmatpush1.msra.mxu0 %v3293
    %3295 = vmatprep.subr.mxu0 0.0
    %v3296 = vand.u32 %v154, 4294901760
    %v3297 = vsub.f32 %v154, %v3296
    %3298 = vmatpush1.msra.mxu0 %v3297
    %3299 = vmatprep.subr.mxu0 0.0
    %v3300 = vand.u32 %v155, 4294901760
    %v3301 = vsub.f32 %v155, %v3300
    %3302 = vmatpush1.msra.mxu0 %v3301
    %3303 = vmatprep.subr.mxu0 0.0
    %v3304 = vand.u32 %v156, 4294901760
    %v3305 = vsub.f32 %v156, %v3304
    %3306 = vmatpush1.msra.mxu0 %v3305
    %3307 = vmatprep.subr.mxu0 0.0
    %v3308 = vand.u32 %v157, 4294901760
    %v3309 = vsub.f32 %v157, %v3308
    %3310 = vmatpush1.msra.mxu0 %v3309
    %3311 = vmatprep.subr.mxu0 0.0
    %v3312 = vand.u32 %v158, 4294901760
    %v3313 = vsub.f32 %v158, %v3312
    %3314 = vmatpush1.msra.mxu0 %v3313
    %3315 = vmatprep.subr.mxu0 0.0
    %v3316 = vand.u32 %v159, 4294901760
    %v3317 = vsub.f32 %v159, %v3316
    %3318 = vmatpush1.msra.mxu0 %v3317
    %3319 = vmatprep.subr.mxu0 0.0
    %v3320 = vand.u32 %v160, 4294901760
    %v3321 = vsub.f32 %v160, %v3320
    %3322 = vmatpush1.msra.mxu0 %v3321
    %3323 = vmatprep.subr.mxu0 0.0
    %v3324 = vand.u32 %v161, 4294901760
    %v3325 = vsub.f32 %v161, %v3324
    %3326 = vmatpush1.msra.mxu0 %v3325
    %3327 = vmatprep.subr.mxu0 0.0
    %v3328 = vand.u32 %v162, 4294901760
    %v3329 = vsub.f32 %v162, %v3328
    %3330 = vmatpush1.msra.mxu0 %v3329
    %3331 = vmatprep.subr.mxu0 0.0
    %v3332 = vand.u32 %v163, 4294901760
    %v3333 = vsub.f32 %v163, %v3332
    %3334 = vmatpush1.msra.mxu0 %v3333
    %3335 = vmatprep.subr.mxu0 0.0
    %v3336 = vand.u32 %v164, 4294901760
    %v3337 = vsub.f32 %v164, %v3336
    %3338 = vmatpush1.msra.mxu0 %v3337
    %3339 = vmatprep.subr.mxu0 0.0
    %v3340 = vand.u32 %v165, 4294901760
    %v3341 = vsub.f32 %v165, %v3340
    %3342 = vmatpush1.msra.mxu0 %v3341
    %3343 = vmatprep.subr.mxu0 0.0
    %v3344 = vand.u32 %v166, 4294901760
    %v3345 = vsub.f32 %v166, %v3344
    %3346 = vmatpush1.msra.mxu0 %v3345
    %3347 = vmatprep.subr.mxu0 0.0
    %v3348 = vand.u32 %v167, 4294901760
    %v3349 = vsub.f32 %v167, %v3348
    %3350 = vmatpush1.msra.mxu0 %v3349
    %3351 = vmatprep.subr.mxu0 0.0
    %v3352 = vand.u32 %v168, 4294901760
    %v3353 = vsub.f32 %v168, %v3352
    %3354 = vmatpush1.msra.mxu0 %v3353
    %3355 = vmatprep.subr.mxu0 0.0
    %v3356 = vand.u32 %v169, 4294901760
    %v3357 = vsub.f32 %v169, %v3356
    %3358 = vmatpush1.msra.mxu0 %v3357
    %3359 = vmatprep.subr.mxu0 0.0
    %v3360 = vand.u32 %v170, 4294901760
    %v3361 = vsub.f32 %v170, %v3360
    %3362 = vmatpush1.msra.mxu0 %v3361
    %3363 = vmatprep.subr.mxu0 0.0
    %v3364 = vand.u32 %v171, 4294901760
    %v3365 = vsub.f32 %v171, %v3364
    %3366 = vmatpush1.msra.mxu0 %v3365
    %3367 = vmatprep.subr.mxu0 0.0
    %v3368 = vand.u32 %v172, 4294901760
    %v3369 = vsub.f32 %v172, %v3368
    %3370 = vmatpush1.msra.mxu0 %v3369
    %3371 = vmatprep.subr.mxu0 0.0
    %v3372 = vand.u32 %v173, 4294901760
    %v3373 = vsub.f32 %v173, %v3372
    %3374 = vmatpush1.msra.mxu0 %v3373
    %3375 = vmatprep.subr.mxu0 0.0
    %v3376 = vand.u32 %v174, 4294901760
    %v3377 = vsub.f32 %v174, %v3376
    %3378 = vmatpush1.msra.mxu0 %v3377
    %3379 = vmatprep.subr.mxu0 0.0
    %v3380 = vand.u32 %v175, 4294901760
    %v3381 = vsub.f32 %v175, %v3380
    %3382 = vmatpush1.msra.mxu0 %v3381
    %3383 = vmatprep.subr.mxu0 0.0
    %v3384 = vand.u32 %v176, 4294901760
    %v3385 = vsub.f32 %v176, %v3384
    %3386 = vmatpush1.msra.mxu0 %v3385
    %v3387 = vand.u32 %v316, 4294901760
    %v3388 = vsub.f32 %v316, %v3387
    %3389 = vmatprep.mubr.f32.mxu0 %v3388
    %v3390 = vand.u32 %v44, 4294901760
    %v3391 = vsub.f32 %v44, %v3390
    %3392 = vmatmul.mubr.f32.gmra.mrb[0].mxu0 %v3391
    %v3393 = vpop.f32.mrb[0].mxu0
    %v3394 = vadd.f32 %v3256, %v3393
    %v3395 = vpop.f32.mrb[0].mxu0
    %3396 = vdwg.mxu0
    %3397 = vmatprep.subr.mxu0 0.0
    %v3398 = vand.u32 %v145, 4294901760
    %3399 = vmatpush1.msra.mxu0 %v3398
    %3400 = vmatprep.subr.mxu0 0.0
    %v3401 = vand.u32 %v146, 4294901760
    %3402 = vmatpush1.msra.mxu0 %v3401
    %3403 = vmatprep.subr.mxu0 0.0
    %v3404 = vand.u32 %v147, 4294901760
    %3405 = vmatpush1.msra.mxu0 %v3404
    %3406 = vmatprep.subr.mxu0 0.0
    %v3407 = vand.u32 %v148, 4294901760
    %3408 = vmatpush1.msra.mxu0 %v3407
    %3409 = vmatprep.subr.mxu0 0.0
    %v3410 = vand.u32 %v149, 4294901760
    %3411 = vmatpush1.msra.mxu0 %v3410
    %3412 = vmatprep.subr.mxu0 0.0
    %v3413 = vand.u32 %v150, 4294901760
    %3414 = vmatpush1.msra.mxu0 %v3413
    %3415 = vmatprep.subr.mxu0 0.0
    %v3416 = vand.u32 %v151, 4294901760
    %3417 = vmatpush1.msra.mxu0 %v3416
    %3418 = vmatprep.subr.mxu0 0.0
    %v3419 = vand.u32 %v152, 4294901760
    %3420 = vmatpush1.msra.mxu0 %v3419
    %3421 = vmatprep.subr.mxu0 0.0
    %v3422 = vand.u32 %v153, 4294901760
    %3423 = vmatpush1.msra.mxu0 %v3422
    %3424 = vmatprep.subr.mxu0 0.0
    %v3425 = vand.u32 %v154, 4294901760
    %3426 = vmatpush1.msra.mxu0 %v3425
    %3427 = vmatprep.subr.mxu0 0.0
    %v3428 = vand.u32 %v155, 4294901760
    %3429 = vmatpush1.msra.mxu0 %v3428
    %3430 = vmatprep.subr.mxu0 0.0
    %v3431 = vand.u32 %v156, 4294901760
    %3432 = vmatpush1.msra.mxu0 %v3431
    %3433 = vmatprep.subr.mxu0 0.0
    %v3434 = vand.u32 %v157, 4294901760
    %3435 = vmatpush1.msra.mxu0 %v3434
    %3436 = vmatprep.subr.mxu0 0.0
    %v3437 = vand.u32 %v158, 4294901760
    %3438 = vmatpush1.msra.mxu0 %v3437
    %3439 = vmatprep.subr.mxu0 0.0
    %v3440 = vand.u32 %v159, 4294901760
    %3441 = vmatpush1.msra.mxu0 %v3440
    %3442 = vmatprep.subr.mxu0 0.0
    %v3443 = vand.u32 %v160, 4294901760
    %3444 = vmatpush1.msra.mxu0 %v3443
    %3445 = vmatprep.subr.mxu0 0.0
    %v3446 = vand.u32 %v161, 4294901760
    %3447 = vmatpush1.msra.mxu0 %v3446
    %3448 = vmatprep.subr.mxu0 0.0
    %v3449 = vand.u32 %v162, 4294901760
    %3450 = vmatpush1.msra.mxu0 %v3449
    %3451 = vmatprep.subr.mxu0 0.0
    %v3452 = vand.u32 %v163, 4294901760
    %3453 = vmatpush1.msra.mxu0 %v3452
    %3454 = vmatprep.subr.mxu0 0.0
    %v3455 = vand.u32 %v164, 4294901760
    %3456 = vmatpush1.msra.mxu0 %v3455
    %3457 = vmatprep.subr.mxu0 0.0
    %v3458 = vand.u32 %v165, 4294901760
    %3459 = vmatpush1.msra.mxu0 %v3458
    %3460 = vmatprep.subr.mxu0 0.0
    %v3461 = vand.u32 %v166, 4294901760
    %3462 = vmatpush1.msra.mxu0 %v3461
    %3463 = vmatprep.subr.mxu0 0.0
    %v3464 = vand.u32 %v167, 4294901760
    %3465 = vmatpush1.msra.mxu0 %v3464
    %3466 = vmatprep.subr.mxu0 0.0
    %v3467 = vand.u32 %v168, 4294901760
    %3468 = vmatpush1.msra.mxu0 %v3467
    %3469 = vmatprep.subr.mxu0 0.0
    %v3470 = vand.u32 %v169, 4294901760
    %3471 = vmatpush1.msra.mxu0 %v3470
    %3472 = vmatprep.subr.mxu0 0.0
    %v3473 = vand.u32 %v170, 4294901760
    %3474 = vmatpush1.msra.mxu0 %v3473
    %3475 = vmatprep.subr.mxu0 0.0
    %v3476 = vand.u32 %v171, 4294901760
    %3477 = vmatpush1.msra.mxu0 %v3476
    %3478 = vmatprep.subr.mxu0 0.0
    %v3479 = vand.u32 %v172, 4294901760
    %3480 = vmatpush1.msra.mxu0 %v3479
    %3481 = vmatprep.subr.mxu0 0.0
    %v3482 = vand.u32 %v173, 4294901760
    %3483 = vmatpush1.msra.mxu0 %v3482
    %3484 = vmatprep.subr.mxu0 0.0
    %v3485 = vand.u32 %v174, 4294901760
    %3486 = vmatpush1.msra.mxu0 %v3485
    %3487 = vmatprep.subr.mxu0 0.0
    %v3488 = vand.u32 %v175, 4294901760
    %3489 = vmatpush1.msra.mxu0 %v3488
    %3490 = vmatprep.subr.mxu0 0.0
    %v3491 = vand.u32 %v176, 4294901760
    %3492 = vmatpush1.msra.mxu0 %v3491
    %v3493 = vand.u32 %v316, 4294901760
    %v3494 = vsub.f32 %v316, %v3493
    %v3495 = vand.u32 %v3494, 4294901760
    %3496 = vmatprep.mubr.f32.mxu0 %v3495
    %v3497 = vand.u32 %v44, 4294901760
    %v3498 = vsub.f32 %v44, %v3497
    %v3499 = vand.u32 %v3498, 4294901760
    %3500 = vmatmul.mubr.f32.gmra.mrb[0].mxu0 %v3499
    %v3501 = vpop.f32.mrb[0].mxu0
    %v3502 = vadd.f32 %v3394, %v3501
    %v3503 = vpop.f32.mrb[0].mxu0
    %3504 = vdwg.mxu0
    %3505 = vmatprep.subr.mxu0 0.0
    %v3506 = vand.u32 %v145, 4294901760
    %v3507 = vsub.f32 %v145, %v3506
    %v3508 = vand.u32 %v3507, 4294901760
    %3509 = vmatpush1.msra.mxu0 %v3508
    %3510 = vmatprep.subr.mxu0 0.0
    %v3511 = vand.u32 %v146, 4294901760
    %v3512 = vsub.f32 %v146, %v3511
    %v3513 = vand.u32 %v3512, 4294901760
    %3514 = vmatpush1.msra.mxu0 %v3513
    %3515 = vmatprep.subr.mxu0 0.0
    %v3516 = vand.u32 %v147, 4294901760
    %v3517 = vsub.f32 %v147, %v3516
    %v3518 = vand.u32 %v3517, 4294901760
    %3519 = vmatpush1.msra.mxu0 %v3518
    %3520 = vmatprep.subr.mxu0 0.0
    %v3521 = vand.u32 %v148, 4294901760
    %v3522 = vsub.f32 %v148, %v3521
    %v3523 = vand.u32 %v3522, 4294901760
    %3524 = vmatpush1.msra.mxu0 %v3523
    %3525 = vmatprep.subr.mxu0 0.0
    %v3526 = vand.u32 %v149, 4294901760
    %v3527 = vsub.f32 %v149, %v3526
    %v3528 = vand.u32 %v3527, 4294901760
    %3529 = vmatpush1.msra.mxu0 %v3528
    %3530 = vmatprep.subr.mxu0 0.0
    %v3531 = vand.u32 %v150, 4294901760
    %v3532 = vsub.f32 %v150, %v3531
    %v3533 = vand.u32 %v3532, 4294901760
    %3534 = vmatpush1.msra.mxu0 %v3533
    %3535 = vmatprep.subr.mxu0 0.0
    %v3536 = vand.u32 %v151, 4294901760
    %v3537 = vsub.f32 %v151, %v3536
    %v3538 = vand.u32 %v3537, 4294901760
    %3539 = vmatpush1.msra.mxu0 %v3538
    %3540 = vmatprep.subr.mxu0 0.0
    %v3541 = vand.u32 %v152, 4294901760
    %v3542 = vsub.f32 %v152, %v3541
    %v3543 = vand.u32 %v3542, 4294901760
    %3544 = vmatpush1.msra.mxu0 %v3543
    %3545 = vmatprep.subr.mxu0 0.0
    %v3546 = vand.u32 %v153, 4294901760
    %v3547 = vsub.f32 %v153, %v3546
    %v3548 = vand.u32 %v3547, 4294901760
    %3549 = vmatpush1.msra.mxu0 %v3548
    %3550 = vmatprep.subr.mxu0 0.0
    %v3551 = vand.u32 %v154, 4294901760
    %v3552 = vsub.f32 %v154, %v3551
    %v3553 = vand.u32 %v3552, 4294901760
    %3554 = vmatpush1.msra.mxu0 %v3553
    %3555 = vmatprep.subr.mxu0 0.0
    %v3556 = vand.u32 %v155, 4294901760
    %v3557 = vsub.f32 %v155, %v3556
    %v3558 = vand.u32 %v3557, 4294901760
    %3559 = vmatpush1.msra.mxu0 %v3558
    %3560 = vmatprep.subr.mxu0 0.0
    %v3561 = vand.u32 %v156, 4294901760
    %v3562 = vsub.f32 %v156, %v3561
    %v3563 = vand.u32 %v3562, 4294901760
    %3564 = vmatpush1.msra.mxu0 %v3563
    %3565 = vmatprep.subr.mxu0 0.0
    %v3566 = vand.u32 %v157, 4294901760
    %v3567 = vsub.f32 %v157, %v3566
    %v3568 = vand.u32 %v3567, 4294901760
    %3569 = vmatpush1.msra.mxu0 %v3568
    %3570 = vmatprep.subr.mxu0 0.0
    %v3571 = vand.u32 %v158, 4294901760
    %v3572 = vsub.f32 %v158, %v3571
    %v3573 = vand.u32 %v3572, 4294901760
    %3574 = vmatpush1.msra.mxu0 %v3573
    %3575 = vmatprep.subr.mxu0 0.0
    %v3576 = vand.u32 %v159, 4294901760
    %v3577 = vsub.f32 %v159, %v3576
    %v3578 = vand.u32 %v3577, 4294901760
    %3579 = vmatpush1.msra.mxu0 %v3578
    %3580 = vmatprep.subr.mxu0 0.0
    %v3581 = vand.u32 %v160, 4294901760
    %v3582 = vsub.f32 %v160, %v3581
    %v3583 = vand.u32 %v3582, 4294901760
    %3584 = vmatpush1.msra.mxu0 %v3583
    %3585 = vmatprep.subr.mxu0 0.0
    %v3586 = vand.u32 %v161, 4294901760
    %v3587 = vsub.f32 %v161, %v3586
    %v3588 = vand.u32 %v3587, 4294901760
    %3589 = vmatpush1.msra.mxu0 %v3588
    %3590 = vmatprep.subr.mxu0 0.0
    %v3591 = vand.u32 %v162, 4294901760
    %v3592 = vsub.f32 %v162, %v3591
    %v3593 = vand.u32 %v3592, 4294901760
    %3594 = vmatpush1.msra.mxu0 %v3593
    %3595 = vmatprep.subr.mxu0 0.0
    %v3596 = vand.u32 %v163, 4294901760
    %v3597 = vsub.f32 %v163, %v3596
    %v3598 = vand.u32 %v3597, 4294901760
    %3599 = vmatpush1.msra.mxu0 %v3598
    %3600 = vmatprep.subr.mxu0 0.0
    %v3601 = vand.u32 %v164, 4294901760
    %v3602 = vsub.f32 %v164, %v3601
    %v3603 = vand.u32 %v3602, 4294901760
    %3604 = vmatpush1.msra.mxu0 %v3603
    %3605 = vmatprep.subr.mxu0 0.0
    %v3606 = vand.u32 %v165, 4294901760
    %v3607 = vsub.f32 %v165, %v3606
    %v3608 = vand.u32 %v3607, 4294901760
    %3609 = vmatpush1.msra.mxu0 %v3608
    %3610 = vmatprep.subr.mxu0 0.0
    %v3611 = vand.u32 %v166, 4294901760
    %v3612 = vsub.f32 %v166, %v3611
    %v3613 = vand.u32 %v3612, 4294901760
    %3614 = vmatpush1.msra.mxu0 %v3613
    %3615 = vmatprep.subr.mxu0 0.0
    %v3616 = vand.u32 %v167, 4294901760
    %v3617 = vsub.f32 %v167, %v3616
    %v3618 = vand.u32 %v3617, 4294901760
    %3619 = vmatpush1.msra.mxu0 %v3618
    %3620 = vmatprep.subr.mxu0 0.0
    %v3621 = vand.u32 %v168, 4294901760
    %v3622 = vsub.f32 %v168, %v3621
    %v3623 = vand.u32 %v3622, 4294901760
    %3624 = vmatpush1.msra.mxu0 %v3623
    %3625 = vmatprep.subr.mxu0 0.0
    %v3626 = vand.u32 %v169, 4294901760
    %v3627 = vsub.f32 %v169, %v3626
    %v3628 = vand.u32 %v3627, 4294901760
    %3629 = vmatpush1.msra.mxu0 %v3628
    %3630 = vmatprep.subr.mxu0 0.0
    %v3631 = vand.u32 %v170, 4294901760
    %v3632 = vsub.f32 %v170, %v3631
    %v3633 = vand.u32 %v3632, 4294901760
    %3634 = vmatpush1.msra.mxu0 %v3633
    %3635 = vmatprep.subr.mxu0 0.0
    %v3636 = vand.u32 %v171, 4294901760
    %v3637 = vsub.f32 %v171, %v3636
    %v3638 = vand.u32 %v3637, 4294901760
    %3639 = vmatpush1.msra.mxu0 %v3638
    %3640 = vmatprep.subr.mxu0 0.0
    %v3641 = vand.u32 %v172, 4294901760
    %v3642 = vsub.f32 %v172, %v3641
    %v3643 = vand.u32 %v3642, 4294901760
    %3644 = vmatpush1.msra.mxu0 %v3643
    %3645 = vmatprep.subr.mxu0 0.0
    %v3646 = vand.u32 %v173, 4294901760
    %v3647 = vsub.f32 %v173, %v3646
    %v3648 = vand.u32 %v3647, 4294901760
    %3649 = vmatpush1.msra.mxu0 %v3648
    %3650 = vmatprep.subr.mxu0 0.0
    %v3651 = vand.u32 %v174, 4294901760
    %v3652 = vsub.f32 %v174, %v3651
    %v3653 = vand.u32 %v3652, 4294901760
    %3654 = vmatpush1.msra.mxu0 %v3653
    %3655 = vmatprep.subr.mxu0 0.0
    %v3656 = vand.u32 %v175, 4294901760
    %v3657 = vsub.f32 %v175, %v3656
    %v3658 = vand.u32 %v3657, 4294901760
    %3659 = vmatpush1.msra.mxu0 %v3658
    %3660 = vmatprep.subr.mxu0 0.0
    %v3661 = vand.u32 %v176, 4294901760
    %v3662 = vsub.f32 %v176, %v3661
    %v3663 = vand.u32 %v3662, 4294901760
    %3664 = vmatpush1.msra.mxu0 %v3663
    %v3665 = vand.u32 %v316, 4294901760
    %3666 = vmatprep.mubr.f32.mxu0 %v3665
    %v3667 = vand.u32 %v44, 4294901760
    %3668 = vmatmul.mubr.f32.gmra.mrb[0].mxu0 %v3667
    %v3669 = vpop.f32.mrb[0].mxu0
    %v3670 = vadd.f32 %v3502, %v3669
    %v3671 = vpop.f32.mrb[0].mxu0
    %3672 = vdwg.mxu0
    %3673 = vmatprep.subr.mxu0 0.0
    %v3674 = vand.u32 %v145, 4294901760
    %3675 = vmatpush1.msra.mxu0 %v3674
    %3676 = vmatprep.subr.mxu0 0.0
    %v3677 = vand.u32 %v146, 4294901760
    %3678 = vmatpush1.msra.mxu0 %v3677
    %3679 = vmatprep.subr.mxu0 0.0
    %v3680 = vand.u32 %v147, 4294901760
    %3681 = vmatpush1.msra.mxu0 %v3680
    %3682 = vmatprep.subr.mxu0 0.0
    %v3683 = vand.u32 %v148, 4294901760
    %3684 = vmatpush1.msra.mxu0 %v3683
    %3685 = vmatprep.subr.mxu0 0.0
    %v3686 = vand.u32 %v149, 4294901760
    %3687 = vmatpush1.msra.mxu0 %v3686
    %3688 = vmatprep.subr.mxu0 0.0
    %v3689 = vand.u32 %v150, 4294901760
    %3690 = vmatpush1.msra.mxu0 %v3689
    %3691 = vmatprep.subr.mxu0 0.0
    %v3692 = vand.u32 %v151, 4294901760
    %3693 = vmatpush1.msra.mxu0 %v3692
    %3694 = vmatprep.subr.mxu0 0.0
    %v3695 = vand.u32 %v152, 4294901760
    %3696 = vmatpush1.msra.mxu0 %v3695
    %3697 = vmatprep.subr.mxu0 0.0
    %v3698 = vand.u32 %v153, 4294901760
    %3699 = vmatpush1.msra.mxu0 %v3698
    %3700 = vmatprep.subr.mxu0 0.0
    %v3701 = vand.u32 %v154, 4294901760
    %3702 = vmatpush1.msra.mxu0 %v3701
    %3703 = vmatprep.subr.mxu0 0.0
    %v3704 = vand.u32 %v155, 4294901760
    %3705 = vmatpush1.msra.mxu0 %v3704
    %3706 = vmatprep.subr.mxu0 0.0
    %v3707 = vand.u32 %v156, 4294901760
    %3708 = vmatpush1.msra.mxu0 %v3707
    %3709 = vmatprep.subr.mxu0 0.0
    %v3710 = vand.u32 %v157, 4294901760
    %3711 = vmatpush1.msra.mxu0 %v3710
    %3712 = vmatprep.subr.mxu0 0.0
    %v3713 = vand.u32 %v158, 4294901760
    %3714 = vmatpush1.msra.mxu0 %v3713
    %3715 = vmatprep.subr.mxu0 0.0
    %v3716 = vand.u32 %v159, 4294901760
    %3717 = vmatpush1.msra.mxu0 %v3716
    %3718 = vmatprep.subr.mxu0 0.0
    %v3719 = vand.u32 %v160, 4294901760
    %3720 = vmatpush1.msra.mxu0 %v3719
    %3721 = vmatprep.subr.mxu0 0.0
    %v3722 = vand.u32 %v161, 4294901760
    %3723 = vmatpush1.msra.mxu0 %v3722
    %3724 = vmatprep.subr.mxu0 0.0
    %v3725 = vand.u32 %v162, 4294901760
    %3726 = vmatpush1.msra.mxu0 %v3725
    %3727 = vmatprep.subr.mxu0 0.0
    %v3728 = vand.u32 %v163, 4294901760
    %3729 = vmatpush1.msra.mxu0 %v3728
    %3730 = vmatprep.subr.mxu0 0.0
    %v3731 = vand.u32 %v164, 4294901760
    %3732 = vmatpush1.msra.mxu0 %v3731
    %3733 = vmatprep.subr.mxu0 0.0
    %v3734 = vand.u32 %v165, 4294901760
    %3735 = vmatpush1.msra.mxu0 %v3734
    %3736 = vmatprep.subr.mxu0 0.0
    %v3737 = vand.u32 %v166, 4294901760
    %3738 = vmatpush1.msra.mxu0 %v3737
    %3739 = vmatprep.subr.mxu0 0.0
    %v3740 = vand.u32 %v167, 4294901760
    %3741 = vmatpush1.msra.mxu0 %v3740
    %3742 = vmatprep.subr.mxu0 0.0
    %v3743 = vand.u32 %v168, 4294901760
    %3744 = vmatpush1.msra.mxu0 %v3743
    %3745 = vmatprep.subr.mxu0 0.0
    %v3746 = vand.u32 %v169, 4294901760
    %3747 = vmatpush1.msra.mxu0 %v3746
    %3748 = vmatprep.subr.mxu0 0.0
    %v3749 = vand.u32 %v170, 4294901760
    %3750 = vmatpush1.msra.mxu0 %v3749
    %3751 = vmatprep.subr.mxu0 0.0
    %v3752 = vand.u32 %v171, 4294901760
    %3753 = vmatpush1.msra.mxu0 %v3752
    %3754 = vmatprep.subr.mxu0 0.0
    %v3755 = vand.u32 %v172, 4294901760
    %3756 = vmatpush1.msra.mxu0 %v3755
    %3757 = vmatprep.subr.mxu0 0.0
    %v3758 = vand.u32 %v173, 4294901760
    %3759 = vmatpush1.msra.mxu0 %v3758
    %3760 = vmatprep.subr.mxu0 0.0
    %v3761 = vand.u32 %v174, 4294901760
    %3762 = vmatpush1.msra.mxu0 %v3761
    %3763 = vmatprep.subr.mxu0 0.0
    %v3764 = vand.u32 %v175, 4294901760
    %3765 = vmatpush1.msra.mxu0 %v3764
    %3766 = vmatprep.subr.mxu0 0.0
    %v3767 = vand.u32 %v176, 4294901760
    %3768 = vmatpush1.msra.mxu0 %v3767
    %v3769 = vand.u32 %v316, 4294901760
    %3770 = vmatprep.mubr.f32.mxu0 %v3769
    %v3771 = vand.u32 %v44, 4294901760
    %3772 = vmatmul.mubr.f32.gmra.mrb[0].mxu0 %v3771
    %v3773 = vpop.f32.mrb[0].mxu0
    %v3774 = vadd.f32 %v3670, %v3773
    %v3775 = vpop.f32.mrb[0].mxu0
    %3776 = vdwg.mxu0
    %3777 = vmatprep.subr.mxu0 0.0
    %v3778 = vand.u32 %v177, 4294901760
    %3779 = vmatpush1.msra.mxu0 %v3778
    %3780 = vmatprep.subr.mxu0 0.0
    %v3781 = vand.u32 %v178, 4294901760
    %3782 = vmatpush1.msra.mxu0 %v3781
    %3783 = vmatprep.subr.mxu0 0.0
    %v3784 = vand.u32 %v179, 4294901760
    %3785 = vmatpush1.msra.mxu0 %v3784
    %3786 = vmatprep.subr.mxu0 0.0
    %v3787 = vand.u32 %v180, 4294901760
    %3788 = vmatpush1.msra.mxu0 %v3787
    %3789 = vmatprep.subr.mxu0 0.0
    %v3790 = vand.u32 %v181, 4294901760
    %3791 = vmatpush1.msra.mxu0 %v3790
    %3792 = vmatprep.subr.mxu0 0.0
    %v3793 = vand.u32 %v182, 4294901760
    %3794 = vmatpush1.msra.mxu0 %v3793
    %3795 = vmatprep.subr.mxu0 0.0
    %v3796 = vand.u32 %v183, 4294901760
    %3797 = vmatpush1.msra.mxu0 %v3796
    %3798 = vmatprep.subr.mxu0 0.0
    %v3799 = vand.u32 %v184, 4294901760
    %3800 = vmatpush1.msra.mxu0 %v3799
    %3801 = vmatprep.subr.mxu0 0.0
    %v3802 = vand.u32 %v185, 4294901760
    %3803 = vmatpush1.msra.mxu0 %v3802
    %3804 = vmatprep.subr.mxu0 0.0
    %v3805 = vand.u32 %v186, 4294901760
    %3806 = vmatpush1.msra.mxu0 %v3805
    %3807 = vmatprep.subr.mxu0 0.0
    %v3808 = vand.u32 %v187, 4294901760
    %3809 = vmatpush1.msra.mxu0 %v3808
    %3810 = vmatprep.subr.mxu0 0.0
    %v3811 = vand.u32 %v188, 4294901760
    %3812 = vmatpush1.msra.mxu0 %v3811
    %3813 = vmatprep.subr.mxu0 0.0
    %v3814 = vand.u32 %v189, 4294901760
    %3815 = vmatpush1.msra.mxu0 %v3814
    %3816 = vmatprep.subr.mxu0 0.0
    %v3817 = vand.u32 %v190, 4294901760
    %3818 = vmatpush1.msra.mxu0 %v3817
    %3819 = vmatprep.subr.mxu0 0.0
    %v3820 = vand.u32 %v191, 4294901760
    %3821 = vmatpush1.msra.mxu0 %v3820
    %3822 = vmatprep.subr.mxu0 0.0
    %v3823 = vand.u32 %v192, 4294901760
    %3824 = vmatpush1.msra.mxu0 %v3823
    %3825 = vmatprep.subr.mxu0 0.0
    %v3826 = vand.u32 %v193, 4294901760
    %3827 = vmatpush1.msra.mxu0 %v3826
    %3828 = vmatprep.subr.mxu0 0.0
    %v3829 = vand.u32 %v194, 4294901760
    %3830 = vmatpush1.msra.mxu0 %v3829
    %3831 = vmatprep.subr.mxu0 0.0
    %v3832 = vand.u32 %v195, 4294901760
    %3833 = vmatpush1.msra.mxu0 %v3832
    %3834 = vmatprep.subr.mxu0 0.0
    %v3835 = vand.u32 %v196, 4294901760
    %3836 = vmatpush1.msra.mxu0 %v3835
    %3837 = vmatprep.subr.mxu0 0.0
    %v3838 = vand.u32 %v197, 4294901760
    %3839 = vmatpush1.msra.mxu0 %v3838
    %3840 = vmatprep.subr.mxu0 0.0
    %v3841 = vand.u32 %v198, 4294901760
    %3842 = vmatpush1.msra.mxu0 %v3841
    %3843 = vmatprep.subr.mxu0 0.0
    %v3844 = vand.u32 %v199, 4294901760
    %3845 = vmatpush1.msra.mxu0 %v3844
    %3846 = vmatprep.subr.mxu0 0.0
    %v3847 = vand.u32 %v200, 4294901760
    %3848 = vmatpush1.msra.mxu0 %v3847
    %3849 = vmatprep.subr.mxu0 0.0
    %v3850 = vand.u32 %v201, 4294901760
    %3851 = vmatpush1.msra.mxu0 %v3850
    %3852 = vmatprep.subr.mxu0 0.0
    %v3853 = vand.u32 %v202, 4294901760
    %3854 = vmatpush1.msra.mxu0 %v3853
    %3855 = vmatprep.subr.mxu0 0.0
    %v3856 = vand.u32 %v203, 4294901760
    %3857 = vmatpush1.msra.mxu0 %v3856
    %3858 = vmatprep.subr.mxu0 0.0
    %v3859 = vand.u32 %v204, 4294901760
    %3860 = vmatpush1.msra.mxu0 %v3859
    %3861 = vmatprep.subr.mxu0 0.0
    %v3862 = vand.u32 %v205, 4294901760
    %3863 = vmatpush1.msra.mxu0 %v3862
    %3864 = vmatprep.subr.mxu0 0.0
    %v3865 = vand.u32 %v206, 4294901760
    %3866 = vmatpush1.msra.mxu0 %v3865
    %3867 = vmatprep.subr.mxu0 0.0
    %v3868 = vand.u32 %v207, 4294901760
    %3869 = vmatpush1.msra.mxu0 %v3868
    %3870 = vmatprep.subr.mxu0 0.0
    %v3871 = vand.u32 %v208, 4294901760
    %3872 = vmatpush1.msra.mxu0 %v3871
    %v3873 = vand.u32 %v317, 4294901760
    %v3874 = vsub.f32 %v317, %v3873
    %v3875 = vand.u32 %v3874, 4294901760
    %v3876 = vsub.f32 %v3874, %v3875
    %v3877 = vand.u32 %v3876, 4294901760
    %3878 = vmatprep.mubr.f32.mxu0 %v3877
    %v3879 = vand.u32 %v45, 4294901760
    %v3880 = vsub.f32 %v45, %v3879
    %v3881 = vand.u32 %v3880, 4294901760
    %v3882 = vsub.f32 %v3880, %v3881
    %v3883 = vand.u32 %v3882, 4294901760
    %3884 = vmatmul.mubr.f32.gmra.mrb[0].mxu0 %v3883
    %v3885 = vpop.f32.mrb[0].mxu0
    %v3886 = vadd.f32 %v3774, %v3885
    %v3887 = vpop.f32.mrb[0].mxu0
    %3888 = vdwg.mxu0
    %3889 = vmatprep.subr.mxu0 0.0
    %v3890 = vand.u32 %v177, 4294901760
    %v3891 = vsub.f32 %v177, %v3890
    %v3892 = vand.u32 %v3891, 4294901760
    %v3893 = vsub.f32 %v3891, %v3892
    %v3894 = vand.u32 %v3893, 4294901760
    %3895 = vmatpush1.msra.mxu0 %v3894
    %3896 = vmatprep.subr.mxu0 0.0
    %v3897 = vand.u32 %v178, 4294901760
    %v3898 = vsub.f32 %v178, %v3897
    %v3899 = vand.u32 %v3898, 4294901760
    %v3900 = vsub.f32 %v3898, %v3899
    %v3901 = vand.u32 %v3900, 4294901760
    %3902 = vmatpush1.msra.mxu0 %v3901
    %3903 = vmatprep.subr.mxu0 0.0
    %v3904 = vand.u32 %v179, 4294901760
    %v3905 = vsub.f32 %v179, %v3904
    %v3906 = vand.u32 %v3905, 4294901760
    %v3907 = vsub.f32 %v3905, %v3906
    %v3908 = vand.u32 %v3907, 4294901760
    %3909 = vmatpush1.msra.mxu0 %v3908
    %3910 = vmatprep.subr.mxu0 0.0
    %v3911 = vand.u32 %v180, 4294901760
    %v3912 = vsub.f32 %v180, %v3911
    %v3913 = vand.u32 %v3912, 4294901760
    %v3914 = vsub.f32 %v3912, %v3913
    %v3915 = vand.u32 %v3914, 4294901760
    %3916 = vmatpush1.msra.mxu0 %v3915
    %3917 = vmatprep.subr.mxu0 0.0
    %v3918 = vand.u32 %v181, 4294901760
    %v3919 = vsub.f32 %v181, %v3918
    %v3920 = vand.u32 %v3919, 4294901760
    %v3921 = vsub.f32 %v3919, %v3920
    %v3922 = vand.u32 %v3921, 4294901760
    %3923 = vmatpush1.msra.mxu0 %v3922
    %3924 = vmatprep.subr.mxu0 0.0
    %v3925 = vand.u32 %v182, 4294901760
    %v3926 = vsub.f32 %v182, %v3925
    %v3927 = vand.u32 %v3926, 4294901760
    %v3928 = vsub.f32 %v3926, %v3927
    %v3929 = vand.u32 %v3928, 4294901760
    %3930 = vmatpush1.msra.mxu0 %v3929
    %3931 = vmatprep.subr.mxu0 0.0
    %v3932 = vand.u32 %v183, 4294901760
    %v3933 = vsub.f32 %v183, %v3932
    %v3934 = vand.u32 %v3933, 4294901760
    %v3935 = vsub.f32 %v3933, %v3934
    %v3936 = vand.u32 %v3935, 4294901760
    %3937 = vmatpush1.msra.mxu0 %v3936
    %3938 = vmatprep.subr.mxu0 0.0
    %v3939 = vand.u32 %v184, 4294901760
    %v3940 = vsub.f32 %v184, %v3939
    %v3941 = vand.u32 %v3940, 4294901760
    %v3942 = vsub.f32 %v3940, %v3941
    %v3943 = vand.u32 %v3942, 4294901760
    %3944 = vmatpush1.msra.mxu0 %v3943
    %3945 = vmatprep.subr.mxu0 0.0
    %v3946 = vand.u32 %v185, 4294901760
    %v3947 = vsub.f32 %v185, %v3946
    %v3948 = vand.u32 %v3947, 4294901760
    %v3949 = vsub.f32 %v3947, %v3948
    %v3950 = vand.u32 %v3949, 4294901760
    %3951 = vmatpush1.msra.mxu0 %v3950
    %3952 = vmatprep.subr.mxu0 0.0
    %v3953 = vand.u32 %v186, 4294901760
    %v3954 = vsub.f32 %v186, %v3953
    %v3955 = vand.u32 %v3954, 4294901760
    %v3956 = vsub.f32 %v3954, %v3955
    %v3957 = vand.u32 %v3956, 4294901760
    %3958 = vmatpush1.msra.mxu0 %v3957
    %3959 = vmatprep.subr.mxu0 0.0
    %v3960 = vand.u32 %v187, 4294901760
    %v3961 = vsub.f32 %v187, %v3960
    %v3962 = vand.u32 %v3961, 4294901760
    %v3963 = vsub.f32 %v3961, %v3962
    %v3964 = vand.u32 %v3963, 4294901760
    %3965 = vmatpush1.msra.mxu0 %v3964
    %3966 = vmatprep.subr.mxu0 0.0
    %v3967 = vand.u32 %v188, 4294901760
    %v3968 = vsub.f32 %v188, %v3967
    %v3969 = vand.u32 %v3968, 4294901760
    %v3970 = vsub.f32 %v3968, %v3969
    %v3971 = vand.u32 %v3970, 4294901760
    %3972 = vmatpush1.msra.mxu0 %v3971
    %3973 = vmatprep.subr.mxu0 0.0
    %v3974 = vand.u32 %v189, 4294901760
    %v3975 = vsub.f32 %v189, %v3974
    %v3976 = vand.u32 %v3975, 4294901760
    %v3977 = vsub.f32 %v3975, %v3976
    %v3978 = vand.u32 %v3977, 4294901760
    %3979 = vmatpush1.msra.mxu0 %v3978
    %3980 = vmatprep.subr.mxu0 0.0
    %v3981 = vand.u32 %v190, 4294901760
    %v3982 = vsub.f32 %v190, %v3981
    %v3983 = vand.u32 %v3982, 4294901760
    %v3984 = vsub.f32 %v3982, %v3983
    %v3985 = vand.u32 %v3984, 4294901760
    %3986 = vmatpush1.msra.mxu0 %v3985
    %3987 = vmatprep.subr.mxu0 0.0
    %v3988 = vand.u32 %v191, 4294901760
    %v3989 = vsub.f32 %v191, %v3988
    %v3990 = vand.u32 %v3989, 4294901760
    %v3991 = vsub.f32 %v3989, %v3990
    %v3992 = vand.u32 %v3991, 4294901760
    %3993 = vmatpush1.msra.mxu0 %v3992
    %3994 = vmatprep.subr.mxu0 0.0
    %v3995 = vand.u32 %v192, 4294901760
    %v3996 = vsub.f32 %v192, %v3995
    %v3997 = vand.u32 %v3996, 4294901760
    %v3998 = vsub.f32 %v3996, %v3997
    %v3999 = vand.u32 %v3998, 4294901760
    %4000 = vmatpush1.msra.mxu0 %v3999
    %4001 = vmatprep.subr.mxu0 0.0
    %v4002 = vand.u32 %v193, 4294901760
    %v4003 = vsub.f32 %v193, %v4002
    %v4004 = vand.u32 %v4003, 4294901760
    %v4005 = vsub.f32 %v4003, %v4004
    %v4006 = vand.u32 %v4005, 4294901760
    %4007 = vmatpush1.msra.mxu0 %v4006
    %4008 = vmatprep.subr.mxu0 0.0
    %v4009 = vand.u32 %v194, 4294901760
    %v4010 = vsub.f32 %v194, %v4009
    %v4011 = vand.u32 %v4010, 4294901760
    %v4012 = vsub.f32 %v4010, %v4011
    %v4013 = vand.u32 %v4012, 4294901760
    %4014 = vmatpush1.msra.mxu0 %v4013
    %4015 = vmatprep.subr.mxu0 0.0
    %v4016 = vand.u32 %v195, 4294901760
    %v4017 = vsub.f32 %v195, %v4016
    %v4018 = vand.u32 %v4017, 4294901760
    %v4019 = vsub.f32 %v4017, %v4018
    %v4020 = vand.u32 %v4019, 4294901760
    %4021 = vmatpush1.msra.mxu0 %v4020
    %4022 = vmatprep.subr.mxu0 0.0
    %v4023 = vand.u32 %v196, 4294901760
    %v4024 = vsub.f32 %v196, %v4023
    %v4025 = vand.u32 %v4024, 4294901760
    %v4026 = vsub.f32 %v4024, %v4025
    %v4027 = vand.u32 %v4026, 4294901760
    %4028 = vmatpush1.msra.mxu0 %v4027
    %4029 = vmatprep.subr.mxu0 0.0
    %v4030 = vand.u32 %v197, 4294901760
    %v4031 = vsub.f32 %v197, %v4030
    %v4032 = vand.u32 %v4031, 4294901760
    %v4033 = vsub.f32 %v4031, %v4032
    %v4034 = vand.u32 %v4033, 4294901760
    %4035 = vmatpush1.msra.mxu0 %v4034
    %4036 = vmatprep.subr.mxu0 0.0
    %v4037 = vand.u32 %v198, 4294901760
    %v4038 = vsub.f32 %v198, %v4037
    %v4039 = vand.u32 %v4038, 4294901760
    %v4040 = vsub.f32 %v4038, %v4039
    %v4041 = vand.u32 %v4040, 4294901760
    %4042 = vmatpush1.msra.mxu0 %v4041
    %4043 = vmatprep.subr.mxu0 0.0
    %v4044 = vand.u32 %v199, 4294901760
    %v4045 = vsub.f32 %v199, %v4044
    %v4046 = vand.u32 %v4045, 4294901760
    %v4047 = vsub.f32 %v4045, %v4046
    %v4048 = vand.u32 %v4047, 4294901760
    %4049 = vmatpush1.msra.mxu0 %v4048
    %4050 = vmatprep.subr.mxu0 0.0
    %v4051 = vand.u32 %v200, 4294901760
    %v4052 = vsub.f32 %v200, %v4051
    %v4053 = vand.u32 %v4052, 4294901760
    %v4054 = vsub.f32 %v4052, %v4053
    %v4055 = vand.u32 %v4054, 4294901760
    %4056 = vmatpush1.msra.mxu0 %v4055
    %4057 = vmatprep.subr.mxu0 0.0
    %v4058 = vand.u32 %v201, 4294901760
    %v4059 = vsub.f32 %v201, %v4058
    %v4060 = vand.u32 %v4059, 4294901760
    %v4061 = vsub.f32 %v4059, %v4060
    %v4062 = vand.u32 %v4061, 4294901760
    %4063 = vmatpush1.msra.mxu0 %v4062
    %4064 = vmatprep.subr.mxu0 0.0
    %v4065 = vand.u32 %v202, 4294901760
    %v4066 = vsub.f32 %v202, %v4065
    %v4067 = vand.u32 %v4066, 4294901760
    %v4068 = vsub.f32 %v4066, %v4067
    %v4069 = vand.u32 %v4068, 4294901760
    %4070 = vmatpush1.msra.mxu0 %v4069
    %4071 = vmatprep.subr.mxu0 0.0
    %v4072 = vand.u32 %v203, 4294901760
    %v4073 = vsub.f32 %v203, %v4072
    %v4074 = vand.u32 %v4073, 4294901760
    %v4075 = vsub.f32 %v4073, %v4074
    %v4076 = vand.u32 %v4075, 4294901760
    %4077 = vmatpush1.msra.mxu0 %v4076
    %4078 = vmatprep.subr.mxu0 0.0
    %v4079 = vand.u32 %v204, 4294901760
    %v4080 = vsub.f32 %v204, %v4079
    %v4081 = vand.u32 %v4080, 4294901760
    %v4082 = vsub.f32 %v4080, %v4081
    %v4083 = vand.u32 %v4082, 4294901760
    %4084 = vmatpush1.msra.mxu0 %v4083
    %4085 = vmatprep.subr.mxu0 0.0
    %v4086 = vand.u32 %v205, 4294901760
    %v4087 = vsub.f32 %v205, %v4086
    %v4088 = vand.u32 %v4087, 4294901760
    %v4089 = vsub.f32 %v4087, %v4088
    %v4090 = vand.u32 %v4089, 4294901760
    %4091 = vmatpush1.msra.mxu0 %v4090
    %4092 = vmatprep.subr.mxu0 0.0
    %v4093 = vand.u32 %v206, 4294901760
    %v4094 = vsub.f32 %v206, %v4093
    %v4095 = vand.u32 %v4094, 4294901760
    %v4096 = vsub.f32 %v4094, %v4095
    %v4097 = vand.u32 %v4096, 4294901760
    %4098 = vmatpush1.msra.mxu0 %v4097
    %4099 = vmatprep.subr.mxu0 0.0
    %v4100 = vand.u32 %v207, 4294901760
    %v4101 = vsub.f32 %v207, %v4100
    %v4102 = vand.u32 %v4101, 4294901760
    %v4103 = vsub.f32 %v4101, %v4102
    %v4104 = vand.u32 %v4103, 4294901760
    %4105 = vmatpush1.msra.mxu0 %v4104
    %4106 = vmatprep.subr.mxu0 0.0
    %v4107 = vand.u32 %v208, 4294901760
    %v4108 = vsub.f32 %v208, %v4107
    %v4109 = vand.u32 %v4108, 4294901760
    %v4110 = vsub.f32 %v4108, %v4109
    %v4111 = vand.u32 %v4110, 4294901760
    %4112 = vmatpush1.msra.mxu0 %v4111
    %v4113 = vand.u32 %v317, 4294901760
    %4114 = vmatprep.mubr.f32.mxu0 %v4113
    %v4115 = vand.u32 %v45, 4294901760
    %4116 = vmatmul.mubr.f32.gmra.mrb[0].mxu0 %v4115
    %v4117 = vpop.f32.mrb[0].mxu0
    %v4118 = vadd.f32 %v3886, %v4117
    %v4119 = vpop.f32.mrb[0].mxu0
    %4120 = vdwg.mxu0
    %4121 = vmatprep.subr.mxu0 0.0
    %v4122 = vand.u32 %v177, 4294901760
    %v4123 = vsub.f32 %v177, %v4122
    %4124 = vmatpush1.msra.mxu0 %v4123
    %4125 = vmatprep.subr.mxu0 0.0
    %v4126 = vand.u32 %v178, 4294901760
    %v4127 = vsub.f32 %v178, %v4126
    %4128 = vmatpush1.msra.mxu0 %v4127
    %4129 = vmatprep.subr.mxu0 0.0
    %v4130 = vand.u32 %v179, 4294901760
    %v4131 = vsub.f32 %v179, %v4130
    %4132 = vmatpush1.msra.mxu0 %v4131
    %4133 = vmatprep.subr.mxu0 0.0
    %v4134 = vand.u32 %v180, 4294901760
    %v4135 = vsub.f32 %v180, %v4134
    %4136 = vmatpush1.msra.mxu0 %v4135
    %4137 = vmatprep.subr.mxu0 0.0
    %v4138 = vand.u32 %v181, 4294901760
    %v4139 = vsub.f32 %v181, %v4138
    %4140 = vmatpush1.msra.mxu0 %v4139
    %4141 = vmatprep.subr.mxu0 0.0
    %v4142 = vand.u32 %v182, 4294901760
    %v4143 = vsub.f32 %v182, %v4142
    %4144 = vmatpush1.msra.mxu0 %v4143
    %4145 = vmatprep.subr.mxu0 0.0
    %v4146 = vand.u32 %v183, 4294901760
    %v4147 = vsub.f32 %v183, %v4146
    %4148 = vmatpush1.msra.mxu0 %v4147
    %4149 = vmatprep.subr.mxu0 0.0
    %v4150 = vand.u32 %v184, 4294901760
    %v4151 = vsub.f32 %v184, %v4150
    %4152 = vmatpush1.msra.mxu0 %v4151
    %4153 = vmatprep.subr.mxu0 0.0
    %v4154 = vand.u32 %v185, 4294901760
    %v4155 = vsub.f32 %v185, %v4154
    %4156 = vmatpush1.msra.mxu0 %v4155
    %4157 = vmatprep.subr.mxu0 0.0
    %v4158 = vand.u32 %v186, 4294901760
    %v4159 = vsub.f32 %v186, %v4158
    %4160 = vmatpush1.msra.mxu0 %v4159
    %4161 = vmatprep.subr.mxu0 0.0
    %v4162 = vand.u32 %v187, 4294901760
    %v4163 = vsub.f32 %v187, %v4162
    %4164 = vmatpush1.msra.mxu0 %v4163
    %4165 = vmatprep.subr.mxu0 0.0
    %v4166 = vand.u32 %v188, 4294901760
    %v4167 = vsub.f32 %v188, %v4166
    %4168 = vmatpush1.msra.mxu0 %v4167
    %4169 = vmatprep.subr.mxu0 0.0
    %v4170 = vand.u32 %v189, 4294901760
    %v4171 = vsub.f32 %v189, %v4170
    %4172 = vmatpush1.msra.mxu0 %v4171
    %4173 = vmatprep.subr.mxu0 0.0
    %v4174 = vand.u32 %v190, 4294901760
    %v4175 = vsub.f32 %v190, %v4174
    %4176 = vmatpush1.msra.mxu0 %v4175
    %4177 = vmatprep.subr.mxu0 0.0
    %v4178 = vand.u32 %v191, 4294901760
    %v4179 = vsub.f32 %v191, %v4178
    %4180 = vmatpush1.msra.mxu0 %v4179
    %4181 = vmatprep.subr.mxu0 0.0
    %v4182 = vand.u32 %v192, 4294901760
    %v4183 = vsub.f32 %v192, %v4182
    %4184 = vmatpush1.msra.mxu0 %v4183
    %4185 = vmatprep.subr.mxu0 0.0
    %v4186 = vand.u32 %v193, 4294901760
    %v4187 = vsub.f32 %v193, %v4186
    %4188 = vmatpush1.msra.mxu0 %v4187
    %4189 = vmatprep.subr.mxu0 0.0
    %v4190 = vand.u32 %v194, 4294901760
    %v4191 = vsub.f32 %v194, %v4190
    %4192 = vmatpush1.msra.mxu0 %v4191
    %4193 = vmatprep.subr.mxu0 0.0
    %v4194 = vand.u32 %v195, 4294901760
    %v4195 = vsub.f32 %v195, %v4194
    %4196 = vmatpush1.msra.mxu0 %v4195
    %4197 = vmatprep.subr.mxu0 0.0
    %v4198 = vand.u32 %v196, 4294901760
    %v4199 = vsub.f32 %v196, %v4198
    %4200 = vmatpush1.msra.mxu0 %v4199
    %4201 = vmatprep.subr.mxu0 0.0
    %v4202 = vand.u32 %v197, 4294901760
    %v4203 = vsub.f32 %v197, %v4202
    %4204 = vmatpush1.msra.mxu0 %v4203
    %4205 = vmatprep.subr.mxu0 0.0
    %v4206 = vand.u32 %v198, 4294901760
    %v4207 = vsub.f32 %v198, %v4206
    %4208 = vmatpush1.msra.mxu0 %v4207
    %4209 = vmatprep.subr.mxu0 0.0
    %v4210 = vand.u32 %v199, 4294901760
    %v4211 = vsub.f32 %v199, %v4210
    %4212 = vmatpush1.msra.mxu0 %v4211
    %4213 = vmatprep.subr.mxu0 0.0
    %v4214 = vand.u32 %v200, 4294901760
    %v4215 = vsub.f32 %v200, %v4214
    %4216 = vmatpush1.msra.mxu0 %v4215
    %4217 = vmatprep.subr.mxu0 0.0
    %v4218 = vand.u32 %v201, 4294901760
    %v4219 = vsub.f32 %v201, %v4218
    %4220 = vmatpush1.msra.mxu0 %v4219
    %4221 = vmatprep.subr.mxu0 0.0
    %v4222 = vand.u32 %v202, 4294901760
    %v4223 = vsub.f32 %v202, %v4222
    %4224 = vmatpush1.msra.mxu0 %v4223
    %4225 = vmatprep.subr.mxu0 0.0
    %v4226 = vand.u32 %v203, 4294901760
    %v4227 = vsub.f32 %v203, %v4226
    %4228 = vmatpush1.msra.mxu0 %v4227
    %4229 = vmatprep.subr.mxu0 0.0
    %v4230 = vand.u32 %v204, 4294901760
    %v4231 = vsub.f32 %v204, %v4230
    %4232 = vmatpush1.msra.mxu0 %v4231
    %4233 = vmatprep.subr.mxu0 0.0
    %v4234 = vand.u32 %v205, 4294901760
    %v4235 = vsub.f32 %v205, %v4234
    %4236 = vmatpush1.msra.mxu0 %v4235
    %4237 = vmatprep.subr.mxu0 0.0
    %v4238 = vand.u32 %v206, 4294901760
    %v4239 = vsub.f32 %v206, %v4238
    %4240 = vmatpush1.msra.mxu0 %v4239
    %4241 = vmatprep.subr.mxu0 0.0
    %v4242 = vand.u32 %v207, 4294901760
    %v4243 = vsub.f32 %v207, %v4242
    %4244 = vmatpush1.msra.mxu0 %v4243
    %4245 = vmatprep.subr.mxu0 0.0
    %v4246 = vand.u32 %v208, 4294901760
    %v4247 = vsub.f32 %v208, %v4246
    %4248 = vmatpush1.msra.mxu0 %v4247
    %v4249 = vand.u32 %v317, 4294901760
    %v4250 = vsub.f32 %v317, %v4249
    %4251 = vmatprep.mubr.f32.mxu0 %v4250
    %v4252 = vand.u32 %v45, 4294901760
    %v4253 = vsub.f32 %v45, %v4252
    %4254 = vmatmul.mubr.f32.gmra.mrb[0].mxu0 %v4253
    %v4255 = vpop.f32.mrb[0].mxu0
    %v4256 = vadd.f32 %v4118, %v4255
    %v4257 = vpop.f32.mrb[0].mxu0
    %4258 = vdwg.mxu0
    %4259 = vmatprep.subr.mxu0 0.0
    %v4260 = vand.u32 %v177, 4294901760
    %4261 = vmatpush1.msra.mxu0 %v4260
    %4262 = vmatprep.subr.mxu0 0.0
    %v4263 = vand.u32 %v178, 4294901760
    %4264 = vmatpush1.msra.mxu0 %v4263
    %4265 = vmatprep.subr.mxu0 0.0
    %v4266 = vand.u32 %v179, 4294901760
    %4267 = vmatpush1.msra.mxu0 %v4266
    %4268 = vmatprep.subr.mxu0 0.0
    %v4269 = vand.u32 %v180, 4294901760
    %4270 = vmatpush1.msra.mxu0 %v4269
    %4271 = vmatprep.subr.mxu0 0.0
    %v4272 = vand.u32 %v181, 4294901760
    %4273 = vmatpush1.msra.mxu0 %v4272
    %4274 = vmatprep.subr.mxu0 0.0
    %v4275 = vand.u32 %v182, 4294901760
    %4276 = vmatpush1.msra.mxu0 %v4275
    %4277 = vmatprep.subr.mxu0 0.0
    %v4278 = vand.u32 %v183, 4294901760
    %4279 = vmatpush1.msra.mxu0 %v4278
    %4280 = vmatprep.subr.mxu0 0.0
    %v4281 = vand.u32 %v184, 4294901760
    %4282 = vmatpush1.msra.mxu0 %v4281
    %4283 = vmatprep.subr.mxu0 0.0
    %v4284 = vand.u32 %v185, 4294901760
    %4285 = vmatpush1.msra.mxu0 %v4284
    %4286 = vmatprep.subr.mxu0 0.0
    %v4287 = vand.u32 %v186, 4294901760
    %4288 = vmatpush1.msra.mxu0 %v4287
    %4289 = vmatprep.subr.mxu0 0.0
    %v4290 = vand.u32 %v187, 4294901760
    %4291 = vmatpush1.msra.mxu0 %v4290
    %4292 = vmatprep.subr.mxu0 0.0
    %v4293 = vand.u32 %v188, 4294901760
    %4294 = vmatpush1.msra.mxu0 %v4293
    %4295 = vmatprep.subr.mxu0 0.0
    %v4296 = vand.u32 %v189, 4294901760
    %4297 = vmatpush1.msra.mxu0 %v4296
    %4298 = vmatprep.subr.mxu0 0.0
    %v4299 = vand.u32 %v190, 4294901760
    %4300 = vmatpush1.msra.mxu0 %v4299
    %4301 = vmatprep.subr.mxu0 0.0
    %v4302 = vand.u32 %v191, 4294901760
    %4303 = vmatpush1.msra.mxu0 %v4302
    %4304 = vmatprep.subr.mxu0 0.0
    %v4305 = vand.u32 %v192, 4294901760
    %4306 = vmatpush1.msra.mxu0 %v4305
    %4307 = vmatprep.subr.mxu0 0.0
    %v4308 = vand.u32 %v193, 4294901760
    %4309 = vmatpush1.msra.mxu0 %v4308
    %4310 = vmatprep.subr.mxu0 0.0
    %v4311 = vand.u32 %v194, 4294901760
    %4312 = vmatpush1.msra.mxu0 %v4311
    %4313 = vmatprep.subr.mxu0 0.0
    %v4314 = vand.u32 %v195, 4294901760
    %4315 = vmatpush1.msra.mxu0 %v4314
    %4316 = vmatprep.subr.mxu0 0.0
    %v4317 = vand.u32 %v196, 4294901760
    %4318 = vmatpush1.msra.mxu0 %v4317
    %4319 = vmatprep.subr.mxu0 0.0
    %v4320 = vand.u32 %v197, 4294901760
    %4321 = vmatpush1.msra.mxu0 %v4320
    %4322 = vmatprep.subr.mxu0 0.0
    %v4323 = vand.u32 %v198, 4294901760
    %4324 = vmatpush1.msra.mxu0 %v4323
    %4325 = vmatprep.subr.mxu0 0.0
    %v4326 = vand.u32 %v199, 4294901760
    %4327 = vmatpush1.msra.mxu0 %v4326
    %4328 = vmatprep.subr.mxu0 0.0
    %v4329 = vand.u32 %v200, 4294901760
    %4330 = vmatpush1.msra.mxu0 %v4329
    %4331 = vmatprep.subr.mxu0 0.0
    %v4332 = vand.u32 %v201, 4294901760
    %4333 = vmatpush1.msra.mxu0 %v4332
    %4334 = vmatprep.subr.mxu0 0.0
    %v4335 = vand.u32 %v202, 4294901760
    %4336 = vmatpush1.msra.mxu0 %v4335
    %4337 = vmatprep.subr.mxu0 0.0
    %v4338 = vand.u32 %v203, 4294901760
    %4339 = vmatpush1.msra.mxu0 %v4338
    %4340 = vmatprep.subr.mxu0 0.0
    %v4341 = vand.u32 %v204, 4294901760
    %4342 = vmatpush1.msra.mxu0 %v4341
    %4343 = vmatprep.subr.mxu0 0.0
    %v4344 = vand.u32 %v205, 4294901760
    %4345 = vmatpush1.msra.mxu0 %v4344
    %4346 = vmatprep.subr.mxu0 0.0
    %v4347 = vand.u32 %v206, 4294901760
    %4348 = vmatpush1.msra.mxu0 %v4347
    %4349 = vmatprep.subr.mxu0 0.0
    %v4350 = vand.u32 %v207, 4294901760
    %4351 = vmatpush1.msra.mxu0 %v4350
    %4352 = vmatprep.subr.mxu0 0.0
    %v4353 = vand.u32 %v208, 4294901760
    %4354 = vmatpush1.msra.mxu0 %v4353
    %v4355 = vand.u32 %v317, 4294901760
    %v4356 = vsub.f32 %v317, %v4355
    %v4357 = vand.u32 %v4356, 4294901760
    %4358 = vmatprep.mubr.f32.mxu0 %v4357
    %v4359 = vand.u32 %v45, 4294901760
    %v4360 = vsub.f32 %v45, %v4359
    %v4361 = vand.u32 %v4360, 4294901760
    %4362 = vmatmul.mubr.f32.gmra.mrb[0].mxu0 %v4361
    %v4363 = vpop.f32.mrb[0].mxu0
    %v4364 = vadd.f32 %v4256, %v4363
    %v4365 = vpop.f32.mrb[0].mxu0
    %4366 = vdwg.mxu0
    %4367 = vmatprep.subr.mxu0 0.0
    %v4368 = vand.u32 %v177, 4294901760
    %v4369 = vsub.f32 %v177, %v4368
    %v4370 = vand.u32 %v4369, 4294901760
    %4371 = vmatpush1.msra.mxu0 %v4370
    %4372 = vmatprep.subr.mxu0 0.0
    %v4373 = vand.u32 %v178, 4294901760
    %v4374 = vsub.f32 %v178, %v4373
    %v4375 = vand.u32 %v4374, 4294901760
    %4376 = vmatpush1.msra.mxu0 %v4375
    %4377 = vmatprep.subr.mxu0 0.0
    %v4378 = vand.u32 %v179, 4294901760
    %v4379 = vsub.f32 %v179, %v4378
    %v4380 = vand.u32 %v4379, 4294901760
    %4381 = vmatpush1.msra.mxu0 %v4380
    %4382 = vmatprep.subr.mxu0 0.0
    %v4383 = vand.u32 %v180, 4294901760
    %v4384 = vsub.f32 %v180, %v4383
    %v4385 = vand.u32 %v4384, 4294901760
    %4386 = vmatpush1.msra.mxu0 %v4385
    %4387 = vmatprep.subr.mxu0 0.0
    %v4388 = vand.u32 %v181, 4294901760
    %v4389 = vsub.f32 %v181, %v4388
    %v4390 = vand.u32 %v4389, 4294901760
    %4391 = vmatpush1.msra.mxu0 %v4390
    %4392 = vmatprep.subr.mxu0 0.0
    %v4393 = vand.u32 %v182, 4294901760
    %v4394 = vsub.f32 %v182, %v4393
    %v4395 = vand.u32 %v4394, 4294901760
    %4396 = vmatpush1.msra.mxu0 %v4395
    %4397 = vmatprep.subr.mxu0 0.0
    %v4398 = vand.u32 %v183, 4294901760
    %v4399 = vsub.f32 %v183, %v4398
    %v4400 = vand.u32 %v4399, 4294901760
    %4401 = vmatpush1.msra.mxu0 %v4400
    %4402 = vmatprep.subr.mxu0 0.0
    %v4403 = vand.u32 %v184, 4294901760
    %v4404 = vsub.f32 %v184, %v4403
    %v4405 = vand.u32 %v4404, 4294901760
    %4406 = vmatpush1.msra.mxu0 %v4405
    %4407 = vmatprep.subr.mxu0 0.0
    %v4408 = vand.u32 %v185, 4294901760
    %v4409 = vsub.f32 %v185, %v4408
    %v4410 = vand.u32 %v4409, 4294901760
    %4411 = vmatpush1.msra.mxu0 %v4410
    %4412 = vmatprep.subr.mxu0 0.0
    %v4413 = vand.u32 %v186, 4294901760
    %v4414 = vsub.f32 %v186, %v4413
    %v4415 = vand.u32 %v4414, 4294901760
    %4416 = vmatpush1.msra.mxu0 %v4415
    %4417 = vmatprep.subr.mxu0 0.0
    %v4418 = vand.u32 %v187, 4294901760
    %v4419 = vsub.f32 %v187, %v4418
    %v4420 = vand.u32 %v4419, 4294901760
    %4421 = vmatpush1.msra.mxu0 %v4420
    %4422 = vmatprep.subr.mxu0 0.0
    %v4423 = vand.u32 %v188, 4294901760
    %v4424 = vsub.f32 %v188, %v4423
    %v4425 = vand.u32 %v4424, 4294901760
    %4426 = vmatpush1.msra.mxu0 %v4425
    %4427 = vmatprep.subr.mxu0 0.0
    %v4428 = vand.u32 %v189, 4294901760
    %v4429 = vsub.f32 %v189, %v4428
    %v4430 = vand.u32 %v4429, 4294901760
    %4431 = vmatpush1.msra.mxu0 %v4430
    %4432 = vmatprep.subr.mxu0 0.0
    %v4433 = vand.u32 %v190, 4294901760
    %v4434 = vsub.f32 %v190, %v4433
    %v4435 = vand.u32 %v4434, 4294901760
    %4436 = vmatpush1.msra.mxu0 %v4435
    %4437 = vmatprep.subr.mxu0 0.0
    %v4438 = vand.u32 %v191, 4294901760
    %v4439 = vsub.f32 %v191, %v4438
    %v4440 = vand.u32 %v4439, 4294901760
    %4441 = vmatpush1.msra.mxu0 %v4440
    %4442 = vmatprep.subr.mxu0 0.0
    %v4443 = vand.u32 %v192, 4294901760
    %v4444 = vsub.f32 %v192, %v4443
    %v4445 = vand.u32 %v4444, 4294901760
    %4446 = vmatpush1.msra.mxu0 %v4445
    %4447 = vmatprep.subr.mxu0 0.0
    %v4448 = vand.u32 %v193, 4294901760
    %v4449 = vsub.f32 %v193, %v4448
    %v4450 = vand.u32 %v4449, 4294901760
    %4451 = vmatpush1.msra.mxu0 %v4450
    %4452 = vmatprep.subr.mxu0 0.0
    %v4453 = vand.u32 %v194, 4294901760
    %v4454 = vsub.f32 %v194, %v4453
    %v4455 = vand.u32 %v4454, 4294901760
    %4456 = vmatpush1.msra.mxu0 %v4455
    %4457 = vmatprep.subr.mxu0 0.0
    %v4458 = vand.u32 %v195, 4294901760
    %v4459 = vsub.f32 %v195, %v4458
    %v4460 = vand.u32 %v4459, 4294901760
    %4461 = vmatpush1.msra.mxu0 %v4460
    %4462 = vmatprep.subr.mxu0 0.0
    %v4463 = vand.u32 %v196, 4294901760
    %v4464 = vsub.f32 %v196, %v4463
    %v4465 = vand.u32 %v4464, 4294901760
    %4466 = vmatpush1.msra.mxu0 %v4465
    %4467 = vmatprep.subr.mxu0 0.0
    %v4468 = vand.u32 %v197, 4294901760
    %v4469 = vsub.f32 %v197, %v4468
    %v4470 = vand.u32 %v4469, 4294901760
    %4471 = vmatpush1.msra.mxu0 %v4470
    %4472 = vmatprep.subr.mxu0 0.0
    %v4473 = vand.u32 %v198, 4294901760
    %v4474 = vsub.f32 %v198, %v4473
    %v4475 = vand.u32 %v4474, 4294901760
    %4476 = vmatpush1.msra.mxu0 %v4475
    %4477 = vmatprep.subr.mxu0 0.0
    %v4478 = vand.u32 %v199, 4294901760
    %v4479 = vsub.f32 %v199, %v4478
    %v4480 = vand.u32 %v4479, 4294901760
    %4481 = vmatpush1.msra.mxu0 %v4480
    %4482 = vmatprep.subr.mxu0 0.0
    %v4483 = vand.u32 %v200, 4294901760
    %v4484 = vsub.f32 %v200, %v4483
    %v4485 = vand.u32 %v4484, 4294901760
    %4486 = vmatpush1.msra.mxu0 %v4485
    %4487 = vmatprep.subr.mxu0 0.0
    %v4488 = vand.u32 %v201, 4294901760
    %v4489 = vsub.f32 %v201, %v4488
    %v4490 = vand.u32 %v4489, 4294901760
    %4491 = vmatpush1.msra.mxu0 %v4490
    %4492 = vmatprep.subr.mxu0 0.0
    %v4493 = vand.u32 %v202, 4294901760
    %v4494 = vsub.f32 %v202, %v4493
    %v4495 = vand.u32 %v4494, 4294901760
    %4496 = vmatpush1.msra.mxu0 %v4495
    %4497 = vmatprep.subr.mxu0 0.0
    %v4498 = vand.u32 %v203, 4294901760
    %v4499 = vsub.f32 %v203, %v4498
    %v4500 = vand.u32 %v4499, 4294901760
    %4501 = vmatpush1.msra.mxu0 %v4500
    %4502 = vmatprep.subr.mxu0 0.0
    %v4503 = vand.u32 %v204, 4294901760
    %v4504 = vsub.f32 %v204, %v4503
    %v4505 = vand.u32 %v4504, 4294901760
    %4506 = vmatpush1.msra.mxu0 %v4505
    %4507 = vmatprep.subr.mxu0 0.0
    %v4508 = vand.u32 %v205, 4294901760
    %v4509 = vsub.f32 %v205, %v4508
    %v4510 = vand.u32 %v4509, 4294901760
    %4511 = vmatpush1.msra.mxu0 %v4510
    %4512 = vmatprep.subr.mxu0 0.0
    %v4513 = vand.u32 %v206, 4294901760
    %v4514 = vsub.f32 %v206, %v4513
    %v4515 = vand.u32 %v4514, 4294901760
    %4516 = vmatpush1.msra.mxu0 %v4515
    %4517 = vmatprep.subr.mxu0 0.0
    %v4518 = vand.u32 %v207, 4294901760
    %v4519 = vsub.f32 %v207, %v4518
    %v4520 = vand.u32 %v4519, 4294901760
    %4521 = vmatpush1.msra.mxu0 %v4520
    %4522 = vmatprep.subr.mxu0 0.0
    %v4523 = vand.u32 %v208, 4294901760
    %v4524 = vsub.f32 %v208, %v4523
    %v4525 = vand.u32 %v4524, 4294901760
    %4526 = vmatpush1.msra.mxu0 %v4525
    %v4527 = vand.u32 %v317, 4294901760
    %4528 = vmatprep.mubr.f32.mxu0 %v4527
    %v4529 = vand.u32 %v45, 4294901760
    %4530 = vmatmul.mubr.f32.gmra.mrb[0].mxu0 %v4529
    %v4531 = vpop.f32.mrb[0].mxu0
    %v4532 = vadd.f32 %v4364, %v4531
    %v4533 = vpop.f32.mrb[0].mxu0
    %4534 = vdwg.mxu0
    %4535 = vmatprep.subr.mxu0 0.0
    %v4536 = vand.u32 %v177, 4294901760
    %4537 = vmatpush1.msra.mxu0 %v4536
    %4538 = vmatprep.subr.mxu0 0.0
    %v4539 = vand.u32 %v178, 4294901760
    %4540 = vmatpush1.msra.mxu0 %v4539
    %4541 = vmatprep.subr.mxu0 0.0
    %v4542 = vand.u32 %v179, 4294901760
    %4543 = vmatpush1.msra.mxu0 %v4542
    %4544 = vmatprep.subr.mxu0 0.0
    %v4545 = vand.u32 %v180, 4294901760
    %4546 = vmatpush1.msra.mxu0 %v4545
    %4547 = vmatprep.subr.mxu0 0.0
    %v4548 = vand.u32 %v181, 4294901760
    %4549 = vmatpush1.msra.mxu0 %v4548
    %4550 = vmatprep.subr.mxu0 0.0
    %v4551 = vand.u32 %v182, 4294901760
    %4552 = vmatpush1.msra.mxu0 %v4551
    %4553 = vmatprep.subr.mxu0 0.0
    %v4554 = vand.u32 %v183, 4294901760
    %4555 = vmatpush1.msra.mxu0 %v4554
    %4556 = vmatprep.subr.mxu0 0.0
    %v4557 = vand.u32 %v184, 4294901760
    %4558 = vmatpush1.msra.mxu0 %v4557
    %4559 = vmatprep.subr.mxu0 0.0
    %v4560 = vand.u32 %v185, 4294901760
    %4561 = vmatpush1.msra.mxu0 %v4560
    %4562 = vmatprep.subr.mxu0 0.0
    %v4563 = vand.u32 %v186, 4294901760
    %4564 = vmatpush1.msra.mxu0 %v4563
    %4565 = vmatprep.subr.mxu0 0.0
    %v4566 = vand.u32 %v187, 4294901760
    %4567 = vmatpush1.msra.mxu0 %v4566
    %4568 = vmatprep.subr.mxu0 0.0
    %v4569 = vand.u32 %v188, 4294901760
    %4570 = vmatpush1.msra.mxu0 %v4569
    %4571 = vmatprep.subr.mxu0 0.0
    %v4572 = vand.u32 %v189, 4294901760
    %4573 = vmatpush1.msra.mxu0 %v4572
    %4574 = vmatprep.subr.mxu0 0.0
    %v4575 = vand.u32 %v190, 4294901760
    %4576 = vmatpush1.msra.mxu0 %v4575
    %4577 = vmatprep.subr.mxu0 0.0
    %v4578 = vand.u32 %v191, 4294901760
    %4579 = vmatpush1.msra.mxu0 %v4578
    %4580 = vmatprep.subr.mxu0 0.0
    %v4581 = vand.u32 %v192, 4294901760
    %4582 = vmatpush1.msra.mxu0 %v4581
    %4583 = vmatprep.subr.mxu0 0.0
    %v4584 = vand.u32 %v193, 4294901760
    %4585 = vmatpush1.msra.mxu0 %v4584
    %4586 = vmatprep.subr.mxu0 0.0
    %v4587 = vand.u32 %v194, 4294901760
    %4588 = vmatpush1.msra.mxu0 %v4587
    %4589 = vmatprep.subr.mxu0 0.0
    %v4590 = vand.u32 %v195, 4294901760
    %4591 = vmatpush1.msra.mxu0 %v4590
    %4592 = vmatprep.subr.mxu0 0.0
    %v4593 = vand.u32 %v196, 4294901760
    %4594 = vmatpush1.msra.mxu0 %v4593
    %4595 = vmatprep.subr.mxu0 0.0
    %v4596 = vand.u32 %v197, 4294901760
    %4597 = vmatpush1.msra.mxu0 %v4596
    %4598 = vmatprep.subr.mxu0 0.0
    %v4599 = vand.u32 %v198, 4294901760
    %4600 = vmatpush1.msra.mxu0 %v4599
    %4601 = vmatprep.subr.mxu0 0.0
    %v4602 = vand.u32 %v199, 4294901760
    %4603 = vmatpush1.msra.mxu0 %v4602
    %4604 = vmatprep.subr.mxu0 0.0
    %v4605 = vand.u32 %v200, 4294901760
    %4606 = vmatpush1.msra.mxu0 %v4605
    %4607 = vmatprep.subr.mxu0 0.0
    %v4608 = vand.u32 %v201, 4294901760
    %4609 = vmatpush1.msra.mxu0 %v4608
    %4610 = vmatprep.subr.mxu0 0.0
    %v4611 = vand.u32 %v202, 4294901760
    %4612 = vmatpush1.msra.mxu0 %v4611
    %4613 = vmatprep.subr.mxu0 0.0
    %v4614 = vand.u32 %v203, 4294901760
    %4615 = vmatpush1.msra.mxu0 %v4614
    %4616 = vmatprep.subr.mxu0 0.0
    %v4617 = vand.u32 %v204, 4294901760
    %4618 = vmatpush1.msra.mxu0 %v4617
    %4619 = vmatprep.subr.mxu0 0.0
    %v4620 = vand.u32 %v205, 4294901760
    %4621 = vmatpush1.msra.mxu0 %v4620
    %4622 = vmatprep.subr.mxu0 0.0
    %v4623 = vand.u32 %v206, 4294901760
    %4624 = vmatpush1.msra.mxu0 %v4623
    %4625 = vmatprep.subr.mxu0 0.0
    %v4626 = vand.u32 %v207, 4294901760
    %4627 = vmatpush1.msra.mxu0 %v4626
    %4628 = vmatprep.subr.mxu0 0.0
    %v4629 = vand.u32 %v208, 4294901760
    %4630 = vmatpush1.msra.mxu0 %v4629
    %v4631 = vand.u32 %v317, 4294901760
    %4632 = vmatprep.mubr.f32.mxu0 %v4631
    %v4633 = vand.u32 %v45, 4294901760
    %4634 = vmatmul.mubr.f32.gmra.mrb[0].mxu0 %v4633
    %v4635 = vpop.f32.mrb[0].mxu0
    %v4636 = vadd.f32 %v4532, %v4635
    %v4637 = vpop.f32.mrb[0].mxu0
    %4638 = vdwg.mxu0
    %4639 = vmatprep.subr.mxu0 0.0
    %v4640 = vand.u32 %v209, 4294901760
    %4641 = vmatpush1.msra.mxu0 %v4640
    %4642 = vmatprep.subr.mxu0 0.0
    %v4643 = vand.u32 %v210, 4294901760
    %4644 = vmatpush1.msra.mxu0 %v4643
    %4645 = vmatprep.subr.mxu0 0.0
    %v4646 = vand.u32 %v211, 4294901760
    %4647 = vmatpush1.msra.mxu0 %v4646
    %4648 = vmatprep.subr.mxu0 0.0
    %v4649 = vand.u32 %v212, 4294901760
    %4650 = vmatpush1.msra.mxu0 %v4649
    %4651 = vmatprep.subr.mxu0 0.0
    %v4652 = vand.u32 %v213, 4294901760
    %4653 = vmatpush1.msra.mxu0 %v4652
    %4654 = vmatprep.subr.mxu0 0.0
    %v4655 = vand.u32 %v214, 4294901760
    %4656 = vmatpush1.msra.mxu0 %v4655
    %4657 = vmatprep.subr.mxu0 0.0
    %v4658 = vand.u32 %v215, 4294901760
    %4659 = vmatpush1.msra.mxu0 %v4658
    %4660 = vmatprep.subr.mxu0 0.0
    %v4661 = vand.u32 %v216, 4294901760
    %4662 = vmatpush1.msra.mxu0 %v4661
    %4663 = vmatprep.subr.mxu0 0.0
    %v4664 = vand.u32 %v217, 4294901760
    %4665 = vmatpush1.msra.mxu0 %v4664
    %4666 = vmatprep.subr.mxu0 0.0
    %v4667 = vand.u32 %v218, 4294901760
    %4668 = vmatpush1.msra.mxu0 %v4667
    %4669 = vmatprep.subr.mxu0 0.0
    %v4670 = vand.u32 %v219, 4294901760
    %4671 = vmatpush1.msra.mxu0 %v4670
    %4672 = vmatprep.subr.mxu0 0.0
    %v4673 = vand.u32 %v220, 4294901760
    %4674 = vmatpush1.msra.mxu0 %v4673
    %4675 = vmatprep.subr.mxu0 0.0
    %v4676 = vand.u32 %v221, 4294901760
    %4677 = vmatpush1.msra.mxu0 %v4676
    %4678 = vmatprep.subr.mxu0 0.0
    %v4679 = vand.u32 %v222, 4294901760
    %4680 = vmatpush1.msra.mxu0 %v4679
    %4681 = vmatprep.subr.mxu0 0.0
    %v4682 = vand.u32 %v223, 4294901760
    %4683 = vmatpush1.msra.mxu0 %v4682
    %4684 = vmatprep.subr.mxu0 0.0
    %v4685 = vand.u32 %v224, 4294901760
    %4686 = vmatpush1.msra.mxu0 %v4685
    %4687 = vmatprep.subr.mxu0 0.0
    %v4688 = vand.u32 %v225, 4294901760
    %4689 = vmatpush1.msra.mxu0 %v4688
    %4690 = vmatprep.subr.mxu0 0.0
    %v4691 = vand.u32 %v226, 4294901760
    %4692 = vmatpush1.msra.mxu0 %v4691
    %4693 = vmatprep.subr.mxu0 0.0
    %v4694 = vand.u32 %v227, 4294901760
    %4695 = vmatpush1.msra.mxu0 %v4694
    %4696 = vmatprep.subr.mxu0 0.0
    %v4697 = vand.u32 %v228, 4294901760
    %4698 = vmatpush1.msra.mxu0 %v4697
    %4699 = vmatprep.subr.mxu0 0.0
    %v4700 = vand.u32 %v229, 4294901760
    %4701 = vmatpush1.msra.mxu0 %v4700
    %4702 = vmatprep.subr.mxu0 0.0
    %v4703 = vand.u32 %v230, 4294901760
    %4704 = vmatpush1.msra.mxu0 %v4703
    %4705 = vmatprep.subr.mxu0 0.0
    %v4706 = vand.u32 %v231, 4294901760
    %4707 = vmatpush1.msra.mxu0 %v4706
    %4708 = vmatprep.subr.mxu0 0.0
    %v4709 = vand.u32 %v232, 4294901760
    %4710 = vmatpush1.msra.mxu0 %v4709
    %4711 = vmatprep.subr.mxu0 0.0
    %v4712 = vand.u32 %v233, 4294901760
    %4713 = vmatpush1.msra.mxu0 %v4712
    %4714 = vmatprep.subr.mxu0 0.0
    %v4715 = vand.u32 %v234, 4294901760
    %4716 = vmatpush1.msra.mxu0 %v4715
    %4717 = vmatprep.subr.mxu0 0.0
    %v4718 = vand.u32 %v235, 4294901760
    %4719 = vmatpush1.msra.mxu0 %v4718
    %4720 = vmatprep.subr.mxu0 0.0
    %v4721 = vand.u32 %v236, 4294901760
    %4722 = vmatpush1.msra.mxu0 %v4721
    %4723 = vmatprep.subr.mxu0 0.0
    %v4724 = vand.u32 %v237, 4294901760
    %4725 = vmatpush1.msra.mxu0 %v4724
    %4726 = vmatprep.subr.mxu0 0.0
    %v4727 = vand.u32 %v238, 4294901760
    %4728 = vmatpush1.msra.mxu0 %v4727
    %4729 = vmatprep.subr.mxu0 0.0
    %v4730 = vand.u32 %v239, 4294901760
    %4731 = vmatpush1.msra.mxu0 %v4730
    %4732 = vmatprep.subr.mxu0 0.0
    %v4733 = vand.u32 %v240, 4294901760
    %4734 = vmatpush1.msra.mxu0 %v4733
    %v4735 = vand.u32 %v318, 4294901760
    %v4736 = vsub.f32 %v318, %v4735
    %v4737 = vand.u32 %v4736, 4294901760
    %v4738 = vsub.f32 %v4736, %v4737
    %v4739 = vand.u32 %v4738, 4294901760
    %4740 = vmatprep.mubr.f32.mxu0 %v4739
    %v4741 = vand.u32 %v46, 4294901760
    %v4742 = vsub.f32 %v46, %v4741
    %v4743 = vand.u32 %v4742, 4294901760
    %v4744 = vsub.f32 %v4742, %v4743
    %v4745 = vand.u32 %v4744, 4294901760
    %4746 = vmatmul.mubr.f32.gmra.mrb[0].mxu0 %v4745
    %v4747 = vpop.f32.mrb[0].mxu0
    %v4748 = vadd.f32 %v4636, %v4747
    %v4749 = vpop.f32.mrb[0].mxu0
    %4750 = vdwg.mxu0
    %4751 = vmatprep.subr.mxu0 0.0
    %v4752 = vand.u32 %v209, 4294901760
    %v4753 = vsub.f32 %v209, %v4752
    %v4754 = vand.u32 %v4753, 4294901760
    %v4755 = vsub.f32 %v4753, %v4754
    %v4756 = vand.u32 %v4755, 4294901760
    %4757 = vmatpush1.msra.mxu0 %v4756
    %4758 = vmatprep.subr.mxu0 0.0
    %v4759 = vand.u32 %v210, 4294901760
    %v4760 = vsub.f32 %v210, %v4759
    %v4761 = vand.u32 %v4760, 4294901760
    %v4762 = vsub.f32 %v4760, %v4761
    %v4763 = vand.u32 %v4762, 4294901760
    %4764 = vmatpush1.msra.mxu0 %v4763
    %4765 = vmatprep.subr.mxu0 0.0
    %v4766 = vand.u32 %v211, 4294901760
    %v4767 = vsub.f32 %v211, %v4766
    %v4768 = vand.u32 %v4767, 4294901760
    %v4769 = vsub.f32 %v4767, %v4768
    %v4770 = vand.u32 %v4769, 4294901760
    %4771 = vmatpush1.msra.mxu0 %v4770
    %4772 = vmatprep.subr.mxu0 0.0
    %v4773 = vand.u32 %v212, 4294901760
    %v4774 = vsub.f32 %v212, %v4773
    %v4775 = vand.u32 %v4774, 4294901760
    %v4776 = vsub.f32 %v4774, %v4775
    %v4777 = vand.u32 %v4776, 4294901760
    %4778 = vmatpush1.msra.mxu0 %v4777
    %4779 = vmatprep.subr.mxu0 0.0
    %v4780 = vand.u32 %v213, 4294901760
    %v4781 = vsub.f32 %v213, %v4780
    %v4782 = vand.u32 %v4781, 4294901760
    %v4783 = vsub.f32 %v4781, %v4782
    %v4784 = vand.u32 %v4783, 4294901760
    %4785 = vmatpush1.msra.mxu0 %v4784
    %4786 = vmatprep.subr.mxu0 0.0
    %v4787 = vand.u32 %v214, 4294901760
    %v4788 = vsub.f32 %v214, %v4787
    %v4789 = vand.u32 %v4788, 4294901760
    %v4790 = vsub.f32 %v4788, %v4789
    %v4791 = vand.u32 %v4790, 4294901760
    %4792 = vmatpush1.msra.mxu0 %v4791
    %4793 = vmatprep.subr.mxu0 0.0
    %v4794 = vand.u32 %v215, 4294901760
    %v4795 = vsub.f32 %v215, %v4794
    %v4796 = vand.u32 %v4795, 4294901760
    %v4797 = vsub.f32 %v4795, %v4796
    %v4798 = vand.u32 %v4797, 4294901760
    %4799 = vmatpush1.msra.mxu0 %v4798
    %4800 = vmatprep.subr.mxu0 0.0
    %v4801 = vand.u32 %v216, 4294901760
    %v4802 = vsub.f32 %v216, %v4801
    %v4803 = vand.u32 %v4802, 4294901760
    %v4804 = vsub.f32 %v4802, %v4803
    %v4805 = vand.u32 %v4804, 4294901760
    %4806 = vmatpush1.msra.mxu0 %v4805
    %4807 = vmatprep.subr.mxu0 0.0
    %v4808 = vand.u32 %v217, 4294901760
    %v4809 = vsub.f32 %v217, %v4808
    %v4810 = vand.u32 %v4809, 4294901760
    %v4811 = vsub.f32 %v4809, %v4810
    %v4812 = vand.u32 %v4811, 4294901760
    %4813 = vmatpush1.msra.mxu0 %v4812
    %4814 = vmatprep.subr.mxu0 0.0
    %v4815 = vand.u32 %v218, 4294901760
    %v4816 = vsub.f32 %v218, %v4815
    %v4817 = vand.u32 %v4816, 4294901760
    %v4818 = vsub.f32 %v4816, %v4817
    %v4819 = vand.u32 %v4818, 4294901760
    %4820 = vmatpush1.msra.mxu0 %v4819
    %4821 = vmatprep.subr.mxu0 0.0
    %v4822 = vand.u32 %v219, 4294901760
    %v4823 = vsub.f32 %v219, %v4822
    %v4824 = vand.u32 %v4823, 4294901760
    %v4825 = vsub.f32 %v4823, %v4824
    %v4826 = vand.u32 %v4825, 4294901760
    %4827 = vmatpush1.msra.mxu0 %v4826
    %4828 = vmatprep.subr.mxu0 0.0
    %v4829 = vand.u32 %v220, 4294901760
    %v4830 = vsub.f32 %v220, %v4829
    %v4831 = vand.u32 %v4830, 4294901760
    %v4832 = vsub.f32 %v4830, %v4831
    %v4833 = vand.u32 %v4832, 4294901760
    %4834 = vmatpush1.msra.mxu0 %v4833
    %4835 = vmatprep.subr.mxu0 0.0
    %v4836 = vand.u32 %v221, 4294901760
    %v4837 = vsub.f32 %v221, %v4836
    %v4838 = vand.u32 %v4837, 4294901760
    %v4839 = vsub.f32 %v4837, %v4838
    %v4840 = vand.u32 %v4839, 4294901760
    %4841 = vmatpush1.msra.mxu0 %v4840
    %4842 = vmatprep.subr.mxu0 0.0
    %v4843 = vand.u32 %v222, 4294901760
    %v4844 = vsub.f32 %v222, %v4843
    %v4845 = vand.u32 %v4844, 4294901760
    %v4846 = vsub.f32 %v4844, %v4845
    %v4847 = vand.u32 %v4846, 4294901760
    %4848 = vmatpush1.msra.mxu0 %v4847
    %4849 = vmatprep.subr.mxu0 0.0
    %v4850 = vand.u32 %v223, 4294901760
    %v4851 = vsub.f32 %v223, %v4850
    %v4852 = vand.u32 %v4851, 4294901760
    %v4853 = vsub.f32 %v4851, %v4852
    %v4854 = vand.u32 %v4853, 4294901760
    %4855 = vmatpush1.msra.mxu0 %v4854
    %4856 = vmatprep.subr.mxu0 0.0
    %v4857 = vand.u32 %v224, 4294901760
    %v4858 = vsub.f32 %v224, %v4857
    %v4859 = vand.u32 %v4858, 4294901760
    %v4860 = vsub.f32 %v4858, %v4859
    %v4861 = vand.u32 %v4860, 4294901760
    %4862 = vmatpush1.msra.mxu0 %v4861
    %4863 = vmatprep.subr.mxu0 0.0
    %v4864 = vand.u32 %v225, 4294901760
    %v4865 = vsub.f32 %v225, %v4864
    %v4866 = vand.u32 %v4865, 4294901760
    %v4867 = vsub.f32 %v4865, %v4866
    %v4868 = vand.u32 %v4867, 4294901760
    %4869 = vmatpush1.msra.mxu0 %v4868
    %4870 = vmatprep.subr.mxu0 0.0
    %v4871 = vand.u32 %v226, 4294901760
    %v4872 = vsub.f32 %v226, %v4871
    %v4873 = vand.u32 %v4872, 4294901760
    %v4874 = vsub.f32 %v4872, %v4873
    %v4875 = vand.u32 %v4874, 4294901760
    %4876 = vmatpush1.msra.mxu0 %v4875
    %4877 = vmatprep.subr.mxu0 0.0
    %v4878 = vand.u32 %v227, 4294901760
    %v4879 = vsub.f32 %v227, %v4878
    %v4880 = vand.u32 %v4879, 4294901760
    %v4881 = vsub.f32 %v4879, %v4880
    %v4882 = vand.u32 %v4881, 4294901760
    %4883 = vmatpush1.msra.mxu0 %v4882
    %4884 = vmatprep.subr.mxu0 0.0
    %v4885 = vand.u32 %v228, 4294901760
    %v4886 = vsub.f32 %v228, %v4885
    %v4887 = vand.u32 %v4886, 4294901760
    %v4888 = vsub.f32 %v4886, %v4887
    %v4889 = vand.u32 %v4888, 4294901760
    %4890 = vmatpush1.msra.mxu0 %v4889
    %4891 = vmatprep.subr.mxu0 0.0
    %v4892 = vand.u32 %v229, 4294901760
    %v4893 = vsub.f32 %v229, %v4892
    %v4894 = vand.u32 %v4893, 4294901760
    %v4895 = vsub.f32 %v4893, %v4894
    %v4896 = vand.u32 %v4895, 4294901760
    %4897 = vmatpush1.msra.mxu0 %v4896
    %4898 = vmatprep.subr.mxu0 0.0
    %v4899 = vand.u32 %v230, 4294901760
    %v4900 = vsub.f32 %v230, %v4899
    %v4901 = vand.u32 %v4900, 4294901760
    %v4902 = vsub.f32 %v4900, %v4901
    %v4903 = vand.u32 %v4902, 4294901760
    %4904 = vmatpush1.msra.mxu0 %v4903
    %4905 = vmatprep.subr.mxu0 0.0
    %v4906 = vand.u32 %v231, 4294901760
    %v4907 = vsub.f32 %v231, %v4906
    %v4908 = vand.u32 %v4907, 4294901760
    %v4909 = vsub.f32 %v4907, %v4908
    %v4910 = vand.u32 %v4909, 4294901760
    %4911 = vmatpush1.msra.mxu0 %v4910
    %4912 = vmatprep.subr.mxu0 0.0
    %v4913 = vand.u32 %v232, 4294901760
    %v4914 = vsub.f32 %v232, %v4913
    %v4915 = vand.u32 %v4914, 4294901760
    %v4916 = vsub.f32 %v4914, %v4915
    %v4917 = vand.u32 %v4916, 4294901760
    %4918 = vmatpush1.msra.mxu0 %v4917
    %4919 = vmatprep.subr.mxu0 0.0
    %v4920 = vand.u32 %v233, 4294901760
    %v4921 = vsub.f32 %v233, %v4920
    %v4922 = vand.u32 %v4921, 4294901760
    %v4923 = vsub.f32 %v4921, %v4922
    %v4924 = vand.u32 %v4923, 4294901760
    %4925 = vmatpush1.msra.mxu0 %v4924
    %4926 = vmatprep.subr.mxu0 0.0
    %v4927 = vand.u32 %v234, 4294901760
    %v4928 = vsub.f32 %v234, %v4927
    %v4929 = vand.u32 %v4928, 4294901760
    %v4930 = vsub.f32 %v4928, %v4929
    %v4931 = vand.u32 %v4930, 4294901760
    %4932 = vmatpush1.msra.mxu0 %v4931
    %4933 = vmatprep.subr.mxu0 0.0
    %v4934 = vand.u32 %v235, 4294901760
    %v4935 = vsub.f32 %v235, %v4934
    %v4936 = vand.u32 %v4935, 4294901760
    %v4937 = vsub.f32 %v4935, %v4936
    %v4938 = vand.u32 %v4937, 4294901760
    %4939 = vmatpush1.msra.mxu0 %v4938
    %4940 = vmatprep.subr.mxu0 0.0
    %v4941 = vand.u32 %v236, 4294901760
    %v4942 = vsub.f32 %v236, %v4941
    %v4943 = vand.u32 %v4942, 4294901760
    %v4944 = vsub.f32 %v4942, %v4943
    %v4945 = vand.u32 %v4944, 4294901760
    %4946 = vmatpush1.msra.mxu0 %v4945
    %4947 = vmatprep.subr.mxu0 0.0
    %v4948 = vand.u32 %v237, 4294901760
    %v4949 = vsub.f32 %v237, %v4948
    %v4950 = vand.u32 %v4949, 4294901760
    %v4951 = vsub.f32 %v4949, %v4950
    %v4952 = vand.u32 %v4951, 4294901760
    %4953 = vmatpush1.msra.mxu0 %v4952
    %4954 = vmatprep.subr.mxu0 0.0
    %v4955 = vand.u32 %v238, 4294901760
    %v4956 = vsub.f32 %v238, %v4955
    %v4957 = vand.u32 %v4956, 4294901760
    %v4958 = vsub.f32 %v4956, %v4957
    %v4959 = vand.u32 %v4958, 4294901760
    %4960 = vmatpush1.msra.mxu0 %v4959
    %4961 = vmatprep.subr.mxu0 0.0
    %v4962 = vand.u32 %v239, 4294901760
    %v4963 = vsub.f32 %v239, %v4962
    %v4964 = vand.u32 %v4963, 4294901760
    %v4965 = vsub.f32 %v4963, %v4964
    %v4966 = vand.u32 %v4965, 4294901760
    %4967 = vmatpush1.msra.mxu0 %v4966
    %4968 = vmatprep.subr.mxu0 0.0
    %v4969 = vand.u32 %v240, 4294901760
    %v4970 = vsub.f32 %v240, %v4969
    %v4971 = vand.u32 %v4970, 4294901760
    %v4972 = vsub.f32 %v4970, %v4971
    %v4973 = vand.u32 %v4972, 4294901760
    %4974 = vmatpush1.msra.mxu0 %v4973
    %v4975 = vand.u32 %v318, 4294901760
    %4976 = vmatprep.mubr.f32.mxu0 %v4975
    %v4977 = vand.u32 %v46, 4294901760
    %4978 = vmatmul.mubr.f32.gmra.mrb[0].mxu0 %v4977
    %v4979 = vpop.f32.mrb[0].mxu0
    %v4980 = vadd.f32 %v4748, %v4979
    %v4981 = vpop.f32.mrb[0].mxu0
    %4982 = vdwg.mxu0
    %4983 = vmatprep.subr.mxu0 0.0
    %v4984 = vand.u32 %v209, 4294901760
    %v4985 = vsub.f32 %v209, %v4984
    %4986 = vmatpush1.msra.mxu0 %v4985
    %4987 = vmatprep.subr.mxu0 0.0
    %v4988 = vand.u32 %v210, 4294901760
    %v4989 = vsub.f32 %v210, %v4988
    %4990 = vmatpush1.msra.mxu0 %v4989
    %4991 = vmatprep.subr.mxu0 0.0
    %v4992 = vand.u32 %v211, 4294901760
    %v4993 = vsub.f32 %v211, %v4992
    %4994 = vmatpush1.msra.mxu0 %v4993
    %4995 = vmatprep.subr.mxu0 0.0
    %v4996 = vand.u32 %v212, 4294901760
    %v4997 = vsub.f32 %v212, %v4996
    %4998 = vmatpush1.msra.mxu0 %v4997
    %4999 = vmatprep.subr.mxu0 0.0
    %v5000 = vand.u32 %v213, 4294901760
    %v5001 = vsub.f32 %v213, %v5000
    %5002 = vmatpush1.msra.mxu0 %v5001
    %5003 = vmatprep.subr.mxu0 0.0
    %v5004 = vand.u32 %v214, 4294901760
    %v5005 = vsub.f32 %v214, %v5004
    %5006 = vmatpush1.msra.mxu0 %v5005
    %5007 = vmatprep.subr.mxu0 0.0
    %v5008 = vand.u32 %v215, 4294901760
    %v5009 = vsub.f32 %v215, %v5008
    %5010 = vmatpush1.msra.mxu0 %v5009
    %5011 = vmatprep.subr.mxu0 0.0
    %v5012 = vand.u32 %v216, 4294901760
    %v5013 = vsub.f32 %v216, %v5012
    %5014 = vmatpush1.msra.mxu0 %v5013
    %5015 = vmatprep.subr.mxu0 0.0
    %v5016 = vand.u32 %v217, 4294901760
    %v5017 = vsub.f32 %v217, %v5016
    %5018 = vmatpush1.msra.mxu0 %v5017
    %5019 = vmatprep.subr.mxu0 0.0
    %v5020 = vand.u32 %v218, 4294901760
    %v5021 = vsub.f32 %v218, %v5020
    %5022 = vmatpush1.msra.mxu0 %v5021
    %5023 = vmatprep.subr.mxu0 0.0
    %v5024 = vand.u32 %v219, 4294901760
    %v5025 = vsub.f32 %v219, %v5024
    %5026 = vmatpush1.msra.mxu0 %v5025
    %5027 = vmatprep.subr.mxu0 0.0
    %v5028 = vand.u32 %v220, 4294901760
    %v5029 = vsub.f32 %v220, %v5028
    %5030 = vmatpush1.msra.mxu0 %v5029
    %5031 = vmatprep.subr.mxu0 0.0
    %v5032 = vand.u32 %v221, 4294901760
    %v5033 = vsub.f32 %v221, %v5032
    %5034 = vmatpush1.msra.mxu0 %v5033
    %5035 = vmatprep.subr.mxu0 0.0
    %v5036 = vand.u32 %v222, 4294901760
    %v5037 = vsub.f32 %v222, %v5036
    %5038 = vmatpush1.msra.mxu0 %v5037
    %5039 = vmatprep.subr.mxu0 0.0
    %v5040 = vand.u32 %v223, 4294901760
    %v5041 = vsub.f32 %v223, %v5040
    %5042 = vmatpush1.msra.mxu0 %v5041
    %5043 = vmatprep.subr.mxu0 0.0
    %v5044 = vand.u32 %v224, 4294901760
    %v5045 = vsub.f32 %v224, %v5044
    %5046 = vmatpush1.msra.mxu0 %v5045
    %5047 = vmatprep.subr.mxu0 0.0
    %v5048 = vand.u32 %v225, 4294901760
    %v5049 = vsub.f32 %v225, %v5048
    %5050 = vmatpush1.msra.mxu0 %v5049
    %5051 = vmatprep.subr.mxu0 0.0
    %v5052 = vand.u32 %v226, 4294901760
    %v5053 = vsub.f32 %v226, %v5052
    %5054 = vmatpush1.msra.mxu0 %v5053
    %5055 = vmatprep.subr.mxu0 0.0
    %v5056 = vand.u32 %v227, 4294901760
    %v5057 = vsub.f32 %v227, %v5056
    %5058 = vmatpush1.msra.mxu0 %v5057
    %5059 = vmatprep.subr.mxu0 0.0
    %v5060 = vand.u32 %v228, 4294901760
    %v5061 = vsub.f32 %v228, %v5060
    %5062 = vmatpush1.msra.mxu0 %v5061
    %5063 = vmatprep.subr.mxu0 0.0
    %v5064 = vand.u32 %v229, 4294901760
    %v5065 = vsub.f32 %v229, %v5064
    %5066 = vmatpush1.msra.mxu0 %v5065
    %5067 = vmatprep.subr.mxu0 0.0
    %v5068 = vand.u32 %v230, 4294901760
    %v5069 = vsub.f32 %v230, %v5068
    %5070 = vmatpush1.msra.mxu0 %v5069
    %5071 = vmatprep.subr.mxu0 0.0
    %v5072 = vand.u32 %v231, 4294901760
    %v5073 = vsub.f32 %v231, %v5072
    %5074 = vmatpush1.msra.mxu0 %v5073
    %5075 = vmatprep.subr.mxu0 0.0
    %v5076 = vand.u32 %v232, 4294901760
    %v5077 = vsub.f32 %v232, %v5076
    %5078 = vmatpush1.msra.mxu0 %v5077
    %5079 = vmatprep.subr.mxu0 0.0
    %v5080 = vand.u32 %v233, 4294901760
    %v5081 = vsub.f32 %v233, %v5080
    %5082 = vmatpush1.msra.mxu0 %v5081
    %5083 = vmatprep.subr.mxu0 0.0
    %v5084 = vand.u32 %v234, 4294901760
    %v5085 = vsub.f32 %v234, %v5084
    %5086 = vmatpush1.msra.mxu0 %v5085
    %5087 = vmatprep.subr.mxu0 0.0
    %v5088 = vand.u32 %v235, 4294901760
    %v5089 = vsub.f32 %v235, %v5088
    %5090 = vmatpush1.msra.mxu0 %v5089
    %5091 = vmatprep.subr.mxu0 0.0
    %v5092 = vand.u32 %v236, 4294901760
    %v5093 = vsub.f32 %v236, %v5092
    %5094 = vmatpush1.msra.mxu0 %v5093
    %5095 = vmatprep.subr.mxu0 0.0
    %v5096 = vand.u32 %v237, 4294901760
    %v5097 = vsub.f32 %v237, %v5096
    %5098 = vmatpush1.msra.mxu0 %v5097
    %5099 = vmatprep.subr.mxu0 0.0
    %v5100 = vand.u32 %v238, 4294901760
    %v5101 = vsub.f32 %v238, %v5100
    %5102 = vmatpush1.msra.mxu0 %v5101
    %5103 = vmatprep.subr.mxu0 0.0
    %v5104 = vand.u32 %v239, 4294901760
    %v5105 = vsub.f32 %v239, %v5104
    %5106 = vmatpush1.msra.mxu0 %v5105
    %5107 = vmatprep.subr.mxu0 0.0
    %v5108 = vand.u32 %v240, 4294901760
    %v5109 = vsub.f32 %v240, %v5108
    %5110 = vmatpush1.msra.mxu0 %v5109
    %v5111 = vand.u32 %v318, 4294901760
    %v5112 = vsub.f32 %v318, %v5111
    %5113 = vmatprep.mubr.f32.mxu0 %v5112
    %v5114 = vand.u32 %v46, 4294901760
    %v5115 = vsub.f32 %v46, %v5114
    %5116 = vmatmul.mubr.f32.gmra.mrb[0].mxu0 %v5115
    %v5117 = vpop.f32.mrb[0].mxu0
    %v5118 = vadd.f32 %v4980, %v5117
    %v5119 = vpop.f32.mrb[0].mxu0
    %5120 = vdwg.mxu0
    %5121 = vmatprep.subr.mxu0 0.0
    %v5122 = vand.u32 %v209, 4294901760
    %5123 = vmatpush1.msra.mxu0 %v5122
    %5124 = vmatprep.subr.mxu0 0.0
    %v5125 = vand.u32 %v210, 4294901760
    %5126 = vmatpush1.msra.mxu0 %v5125
    %5127 = vmatprep.subr.mxu0 0.0
    %v5128 = vand.u32 %v211, 4294901760
    %5129 = vmatpush1.msra.mxu0 %v5128
    %5130 = vmatprep.subr.mxu0 0.0
    %v5131 = vand.u32 %v212, 4294901760
    %5132 = vmatpush1.msra.mxu0 %v5131
    %5133 = vmatprep.subr.mxu0 0.0
    %v5134 = vand.u32 %v213, 4294901760
    %5135 = vmatpush1.msra.mxu0 %v5134
    %5136 = vmatprep.subr.mxu0 0.0
    %v5137 = vand.u32 %v214, 4294901760
    %5138 = vmatpush1.msra.mxu0 %v5137
    %5139 = vmatprep.subr.mxu0 0.0
    %v5140 = vand.u32 %v215, 4294901760
    %5141 = vmatpush1.msra.mxu0 %v5140
    %5142 = vmatprep.subr.mxu0 0.0
    %v5143 = vand.u32 %v216, 4294901760
    %5144 = vmatpush1.msra.mxu0 %v5143
    %5145 = vmatprep.subr.mxu0 0.0
    %v5146 = vand.u32 %v217, 4294901760
    %5147 = vmatpush1.msra.mxu0 %v5146
    %5148 = vmatprep.subr.mxu0 0.0
    %v5149 = vand.u32 %v218, 4294901760
    %5150 = vmatpush1.msra.mxu0 %v5149
    %5151 = vmatprep.subr.mxu0 0.0
    %v5152 = vand.u32 %v219, 4294901760
    %5153 = vmatpush1.msra.mxu0 %v5152
    %5154 = vmatprep.subr.mxu0 0.0
    %v5155 = vand.u32 %v220, 4294901760
    %5156 = vmatpush1.msra.mxu0 %v5155
    %5157 = vmatprep.subr.mxu0 0.0
    %v5158 = vand.u32 %v221, 4294901760
    %5159 = vmatpush1.msra.mxu0 %v5158
    %5160 = vmatprep.subr.mxu0 0.0
    %v5161 = vand.u32 %v222, 4294901760
    %5162 = vmatpush1.msra.mxu0 %v5161
    %5163 = vmatprep.subr.mxu0 0.0
    %v5164 = vand.u32 %v223, 4294901760
    %5165 = vmatpush1.msra.mxu0 %v5164
    %5166 = vmatprep.subr.mxu0 0.0
    %v5167 = vand.u32 %v224, 4294901760
    %5168 = vmatpush1.msra.mxu0 %v5167
    %5169 = vmatprep.subr.mxu0 0.0
    %v5170 = vand.u32 %v225, 4294901760
    %5171 = vmatpush1.msra.mxu0 %v5170
    %5172 = vmatprep.subr.mxu0 0.0
    %v5173 = vand.u32 %v226, 4294901760
    %5174 = vmatpush1.msra.mxu0 %v5173
    %5175 = vmatprep.subr.mxu0 0.0
    %v5176 = vand.u32 %v227, 4294901760
    %5177 = vmatpush1.msra.mxu0 %v5176
    %5178 = vmatprep.subr.mxu0 0.0
    %v5179 = vand.u32 %v228, 4294901760
    %5180 = vmatpush1.msra.mxu0 %v5179
    %5181 = vmatprep.subr.mxu0 0.0
    %v5182 = vand.u32 %v229, 4294901760
    %5183 = vmatpush1.msra.mxu0 %v5182
    %5184 = vmatprep.subr.mxu0 0.0
    %v5185 = vand.u32 %v230, 4294901760
    %5186 = vmatpush1.msra.mxu0 %v5185
    %5187 = vmatprep.subr.mxu0 0.0
    %v5188 = vand.u32 %v231, 4294901760
    %5189 = vmatpush1.msra.mxu0 %v5188
    %5190 = vmatprep.subr.mxu0 0.0
    %v5191 = vand.u32 %v232, 4294901760
    %5192 = vmatpush1.msra.mxu0 %v5191
    %5193 = vmatprep.subr.mxu0 0.0
    %v5194 = vand.u32 %v233, 4294901760
    %5195 = vmatpush1.msra.mxu0 %v5194
    %5196 = vmatprep.subr.mxu0 0.0
    %v5197 = vand.u32 %v234, 4294901760
    %5198 = vmatpush1.msra.mxu0 %v5197
    %5199 = vmatprep.subr.mxu0 0.0
    %v5200 = vand.u32 %v235, 4294901760
    %5201 = vmatpush1.msra.mxu0 %v5200
    %5202 = vmatprep.subr.mxu0 0.0
    %v5203 = vand.u32 %v236, 4294901760
    %5204 = vmatpush1.msra.mxu0 %v5203
    %5205 = vmatprep.subr.mxu0 0.0
    %v5206 = vand.u32 %v237, 4294901760
    %5207 = vmatpush1.msra.mxu0 %v5206
    %5208 = vmatprep.subr.mxu0 0.0
    %v5209 = vand.u32 %v238, 4294901760
    %5210 = vmatpush1.msra.mxu0 %v5209
    %5211 = vmatprep.subr.mxu0 0.0
    %v5212 = vand.u32 %v239, 4294901760
    %5213 = vmatpush1.msra.mxu0 %v5212
    %5214 = vmatprep.subr.mxu0 0.0
    %v5215 = vand.u32 %v240, 4294901760
    %5216 = vmatpush1.msra.mxu0 %v5215
    %v5217 = vand.u32 %v318, 4294901760
    %v5218 = vsub.f32 %v318, %v5217
    %v5219 = vand.u32 %v5218, 4294901760
    %5220 = vmatprep.mubr.f32.mxu0 %v5219
    %v5221 = vand.u32 %v46, 4294901760
    %v5222 = vsub.f32 %v46, %v5221
    %v5223 = vand.u32 %v5222, 4294901760
    %5224 = vmatmul.mubr.f32.gmra.mrb[0].mxu0 %v5223
    %v5225 = vpop.f32.mrb[0].mxu0
    %v5226 = vadd.f32 %v5118, %v5225
    %v5227 = vpop.f32.mrb[0].mxu0
    %5228 = vdwg.mxu0
    %5229 = vmatprep.subr.mxu0 0.0
    %v5230 = vand.u32 %v209, 4294901760
    %v5231 = vsub.f32 %v209, %v5230
    %v5232 = vand.u32 %v5231, 4294901760
    %5233 = vmatpush1.msra.mxu0 %v5232
    %5234 = vmatprep.subr.mxu0 0.0
    %v5235 = vand.u32 %v210, 4294901760
    %v5236 = vsub.f32 %v210, %v5235
    %v5237 = vand.u32 %v5236, 4294901760
    %5238 = vmatpush1.msra.mxu0 %v5237
    %5239 = vmatprep.subr.mxu0 0.0
    %v5240 = vand.u32 %v211, 4294901760
    %v5241 = vsub.f32 %v211, %v5240
    %v5242 = vand.u32 %v5241, 4294901760
    %5243 = vmatpush1.msra.mxu0 %v5242
    %5244 = vmatprep.subr.mxu0 0.0
    %v5245 = vand.u32 %v212, 4294901760
    %v5246 = vsub.f32 %v212, %v5245
    %v5247 = vand.u32 %v5246, 4294901760
    %5248 = vmatpush1.msra.mxu0 %v5247
    %5249 = vmatprep.subr.mxu0 0.0
    %v5250 = vand.u32 %v213, 4294901760
    %v5251 = vsub.f32 %v213, %v5250
    %v5252 = vand.u32 %v5251, 4294901760
    %5253 = vmatpush1.msra.mxu0 %v5252
    %5254 = vmatprep.subr.mxu0 0.0
    %v5255 = vand.u32 %v214, 4294901760
    %v5256 = vsub.f32 %v214, %v5255
    %v5257 = vand.u32 %v5256, 4294901760
    %5258 = vmatpush1.msra.mxu0 %v5257
    %5259 = vmatprep.subr.mxu0 0.0
    %v5260 = vand.u32 %v215, 4294901760
    %v5261 = vsub.f32 %v215, %v5260
    %v5262 = vand.u32 %v5261, 4294901760
    %5263 = vmatpush1.msra.mxu0 %v5262
    %5264 = vmatprep.subr.mxu0 0.0
    %v5265 = vand.u32 %v216, 4294901760
    %v5266 = vsub.f32 %v216, %v5265
    %v5267 = vand.u32 %v5266, 4294901760
    %5268 = vmatpush1.msra.mxu0 %v5267
    %5269 = vmatprep.subr.mxu0 0.0
    %v5270 = vand.u32 %v217, 4294901760
    %v5271 = vsub.f32 %v217, %v5270
    %v5272 = vand.u32 %v5271, 4294901760
    %5273 = vmatpush1.msra.mxu0 %v5272
    %5274 = vmatprep.subr.mxu0 0.0
    %v5275 = vand.u32 %v218, 4294901760
    %v5276 = vsub.f32 %v218, %v5275
    %v5277 = vand.u32 %v5276, 4294901760
    %5278 = vmatpush1.msra.mxu0 %v5277
    %5279 = vmatprep.subr.mxu0 0.0
    %v5280 = vand.u32 %v219, 4294901760
    %v5281 = vsub.f32 %v219, %v5280
    %v5282 = vand.u32 %v5281, 4294901760
    %5283 = vmatpush1.msra.mxu0 %v5282
    %5284 = vmatprep.subr.mxu0 0.0
    %v5285 = vand.u32 %v220, 4294901760
    %v5286 = vsub.f32 %v220, %v5285
    %v5287 = vand.u32 %v5286, 4294901760
    %5288 = vmatpush1.msra.mxu0 %v5287
    %5289 = vmatprep.subr.mxu0 0.0
    %v5290 = vand.u32 %v221, 4294901760
    %v5291 = vsub.f32 %v221, %v5290
    %v5292 = vand.u32 %v5291, 4294901760
    %5293 = vmatpush1.msra.mxu0 %v5292
    %5294 = vmatprep.subr.mxu0 0.0
    %v5295 = vand.u32 %v222, 4294901760
    %v5296 = vsub.f32 %v222, %v5295
    %v5297 = vand.u32 %v5296, 4294901760
    %5298 = vmatpush1.msra.mxu0 %v5297
    %5299 = vmatprep.subr.mxu0 0.0
    %v5300 = vand.u32 %v223, 4294901760
    %v5301 = vsub.f32 %v223, %v5300
    %v5302 = vand.u32 %v5301, 4294901760
    %5303 = vmatpush1.msra.mxu0 %v5302
    %5304 = vmatprep.subr.mxu0 0.0
    %v5305 = vand.u32 %v224, 4294901760
    %v5306 = vsub.f32 %v224, %v5305
    %v5307 = vand.u32 %v5306, 4294901760
    %5308 = vmatpush1.msra.mxu0 %v5307
    %5309 = vmatprep.subr.mxu0 0.0
    %v5310 = vand.u32 %v225, 4294901760
    %v5311 = vsub.f32 %v225, %v5310
    %v5312 = vand.u32 %v5311, 4294901760
    %5313 = vmatpush1.msra.mxu0 %v5312
    %5314 = vmatprep.subr.mxu0 0.0
    %v5315 = vand.u32 %v226, 4294901760
    %v5316 = vsub.f32 %v226, %v5315
    %v5317 = vand.u32 %v5316, 4294901760
    %5318 = vmatpush1.msra.mxu0 %v5317
    %5319 = vmatprep.subr.mxu0 0.0
    %v5320 = vand.u32 %v227, 4294901760
    %v5321 = vsub.f32 %v227, %v5320
    %v5322 = vand.u32 %v5321, 4294901760
    %5323 = vmatpush1.msra.mxu0 %v5322
    %5324 = vmatprep.subr.mxu0 0.0
    %v5325 = vand.u32 %v228, 4294901760
    %v5326 = vsub.f32 %v228, %v5325
    %v5327 = vand.u32 %v5326, 4294901760
    %5328 = vmatpush1.msra.mxu0 %v5327
    %5329 = vmatprep.subr.mxu0 0.0
    %v5330 = vand.u32 %v229, 4294901760
    %v5331 = vsub.f32 %v229, %v5330
    %v5332 = vand.u32 %v5331, 4294901760
    %5333 = vmatpush1.msra.mxu0 %v5332
    %5334 = vmatprep.subr.mxu0 0.0
    %v5335 = vand.u32 %v230, 4294901760
    %v5336 = vsub.f32 %v230, %v5335
    %v5337 = vand.u32 %v5336, 4294901760
    %5338 = vmatpush1.msra.mxu0 %v5337
    %5339 = vmatprep.subr.mxu0 0.0
    %v5340 = vand.u32 %v231, 4294901760
    %v5341 = vsub.f32 %v231, %v5340
    %v5342 = vand.u32 %v5341, 4294901760
    %5343 = vmatpush1.msra.mxu0 %v5342
    %5344 = vmatprep.subr.mxu0 0.0
    %v5345 = vand.u32 %v232, 4294901760
    %v5346 = vsub.f32 %v232, %v5345
    %v5347 = vand.u32 %v5346, 4294901760
    %5348 = vmatpush1.msra.mxu0 %v5347
    %5349 = vmatprep.subr.mxu0 0.0
    %v5350 = vand.u32 %v233, 4294901760
    %v5351 = vsub.f32 %v233, %v5350
    %v5352 = vand.u32 %v5351, 4294901760
    %5353 = vmatpush1.msra.mxu0 %v5352
    %5354 = vmatprep.subr.mxu0 0.0
    %v5355 = vand.u32 %v234, 4294901760
    %v5356 = vsub.f32 %v234, %v5355
    %v5357 = vand.u32 %v5356, 4294901760
    %5358 = vmatpush1.msra.mxu0 %v5357
    %5359 = vmatprep.subr.mxu0 0.0
    %v5360 = vand.u32 %v235, 4294901760
    %v5361 = vsub.f32 %v235, %v5360
    %v5362 = vand.u32 %v5361, 4294901760
    %5363 = vmatpush1.msra.mxu0 %v5362
    %5364 = vmatprep.subr.mxu0 0.0
    %v5365 = vand.u32 %v236, 4294901760
    %v5366 = vsub.f32 %v236, %v5365
    %v5367 = vand.u32 %v5366, 4294901760
    %5368 = vmatpush1.msra.mxu0 %v5367
    %5369 = vmatprep.subr.mxu0 0.0
    %v5370 = vand.u32 %v237, 4294901760
    %v5371 = vsub.f32 %v237, %v5370
    %v5372 = vand.u32 %v5371, 4294901760
    %5373 = vmatpush1.msra.mxu0 %v5372
    %5374 = vmatprep.subr.mxu0 0.0
    %v5375 = vand.u32 %v238, 4294901760
    %v5376 = vsub.f32 %v238, %v5375
    %v5377 = vand.u32 %v5376, 4294901760
    %5378 = vmatpush1.msra.mxu0 %v5377
    %5379 = vmatprep.subr.mxu0 0.0
    %v5380 = vand.u32 %v239, 4294901760
    %v5381 = vsub.f32 %v239, %v5380
    %v5382 = vand.u32 %v5381, 4294901760
    %5383 = vmatpush1.msra.mxu0 %v5382
    %5384 = vmatprep.subr.mxu0 0.0
    %v5385 = vand.u32 %v240, 4294901760
    %v5386 = vsub.f32 %v240, %v5385
    %v5387 = vand.u32 %v5386, 4294901760
    %5388 = vmatpush1.msra.mxu0 %v5387
    %v5389 = vand.u32 %v318, 4294901760
    %5390 = vmatprep.mubr.f32.mxu0 %v5389
    %v5391 = vand.u32 %v46, 4294901760
    %5392 = vmatmul.mubr.f32.gmra.mrb[0].mxu0 %v5391
    %v5393 = vpop.f32.mrb[0].mxu0
    %v5394 = vadd.f32 %v5226, %v5393
    %v5395 = vpop.f32.mrb[0].mxu0
    %5396 = vdwg.mxu0
    %5397 = vmatprep.subr.mxu0 0.0
    %v5398 = vand.u32 %v209, 4294901760
    %5399 = vmatpush1.msra.mxu0 %v5398
    %5400 = vmatprep.subr.mxu0 0.0
    %v5401 = vand.u32 %v210, 4294901760
    %5402 = vmatpush1.msra.mxu0 %v5401
    %5403 = vmatprep.subr.mxu0 0.0
    %v5404 = vand.u32 %v211, 4294901760
    %5405 = vmatpush1.msra.mxu0 %v5404
    %5406 = vmatprep.subr.mxu0 0.0
    %v5407 = vand.u32 %v212, 4294901760
    %5408 = vmatpush1.msra.mxu0 %v5407
    %5409 = vmatprep.subr.mxu0 0.0
    %v5410 = vand.u32 %v213, 4294901760
    %5411 = vmatpush1.msra.mxu0 %v5410
    %5412 = vmatprep.subr.mxu0 0.0
    %v5413 = vand.u32 %v214, 4294901760
    %5414 = vmatpush1.msra.mxu0 %v5413
    %5415 = vmatprep.subr.mxu0 0.0
    %v5416 = vand.u32 %v215, 4294901760
    %5417 = vmatpush1.msra.mxu0 %v5416
    %5418 = vmatprep.subr.mxu0 0.0
    %v5419 = vand.u32 %v216, 4294901760
    %5420 = vmatpush1.msra.mxu0 %v5419
    %5421 = vmatprep.subr.mxu0 0.0
    %v5422 = vand.u32 %v217, 4294901760
    %5423 = vmatpush1.msra.mxu0 %v5422
    %5424 = vmatprep.subr.mxu0 0.0
    %v5425 = vand.u32 %v218, 4294901760
    %5426 = vmatpush1.msra.mxu0 %v5425
    %5427 = vmatprep.subr.mxu0 0.0
    %v5428 = vand.u32 %v219, 4294901760
    %5429 = vmatpush1.msra.mxu0 %v5428
    %5430 = vmatprep.subr.mxu0 0.0
    %v5431 = vand.u32 %v220, 4294901760
    %5432 = vmatpush1.msra.mxu0 %v5431
    %5433 = vmatprep.subr.mxu0 0.0
    %v5434 = vand.u32 %v221, 4294901760
    %5435 = vmatpush1.msra.mxu0 %v5434
    %5436 = vmatprep.subr.mxu0 0.0
    %v5437 = vand.u32 %v222, 4294901760
    %5438 = vmatpush1.msra.mxu0 %v5437
    %5439 = vmatprep.subr.mxu0 0.0
    %v5440 = vand.u32 %v223, 4294901760
    %5441 = vmatpush1.msra.mxu0 %v5440
    %5442 = vmatprep.subr.mxu0 0.0
    %v5443 = vand.u32 %v224, 4294901760
    %5444 = vmatpush1.msra.mxu0 %v5443
    %5445 = vmatprep.subr.mxu0 0.0
    %v5446 = vand.u32 %v225, 4294901760
    %5447 = vmatpush1.msra.mxu0 %v5446
    %5448 = vmatprep.subr.mxu0 0.0
    %v5449 = vand.u32 %v226, 4294901760
    %5450 = vmatpush1.msra.mxu0 %v5449
    %5451 = vmatprep.subr.mxu0 0.0
    %v5452 = vand.u32 %v227, 4294901760
    %5453 = vmatpush1.msra.mxu0 %v5452
    %5454 = vmatprep.subr.mxu0 0.0
    %v5455 = vand.u32 %v228, 4294901760
    %5456 = vmatpush1.msra.mxu0 %v5455
    %5457 = vmatprep.subr.mxu0 0.0
    %v5458 = vand.u32 %v229, 4294901760
    %5459 = vmatpush1.msra.mxu0 %v5458
    %5460 = vmatprep.subr.mxu0 0.0
    %v5461 = vand.u32 %v230, 4294901760
    %5462 = vmatpush1.msra.mxu0 %v5461
    %5463 = vmatprep.subr.mxu0 0.0
    %v5464 = vand.u32 %v231, 4294901760
    %5465 = vmatpush1.msra.mxu0 %v5464
    %5466 = vmatprep.subr.mxu0 0.0
    %v5467 = vand.u32 %v232, 4294901760
    %5468 = vmatpush1.msra.mxu0 %v5467
    %5469 = vmatprep.subr.mxu0 0.0
    %v5470 = vand.u32 %v233, 4294901760
    %5471 = vmatpush1.msra.mxu0 %v5470
    %5472 = vmatprep.subr.mxu0 0.0
    %v5473 = vand.u32 %v234, 4294901760
    %5474 = vmatpush1.msra.mxu0 %v5473
    %5475 = vmatprep.subr.mxu0 0.0
    %v5476 = vand.u32 %v235, 4294901760
    %5477 = vmatpush1.msra.mxu0 %v5476
    %5478 = vmatprep.subr.mxu0 0.0
    %v5479 = vand.u32 %v236, 4294901760
    %5480 = vmatpush1.msra.mxu0 %v5479
    %5481 = vmatprep.subr.mxu0 0.0
    %v5482 = vand.u32 %v237, 4294901760
    %5483 = vmatpush1.msra.mxu0 %v5482
    %5484 = vmatprep.subr.mxu0 0.0
    %v5485 = vand.u32 %v238, 4294901760
    %5486 = vmatpush1.msra.mxu0 %v5485
    %5487 = vmatprep.subr.mxu0 0.0
    %v5488 = vand.u32 %v239, 4294901760
    %5489 = vmatpush1.msra.mxu0 %v5488
    %5490 = vmatprep.subr.mxu0 0.0
    %v5491 = vand.u32 %v240, 4294901760
    %5492 = vmatpush1.msra.mxu0 %v5491
    %v5493 = vand.u32 %v318, 4294901760
    %5494 = vmatprep.mubr.f32.mxu0 %v5493
    %v5495 = vand.u32 %v46, 4294901760
    %5496 = vmatmul.mubr.f32.gmra.mrb[0].mxu0 %v5495
    %v5497 = vpop.f32.mrb[0].mxu0
    %v5498 = vadd.f32 %v5394, %v5497
    %v5499 = vpop.f32.mrb[0].mxu0
    %5500 = vdwg.mxu0
    %5501 = vmatprep.subr.mxu0 0.0
    %v5502 = vand.u32 %v241, 4294901760
    %5503 = vmatpush1.msra.mxu0 %v5502
    %5504 = vmatprep.subr.mxu0 0.0
    %v5505 = vand.u32 %v242, 4294901760
    %5506 = vmatpush1.msra.mxu0 %v5505
    %5507 = vmatprep.subr.mxu0 0.0
    %v5508 = vand.u32 %v243, 4294901760
    %5509 = vmatpush1.msra.mxu0 %v5508
    %5510 = vmatprep.subr.mxu0 0.0
    %v5511 = vand.u32 %v244, 4294901760
    %5512 = vmatpush1.msra.mxu0 %v5511
    %5513 = vmatprep.subr.mxu0 0.0
    %v5514 = vand.u32 %v245, 4294901760
    %5515 = vmatpush1.msra.mxu0 %v5514
    %5516 = vmatprep.subr.mxu0 0.0
    %v5517 = vand.u32 %v246, 4294901760
    %5518 = vmatpush1.msra.mxu0 %v5517
    %5519 = vmatprep.subr.mxu0 0.0
    %v5520 = vand.u32 %v247, 4294901760
    %5521 = vmatpush1.msra.mxu0 %v5520
    %5522 = vmatprep.subr.mxu0 0.0
    %v5523 = vand.u32 %v248, 4294901760
    %5524 = vmatpush1.msra.mxu0 %v5523
    %5525 = vmatprep.subr.mxu0 0.0
    %v5526 = vand.u32 %v249, 4294901760
    %5527 = vmatpush1.msra.mxu0 %v5526
    %5528 = vmatprep.subr.mxu0 0.0
    %v5529 = vand.u32 %v250, 4294901760
    %5530 = vmatpush1.msra.mxu0 %v5529
    %5531 = vmatprep.subr.mxu0 0.0
    %v5532 = vand.u32 %v251, 4294901760
    %5533 = vmatpush1.msra.mxu0 %v5532
    %5534 = vmatprep.subr.mxu0 0.0
    %v5535 = vand.u32 %v252, 4294901760
    %5536 = vmatpush1.msra.mxu0 %v5535
    %5537 = vmatprep.subr.mxu0 0.0
    %v5538 = vand.u32 %v253, 4294901760
    %5539 = vmatpush1.msra.mxu0 %v5538
    %5540 = vmatprep.subr.mxu0 0.0
    %v5541 = vand.u32 %v254, 4294901760
    %5542 = vmatpush1.msra.mxu0 %v5541
    %5543 = vmatprep.subr.mxu0 0.0
    %v5544 = vand.u32 %v255, 4294901760
    %5545 = vmatpush1.msra.mxu0 %v5544
    %5546 = vmatprep.subr.mxu0 0.0
    %v5547 = vand.u32 %v256, 4294901760
    %5548 = vmatpush1.msra.mxu0 %v5547
    %5549 = vmatprep.subr.mxu0 0.0
    %v5550 = vand.u32 %v257, 4294901760
    %5551 = vmatpush1.msra.mxu0 %v5550
    %5552 = vmatprep.subr.mxu0 0.0
    %v5553 = vand.u32 %v258, 4294901760
    %5554 = vmatpush1.msra.mxu0 %v5553
    %5555 = vmatprep.subr.mxu0 0.0
    %v5556 = vand.u32 %v259, 4294901760
    %5557 = vmatpush1.msra.mxu0 %v5556
    %5558 = vmatprep.subr.mxu0 0.0
    %v5559 = vand.u32 %v260, 4294901760
    %5560 = vmatpush1.msra.mxu0 %v5559
    %5561 = vmatprep.subr.mxu0 0.0
    %v5562 = vand.u32 %v261, 4294901760
    %5563 = vmatpush1.msra.mxu0 %v5562
    %5564 = vmatprep.subr.mxu0 0.0
    %v5565 = vand.u32 %v262, 4294901760
    %5566 = vmatpush1.msra.mxu0 %v5565
    %5567 = vmatprep.subr.mxu0 0.0
    %v5568 = vand.u32 %v263, 4294901760
    %5569 = vmatpush1.msra.mxu0 %v5568
    %5570 = vmatprep.subr.mxu0 0.0
    %v5571 = vand.u32 %v264, 4294901760
    %5572 = vmatpush1.msra.mxu0 %v5571
    %5573 = vmatprep.subr.mxu0 0.0
    %v5574 = vand.u32 %v265, 4294901760
    %5575 = vmatpush1.msra.mxu0 %v5574
    %5576 = vmatprep.subr.mxu0 0.0
    %v5577 = vand.u32 %v266, 4294901760
    %5578 = vmatpush1.msra.mxu0 %v5577
    %5579 = vmatprep.subr.mxu0 0.0
    %v5580 = vand.u32 %v267, 4294901760
    %5581 = vmatpush1.msra.mxu0 %v5580
    %5582 = vmatprep.subr.mxu0 0.0
    %v5583 = vand.u32 %v268, 4294901760
    %5584 = vmatpush1.msra.mxu0 %v5583
    %5585 = vmatprep.subr.mxu0 0.0
    %v5586 = vand.u32 %v269, 4294901760
    %5587 = vmatpush1.msra.mxu0 %v5586
    %5588 = vmatprep.subr.mxu0 0.0
    %v5589 = vand.u32 %v270, 4294901760
    %5590 = vmatpush1.msra.mxu0 %v5589
    %5591 = vmatprep.subr.mxu0 0.0
    %v5592 = vand.u32 %v271, 4294901760
    %5593 = vmatpush1.msra.mxu0 %v5592
    %5594 = vmatprep.subr.mxu0 0.0
    %v5595 = vand.u32 %v272, 4294901760
    %5596 = vmatpush1.msra.mxu0 %v5595
    %v5597 = vand.u32 %v319, 4294901760
    %v5598 = vsub.f32 %v319, %v5597
    %v5599 = vand.u32 %v5598, 4294901760
    %v5600 = vsub.f32 %v5598, %v5599
    %v5601 = vand.u32 %v5600, 4294901760
    %5602 = vmatprep.mubr.f32.mxu0 %v5601
    %v5603 = vand.u32 %v47, 4294901760
    %v5604 = vsub.f32 %v47, %v5603
    %v5605 = vand.u32 %v5604, 4294901760
    %v5606 = vsub.f32 %v5604, %v5605
    %v5607 = vand.u32 %v5606, 4294901760
    %5608 = vmatmul.mubr.f32.gmra.mrb[0].mxu0 %v5607
    %v5609 = vpop.f32.mrb[0].mxu0
    %v5610 = vadd.f32 %v5498, %v5609
    %v5611 = vpop.f32.mrb[0].mxu0
    %5612 = vdwg.mxu0
    %5613 = vmatprep.subr.mxu0 0.0
    %v5614 = vand.u32 %v241, 4294901760
    %v5615 = vsub.f32 %v241, %v5614
    %v5616 = vand.u32 %v5615, 4294901760
    %v5617 = vsub.f32 %v5615, %v5616
    %v5618 = vand.u32 %v5617, 4294901760
    %5619 = vmatpush1.msra.mxu0 %v5618
    %5620 = vmatprep.subr.mxu0 0.0
    %v5621 = vand.u32 %v242, 4294901760
    %v5622 = vsub.f32 %v242, %v5621
    %v5623 = vand.u32 %v5622, 4294901760
    %v5624 = vsub.f32 %v5622, %v5623
    %v5625 = vand.u32 %v5624, 4294901760
    %5626 = vmatpush1.msra.mxu0 %v5625
    %5627 = vmatprep.subr.mxu0 0.0
    %v5628 = vand.u32 %v243, 4294901760
    %v5629 = vsub.f32 %v243, %v5628
    %v5630 = vand.u32 %v5629, 4294901760
    %v5631 = vsub.f32 %v5629, %v5630
    %v5632 = vand.u32 %v5631, 4294901760
    %5633 = vmatpush1.msra.mxu0 %v5632
    %5634 = vmatprep.subr.mxu0 0.0
    %v5635 = vand.u32 %v244, 4294901760
    %v5636 = vsub.f32 %v244, %v5635
    %v5637 = vand.u32 %v5636, 4294901760
    %v5638 = vsub.f32 %v5636, %v5637
    %v5639 = vand.u32 %v5638, 4294901760
    %5640 = vmatpush1.msra.mxu0 %v5639
    %5641 = vmatprep.subr.mxu0 0.0
    %v5642 = vand.u32 %v245, 4294901760
    %v5643 = vsub.f32 %v245, %v5642
    %v5644 = vand.u32 %v5643, 4294901760
    %v5645 = vsub.f32 %v5643, %v5644
    %v5646 = vand.u32 %v5645, 4294901760
    %5647 = vmatpush1.msra.mxu0 %v5646
    %5648 = vmatprep.subr.mxu0 0.0
    %v5649 = vand.u32 %v246, 4294901760
    %v5650 = vsub.f32 %v246, %v5649
    %v5651 = vand.u32 %v5650, 4294901760
    %v5652 = vsub.f32 %v5650, %v5651
    %v5653 = vand.u32 %v5652, 4294901760
    %5654 = vmatpush1.msra.mxu0 %v5653
    %5655 = vmatprep.subr.mxu0 0.0
    %v5656 = vand.u32 %v247, 4294901760
    %v5657 = vsub.f32 %v247, %v5656
    %v5658 = vand.u32 %v5657, 4294901760
    %v5659 = vsub.f32 %v5657, %v5658
    %v5660 = vand.u32 %v5659, 4294901760
    %5661 = vmatpush1.msra.mxu0 %v5660
    %5662 = vmatprep.subr.mxu0 0.0
    %v5663 = vand.u32 %v248, 4294901760
    %v5664 = vsub.f32 %v248, %v5663
    %v5665 = vand.u32 %v5664, 4294901760
    %v5666 = vsub.f32 %v5664, %v5665
    %v5667 = vand.u32 %v5666, 4294901760
    %5668 = vmatpush1.msra.mxu0 %v5667
    %5669 = vmatprep.subr.mxu0 0.0
    %v5670 = vand.u32 %v249, 4294901760
    %v5671 = vsub.f32 %v249, %v5670
    %v5672 = vand.u32 %v5671, 4294901760
    %v5673 = vsub.f32 %v5671, %v5672
    %v5674 = vand.u32 %v5673, 4294901760
    %5675 = vmatpush1.msra.mxu0 %v5674
    %5676 = vmatprep.subr.mxu0 0.0
    %v5677 = vand.u32 %v250, 4294901760
    %v5678 = vsub.f32 %v250, %v5677
    %v5679 = vand.u32 %v5678, 4294901760
    %v5680 = vsub.f32 %v5678, %v5679
    %v5681 = vand.u32 %v5680, 4294901760
    %5682 = vmatpush1.msra.mxu0 %v5681
    %5683 = vmatprep.subr.mxu0 0.0
    %v5684 = vand.u32 %v251, 4294901760
    %v5685 = vsub.f32 %v251, %v5684
    %v5686 = vand.u32 %v5685, 4294901760
    %v5687 = vsub.f32 %v5685, %v5686
    %v5688 = vand.u32 %v5687, 4294901760
    %5689 = vmatpush1.msra.mxu0 %v5688
    %5690 = vmatprep.subr.mxu0 0.0
    %v5691 = vand.u32 %v252, 4294901760
    %v5692 = vsub.f32 %v252, %v5691
    %v5693 = vand.u32 %v5692, 4294901760
    %v5694 = vsub.f32 %v5692, %v5693
    %v5695 = vand.u32 %v5694, 4294901760
    %5696 = vmatpush1.msra.mxu0 %v5695
    %5697 = vmatprep.subr.mxu0 0.0
    %v5698 = vand.u32 %v253, 4294901760
    %v5699 = vsub.f32 %v253, %v5698
    %v5700 = vand.u32 %v5699, 4294901760
    %v5701 = vsub.f32 %v5699, %v5700
    %v5702 = vand.u32 %v5701, 4294901760
    %5703 = vmatpush1.msra.mxu0 %v5702
    %5704 = vmatprep.subr.mxu0 0.0
    %v5705 = vand.u32 %v254, 4294901760
    %v5706 = vsub.f32 %v254, %v5705
    %v5707 = vand.u32 %v5706, 4294901760
    %v5708 = vsub.f32 %v5706, %v5707
    %v5709 = vand.u32 %v5708, 4294901760
    %5710 = vmatpush1.msra.mxu0 %v5709
    %5711 = vmatprep.subr.mxu0 0.0
    %v5712 = vand.u32 %v255, 4294901760
    %v5713 = vsub.f32 %v255, %v5712
    %v5714 = vand.u32 %v5713, 4294901760
    %v5715 = vsub.f32 %v5713, %v5714
    %v5716 = vand.u32 %v5715, 4294901760
    %5717 = vmatpush1.msra.mxu0 %v5716
    %5718 = vmatprep.subr.mxu0 0.0
    %v5719 = vand.u32 %v256, 4294901760
    %v5720 = vsub.f32 %v256, %v5719
    %v5721 = vand.u32 %v5720, 4294901760
    %v5722 = vsub.f32 %v5720, %v5721
    %v5723 = vand.u32 %v5722, 4294901760
    %5724 = vmatpush1.msra.mxu0 %v5723
    %5725 = vmatprep.subr.mxu0 0.0
    %v5726 = vand.u32 %v257, 4294901760
    %v5727 = vsub.f32 %v257, %v5726
    %v5728 = vand.u32 %v5727, 4294901760
    %v5729 = vsub.f32 %v5727, %v5728
    %v5730 = vand.u32 %v5729, 4294901760
    %5731 = vmatpush1.msra.mxu0 %v5730
    %5732 = vmatprep.subr.mxu0 0.0
    %v5733 = vand.u32 %v258, 4294901760
    %v5734 = vsub.f32 %v258, %v5733
    %v5735 = vand.u32 %v5734, 4294901760
    %v5736 = vsub.f32 %v5734, %v5735
    %v5737 = vand.u32 %v5736, 4294901760
    %5738 = vmatpush1.msra.mxu0 %v5737
    %5739 = vmatprep.subr.mxu0 0.0
    %v5740 = vand.u32 %v259, 4294901760
    %v5741 = vsub.f32 %v259, %v5740
    %v5742 = vand.u32 %v5741, 4294901760
    %v5743 = vsub.f32 %v5741, %v5742
    %v5744 = vand.u32 %v5743, 4294901760
    %5745 = vmatpush1.msra.mxu0 %v5744
    %5746 = vmatprep.subr.mxu0 0.0
    %v5747 = vand.u32 %v260, 4294901760
    %v5748 = vsub.f32 %v260, %v5747
    %v5749 = vand.u32 %v5748, 4294901760
    %v5750 = vsub.f32 %v5748, %v5749
    %v5751 = vand.u32 %v5750, 4294901760
    %5752 = vmatpush1.msra.mxu0 %v5751
    %5753 = vmatprep.subr.mxu0 0.0
    %v5754 = vand.u32 %v261, 4294901760
    %v5755 = vsub.f32 %v261, %v5754
    %v5756 = vand.u32 %v5755, 4294901760
    %v5757 = vsub.f32 %v5755, %v5756
    %v5758 = vand.u32 %v5757, 4294901760
    %5759 = vmatpush1.msra.mxu0 %v5758
    %5760 = vmatprep.subr.mxu0 0.0
    %v5761 = vand.u32 %v262, 4294901760
    %v5762 = vsub.f32 %v262, %v5761
    %v5763 = vand.u32 %v5762, 4294901760
    %v5764 = vsub.f32 %v5762, %v5763
    %v5765 = vand.u32 %v5764, 4294901760
    %5766 = vmatpush1.msra.mxu0 %v5765
    %5767 = vmatprep.subr.mxu0 0.0
    %v5768 = vand.u32 %v263, 4294901760
    %v5769 = vsub.f32 %v263, %v5768
    %v5770 = vand.u32 %v5769, 4294901760
    %v5771 = vsub.f32 %v5769, %v5770
    %v5772 = vand.u32 %v5771, 4294901760
    %5773 = vmatpush1.msra.mxu0 %v5772
    %5774 = vmatprep.subr.mxu0 0.0
    %v5775 = vand.u32 %v264, 4294901760
    %v5776 = vsub.f32 %v264, %v5775
    %v5777 = vand.u32 %v5776, 4294901760
    %v5778 = vsub.f32 %v5776, %v5777
    %v5779 = vand.u32 %v5778, 4294901760
    %5780 = vmatpush1.msra.mxu0 %v5779
    %5781 = vmatprep.subr.mxu0 0.0
    %v5782 = vand.u32 %v265, 4294901760
    %v5783 = vsub.f32 %v265, %v5782
    %v5784 = vand.u32 %v5783, 4294901760
    %v5785 = vsub.f32 %v5783, %v5784
    %v5786 = vand.u32 %v5785, 4294901760
    %5787 = vmatpush1.msra.mxu0 %v5786
    %5788 = vmatprep.subr.mxu0 0.0
    %v5789 = vand.u32 %v266, 4294901760
    %v5790 = vsub.f32 %v266, %v5789
    %v5791 = vand.u32 %v5790, 4294901760
    %v5792 = vsub.f32 %v5790, %v5791
    %v5793 = vand.u32 %v5792, 4294901760
    %5794 = vmatpush1.msra.mxu0 %v5793
    %5795 = vmatprep.subr.mxu0 0.0
    %v5796 = vand.u32 %v267, 4294901760
    %v5797 = vsub.f32 %v267, %v5796
    %v5798 = vand.u32 %v5797, 4294901760
    %v5799 = vsub.f32 %v5797, %v5798
    %v5800 = vand.u32 %v5799, 4294901760
    %5801 = vmatpush1.msra.mxu0 %v5800
    %5802 = vmatprep.subr.mxu0 0.0
    %v5803 = vand.u32 %v268, 4294901760
    %v5804 = vsub.f32 %v268, %v5803
    %v5805 = vand.u32 %v5804, 4294901760
    %v5806 = vsub.f32 %v5804, %v5805
    %v5807 = vand.u32 %v5806, 4294901760
    %5808 = vmatpush1.msra.mxu0 %v5807
    %5809 = vmatprep.subr.mxu0 0.0
    %v5810 = vand.u32 %v269, 4294901760
    %v5811 = vsub.f32 %v269, %v5810
    %v5812 = vand.u32 %v5811, 4294901760
    %v5813 = vsub.f32 %v5811, %v5812
    %v5814 = vand.u32 %v5813, 4294901760
    %5815 = vmatpush1.msra.mxu0 %v5814
    %5816 = vmatprep.subr.mxu0 0.0
    %v5817 = vand.u32 %v270, 4294901760
    %v5818 = vsub.f32 %v270, %v5817
    %v5819 = vand.u32 %v5818, 4294901760
    %v5820 = vsub.f32 %v5818, %v5819
    %v5821 = vand.u32 %v5820, 4294901760
    %5822 = vmatpush1.msra.mxu0 %v5821
    %5823 = vmatprep.subr.mxu0 0.0
    %v5824 = vand.u32 %v271, 4294901760
    %v5825 = vsub.f32 %v271, %v5824
    %v5826 = vand.u32 %v5825, 4294901760
    %v5827 = vsub.f32 %v5825, %v5826
    %v5828 = vand.u32 %v5827, 4294901760
    %5829 = vmatpush1.msra.mxu0 %v5828
    %5830 = vmatprep.subr.mxu0 0.0
    %v5831 = vand.u32 %v272, 4294901760
    %v5832 = vsub.f32 %v272, %v5831
    %v5833 = vand.u32 %v5832, 4294901760
    %v5834 = vsub.f32 %v5832, %v5833
    %v5835 = vand.u32 %v5834, 4294901760
    %5836 = vmatpush1.msra.mxu0 %v5835
    %v5837 = vand.u32 %v319, 4294901760
    %5838 = vmatprep.mubr.f32.mxu0 %v5837
    %v5839 = vand.u32 %v47, 4294901760
    %5840 = vmatmul.mubr.f32.gmra.mrb[0].mxu0 %v5839
    %v5841 = vpop.f32.mrb[0].mxu0
    %v5842 = vadd.f32 %v5610, %v5841
    %v5843 = vpop.f32.mrb[0].mxu0
    %5844 = vdwg.mxu0
    %5845 = vmatprep.subr.mxu0 0.0
    %v5846 = vand.u32 %v241, 4294901760
    %v5847 = vsub.f32 %v241, %v5846
    %5848 = vmatpush1.msra.mxu0 %v5847
    %5849 = vmatprep.subr.mxu0 0.0
    %v5850 = vand.u32 %v242, 4294901760
    %v5851 = vsub.f32 %v242, %v5850
    %5852 = vmatpush1.msra.mxu0 %v5851
    %5853 = vmatprep.subr.mxu0 0.0
    %v5854 = vand.u32 %v243, 4294901760
    %v5855 = vsub.f32 %v243, %v5854
    %5856 = vmatpush1.msra.mxu0 %v5855
    %5857 = vmatprep.subr.mxu0 0.0
    %v5858 = vand.u32 %v244, 4294901760
    %v5859 = vsub.f32 %v244, %v5858
    %5860 = vmatpush1.msra.mxu0 %v5859
    %5861 = vmatprep.subr.mxu0 0.0
    %v5862 = vand.u32 %v245, 4294901760
    %v5863 = vsub.f32 %v245, %v5862
    %5864 = vmatpush1.msra.mxu0 %v5863
    %5865 = vmatprep.subr.mxu0 0.0
    %v5866 = vand.u32 %v246, 4294901760
    %v5867 = vsub.f32 %v246, %v5866
    %5868 = vmatpush1.msra.mxu0 %v5867
    %5869 = vmatprep.subr.mxu0 0.0
    %v5870 = vand.u32 %v247, 4294901760
    %v5871 = vsub.f32 %v247, %v5870
    %5872 = vmatpush1.msra.mxu0 %v5871
    %5873 = vmatprep.subr.mxu0 0.0
    %v5874 = vand.u32 %v248, 4294901760
    %v5875 = vsub.f32 %v248, %v5874
    %5876 = vmatpush1.msra.mxu0 %v5875
    %5877 = vmatprep.subr.mxu0 0.0
    %v5878 = vand.u32 %v249, 4294901760
    %v5879 = vsub.f32 %v249, %v5878
    %5880 = vmatpush1.msra.mxu0 %v5879
    %5881 = vmatprep.subr.mxu0 0.0
    %v5882 = vand.u32 %v250, 4294901760
    %v5883 = vsub.f32 %v250, %v5882
    %5884 = vmatpush1.msra.mxu0 %v5883
    %5885 = vmatprep.subr.mxu0 0.0
    %v5886 = vand.u32 %v251, 4294901760
    %v5887 = vsub.f32 %v251, %v5886
    %5888 = vmatpush1.msra.mxu0 %v5887
    %5889 = vmatprep.subr.mxu0 0.0
    %v5890 = vand.u32 %v252, 4294901760
    %v5891 = vsub.f32 %v252, %v5890
    %5892 = vmatpush1.msra.mxu0 %v5891
    %5893 = vmatprep.subr.mxu0 0.0
    %v5894 = vand.u32 %v253, 4294901760
    %v5895 = vsub.f32 %v253, %v5894
    %5896 = vmatpush1.msra.mxu0 %v5895
    %5897 = vmatprep.subr.mxu0 0.0
    %v5898 = vand.u32 %v254, 4294901760
    %v5899 = vsub.f32 %v254, %v5898
    %5900 = vmatpush1.msra.mxu0 %v5899
    %5901 = vmatprep.subr.mxu0 0.0
    %v5902 = vand.u32 %v255, 4294901760
    %v5903 = vsub.f32 %v255, %v5902
    %5904 = vmatpush1.msra.mxu0 %v5903
    %5905 = vmatprep.subr.mxu0 0.0
    %v5906 = vand.u32 %v256, 4294901760
    %v5907 = vsub.f32 %v256, %v5906
    %5908 = vmatpush1.msra.mxu0 %v5907
    %5909 = vmatprep.subr.mxu0 0.0
    %v5910 = vand.u32 %v257, 4294901760
    %v5911 = vsub.f32 %v257, %v5910
    %5912 = vmatpush1.msra.mxu0 %v5911
    %5913 = vmatprep.subr.mxu0 0.0
    %v5914 = vand.u32 %v258, 4294901760
    %v5915 = vsub.f32 %v258, %v5914
    %5916 = vmatpush1.msra.mxu0 %v5915
    %5917 = vmatprep.subr.mxu0 0.0
    %v5918 = vand.u32 %v259, 4294901760
    %v5919 = vsub.f32 %v259, %v5918
    %5920 = vmatpush1.msra.mxu0 %v5919
    %5921 = vmatprep.subr.mxu0 0.0
    %v5922 = vand.u32 %v260, 4294901760
    %v5923 = vsub.f32 %v260, %v5922
    %5924 = vmatpush1.msra.mxu0 %v5923
    %5925 = vmatprep.subr.mxu0 0.0
    %v5926 = vand.u32 %v261, 4294901760
    %v5927 = vsub.f32 %v261, %v5926
    %5928 = vmatpush1.msra.mxu0 %v5927
    %5929 = vmatprep.subr.mxu0 0.0
    %v5930 = vand.u32 %v262, 4294901760
    %v5931 = vsub.f32 %v262, %v5930
    %5932 = vmatpush1.msra.mxu0 %v5931
    %5933 = vmatprep.subr.mxu0 0.0
    %v5934 = vand.u32 %v263, 4294901760
    %v5935 = vsub.f32 %v263, %v5934
    %5936 = vmatpush1.msra.mxu0 %v5935
    %5937 = vmatprep.subr.mxu0 0.0
    %v5938 = vand.u32 %v264, 4294901760
    %v5939 = vsub.f32 %v264, %v5938
    %5940 = vmatpush1.msra.mxu0 %v5939
    %5941 = vmatprep.subr.mxu0 0.0
    %v5942 = vand.u32 %v265, 4294901760
    %v5943 = vsub.f32 %v265, %v5942
    %5944 = vmatpush1.msra.mxu0 %v5943
    %5945 = vmatprep.subr.mxu0 0.0
    %v5946 = vand.u32 %v266, 4294901760
    %v5947 = vsub.f32 %v266, %v5946
    %5948 = vmatpush1.msra.mxu0 %v5947
    %5949 = vmatprep.subr.mxu0 0.0
    %v5950 = vand.u32 %v267, 4294901760
    %v5951 = vsub.f32 %v267, %v5950
    %5952 = vmatpush1.msra.mxu0 %v5951
    %5953 = vmatprep.subr.mxu0 0.0
    %v5954 = vand.u32 %v268, 4294901760
    %v5955 = vsub.f32 %v268, %v5954
    %5956 = vmatpush1.msra.mxu0 %v5955
    %5957 = vmatprep.subr.mxu0 0.0
    %v5958 = vand.u32 %v269, 4294901760
    %v5959 = vsub.f32 %v269, %v5958
    %5960 = vmatpush1.msra.mxu0 %v5959
    %5961 = vmatprep.subr.mxu0 0.0
    %v5962 = vand.u32 %v270, 4294901760
    %v5963 = vsub.f32 %v270, %v5962
    %5964 = vmatpush1.msra.mxu0 %v5963
    %5965 = vmatprep.subr.mxu0 0.0
    %v5966 = vand.u32 %v271, 4294901760
    %v5967 = vsub.f32 %v271, %v5966
    %5968 = vmatpush1.msra.mxu0 %v5967
    %5969 = vmatprep.subr.mxu0 0.0
    %v5970 = vand.u32 %v272, 4294901760
    %v5971 = vsub.f32 %v272, %v5970
    %5972 = vmatpush1.msra.mxu0 %v5971
    %v5973 = vand.u32 %v319, 4294901760
    %v5974 = vsub.f32 %v319, %v5973
    %5975 = vmatprep.mubr.f32.mxu0 %v5974
    %v5976 = vand.u32 %v47, 4294901760
    %v5977 = vsub.f32 %v47, %v5976
    %5978 = vmatmul.mubr.f32.gmra.mrb[0].mxu0 %v5977
    %v5979 = vpop.f32.mrb[0].mxu0
    %v5980 = vadd.f32 %v5842, %v5979
    %v5981 = vpop.f32.mrb[0].mxu0
    %5982 = vdwg.mxu0
    %5983 = vmatprep.subr.mxu0 0.0
    %v5984 = vand.u32 %v241, 4294901760
    %5985 = vmatpush1.msra.mxu0 %v5984
    %5986 = vmatprep.subr.mxu0 0.0
    %v5987 = vand.u32 %v242, 4294901760
    %5988 = vmatpush1.msra.mxu0 %v5987
    %5989 = vmatprep.subr.mxu0 0.0
    %v5990 = vand.u32 %v243, 4294901760
    %5991 = vmatpush1.msra.mxu0 %v5990
    %5992 = vmatprep.subr.mxu0 0.0
    %v5993 = vand.u32 %v244, 4294901760
    %5994 = vmatpush1.msra.mxu0 %v5993
    %5995 = vmatprep.subr.mxu0 0.0
    %v5996 = vand.u32 %v245, 4294901760
    %5997 = vmatpush1.msra.mxu0 %v5996
    %5998 = vmatprep.subr.mxu0 0.0
    %v5999 = vand.u32 %v246, 4294901760
    %6000 = vmatpush1.msra.mxu0 %v5999
    %6001 = vmatprep.subr.mxu0 0.0
    %v6002 = vand.u32 %v247, 4294901760
    %6003 = vmatpush1.msra.mxu0 %v6002
    %6004 = vmatprep.subr.mxu0 0.0
    %v6005 = vand.u32 %v248, 4294901760
    %6006 = vmatpush1.msra.mxu0 %v6005
    %6007 = vmatprep.subr.mxu0 0.0
    %v6008 = vand.u32 %v249, 4294901760
    %6009 = vmatpush1.msra.mxu0 %v6008
    %6010 = vmatprep.subr.mxu0 0.0
    %v6011 = vand.u32 %v250, 4294901760
    %6012 = vmatpush1.msra.mxu0 %v6011
    %6013 = vmatprep.subr.mxu0 0.0
    %v6014 = vand.u32 %v251, 4294901760
    %6015 = vmatpush1.msra.mxu0 %v6014
    %6016 = vmatprep.subr.mxu0 0.0
    %v6017 = vand.u32 %v252, 4294901760
    %6018 = vmatpush1.msra.mxu0 %v6017
    %6019 = vmatprep.subr.mxu0 0.0
    %v6020 = vand.u32 %v253, 4294901760
    %6021 = vmatpush1.msra.mxu0 %v6020
    %6022 = vmatprep.subr.mxu0 0.0
    %v6023 = vand.u32 %v254, 4294901760
    %6024 = vmatpush1.msra.mxu0 %v6023
    %6025 = vmatprep.subr.mxu0 0.0
    %v6026 = vand.u32 %v255, 4294901760
    %6027 = vmatpush1.msra.mxu0 %v6026
    %6028 = vmatprep.subr.mxu0 0.0
    %v6029 = vand.u32 %v256, 4294901760
    %6030 = vmatpush1.msra.mxu0 %v6029
    %6031 = vmatprep.subr.mxu0 0.0
    %v6032 = vand.u32 %v257, 4294901760
    %6033 = vmatpush1.msra.mxu0 %v6032
    %6034 = vmatprep.subr.mxu0 0.0
    %v6035 = vand.u32 %v258, 4294901760
    %6036 = vmatpush1.msra.mxu0 %v6035
    %6037 = vmatprep.subr.mxu0 0.0
    %v6038 = vand.u32 %v259, 4294901760
    %6039 = vmatpush1.msra.mxu0 %v6038
    %6040 = vmatprep.subr.mxu0 0.0
    %v6041 = vand.u32 %v260, 4294901760
    %6042 = vmatpush1.msra.mxu0 %v6041
    %6043 = vmatprep.subr.mxu0 0.0
    %v6044 = vand.u32 %v261, 4294901760
    %6045 = vmatpush1.msra.mxu0 %v6044
    %6046 = vmatprep.subr.mxu0 0.0
    %v6047 = vand.u32 %v262, 4294901760
    %6048 = vmatpush1.msra.mxu0 %v6047
    %6049 = vmatprep.subr.mxu0 0.0
    %v6050 = vand.u32 %v263, 4294901760
    %6051 = vmatpush1.msra.mxu0 %v6050
    %6052 = vmatprep.subr.mxu0 0.0
    %v6053 = vand.u32 %v264, 4294901760
    %6054 = vmatpush1.msra.mxu0 %v6053
    %6055 = vmatprep.subr.mxu0 0.0
    %v6056 = vand.u32 %v265, 4294901760
    %6057 = vmatpush1.msra.mxu0 %v6056
    %6058 = vmatprep.subr.mxu0 0.0
    %v6059 = vand.u32 %v266, 4294901760
    %6060 = vmatpush1.msra.mxu0 %v6059
    %6061 = vmatprep.subr.mxu0 0.0
    %v6062 = vand.u32 %v267, 4294901760
    %6063 = vmatpush1.msra.mxu0 %v6062
    %6064 = vmatprep.subr.mxu0 0.0
    %v6065 = vand.u32 %v268, 4294901760
    %6066 = vmatpush1.msra.mxu0 %v6065
    %6067 = vmatprep.subr.mxu0 0.0
    %v6068 = vand.u32 %v269, 4294901760
    %6069 = vmatpush1.msra.mxu0 %v6068
    %6070 = vmatprep.subr.mxu0 0.0
    %v6071 = vand.u32 %v270, 4294901760
    %6072 = vmatpush1.msra.mxu0 %v6071
    %6073 = vmatprep.subr.mxu0 0.0
    %v6074 = vand.u32 %v271, 4294901760
    %6075 = vmatpush1.msra.mxu0 %v6074
    %6076 = vmatprep.subr.mxu0 0.0
    %v6077 = vand.u32 %v272, 4294901760
    %6078 = vmatpush1.msra.mxu0 %v6077
    %v6079 = vand.u32 %v319, 4294901760
    %v6080 = vsub.f32 %v319, %v6079
    %v6081 = vand.u32 %v6080, 4294901760
    %6082 = vmatprep.mubr.f32.mxu0 %v6081
    %v6083 = vand.u32 %v47, 4294901760
    %v6084 = vsub.f32 %v47, %v6083
    %v6085 = vand.u32 %v6084, 4294901760
    %6086 = vmatmul.mubr.f32.gmra.mrb[0].mxu0 %v6085
    %v6087 = vpop.f32.mrb[0].mxu0
    %v6088 = vadd.f32 %v5980, %v6087
    %v6089 = vpop.f32.mrb[0].mxu0
    %6090 = vdwg.mxu0
    %6091 = vmatprep.subr.mxu0 0.0
    %v6092 = vand.u32 %v241, 4294901760
    %v6093 = vsub.f32 %v241, %v6092
    %v6094 = vand.u32 %v6093, 4294901760
    %6095 = vmatpush1.msra.mxu0 %v6094
    %6096 = vmatprep.subr.mxu0 0.0
    %v6097 = vand.u32 %v242, 4294901760
    %v6098 = vsub.f32 %v242, %v6097
    %v6099 = vand.u32 %v6098, 4294901760
    %6100 = vmatpush1.msra.mxu0 %v6099
    %6101 = vmatprep.subr.mxu0 0.0
    %v6102 = vand.u32 %v243, 4294901760
    %v6103 = vsub.f32 %v243, %v6102
    %v6104 = vand.u32 %v6103, 4294901760
    %6105 = vmatpush1.msra.mxu0 %v6104
    %6106 = vmatprep.subr.mxu0 0.0
    %v6107 = vand.u32 %v244, 4294901760
    %v6108 = vsub.f32 %v244, %v6107
    %v6109 = vand.u32 %v6108, 4294901760
    %6110 = vmatpush1.msra.mxu0 %v6109
    %6111 = vmatprep.subr.mxu0 0.0
    %v6112 = vand.u32 %v245, 4294901760
    %v6113 = vsub.f32 %v245, %v6112
    %v6114 = vand.u32 %v6113, 4294901760
    %6115 = vmatpush1.msra.mxu0 %v6114
    %6116 = vmatprep.subr.mxu0 0.0
    %v6117 = vand.u32 %v246, 4294901760
    %v6118 = vsub.f32 %v246, %v6117
    %v6119 = vand.u32 %v6118, 4294901760
    %6120 = vmatpush1.msra.mxu0 %v6119
    %6121 = vmatprep.subr.mxu0 0.0
    %v6122 = vand.u32 %v247, 4294901760
    %v6123 = vsub.f32 %v247, %v6122
    %v6124 = vand.u32 %v6123, 4294901760
    %6125 = vmatpush1.msra.mxu0 %v6124
    %6126 = vmatprep.subr.mxu0 0.0
    %v6127 = vand.u32 %v248, 4294901760
    %v6128 = vsub.f32 %v248, %v6127
    %v6129 = vand.u32 %v6128, 4294901760
    %6130 = vmatpush1.msra.mxu0 %v6129
    %6131 = vmatprep.subr.mxu0 0.0
    %v6132 = vand.u32 %v249, 4294901760
    %v6133 = vsub.f32 %v249, %v6132
    %v6134 = vand.u32 %v6133, 4294901760
    %6135 = vmatpush1.msra.mxu0 %v6134
    %6136 = vmatprep.subr.mxu0 0.0
    %v6137 = vand.u32 %v250, 4294901760
    %v6138 = vsub.f32 %v250, %v6137
    %v6139 = vand.u32 %v6138, 4294901760
    %6140 = vmatpush1.msra.mxu0 %v6139
    %6141 = vmatprep.subr.mxu0 0.0
    %v6142 = vand.u32 %v251, 4294901760
    %v6143 = vsub.f32 %v251, %v6142
    %v6144 = vand.u32 %v6143, 4294901760
    %6145 = vmatpush1.msra.mxu0 %v6144
    %6146 = vmatprep.subr.mxu0 0.0
    %v6147 = vand.u32 %v252, 4294901760
    %v6148 = vsub.f32 %v252, %v6147
    %v6149 = vand.u32 %v6148, 4294901760
    %6150 = vmatpush1.msra.mxu0 %v6149
    %6151 = vmatprep.subr.mxu0 0.0
    %v6152 = vand.u32 %v253, 4294901760
    %v6153 = vsub.f32 %v253, %v6152
    %v6154 = vand.u32 %v6153, 4294901760
    %6155 = vmatpush1.msra.mxu0 %v6154
    %6156 = vmatprep.subr.mxu0 0.0
    %v6157 = vand.u32 %v254, 4294901760
    %v6158 = vsub.f32 %v254, %v6157
    %v6159 = vand.u32 %v6158, 4294901760
    %6160 = vmatpush1.msra.mxu0 %v6159
    %6161 = vmatprep.subr.mxu0 0.0
    %v6162 = vand.u32 %v255, 4294901760
    %v6163 = vsub.f32 %v255, %v6162
    %v6164 = vand.u32 %v6163, 4294901760
    %6165 = vmatpush1.msra.mxu0 %v6164
    %6166 = vmatprep.subr.mxu0 0.0
    %v6167 = vand.u32 %v256, 4294901760
    %v6168 = vsub.f32 %v256, %v6167
    %v6169 = vand.u32 %v6168, 4294901760
    %6170 = vmatpush1.msra.mxu0 %v6169
    %6171 = vmatprep.subr.mxu0 0.0
    %v6172 = vand.u32 %v257, 4294901760
    %v6173 = vsub.f32 %v257, %v6172
    %v6174 = vand.u32 %v6173, 4294901760
    %6175 = vmatpush1.msra.mxu0 %v6174
    %6176 = vmatprep.subr.mxu0 0.0
    %v6177 = vand.u32 %v258, 4294901760
    %v6178 = vsub.f32 %v258, %v6177
    %v6179 = vand.u32 %v6178, 4294901760
    %6180 = vmatpush1.msra.mxu0 %v6179
    %6181 = vmatprep.subr.mxu0 0.0
    %v6182 = vand.u32 %v259, 4294901760
    %v6183 = vsub.f32 %v259, %v6182
    %v6184 = vand.u32 %v6183, 4294901760
    %6185 = vmatpush1.msra.mxu0 %v6184
    %6186 = vmatprep.subr.mxu0 0.0
    %v6187 = vand.u32 %v260, 4294901760
    %v6188 = vsub.f32 %v260, %v6187
    %v6189 = vand.u32 %v6188, 4294901760
    %6190 = vmatpush1.msra.mxu0 %v6189
    %6191 = vmatprep.subr.mxu0 0.0
    %v6192 = vand.u32 %v261, 4294901760
    %v6193 = vsub.f32 %v261, %v6192
    %v6194 = vand.u32 %v6193, 4294901760
    %6195 = vmatpush1.msra.mxu0 %v6194
    %6196 = vmatprep.subr.mxu0 0.0
    %v6197 = vand.u32 %v262, 4294901760
    %v6198 = vsub.f32 %v262, %v6197
    %v6199 = vand.u32 %v6198, 4294901760
    %6200 = vmatpush1.msra.mxu0 %v6199
    %6201 = vmatprep.subr.mxu0 0.0
    %v6202 = vand.u32 %v263, 4294901760
    %v6203 = vsub.f32 %v263, %v6202
    %v6204 = vand.u32 %v6203, 4294901760
    %6205 = vmatpush1.msra.mxu0 %v6204
    %6206 = vmatprep.subr.mxu0 0.0
    %v6207 = vand.u32 %v264, 4294901760
    %v6208 = vsub.f32 %v264, %v6207
    %v6209 = vand.u32 %v6208, 4294901760
    %6210 = vmatpush1.msra.mxu0 %v6209
    %6211 = vmatprep.subr.mxu0 0.0
    %v6212 = vand.u32 %v265, 4294901760
    %v6213 = vsub.f32 %v265, %v6212
    %v6214 = vand.u32 %v6213, 4294901760
    %6215 = vmatpush1.msra.mxu0 %v6214
    %6216 = vmatprep.subr.mxu0 0.0
    %v6217 = vand.u32 %v266, 4294901760
    %v6218 = vsub.f32 %v266, %v6217
    %v6219 = vand.u32 %v6218, 4294901760
    %6220 = vmatpush1.msra.mxu0 %v6219
    %6221 = vmatprep.subr.mxu0 0.0
    %v6222 = vand.u32 %v267, 4294901760
    %v6223 = vsub.f32 %v267, %v6222
    %v6224 = vand.u32 %v6223, 4294901760
    %6225 = vmatpush1.msra.mxu0 %v6224
    %6226 = vmatprep.subr.mxu0 0.0
    %v6227 = vand.u32 %v268, 4294901760
    %v6228 = vsub.f32 %v268, %v6227
    %v6229 = vand.u32 %v6228, 4294901760
    %6230 = vmatpush1.msra.mxu0 %v6229
    %6231 = vmatprep.subr.mxu0 0.0
    %v6232 = vand.u32 %v269, 4294901760
    %v6233 = vsub.f32 %v269, %v6232
    %v6234 = vand.u32 %v6233, 4294901760
    %6235 = vmatpush1.msra.mxu0 %v6234
    %6236 = vmatprep.subr.mxu0 0.0
    %v6237 = vand.u32 %v270, 4294901760
    %v6238 = vsub.f32 %v270, %v6237
    %v6239 = vand.u32 %v6238, 4294901760
    %6240 = vmatpush1.msra.mxu0 %v6239
    %6241 = vmatprep.subr.mxu0 0.0
    %v6242 = vand.u32 %v271, 4294901760
    %v6243 = vsub.f32 %v271, %v6242
    %v6244 = vand.u32 %v6243, 4294901760
    %6245 = vmatpush1.msra.mxu0 %v6244
    %6246 = vmatprep.subr.mxu0 0.0
    %v6247 = vand.u32 %v272, 4294901760
    %v6248 = vsub.f32 %v272, %v6247
    %v6249 = vand.u32 %v6248, 4294901760
    %6250 = vmatpush1.msra.mxu0 %v6249
    %v6251 = vand.u32 %v319, 4294901760
    %6252 = vmatprep.mubr.f32.mxu0 %v6251
    %v6253 = vand.u32 %v47, 4294901760
    %6254 = vmatmul.mubr.f32.gmra.mrb[0].mxu0 %v6253
    %v6255 = vpop.f32.mrb[0].mxu0
    %v6256 = vadd.f32 %v6088, %v6255
    %v6257 = vpop.f32.mrb[0].mxu0
    %6258 = vdwg.mxu0
    %6259 = vmatprep.subr.mxu0 0.0
    %v6260 = vand.u32 %v241, 4294901760
    %6261 = vmatpush1.msra.mxu0 %v6260
    %6262 = vmatprep.subr.mxu0 0.0
    %v6263 = vand.u32 %v242, 4294901760
    %6264 = vmatpush1.msra.mxu0 %v6263
    %6265 = vmatprep.subr.mxu0 0.0
    %v6266 = vand.u32 %v243, 4294901760
    %6267 = vmatpush1.msra.mxu0 %v6266
    %6268 = vmatprep.subr.mxu0 0.0
    %v6269 = vand.u32 %v244, 4294901760
    %6270 = vmatpush1.msra.mxu0 %v6269
    %6271 = vmatprep.subr.mxu0 0.0
    %v6272 = vand.u32 %v245, 4294901760
    %6273 = vmatpush1.msra.mxu0 %v6272
    %6274 = vmatprep.subr.mxu0 0.0
    %v6275 = vand.u32 %v246, 4294901760
    %6276 = vmatpush1.msra.mxu0 %v6275
    %6277 = vmatprep.subr.mxu0 0.0
    %v6278 = vand.u32 %v247, 4294901760
    %6279 = vmatpush1.msra.mxu0 %v6278
    %6280 = vmatprep.subr.mxu0 0.0
    %v6281 = vand.u32 %v248, 4294901760
    %6282 = vmatpush1.msra.mxu0 %v6281
    %6283 = vmatprep.subr.mxu0 0.0
    %v6284 = vand.u32 %v249, 4294901760
    %6285 = vmatpush1.msra.mxu0 %v6284
    %6286 = vmatprep.subr.mxu0 0.0
    %v6287 = vand.u32 %v250, 4294901760
    %6288 = vmatpush1.msra.mxu0 %v6287
    %6289 = vmatprep.subr.mxu0 0.0
    %v6290 = vand.u32 %v251, 4294901760
    %6291 = vmatpush1.msra.mxu0 %v6290
    %6292 = vmatprep.subr.mxu0 0.0
    %v6293 = vand.u32 %v252, 4294901760
    %6294 = vmatpush1.msra.mxu0 %v6293
    %6295 = vmatprep.subr.mxu0 0.0
    %v6296 = vand.u32 %v253, 4294901760
    %6297 = vmatpush1.msra.mxu0 %v6296
    %6298 = vmatprep.subr.mxu0 0.0
    %v6299 = vand.u32 %v254, 4294901760
    %6300 = vmatpush1.msra.mxu0 %v6299
    %6301 = vmatprep.subr.mxu0 0.0
    %v6302 = vand.u32 %v255, 4294901760
    %6303 = vmatpush1.msra.mxu0 %v6302
    %6304 = vmatprep.subr.mxu0 0.0
    %v6305 = vand.u32 %v256, 4294901760
    %6306 = vmatpush1.msra.mxu0 %v6305
    %6307 = vmatprep.subr.mxu0 0.0
    %v6308 = vand.u32 %v257, 4294901760
    %6309 = vmatpush1.msra.mxu0 %v6308
    %6310 = vmatprep.subr.mxu0 0.0
    %v6311 = vand.u32 %v258, 4294901760
    %6312 = vmatpush1.msra.mxu0 %v6311
    %6313 = vmatprep.subr.mxu0 0.0
    %v6314 = vand.u32 %v259, 4294901760
    %6315 = vmatpush1.msra.mxu0 %v6314
    %6316 = vmatprep.subr.mxu0 0.0
    %v6317 = vand.u32 %v260, 4294901760
    %6318 = vmatpush1.msra.mxu0 %v6317
    %6319 = vmatprep.subr.mxu0 0.0
    %v6320 = vand.u32 %v261, 4294901760
    %6321 = vmatpush1.msra.mxu0 %v6320
    %6322 = vmatprep.subr.mxu0 0.0
    %v6323 = vand.u32 %v262, 4294901760
    %6324 = vmatpush1.msra.mxu0 %v6323
    %6325 = vmatprep.subr.mxu0 0.0
    %v6326 = vand.u32 %v263, 4294901760
    %6327 = vmatpush1.msra.mxu0 %v6326
    %6328 = vmatprep.subr.mxu0 0.0
    %v6329 = vand.u32 %v264, 4294901760
    %6330 = vmatpush1.msra.mxu0 %v6329
    %6331 = vmatprep.subr.mxu0 0.0
    %v6332 = vand.u32 %v265, 4294901760
    %6333 = vmatpush1.msra.mxu0 %v6332
    %6334 = vmatprep.subr.mxu0 0.0
    %v6335 = vand.u32 %v266, 4294901760
    %6336 = vmatpush1.msra.mxu0 %v6335
    %6337 = vmatprep.subr.mxu0 0.0
    %v6338 = vand.u32 %v267, 4294901760
    %6339 = vmatpush1.msra.mxu0 %v6338
    %6340 = vmatprep.subr.mxu0 0.0
    %v6341 = vand.u32 %v268, 4294901760
    %6342 = vmatpush1.msra.mxu0 %v6341
    %6343 = vmatprep.subr.mxu0 0.0
    %v6344 = vand.u32 %v269, 4294901760
    %6345 = vmatpush1.msra.mxu0 %v6344
    %6346 = vmatprep.subr.mxu0 0.0
    %v6347 = vand.u32 %v270, 4294901760
    %6348 = vmatpush1.msra.mxu0 %v6347
    %6349 = vmatprep.subr.mxu0 0.0
    %v6350 = vand.u32 %v271, 4294901760
    %6351 = vmatpush1.msra.mxu0 %v6350
    %6352 = vmatprep.subr.mxu0 0.0
    %v6353 = vand.u32 %v272, 4294901760
    %6354 = vmatpush1.msra.mxu0 %v6353
    %v6355 = vand.u32 %v319, 4294901760
    %6356 = vmatprep.mubr.f32.mxu0 %v6355
    %v6357 = vand.u32 %v47, 4294901760
    %6358 = vmatmul.mubr.f32.gmra.mrb[0].mxu0 %v6357
    %v6359 = vpop.f32.mrb[0].mxu0
    %v6360 = vadd.f32 %v6256, %v6359
    %v6361 = vpop.f32.mrb[0].mxu0
    %6362 = vdwg.mxu0
    %6363 = vmatprep.subr.mxu0 0.0
    %v6364 = vand.u32 %v273, 4294901760
    %6365 = vmatpush1.msra.mxu0 %v6364
    %6366 = vmatprep.subr.mxu0 0.0
    %v6367 = vand.u32 %v274, 4294901760
    %6368 = vmatpush1.msra.mxu0 %v6367
    %6369 = vmatprep.subr.mxu0 0.0
    %v6370 = vand.u32 %v275, 4294901760
    %6371 = vmatpush1.msra.mxu0 %v6370
    %6372 = vmatprep.subr.mxu0 0.0
    %v6373 = vand.u32 %v276, 4294901760
    %6374 = vmatpush1.msra.mxu0 %v6373
    %6375 = vmatprep.subr.mxu0 0.0
    %v6376 = vand.u32 %v277, 4294901760
    %6377 = vmatpush1.msra.mxu0 %v6376
    %6378 = vmatprep.subr.mxu0 0.0
    %v6379 = vand.u32 %v278, 4294901760
    %6380 = vmatpush1.msra.mxu0 %v6379
    %6381 = vmatprep.subr.mxu0 0.0
    %v6382 = vand.u32 %v279, 4294901760
    %6383 = vmatpush1.msra.mxu0 %v6382
    %6384 = vmatprep.subr.mxu0 0.0
    %v6385 = vand.u32 %v280, 4294901760
    %6386 = vmatpush1.msra.mxu0 %v6385
    %6387 = vmatprep.subr.mxu0 0.0
    %v6388 = vand.u32 %v281, 4294901760
    %6389 = vmatpush1.msra.mxu0 %v6388
    %6390 = vmatprep.subr.mxu0 0.0
    %v6391 = vand.u32 %v282, 4294901760
    %6392 = vmatpush1.msra.mxu0 %v6391
    %6393 = vmatprep.subr.mxu0 0.0
    %v6394 = vand.u32 %v283, 4294901760
    %6395 = vmatpush1.msra.mxu0 %v6394
    %6396 = vmatprep.subr.mxu0 0.0
    %v6397 = vand.u32 %v284, 4294901760
    %6398 = vmatpush1.msra.mxu0 %v6397
    %6399 = vmatprep.subr.mxu0 0.0
    %v6400 = vand.u32 %v285, 4294901760
    %6401 = vmatpush1.msra.mxu0 %v6400
    %6402 = vmatprep.subr.mxu0 0.0
    %v6403 = vand.u32 %v286, 4294901760
    %6404 = vmatpush1.msra.mxu0 %v6403
    %6405 = vmatprep.subr.mxu0 0.0
    %v6406 = vand.u32 %v287, 4294901760
    %6407 = vmatpush1.msra.mxu0 %v6406
    %6408 = vmatprep.subr.mxu0 0.0
    %v6409 = vand.u32 %v288, 4294901760
    %6410 = vmatpush1.msra.mxu0 %v6409
    %6411 = vmatprep.subr.mxu0 0.0
    %v6412 = vand.u32 %v289, 4294901760
    %6413 = vmatpush1.msra.mxu0 %v6412
    %6414 = vmatprep.subr.mxu0 0.0
    %v6415 = vand.u32 %v290, 4294901760
    %6416 = vmatpush1.msra.mxu0 %v6415
    %6417 = vmatprep.subr.mxu0 0.0
    %v6418 = vand.u32 %v291, 4294901760
    %6419 = vmatpush1.msra.mxu0 %v6418
    %6420 = vmatprep.subr.mxu0 0.0
    %v6421 = vand.u32 %v292, 4294901760
    %6422 = vmatpush1.msra.mxu0 %v6421
    %6423 = vmatprep.subr.mxu0 0.0
    %v6424 = vand.u32 %v293, 4294901760
    %6425 = vmatpush1.msra.mxu0 %v6424
    %6426 = vmatprep.subr.mxu0 0.0
    %v6427 = vand.u32 %v294, 4294901760
    %6428 = vmatpush1.msra.mxu0 %v6427
    %6429 = vmatprep.subr.mxu0 0.0
    %v6430 = vand.u32 %v295, 4294901760
    %6431 = vmatpush1.msra.mxu0 %v6430
    %6432 = vmatprep.subr.mxu0 0.0
    %v6433 = vand.u32 %v296, 4294901760
    %6434 = vmatpush1.msra.mxu0 %v6433
    %6435 = vmatprep.subr.mxu0 0.0
    %v6436 = vand.u32 %v297, 4294901760
    %6437 = vmatpush1.msra.mxu0 %v6436
    %6438 = vmatprep.subr.mxu0 0.0
    %v6439 = vand.u32 %v298, 4294901760
    %6440 = vmatpush1.msra.mxu0 %v6439
    %6441 = vmatprep.subr.mxu0 0.0
    %v6442 = vand.u32 %v299, 4294901760
    %6443 = vmatpush1.msra.mxu0 %v6442
    %6444 = vmatprep.subr.mxu0 0.0
    %v6445 = vand.u32 %v300, 4294901760
    %6446 = vmatpush1.msra.mxu0 %v6445
    %6447 = vmatprep.subr.mxu0 0.0
    %v6448 = vand.u32 %v301, 4294901760
    %6449 = vmatpush1.msra.mxu0 %v6448
    %6450 = vmatprep.subr.mxu0 0.0
    %v6451 = vand.u32 %v302, 4294901760
    %6452 = vmatpush1.msra.mxu0 %v6451
    %6453 = vmatprep.subr.mxu0 0.0
    %v6454 = vand.u32 %v303, 4294901760
    %6455 = vmatpush1.msra.mxu0 %v6454
    %6456 = vmatprep.subr.mxu0 0.0
    %v6457 = vand.u32 %v304, 4294901760
    %6458 = vmatpush1.msra.mxu0 %v6457
    %v6459 = vand.u32 %v320, 4294901760
    %v6460 = vsub.f32 %v320, %v6459
    %v6461 = vand.u32 %v6460, 4294901760
    %v6462 = vsub.f32 %v6460, %v6461
    %v6463 = vand.u32 %v6462, 4294901760
    %6464 = vmatprep.mubr.f32.mxu0 %v6463
    %v6465 = vand.u32 %v48, 4294901760
    %v6466 = vsub.f32 %v48, %v6465
    %v6467 = vand.u32 %v6466, 4294901760
    %v6468 = vsub.f32 %v6466, %v6467
    %v6469 = vand.u32 %v6468, 4294901760
    %6470 = vmatmul.mubr.f32.gmra.mrb[0].mxu0 %v6469
    %v6471 = vpop.f32.mrb[0].mxu0
    %v6472 = vadd.f32 %v6360, %v6471
    %v6473 = vpop.f32.mrb[0].mxu0
    %6474 = vdwg.mxu0
    %6475 = vmatprep.subr.mxu0 0.0
    %v6476 = vand.u32 %v273, 4294901760
    %v6477 = vsub.f32 %v273, %v6476
    %v6478 = vand.u32 %v6477, 4294901760
    %v6479 = vsub.f32 %v6477, %v6478
    %v6480 = vand.u32 %v6479, 4294901760
    %6481 = vmatpush1.msra.mxu0 %v6480
    %6482 = vmatprep.subr.mxu0 0.0
    %v6483 = vand.u32 %v274, 4294901760
    %v6484 = vsub.f32 %v274, %v6483
    %v6485 = vand.u32 %v6484, 4294901760
    %v6486 = vsub.f32 %v6484, %v6485
    %v6487 = vand.u32 %v6486, 4294901760
    %6488 = vmatpush1.msra.mxu0 %v6487
    %6489 = vmatprep.subr.mxu0 0.0
    %v6490 = vand.u32 %v275, 4294901760
    %v6491 = vsub.f32 %v275, %v6490
    %v6492 = vand.u32 %v6491, 4294901760
    %v6493 = vsub.f32 %v6491, %v6492
    %v6494 = vand.u32 %v6493, 4294901760
    %6495 = vmatpush1.msra.mxu0 %v6494
    %6496 = vmatprep.subr.mxu0 0.0
    %v6497 = vand.u32 %v276, 4294901760
    %v6498 = vsub.f32 %v276, %v6497
    %v6499 = vand.u32 %v6498, 4294901760
    %v6500 = vsub.f32 %v6498, %v6499
    %v6501 = vand.u32 %v6500, 4294901760
    %6502 = vmatpush1.msra.mxu0 %v6501
    %6503 = vmatprep.subr.mxu0 0.0
    %v6504 = vand.u32 %v277, 4294901760
    %v6505 = vsub.f32 %v277, %v6504
    %v6506 = vand.u32 %v6505, 4294901760
    %v6507 = vsub.f32 %v6505, %v6506
    %v6508 = vand.u32 %v6507, 4294901760
    %6509 = vmatpush1.msra.mxu0 %v6508
    %6510 = vmatprep.subr.mxu0 0.0
    %v6511 = vand.u32 %v278, 4294901760
    %v6512 = vsub.f32 %v278, %v6511
    %v6513 = vand.u32 %v6512, 4294901760
    %v6514 = vsub.f32 %v6512, %v6513
    %v6515 = vand.u32 %v6514, 4294901760
    %6516 = vmatpush1.msra.mxu0 %v6515
    %6517 = vmatprep.subr.mxu0 0.0
    %v6518 = vand.u32 %v279, 4294901760
    %v6519 = vsub.f32 %v279, %v6518
    %v6520 = vand.u32 %v6519, 4294901760
    %v6521 = vsub.f32 %v6519, %v6520
    %v6522 = vand.u32 %v6521, 4294901760
    %6523 = vmatpush1.msra.mxu0 %v6522
    %6524 = vmatprep.subr.mxu0 0.0
    %v6525 = vand.u32 %v280, 4294901760
    %v6526 = vsub.f32 %v280, %v6525
    %v6527 = vand.u32 %v6526, 4294901760
    %v6528 = vsub.f32 %v6526, %v6527
    %v6529 = vand.u32 %v6528, 4294901760
    %6530 = vmatpush1.msra.mxu0 %v6529
    %6531 = vmatprep.subr.mxu0 0.0
    %v6532 = vand.u32 %v281, 4294901760
    %v6533 = vsub.f32 %v281, %v6532
    %v6534 = vand.u32 %v6533, 4294901760
    %v6535 = vsub.f32 %v6533, %v6534
    %v6536 = vand.u32 %v6535, 4294901760
    %6537 = vmatpush1.msra.mxu0 %v6536
    %6538 = vmatprep.subr.mxu0 0.0
    %v6539 = vand.u32 %v282, 4294901760
    %v6540 = vsub.f32 %v282, %v6539
    %v6541 = vand.u32 %v6540, 4294901760
    %v6542 = vsub.f32 %v6540, %v6541
    %v6543 = vand.u32 %v6542, 4294901760
    %6544 = vmatpush1.msra.mxu0 %v6543
    %6545 = vmatprep.subr.mxu0 0.0
    %v6546 = vand.u32 %v283, 4294901760
    %v6547 = vsub.f32 %v283, %v6546
    %v6548 = vand.u32 %v6547, 4294901760
    %v6549 = vsub.f32 %v6547, %v6548
    %v6550 = vand.u32 %v6549, 4294901760
    %6551 = vmatpush1.msra.mxu0 %v6550
    %6552 = vmatprep.subr.mxu0 0.0
    %v6553 = vand.u32 %v284, 4294901760
    %v6554 = vsub.f32 %v284, %v6553
    %v6555 = vand.u32 %v6554, 4294901760
    %v6556 = vsub.f32 %v6554, %v6555
    %v6557 = vand.u32 %v6556, 4294901760
    %6558 = vmatpush1.msra.mxu0 %v6557
    %6559 = vmatprep.subr.mxu0 0.0
    %v6560 = vand.u32 %v285, 4294901760
    %v6561 = vsub.f32 %v285, %v6560
    %v6562 = vand.u32 %v6561, 4294901760
    %v6563 = vsub.f32 %v6561, %v6562
    %v6564 = vand.u32 %v6563, 4294901760
    %6565 = vmatpush1.msra.mxu0 %v6564
    %6566 = vmatprep.subr.mxu0 0.0
    %v6567 = vand.u32 %v286, 4294901760
    %v6568 = vsub.f32 %v286, %v6567
    %v6569 = vand.u32 %v6568, 4294901760
    %v6570 = vsub.f32 %v6568, %v6569
    %v6571 = vand.u32 %v6570, 4294901760
    %6572 = vmatpush1.msra.mxu0 %v6571
    %6573 = vmatprep.subr.mxu0 0.0
    %v6574 = vand.u32 %v287, 4294901760
    %v6575 = vsub.f32 %v287, %v6574
    %v6576 = vand.u32 %v6575, 4294901760
    %v6577 = vsub.f32 %v6575, %v6576
    %v6578 = vand.u32 %v6577, 4294901760
    %6579 = vmatpush1.msra.mxu0 %v6578
    %6580 = vmatprep.subr.mxu0 0.0
    %v6581 = vand.u32 %v288, 4294901760
    %v6582 = vsub.f32 %v288, %v6581
    %v6583 = vand.u32 %v6582, 4294901760
    %v6584 = vsub.f32 %v6582, %v6583
    %v6585 = vand.u32 %v6584, 4294901760
    %6586 = vmatpush1.msra.mxu0 %v6585
    %6587 = vmatprep.subr.mxu0 0.0
    %v6588 = vand.u32 %v289, 4294901760
    %v6589 = vsub.f32 %v289, %v6588
    %v6590 = vand.u32 %v6589, 4294901760
    %v6591 = vsub.f32 %v6589, %v6590
    %v6592 = vand.u32 %v6591, 4294901760
    %6593 = vmatpush1.msra.mxu0 %v6592
    %6594 = vmatprep.subr.mxu0 0.0
    %v6595 = vand.u32 %v290, 4294901760
    %v6596 = vsub.f32 %v290, %v6595
    %v6597 = vand.u32 %v6596, 4294901760
    %v6598 = vsub.f32 %v6596, %v6597
    %v6599 = vand.u32 %v6598, 4294901760
    %6600 = vmatpush1.msra.mxu0 %v6599
    %6601 = vmatprep.subr.mxu0 0.0
    %v6602 = vand.u32 %v291, 4294901760
    %v6603 = vsub.f32 %v291, %v6602
    %v6604 = vand.u32 %v6603, 4294901760
    %v6605 = vsub.f32 %v6603, %v6604
    %v6606 = vand.u32 %v6605, 4294901760
    %6607 = vmatpush1.msra.mxu0 %v6606
    %6608 = vmatprep.subr.mxu0 0.0
    %v6609 = vand.u32 %v292, 4294901760
    %v6610 = vsub.f32 %v292, %v6609
    %v6611 = vand.u32 %v6610, 4294901760
    %v6612 = vsub.f32 %v6610, %v6611
    %v6613 = vand.u32 %v6612, 4294901760
    %6614 = vmatpush1.msra.mxu0 %v6613
    %6615 = vmatprep.subr.mxu0 0.0
    %v6616 = vand.u32 %v293, 4294901760
    %v6617 = vsub.f32 %v293, %v6616
    %v6618 = vand.u32 %v6617, 4294901760
    %v6619 = vsub.f32 %v6617, %v6618
    %v6620 = vand.u32 %v6619, 4294901760
    %6621 = vmatpush1.msra.mxu0 %v6620
    %6622 = vmatprep.subr.mxu0 0.0
    %v6623 = vand.u32 %v294, 4294901760
    %v6624 = vsub.f32 %v294, %v6623
    %v6625 = vand.u32 %v6624, 4294901760
    %v6626 = vsub.f32 %v6624, %v6625
    %v6627 = vand.u32 %v6626, 4294901760
    %6628 = vmatpush1.msra.mxu0 %v6627
    %6629 = vmatprep.subr.mxu0 0.0
    %v6630 = vand.u32 %v295, 4294901760
    %v6631 = vsub.f32 %v295, %v6630
    %v6632 = vand.u32 %v6631, 4294901760
    %v6633 = vsub.f32 %v6631, %v6632
    %v6634 = vand.u32 %v6633, 4294901760
    %6635 = vmatpush1.msra.mxu0 %v6634
    %6636 = vmatprep.subr.mxu0 0.0
    %v6637 = vand.u32 %v296, 4294901760
    %v6638 = vsub.f32 %v296, %v6637
    %v6639 = vand.u32 %v6638, 4294901760
    %v6640 = vsub.f32 %v6638, %v6639
    %v6641 = vand.u32 %v6640, 4294901760
    %6642 = vmatpush1.msra.mxu0 %v6641
    %6643 = vmatprep.subr.mxu0 0.0
    %v6644 = vand.u32 %v297, 4294901760
    %v6645 = vsub.f32 %v297, %v6644
    %v6646 = vand.u32 %v6645, 4294901760
    %v6647 = vsub.f32 %v6645, %v6646
    %v6648 = vand.u32 %v6647, 4294901760
    %6649 = vmatpush1.msra.mxu0 %v6648
    %6650 = vmatprep.subr.mxu0 0.0
    %v6651 = vand.u32 %v298, 4294901760
    %v6652 = vsub.f32 %v298, %v6651
    %v6653 = vand.u32 %v6652, 4294901760
    %v6654 = vsub.f32 %v6652, %v6653
    %v6655 = vand.u32 %v6654, 4294901760
    %6656 = vmatpush1.msra.mxu0 %v6655
    %6657 = vmatprep.subr.mxu0 0.0
    %v6658 = vand.u32 %v299, 4294901760
    %v6659 = vsub.f32 %v299, %v6658
    %v6660 = vand.u32 %v6659, 4294901760
    %v6661 = vsub.f32 %v6659, %v6660
    %v6662 = vand.u32 %v6661, 4294901760
    %6663 = vmatpush1.msra.mxu0 %v6662
    %6664 = vmatprep.subr.mxu0 0.0
    %v6665 = vand.u32 %v300, 4294901760
    %v6666 = vsub.f32 %v300, %v6665
    %v6667 = vand.u32 %v6666, 4294901760
    %v6668 = vsub.f32 %v6666, %v6667
    %v6669 = vand.u32 %v6668, 4294901760
    %6670 = vmatpush1.msra.mxu0 %v6669
    %6671 = vmatprep.subr.mxu0 0.0
    %v6672 = vand.u32 %v301, 4294901760
    %v6673 = vsub.f32 %v301, %v6672
    %v6674 = vand.u32 %v6673, 4294901760
    %v6675 = vsub.f32 %v6673, %v6674
    %v6676 = vand.u32 %v6675, 4294901760
    %6677 = vmatpush1.msra.mxu0 %v6676
    %6678 = vmatprep.subr.mxu0 0.0
    %v6679 = vand.u32 %v302, 4294901760
    %v6680 = vsub.f32 %v302, %v6679
    %v6681 = vand.u32 %v6680, 4294901760
    %v6682 = vsub.f32 %v6680, %v6681
    %v6683 = vand.u32 %v6682, 4294901760
    %6684 = vmatpush1.msra.mxu0 %v6683
    %6685 = vmatprep.subr.mxu0 0.0
    %v6686 = vand.u32 %v303, 4294901760
    %v6687 = vsub.f32 %v303, %v6686
    %v6688 = vand.u32 %v6687, 4294901760
    %v6689 = vsub.f32 %v6687, %v6688
    %v6690 = vand.u32 %v6689, 4294901760
    %6691 = vmatpush1.msra.mxu0 %v6690
    %6692 = vmatprep.subr.mxu0 0.0
    %v6693 = vand.u32 %v304, 4294901760
    %v6694 = vsub.f32 %v304, %v6693
    %v6695 = vand.u32 %v6694, 4294901760
    %v6696 = vsub.f32 %v6694, %v6695
    %v6697 = vand.u32 %v6696, 4294901760
    %6698 = vmatpush1.msra.mxu0 %v6697
    %v6699 = vand.u32 %v320, 4294901760
    %6700 = vmatprep.mubr.f32.mxu0 %v6699
    %v6701 = vand.u32 %v48, 4294901760
    %6702 = vmatmul.mubr.f32.gmra.mrb[0].mxu0 %v6701
    %v6703 = vpop.f32.mrb[0].mxu0
    %v6704 = vadd.f32 %v6472, %v6703
    %v6705 = vpop.f32.mrb[0].mxu0
    %6706 = vdwg.mxu0
    %6707 = vmatprep.subr.mxu0 0.0
    %v6708 = vand.u32 %v273, 4294901760
    %v6709 = vsub.f32 %v273, %v6708
    %6710 = vmatpush1.msra.mxu0 %v6709
    %6711 = vmatprep.subr.mxu0 0.0
    %v6712 = vand.u32 %v274, 4294901760
    %v6713 = vsub.f32 %v274, %v6712
    %6714 = vmatpush1.msra.mxu0 %v6713
    %6715 = vmatprep.subr.mxu0 0.0
    %v6716 = vand.u32 %v275, 4294901760
    %v6717 = vsub.f32 %v275, %v6716
    %6718 = vmatpush1.msra.mxu0 %v6717
    %6719 = vmatprep.subr.mxu0 0.0
    %v6720 = vand.u32 %v276, 4294901760
    %v6721 = vsub.f32 %v276, %v6720
    %6722 = vmatpush1.msra.mxu0 %v6721
    %6723 = vmatprep.subr.mxu0 0.0
    %v6724 = vand.u32 %v277, 4294901760
    %v6725 = vsub.f32 %v277, %v6724
    %6726 = vmatpush1.msra.mxu0 %v6725
    %6727 = vmatprep.subr.mxu0 0.0
    %v6728 = vand.u32 %v278, 4294901760
    %v6729 = vsub.f32 %v278, %v6728
    %6730 = vmatpush1.msra.mxu0 %v6729
    %6731 = vmatprep.subr.mxu0 0.0
    %v6732 = vand.u32 %v279, 4294901760
    %v6733 = vsub.f32 %v279, %v6732
    %6734 = vmatpush1.msra.mxu0 %v6733
    %6735 = vmatprep.subr.mxu0 0.0
    %v6736 = vand.u32 %v280, 4294901760
    %v6737 = vsub.f32 %v280, %v6736
    %6738 = vmatpush1.msra.mxu0 %v6737
    %6739 = vmatprep.subr.mxu0 0.0
    %v6740 = vand.u32 %v281, 4294901760
    %v6741 = vsub.f32 %v281, %v6740
    %6742 = vmatpush1.msra.mxu0 %v6741
    %6743 = vmatprep.subr.mxu0 0.0
    %v6744 = vand.u32 %v282, 4294901760
    %v6745 = vsub.f32 %v282, %v6744
    %6746 = vmatpush1.msra.mxu0 %v6745
    %6747 = vmatprep.subr.mxu0 0.0
    %v6748 = vand.u32 %v283, 4294901760
    %v6749 = vsub.f32 %v283, %v6748
    %6750 = vmatpush1.msra.mxu0 %v6749
    %6751 = vmatprep.subr.mxu0 0.0
    %v6752 = vand.u32 %v284, 4294901760
    %v6753 = vsub.f32 %v284, %v6752
    %6754 = vmatpush1.msra.mxu0 %v6753
    %6755 = vmatprep.subr.mxu0 0.0
    %v6756 = vand.u32 %v285, 4294901760
    %v6757 = vsub.f32 %v285, %v6756
    %6758 = vmatpush1.msra.mxu0 %v6757
    %6759 = vmatprep.subr.mxu0 0.0
    %v6760 = vand.u32 %v286, 4294901760
    %v6761 = vsub.f32 %v286, %v6760
    %6762 = vmatpush1.msra.mxu0 %v6761
    %6763 = vmatprep.subr.mxu0 0.0
    %v6764 = vand.u32 %v287, 4294901760
    %v6765 = vsub.f32 %v287, %v6764
    %6766 = vmatpush1.msra.mxu0 %v6765
    %6767 = vmatprep.subr.mxu0 0.0
    %v6768 = vand.u32 %v288, 4294901760
    %v6769 = vsub.f32 %v288, %v6768
    %6770 = vmatpush1.msra.mxu0 %v6769
    %6771 = vmatprep.subr.mxu0 0.0
    %v6772 = vand.u32 %v289, 4294901760
    %v6773 = vsub.f32 %v289, %v6772
    %6774 = vmatpush1.msra.mxu0 %v6773
    %6775 = vmatprep.subr.mxu0 0.0
    %v6776 = vand.u32 %v290, 4294901760
    %v6777 = vsub.f32 %v290, %v6776
    %6778 = vmatpush1.msra.mxu0 %v6777
    %6779 = vmatprep.subr.mxu0 0.0
    %v6780 = vand.u32 %v291, 4294901760
    %v6781 = vsub.f32 %v291, %v6780
    %6782 = vmatpush1.msra.mxu0 %v6781
    %6783 = vmatprep.subr.mxu0 0.0
    %v6784 = vand.u32 %v292, 4294901760
    %v6785 = vsub.f32 %v292, %v6784
    %6786 = vmatpush1.msra.mxu0 %v6785
    %6787 = vmatprep.subr.mxu0 0.0
    %v6788 = vand.u32 %v293, 4294901760
    %v6789 = vsub.f32 %v293, %v6788
    %6790 = vmatpush1.msra.mxu0 %v6789
    %6791 = vmatprep.subr.mxu0 0.0
    %v6792 = vand.u32 %v294, 4294901760
    %v6793 = vsub.f32 %v294, %v6792
    %6794 = vmatpush1.msra.mxu0 %v6793
    %6795 = vmatprep.subr.mxu0 0.0
    %v6796 = vand.u32 %v295, 4294901760
    %v6797 = vsub.f32 %v295, %v6796
    %6798 = vmatpush1.msra.mxu0 %v6797
    %6799 = vmatprep.subr.mxu0 0.0
    %v6800 = vand.u32 %v296, 4294901760
    %v6801 = vsub.f32 %v296, %v6800
    %6802 = vmatpush1.msra.mxu0 %v6801
    %6803 = vmatprep.subr.mxu0 0.0
    %v6804 = vand.u32 %v297, 4294901760
    %v6805 = vsub.f32 %v297, %v6804
    %6806 = vmatpush1.msra.mxu0 %v6805
    %6807 = vmatprep.subr.mxu0 0.0
    %v6808 = vand.u32 %v298, 4294901760
    %v6809 = vsub.f32 %v298, %v6808
    %6810 = vmatpush1.msra.mxu0 %v6809
    %6811 = vmatprep.subr.mxu0 0.0
    %v6812 = vand.u32 %v299, 4294901760
    %v6813 = vsub.f32 %v299, %v6812
    %6814 = vmatpush1.msra.mxu0 %v6813
    %6815 = vmatprep.subr.mxu0 0.0
    %v6816 = vand.u32 %v300, 4294901760
    %v6817 = vsub.f32 %v300, %v6816
    %6818 = vmatpush1.msra.mxu0 %v6817
    %6819 = vmatprep.subr.mxu0 0.0
    %v6820 = vand.u32 %v301, 4294901760
    %v6821 = vsub.f32 %v301, %v6820
    %6822 = vmatpush1.msra.mxu0 %v6821
    %6823 = vmatprep.subr.mxu0 0.0
    %v6824 = vand.u32 %v302, 4294901760
    %v6825 = vsub.f32 %v302, %v6824
    %6826 = vmatpush1.msra.mxu0 %v6825
    %6827 = vmatprep.subr.mxu0 0.0
    %v6828 = vand.u32 %v303, 4294901760
    %v6829 = vsub.f32 %v303, %v6828
    %6830 = vmatpush1.msra.mxu0 %v6829
    %6831 = vmatprep.subr.mxu0 0.0
    %v6832 = vand.u32 %v304, 4294901760
    %v6833 = vsub.f32 %v304, %v6832
    %6834 = vmatpush1.msra.mxu0 %v6833
    %v6835 = vand.u32 %v320, 4294901760
    %v6836 = vsub.f32 %v320, %v6835
    %6837 = vmatprep.mubr.f32.mxu0 %v6836
    %v6838 = vand.u32 %v48, 4294901760
    %v6839 = vsub.f32 %v48, %v6838
    %6840 = vmatmul.mubr.f32.gmra.mrb[0].mxu0 %v6839
    %v6841 = vpop.f32.mrb[0].mxu0
    %v6842 = vadd.f32 %v6704, %v6841
    %v6843 = vpop.f32.mrb[0].mxu0
    %6844 = vdwg.mxu0
    %6845 = vmatprep.subr.mxu0 0.0
    %v6846 = vand.u32 %v273, 4294901760
    %6847 = vmatpush1.msra.mxu0 %v6846
    %6848 = vmatprep.subr.mxu0 0.0
    %v6849 = vand.u32 %v274, 4294901760
    %6850 = vmatpush1.msra.mxu0 %v6849
    %6851 = vmatprep.subr.mxu0 0.0
    %v6852 = vand.u32 %v275, 4294901760
    %6853 = vmatpush1.msra.mxu0 %v6852
    %6854 = vmatprep.subr.mxu0 0.0
    %v6855 = vand.u32 %v276, 4294901760
    %6856 = vmatpush1.msra.mxu0 %v6855
    %6857 = vmatprep.subr.mxu0 0.0
    %v6858 = vand.u32 %v277, 4294901760
    %6859 = vmatpush1.msra.mxu0 %v6858
    %6860 = vmatprep.subr.mxu0 0.0
    %v6861 = vand.u32 %v278, 4294901760
    %6862 = vmatpush1.msra.mxu0 %v6861
    %6863 = vmatprep.subr.mxu0 0.0
    %v6864 = vand.u32 %v279, 4294901760
    %6865 = vmatpush1.msra.mxu0 %v6864
    %6866 = vmatprep.subr.mxu0 0.0
    %v6867 = vand.u32 %v280, 4294901760
    %6868 = vmatpush1.msra.mxu0 %v6867
    %6869 = vmatprep.subr.mxu0 0.0
    %v6870 = vand.u32 %v281, 4294901760
    %6871 = vmatpush1.msra.mxu0 %v6870
    %6872 = vmatprep.subr.mxu0 0.0
    %v6873 = vand.u32 %v282, 4294901760
    %6874 = vmatpush1.msra.mxu0 %v6873
    %6875 = vmatprep.subr.mxu0 0.0
    %v6876 = vand.u32 %v283, 4294901760
    %6877 = vmatpush1.msra.mxu0 %v6876
    %6878 = vmatprep.subr.mxu0 0.0
    %v6879 = vand.u32 %v284, 4294901760
    %6880 = vmatpush1.msra.mxu0 %v6879
    %6881 = vmatprep.subr.mxu0 0.0
    %v6882 = vand.u32 %v285, 4294901760
    %6883 = vmatpush1.msra.mxu0 %v6882
    %6884 = vmatprep.subr.mxu0 0.0
    %v6885 = vand.u32 %v286, 4294901760
    %6886 = vmatpush1.msra.mxu0 %v6885
    %6887 = vmatprep.subr.mxu0 0.0
    %v6888 = vand.u32 %v287, 4294901760
    %6889 = vmatpush1.msra.mxu0 %v6888
    %6890 = vmatprep.subr.mxu0 0.0
    %v6891 = vand.u32 %v288, 4294901760
    %6892 = vmatpush1.msra.mxu0 %v6891
    %6893 = vmatprep.subr.mxu0 0.0
    %v6894 = vand.u32 %v289, 4294901760
    %6895 = vmatpush1.msra.mxu0 %v6894
    %6896 = vmatprep.subr.mxu0 0.0
    %v6897 = vand.u32 %v290, 4294901760
    %6898 = vmatpush1.msra.mxu0 %v6897
    %6899 = vmatprep.subr.mxu0 0.0
    %v6900 = vand.u32 %v291, 4294901760
    %6901 = vmatpush1.msra.mxu0 %v6900
    %6902 = vmatprep.subr.mxu0 0.0
    %v6903 = vand.u32 %v292, 4294901760
    %6904 = vmatpush1.msra.mxu0 %v6903
    %6905 = vmatprep.subr.mxu0 0.0
    %v6906 = vand.u32 %v293, 4294901760
    %6907 = vmatpush1.msra.mxu0 %v6906
    %6908 = vmatprep.subr.mxu0 0.0
    %v6909 = vand.u32 %v294, 4294901760
    %6910 = vmatpush1.msra.mxu0 %v6909
    %6911 = vmatprep.subr.mxu0 0.0
    %v6912 = vand.u32 %v295, 4294901760
    %6913 = vmatpush1.msra.mxu0 %v6912
    %6914 = vmatprep.subr.mxu0 0.0
    %v6915 = vand.u32 %v296, 4294901760
    %6916 = vmatpush1.msra.mxu0 %v6915
    %6917 = vmatprep.subr.mxu0 0.0
    %v6918 = vand.u32 %v297, 4294901760
    %6919 = vmatpush1.msra.mxu0 %v6918
    %6920 = vmatprep.subr.mxu0 0.0
    %v6921 = vand.u32 %v298, 4294901760
    %6922 = vmatpush1.msra.mxu0 %v6921
    %6923 = vmatprep.subr.mxu0 0.0
    %v6924 = vand.u32 %v299, 4294901760
    %6925 = vmatpush1.msra.mxu0 %v6924
    %6926 = vmatprep.subr.mxu0 0.0
    %v6927 = vand.u32 %v300, 4294901760
    %6928 = vmatpush1.msra.mxu0 %v6927
    %6929 = vmatprep.subr.mxu0 0.0
    %v6930 = vand.u32 %v301, 4294901760
    %6931 = vmatpush1.msra.mxu0 %v6930
    %6932 = vmatprep.subr.mxu0 0.0
    %v6933 = vand.u32 %v302, 4294901760
    %6934 = vmatpush1.msra.mxu0 %v6933
    %6935 = vmatprep.subr.mxu0 0.0
    %v6936 = vand.u32 %v303, 4294901760
    %6937 = vmatpush1.msra.mxu0 %v6936
    %6938 = vmatprep.subr.mxu0 0.0
    %v6939 = vand.u32 %v304, 4294901760
    %6940 = vmatpush1.msra.mxu0 %v6939
    %v6941 = vand.u32 %v320, 4294901760
    %v6942 = vsub.f32 %v320, %v6941
    %v6943 = vand.u32 %v6942, 4294901760
    %6944 = vmatprep.mubr.f32.mxu0 %v6943
    %v6945 = vand.u32 %v48, 4294901760
    %v6946 = vsub.f32 %v48, %v6945
    %v6947 = vand.u32 %v6946, 4294901760
    %6948 = vmatmul.mubr.f32.gmra.mrb[0].mxu0 %v6947
    %v6949 = vpop.f32.mrb[0].mxu0
    %v6950 = vadd.f32 %v6842, %v6949
    %v6951 = vpop.f32.mrb[0].mxu0
    %6952 = vdwg.mxu0
    %6953 = vmatprep.subr.mxu0 0.0
    %v6954 = vand.u32 %v273, 4294901760
    %v6955 = vsub.f32 %v273, %v6954
    %v6956 = vand.u32 %v6955, 4294901760
    %6957 = vmatpush1.msra.mxu0 %v6956
    %6958 = vmatprep.subr.mxu0 0.0
    %v6959 = vand.u32 %v274, 4294901760
    %v6960 = vsub.f32 %v274, %v6959
    %v6961 = vand.u32 %v6960, 4294901760
    %6962 = vmatpush1.msra.mxu0 %v6961
    %6963 = vmatprep.subr.mxu0 0.0
    %v6964 = vand.u32 %v275, 4294901760
    %v6965 = vsub.f32 %v275, %v6964
    %v6966 = vand.u32 %v6965, 4294901760
    %6967 = vmatpush1.msra.mxu0 %v6966
    %6968 = vmatprep.subr.mxu0 0.0
    %v6969 = vand.u32 %v276, 4294901760
    %v6970 = vsub.f32 %v276, %v6969
    %v6971 = vand.u32 %v6970, 4294901760
    %6972 = vmatpush1.msra.mxu0 %v6971
    %6973 = vmatprep.subr.mxu0 0.0
    %v6974 = vand.u32 %v277, 4294901760
    %v6975 = vsub.f32 %v277, %v6974
    %v6976 = vand.u32 %v6975, 4294901760
    %6977 = vmatpush1.msra.mxu0 %v6976
    %6978 = vmatprep.subr.mxu0 0.0
    %v6979 = vand.u32 %v278, 4294901760
    %v6980 = vsub.f32 %v278, %v6979
    %v6981 = vand.u32 %v6980, 4294901760
    %6982 = vmatpush1.msra.mxu0 %v6981
    %6983 = vmatprep.subr.mxu0 0.0
    %v6984 = vand.u32 %v279, 4294901760
    %v6985 = vsub.f32 %v279, %v6984
    %v6986 = vand.u32 %v6985, 4294901760
    %6987 = vmatpush1.msra.mxu0 %v6986
    %6988 = vmatprep.subr.mxu0 0.0
    %v6989 = vand.u32 %v280, 4294901760
    %v6990 = vsub.f32 %v280, %v6989
    %v6991 = vand.u32 %v6990, 4294901760
    %6992 = vmatpush1.msra.mxu0 %v6991
    %6993 = vmatprep.subr.mxu0 0.0
    %v6994 = vand.u32 %v281, 4294901760
    %v6995 = vsub.f32 %v281, %v6994
    %v6996 = vand.u32 %v6995, 4294901760
    %6997 = vmatpush1.msra.mxu0 %v6996
    %6998 = vmatprep.subr.mxu0 0.0
    %v6999 = vand.u32 %v282, 4294901760
    %v7000 = vsub.f32 %v282, %v6999
    %v7001 = vand.u32 %v7000, 4294901760
    %7002 = vmatpush1.msra.mxu0 %v7001
    %7003 = vmatprep.subr.mxu0 0.0
    %v7004 = vand.u32 %v283, 4294901760
    %v7005 = vsub.f32 %v283, %v7004
    %v7006 = vand.u32 %v7005, 4294901760
    %7007 = vmatpush1.msra.mxu0 %v7006
    %7008 = vmatprep.subr.mxu0 0.0
    %v7009 = vand.u32 %v284, 4294901760
    %v7010 = vsub.f32 %v284, %v7009
    %v7011 = vand.u32 %v7010, 4294901760
    %7012 = vmatpush1.msra.mxu0 %v7011
    %7013 = vmatprep.subr.mxu0 0.0
    %v7014 = vand.u32 %v285, 4294901760
    %v7015 = vsub.f32 %v285, %v7014
    %v7016 = vand.u32 %v7015, 4294901760
    %7017 = vmatpush1.msra.mxu0 %v7016
    %7018 = vmatprep.subr.mxu0 0.0
    %v7019 = vand.u32 %v286, 4294901760
    %v7020 = vsub.f32 %v286, %v7019
    %v7021 = vand.u32 %v7020, 4294901760
    %7022 = vmatpush1.msra.mxu0 %v7021
    %7023 = vmatprep.subr.mxu0 0.0
    %v7024 = vand.u32 %v287, 4294901760
    %v7025 = vsub.f32 %v287, %v7024
    %v7026 = vand.u32 %v7025, 4294901760
    %7027 = vmatpush1.msra.mxu0 %v7026
    %7028 = vmatprep.subr.mxu0 0.0
    %v7029 = vand.u32 %v288, 4294901760
    %v7030 = vsub.f32 %v288, %v7029
    %v7031 = vand.u32 %v7030, 4294901760
    %7032 = vmatpush1.msra.mxu0 %v7031
    %7033 = vmatprep.subr.mxu0 0.0
    %v7034 = vand.u32 %v289, 4294901760
    %v7035 = vsub.f32 %v289, %v7034
    %v7036 = vand.u32 %v7035, 4294901760
    %7037 = vmatpush1.msra.mxu0 %v7036
    %7038 = vmatprep.subr.mxu0 0.0
    %v7039 = vand.u32 %v290, 4294901760
    %v7040 = vsub.f32 %v290, %v7039
    %v7041 = vand.u32 %v7040, 4294901760
    %7042 = vmatpush1.msra.mxu0 %v7041
    %7043 = vmatprep.subr.mxu0 0.0
    %v7044 = vand.u32 %v291, 4294901760
    %v7045 = vsub.f32 %v291, %v7044
    %v7046 = vand.u32 %v7045, 4294901760
    %7047 = vmatpush1.msra.mxu0 %v7046
    %7048 = vmatprep.subr.mxu0 0.0
    %v7049 = vand.u32 %v292, 4294901760
    %v7050 = vsub.f32 %v292, %v7049
    %v7051 = vand.u32 %v7050, 4294901760
    %7052 = vmatpush1.msra.mxu0 %v7051
    %7053 = vmatprep.subr.mxu0 0.0
    %v7054 = vand.u32 %v293, 4294901760
    %v7055 = vsub.f32 %v293, %v7054
    %v7056 = vand.u32 %v7055, 4294901760
    %7057 = vmatpush1.msra.mxu0 %v7056
    %7058 = vmatprep.subr.mxu0 0.0
    %v7059 = vand.u32 %v294, 4294901760
    %v7060 = vsub.f32 %v294, %v7059
    %v7061 = vand.u32 %v7060, 4294901760
    %7062 = vmatpush1.msra.mxu0 %v7061
    %7063 = vmatprep.subr.mxu0 0.0
    %v7064 = vand.u32 %v295, 4294901760
    %v7065 = vsub.f32 %v295, %v7064
    %v7066 = vand.u32 %v7065, 4294901760
    %7067 = vmatpush1.msra.mxu0 %v7066
    %7068 = vmatprep.subr.mxu0 0.0
    %v7069 = vand.u32 %v296, 4294901760
    %v7070 = vsub.f32 %v296, %v7069
    %v7071 = vand.u32 %v7070, 4294901760
    %7072 = vmatpush1.msra.mxu0 %v7071
    %7073 = vmatprep.subr.mxu0 0.0
    %v7074 = vand.u32 %v297, 4294901760
    %v7075 = vsub.f32 %v297, %v7074
    %v7076 = vand.u32 %v7075, 4294901760
    %7077 = vmatpush1.msra.mxu0 %v7076
    %7078 = vmatprep.subr.mxu0 0.0
    %v7079 = vand.u32 %v298, 4294901760
    %v7080 = vsub.f32 %v298, %v7079
    %v7081 = vand.u32 %v7080, 4294901760
    %7082 = vmatpush1.msra.mxu0 %v7081
    %7083 = vmatprep.subr.mxu0 0.0
    %v7084 = vand.u32 %v299, 4294901760
    %v7085 = vsub.f32 %v299, %v7084
    %v7086 = vand.u32 %v7085, 4294901760
    %7087 = vmatpush1.msra.mxu0 %v7086
    %7088 = vmatprep.subr.mxu0 0.0
    %v7089 = vand.u32 %v300, 4294901760
    %v7090 = vsub.f32 %v300, %v7089
    %v7091 = vand.u32 %v7090, 4294901760
    %7092 = vmatpush1.msra.mxu0 %v7091
    %7093 = vmatprep.subr.mxu0 0.0
    %v7094 = vand.u32 %v301, 4294901760
    %v7095 = vsub.f32 %v301, %v7094
    %v7096 = vand.u32 %v7095, 4294901760
    %7097 = vmatpush1.msra.mxu0 %v7096
    %7098 = vmatprep.subr.mxu0 0.0
    %v7099 = vand.u32 %v302, 4294901760
    %v7100 = vsub.f32 %v302, %v7099
    %v7101 = vand.u32 %v7100, 4294901760
    %7102 = vmatpush1.msra.mxu0 %v7101
    %7103 = vmatprep.subr.mxu0 0.0
    %v7104 = vand.u32 %v303, 4294901760
    %v7105 = vsub.f32 %v303, %v7104
    %v7106 = vand.u32 %v7105, 4294901760
    %7107 = vmatpush1.msra.mxu0 %v7106
    %7108 = vmatprep.subr.mxu0 0.0
    %v7109 = vand.u32 %v304, 4294901760
    %v7110 = vsub.f32 %v304, %v7109
    %v7111 = vand.u32 %v7110, 4294901760
    %7112 = vmatpush1.msra.mxu0 %v7111
    %v7113 = vand.u32 %v320, 4294901760
    %7114 = vmatprep.mubr.f32.mxu0 %v7113
    %v7115 = vand.u32 %v48, 4294901760
    %7116 = vmatmul.mubr.f32.gmra.mrb[0].mxu0 %v7115
    %v7117 = vpop.f32.mrb[0].mxu0
    %v7118 = vadd.f32 %v6950, %v7117
    %v7119 = vpop.f32.mrb[0].mxu0
    %7120 = vdwg.mxu0
    %7121 = vmatprep.subr.mxu0 0.0
    %v7122 = vand.u32 %v273, 4294901760
    %7123 = vmatpush1.msra.mxu0 %v7122
    %7124 = vmatprep.subr.mxu0 0.0
    %v7125 = vand.u32 %v274, 4294901760
    %7126 = vmatpush1.msra.mxu0 %v7125
    %7127 = vmatprep.subr.mxu0 0.0
    %v7128 = vand.u32 %v275, 4294901760
    %7129 = vmatpush1.msra.mxu0 %v7128
    %7130 = vmatprep.subr.mxu0 0.0
    %v7131 = vand.u32 %v276, 4294901760
    %7132 = vmatpush1.msra.mxu0 %v7131
    %7133 = vmatprep.subr.mxu0 0.0
    %v7134 = vand.u32 %v277, 4294901760
    %7135 = vmatpush1.msra.mxu0 %v7134
    %7136 = vmatprep.subr.mxu0 0.0
    %v7137 = vand.u32 %v278, 4294901760
    %7138 = vmatpush1.msra.mxu0 %v7137
    %7139 = vmatprep.subr.mxu0 0.0
    %v7140 = vand.u32 %v279, 4294901760
    %7141 = vmatpush1.msra.mxu0 %v7140
    %7142 = vmatprep.subr.mxu0 0.0
    %v7143 = vand.u32 %v280, 4294901760
    %7144 = vmatpush1.msra.mxu0 %v7143
    %7145 = vmatprep.subr.mxu0 0.0
    %v7146 = vand.u32 %v281, 4294901760
    %7147 = vmatpush1.msra.mxu0 %v7146
    %7148 = vmatprep.subr.mxu0 0.0
    %v7149 = vand.u32 %v282, 4294901760
    %7150 = vmatpush1.msra.mxu0 %v7149
    %7151 = vmatprep.subr.mxu0 0.0
    %v7152 = vand.u32 %v283, 4294901760
    %7153 = vmatpush1.msra.mxu0 %v7152
    %7154 = vmatprep.subr.mxu0 0.0
    %v7155 = vand.u32 %v284, 4294901760
    %7156 = vmatpush1.msra.mxu0 %v7155
    %7157 = vmatprep.subr.mxu0 0.0
    %v7158 = vand.u32 %v285, 4294901760
    %7159 = vmatpush1.msra.mxu0 %v7158
    %7160 = vmatprep.subr.mxu0 0.0
    %v7161 = vand.u32 %v286, 4294901760
    %7162 = vmatpush1.msra.mxu0 %v7161
    %7163 = vmatprep.subr.mxu0 0.0
    %v7164 = vand.u32 %v287, 4294901760
    %7165 = vmatpush1.msra.mxu0 %v7164
    %7166 = vmatprep.subr.mxu0 0.0
    %v7167 = vand.u32 %v288, 4294901760
    %7168 = vmatpush1.msra.mxu0 %v7167
    %7169 = vmatprep.subr.mxu0 0.0
    %v7170 = vand.u32 %v289, 4294901760
    %7171 = vmatpush1.msra.mxu0 %v7170
    %7172 = vmatprep.subr.mxu0 0.0
    %v7173 = vand.u32 %v290, 4294901760
    %7174 = vmatpush1.msra.mxu0 %v7173
    %7175 = vmatprep.subr.mxu0 0.0
    %v7176 = vand.u32 %v291, 4294901760
    %7177 = vmatpush1.msra.mxu0 %v7176
    %7178 = vmatprep.subr.mxu0 0.0
    %v7179 = vand.u32 %v292, 4294901760
    %7180 = vmatpush1.msra.mxu0 %v7179
    %7181 = vmatprep.subr.mxu0 0.0
    %v7182 = vand.u32 %v293, 4294901760
    %7183 = vmatpush1.msra.mxu0 %v7182
    %7184 = vmatprep.subr.mxu0 0.0
    %v7185 = vand.u32 %v294, 4294901760
    %7186 = vmatpush1.msra.mxu0 %v7185
    %7187 = vmatprep.subr.mxu0 0.0
    %v7188 = vand.u32 %v295, 4294901760
    %7189 = vmatpush1.msra.mxu0 %v7188
    %7190 = vmatprep.subr.mxu0 0.0
    %v7191 = vand.u32 %v296, 4294901760
    %7192 = vmatpush1.msra.mxu0 %v7191
    %7193 = vmatprep.subr.mxu0 0.0
    %v7194 = vand.u32 %v297, 4294901760
    %7195 = vmatpush1.msra.mxu0 %v7194
    %7196 = vmatprep.subr.mxu0 0.0
    %v7197 = vand.u32 %v298, 4294901760
    %7198 = vmatpush1.msra.mxu0 %v7197
    %7199 = vmatprep.subr.mxu0 0.0
    %v7200 = vand.u32 %v299, 4294901760
    %7201 = vmatpush1.msra.mxu0 %v7200
    %7202 = vmatprep.subr.mxu0 0.0
    %v7203 = vand.u32 %v300, 4294901760
    %7204 = vmatpush1.msra.mxu0 %v7203
    %7205 = vmatprep.subr.mxu0 0.0
    %v7206 = vand.u32 %v301, 4294901760
    %7207 = vmatpush1.msra.mxu0 %v7206
    %7208 = vmatprep.subr.mxu0 0.0
    %v7209 = vand.u32 %v302, 4294901760
    %7210 = vmatpush1.msra.mxu0 %v7209
    %7211 = vmatprep.subr.mxu0 0.0
    %v7212 = vand.u32 %v303, 4294901760
    %7213 = vmatpush1.msra.mxu0 %v7212
    %7214 = vmatprep.subr.mxu0 0.0
    %v7215 = vand.u32 %v304, 4294901760
    %7216 = vmatpush1.msra.mxu0 %v7215
    %v7217 = vand.u32 %v320, 4294901760
    %7218 = vmatprep.mubr.f32.mxu0 %v7217
    %v7219 = vand.u32 %v48, 4294901760
    %7220 = vmatmul.mubr.f32.gmra.mrb[0].mxu0 %v7219
    %v7221 = vpop.f32.mrb[0].mxu0
    %v7222 = vadd.f32 %v7118, %v7221
    %v7223 = vpop.f32.mrb[0].mxu0
    %7224 = vdwg.mxu0
    %v7225 = vld [vmem:[%s2] sm:$0xf]
    %v7226 = vmul.f32 %v7222, %v7225
    %7227 = vst [vmem:[#allocation7] sm:$0xf] %v7226
    // Predicated region
    $region22: #{tpu_custom_call.1} parent=1 // pred_check
      _
    $region23: #{tpu_custom_call.1} parent=1 // pred_check_branch
      %7229 = sbr.rel (0) target = $region25
    $region24: #{tpu_custom_call.1} parent=1 // pred_region
      %s7231 = ssub.s32 64, 64
      %7232 = vsyncadd [#allocation4], %s7231
      %s7234 = sshll.u32 [#allocation7], 4
      %s7235 = int_to_ptr.vmem [resolvable:$true] %s7234
      %7237 = dma.vmem_to_hbm [thread:$0]  %s7235, 64, %s3, [#allocation4]
    $region25: #{tpu_custom_call.1} parent=1 // pred_fallthru
      _
    // Predicated region
    $region26: #{tpu_custom_call.1} parent=1 // pred_check
      _
    $region27: #{tpu_custom_call.1} parent=1 // pred_check_branch
      %7239 = sbr.rel (0) target = $region29
    $region28: #{tpu_custom_call.1} parent=1 // pred_region
      %7240 = dma.done [#allocation4], 64
    $region29: #{tpu_custom_call.1} parent=1 // pred_fallthru
      _
    %7241 = vsyncpa [#allocation3], 1
    %7242 = vsyncpa [#allocation6], 1
    %7243 = vsyncpa [#allocation4], 1

</llo_original>
